<compile_context>
chip_gen: v7x
topology: tpu7x:2x2x1
jax: 0.10.0
libtpu: 0.0.40
codegen_flags: <defaults>
</compile_context>

<pallas_src>
import jax
import jax.numpy as jnp
from jax.experimental import pallas as pl
from jax.experimental.pallas import tpu as pltpu


N_GF_LAYERS = 3
N_HEAD_LAYERS = 7


# ----------------------------------------------------------------------------
# Fused kernel: whole DANN forward for one head per grid step.
# refs = (x, gf_w1, gf_b1, ..., gf_w3, gf_b3, hw1, hb1, ..., hw7, hb7, out)
# ----------------------------------------------------------------------------
def _dann_fused_kernel(*refs):
    x_ref = refs[0]
    gf = refs[1:1 + 2 * N_GF_LAYERS]
    hd = refs[1 + 2 * N_GF_LAYERS:1 + 2 * (N_GF_LAYERS + N_HEAD_LAYERS)]
    o_ref = refs[-1]

    def linear(h, w_ref, b_ref):
        # bf16 x bf16 -> f32 accumulate on the MXU.
        return jnp.dot(h.astype(jnp.bfloat16), w_ref[...],
                       preferred_element_type=jnp.float32) + b_ref[...]

    # --- Gf feature extractor: 3 x (Linear + Tanh).  Tiny; recomputed per head.
    h = x_ref[...]
    for i in range(N_GF_LAYERS):
        h = jnp.tanh(linear(h, gf[2 * i], gf[2 * i + 1]))

    # --- Gradient reversal is identity in forward; head body: 6 x (Linear+Tanh).
    for i in range(N_HEAD_LAYERS - 1):
        h = jnp.tanh(linear(h, hd[2 * i], hd[2 * i + 1]))

    # --- final Linear (zero-padded to the lane-dense output slab width).
    z = linear(h, hd[2 * (N_HEAD_LAYERS - 1)], hd[2 * (N_HEAD_LAYERS - 1) + 1])

    head_id = pl.program_id(0)

    @pl.when(head_id == 0)            # Gy: raw regression output.
    def _():
        o_ref[...] = z

    @pl.when(head_id == 1)            # Gd: LogSoftmax over the 2 real logits.
    def _():
        lane = jax.lax.broadcasted_iota(jnp.int32, z.shape, 1)
        valid = lane < 2
        zm = jnp.where(valid, z, -jnp.inf)
        m = jnp.max(zm, axis=-1, keepdims=True)
        s = zm - m
        lse = jnp.log(jnp.sum(jnp.exp(s), axis=-1, keepdims=True))
        o_ref[...] = jnp.where(valid, s - lse, 0.0)


# ----------------------------------------------------------------------------
# Forward wrapper: one pallas_call for the whole network.
# ----------------------------------------------------------------------------
def dann_forward(packed, x, lamb):
    """x: (B, m) f32.  Returns (regression (B, n), log-domain (B, 2))."""
    del lamb  # GradientReverse is identity in the forward pass.
    B, _ = x.shape
    out_pad = packed["out_pad"]
    n = packed["n"]

    flat_inputs = [x]
    in_specs = [pl.BlockSpec(x.shape, lambda h: (0, 0))]
    for w, b in zip(packed["gf_w"], packed["gf_b"]):
        flat_inputs += [w, b]
        in_specs += [pl.BlockSpec(w.shape, lambda h: (0, 0)),
                     pl.BlockSpec(b.shape, lambda h: (0, 0))]
    for w, b in zip(packed["head_w"], packed["head_b"]):
        flat_inputs += [w, b]
        in_specs += [pl.BlockSpec((None,) + w.shape[1:], lambda h: (h, 0, 0)),
                     pl.BlockSpec((None,) + b.shape[1:], lambda h: (h, 0, 0))]

    out = pl.pallas_call(
        _dann_fused_kernel,
        out_shape=jax.ShapeDtypeStruct((2, B, out_pad), jnp.float32),
        grid=(2,),
        in_specs=in_specs,
        out_specs=pl.BlockSpec((None, B, out_pad), lambda h: (h, 0, 0)),
        compiler_params=pltpu.CompilerParams(
            dimension_semantics=("parallel",)),   # heads -> 2 TCs on v7x
    )(*flat_inputs)

    regression = out[0, :, :n]
    domain_classification = out[1, :, :2]
    return regression, domain_classification


# ----------------------------------------------------------------------------
# Parameter construction (deterministic, PyTorch nn.Linear-style init)
# ----------------------------------------------------------------------------
def _init_linear(key, fan_in, fan_out):
    kw, kb = jax.random.split(key)
    bound = 1.0 / jnp.sqrt(jnp.float32(fan_in))
    w = jax.random.uniform(kw, (fan_in, fan_out), jnp.float32, -bound, bound)
    b = jax.random.uniform(kb, (fan_out,), jnp.float32, -bound, bound)
    return w, b


def make_dann_params(key, m, r, n):
    fc1_n = int(0.9 * m)
    fc2_n = int(0.85 * m)
    fc3_n = int(r * m)

    gf_dims = [(m, fc1_n), (fc1_n, fc2_n), (fc2_n, fc3_n)]
    gy_dims = [(fc3_n, 2048), (2048, 1024), (1024, 512), (512, 256),
               (256, 128), (128, 64), (64, n)]
    gd_dims = [(fc3_n, 2048), (2048, 1024), (1024, 512), (512, 256),
               (256, 128), (128, 64), (64, 2)]

    keys = jax.random.split(key, len(gf_dims) + len(gy_dims) + len(gd_dims))
    ki = iter(keys)
    return {
        "Gf": [_init_linear(next(ki), a, b) for a, b in gf_dims],
        "Gy": [_init_linear(next(ki), a, b) for a, b in gy_dims],
        "Gd": [_init_linear(next(ki), a, b) for a, b in gd_dims],
    }


def pack_dann_params(params):
    """Cast to kernel dtypes, stack the two heads, pad the last layer lane-dense."""
    n = params["Gy"][-1][0].shape[1]
    out_pad = ((max(n, 2) + 127) // 128) * 128

    gf_w = [w.astype(jnp.bfloat16) for w, _ in params["Gf"]]
    gf_b = [b.reshape(1, -1).astype(jnp.float32) for _, b in params["Gf"]]

    head_w, head_b = [], []
    for i in range(N_HEAD_LAYERS):
        wy, by = params["Gy"][i]
        wd, bd = params["Gd"][i]
        if i == N_HEAD_LAYERS - 1:
            wy = jnp.pad(wy, ((0, 0), (0, out_pad - wy.shape[1])))
            wd = jnp.pad(wd, ((0, 0), (0, out_pad - wd.shape[1])))
            by = jnp.pad(by, (0, out_pad - by.shape[0]))
            bd = jnp.pad(bd, (0, out_pad - bd.shape[0]))
        head_w.append(jnp.stack([wy, wd]).astype(jnp.bfloat16))
        head_b.append(jnp.stack([by, bd]).reshape(2, 1, -1).astype(jnp.float32))

    return {"gf_w": gf_w, "gf_b": gf_b, "head_w": head_w, "head_b": head_b,
            "n": n, "out_pad": out_pad}


# ----------------------------------------------------------------------------
# Pure-JAX reference (same bf16 weights / f32 accumulation) for validation
# ----------------------------------------------------------------------------
def dann_reference(packed, x):
    def lin(h, w, b):
        return jnp.dot(h.astype(jnp.bfloat16), w,
                       preferred_element_type=jnp.float32) + b

    h = x
    for w, b in zip(packed["gf_w"], packed["gf_b"]):
        h = jnp.tanh(lin(h, w, b))
    feat = h

    outs = []
    for head in (0, 1):
        h = feat
        for i in range(N_HEAD_LAYERS - 1):
            h = jnp.tanh(lin(h, packed["head_w"][i][head],
                             packed["head_b"][i][head]))
        z = lin(h, packed["head_w"][-1][head], packed["head_b"][-1][head])
        outs.append(z)

    n = packed["n"]
    reg = outs[0][:, :n]
    dom = jax.nn.log_softmax(outs[1][:, :2], axis=1)
    return reg, dom


# ----------------------------------------------------------------------------
# Demo
# ----------------------------------------------------------------------------
if __name__ == "__main__":
    m, r, n = 40, 0.8, 4          # fc1=36, fc2=34, fc3=32
    batch = 8
    lamb = 0.5

    key = jax.random.PRNGKey(0)
    pkey, xkey = jax.random.split(key)
    params = make_dann_params(pkey, m, r, n)
    packed = pack_dann_params(params)
    x = jax.random.normal(xkey, (batch, m), jnp.float32)

    regression, domain = dann_forward(packed, x, lamb)
    jax.block_until_ready((regression, domain))

    assert regression.shape == (batch, n)
    assert domain.shape == (batch, 2)
    # log_softmax rows should sum (in prob space) to ~1
    assert bool(jnp.allclose(jnp.sum(jnp.exp(domain), axis=1), 1.0, atol=1e-5))

    # Compare against a pure-JAX reference with identical dtypes.
    reg_ref, dom_ref = dann_reference(packed, x)
    assert bool(jnp.allclose(regression, reg_ref, atol=2e-2, rtol=2e-2))
    assert bool(jnp.allclose(domain, dom_ref, atol=2e-2, rtol=2e-2))

    print("KERNEL_OK")
</pallas_src>

<mosaic_0001>
module attributes {stable_mosaic.version = 11 : i64} {
  func.func @_dann_fused_kernel(%arg0: i32, %arg1: memref<8x40xf32, #tpu.memory_space<vmem>>, %arg2: memref<40x36xbf16, #tpu.memory_space<vmem>>, %arg3: memref<1x36xf32, #tpu.memory_space<vmem>>, %arg4: memref<36x34xbf16, #tpu.memory_space<vmem>>, %arg5: memref<1x34xf32, #tpu.memory_space<vmem>>, %arg6: memref<34x32xbf16, #tpu.memory_space<vmem>>, %arg7: memref<1x32xf32, #tpu.memory_space<vmem>>, %arg8: memref<1x32x2048xbf16, #tpu.memory_space<vmem>>, %arg9: memref<1x1x2048xf32, #tpu.memory_space<vmem>>, %arg10: memref<1x2048x1024xbf16, #tpu.memory_space<vmem>>, %arg11: memref<1x1x1024xf32, #tpu.memory_space<vmem>>, %arg12: memref<1x1024x512xbf16, #tpu.memory_space<vmem>>, %arg13: memref<1x1x512xf32, #tpu.memory_space<vmem>>, %arg14: memref<1x512x256xbf16, #tpu.memory_space<vmem>>, %arg15: memref<1x1x256xf32, #tpu.memory_space<vmem>>, %arg16: memref<1x256x128xbf16, #tpu.memory_space<vmem>>, %arg17: memref<1x1x128xf32, #tpu.memory_space<vmem>>, %arg18: memref<1x128x64xbf16, #tpu.memory_space<vmem>>, %arg19: memref<1x1x64xf32, #tpu.memory_space<vmem>>, %arg20: memref<1x64x128xbf16, #tpu.memory_space<vmem>>, %arg21: memref<1x1x128xf32, #tpu.memory_space<vmem>>, %arg22: memref<1x8x128xf32, #tpu.memory_space<vmem>>) attributes {dimension_semantics = [#tpu.dimension_semantics<parallel>], iteration_bounds = array<i64: 2>, scalar_prefetch = 0 : i64, scratch_operands = 0 : i64, tpu.core_type = #tpu.core_type<tc>, window_params = [{pipeline_mode = #tpu.pipeline_mode<synchronous>, transform_indices = @transform_0, window_bounds = array<i64: 8, 40>}, {pipeline_mode = #tpu.pipeline_mode<synchronous>, transform_indices = @transform_1, window_bounds = array<i64: 40, 36>}, {pipeline_mode = #tpu.pipeline_mode<synchronous>, transform_indices = @transform_2, window_bounds = array<i64: 1, 36>}, {pipeline_mode = #tpu.pipeline_mode<synchronous>, transform_indices = @transform_3, window_bounds = array<i64: 36, 34>}, {pipeline_mode = #tpu.pipeline_mode<synchronous>, transform_indices = @transform_4, window_bounds = array<i64: 1, 34>}, {pipeline_mode = #tpu.pipeline_mode<synchronous>, transform_indices = @transform_5, window_bounds = array<i64: 34, 32>}, {pipeline_mode = #tpu.pipeline_mode<synchronous>, transform_indices = @transform_6, window_bounds = array<i64: 1, 32>}, {transform_indices = @transform_7, window_bounds = array<i64: 1, 32, 2048>}, {transform_indices = @transform_8, window_bounds = array<i64: 1, 1, 2048>}, {transform_indices = @transform_9, window_bounds = array<i64: 1, 2048, 1024>}, {transform_indices = @transform_10, window_bounds = array<i64: 1, 1, 1024>}, {transform_indices = @transform_11, window_bounds = array<i64: 1, 1024, 512>}, {transform_indices = @transform_12, window_bounds = array<i64: 1, 1, 512>}, {transform_indices = @transform_13, window_bounds = array<i64: 1, 512, 256>}, {transform_indices = @transform_14, window_bounds = array<i64: 1, 1, 256>}, {transform_indices = @transform_15, window_bounds = array<i64: 1, 256, 128>}, {transform_indices = @transform_16, window_bounds = array<i64: 1, 1, 128>}, {transform_indices = @transform_17, window_bounds = array<i64: 1, 128, 64>}, {transform_indices = @transform_18, window_bounds = array<i64: 1, 1, 64>}, {transform_indices = @transform_19, window_bounds = array<i64: 1, 64, 128>}, {transform_indices = @transform_20, window_bounds = array<i64: 1, 1, 128>}, {transform_indices = @transform_21, window_bounds = array<i64: 1, 8, 128>}]} {
    %c0 = arith.constant 0 : index
    %c0_0 = arith.constant 0 : index
    %0 = vector.load %arg1[%c0, %c0_0] : memref<8x40xf32, #tpu.memory_space<vmem>>, vector<8x40xf32>
    %1 = arith.truncf %0 : vector<8x40xf32> to vector<8x40xbf16>
    %c0_1 = arith.constant 0 : index
    %c0_2 = arith.constant 0 : index
    %2 = vector.load %arg2[%c0_1, %c0_2] : memref<40x36xbf16, #tpu.memory_space<vmem>>, vector<40x36xbf16>
    %cst = arith.constant dense<0.000000e+00> : vector<8x36xf32>
    %3 = tpu.matmul %1, %2, %cst {dimension_numbers = #tpu.dot_dimension_numbers<[1], [0], [0], [1], [0, 0, 1, 1], [], []>} : vector<8x40xbf16>, vector<40x36xbf16>, vector<8x36xf32> -> vector<8x36xf32>
    %c0_3 = arith.constant 0 : index
    %c0_4 = arith.constant 0 : index
    %4 = vector.load %arg3[%c0_3, %c0_4] : memref<1x36xf32, #tpu.memory_space<vmem>>, vector<1x36xf32>
    %5 = vector.broadcast %4 : vector<1x36xf32> to vector<8x36xf32>
    %6 = arith.addf %3, %5 : vector<8x36xf32>
    %7 = math.tanh %6 : vector<8x36xf32>
    %8 = arith.truncf %7 : vector<8x36xf32> to vector<8x36xbf16>
    %c0_5 = arith.constant 0 : index
    %c0_6 = arith.constant 0 : index
    %9 = vector.load %arg4[%c0_5, %c0_6] : memref<36x34xbf16, #tpu.memory_space<vmem>>, vector<36x34xbf16>
    %cst_7 = arith.constant dense<0.000000e+00> : vector<8x34xf32>
    %10 = tpu.matmul %8, %9, %cst_7 {dimension_numbers = #tpu.dot_dimension_numbers<[1], [0], [0], [1], [0, 0, 1, 1], [], []>} : vector<8x36xbf16>, vector<36x34xbf16>, vector<8x34xf32> -> vector<8x34xf32>
    %c0_8 = arith.constant 0 : index
    %c0_9 = arith.constant 0 : index
    %11 = vector.load %arg5[%c0_8, %c0_9] : memref<1x34xf32, #tpu.memory_space<vmem>>, vector<1x34xf32>
    %12 = vector.broadcast %11 : vector<1x34xf32> to vector<8x34xf32>
    %13 = arith.addf %10, %12 : vector<8x34xf32>
    %14 = math.tanh %13 : vector<8x34xf32>
    %15 = arith.truncf %14 : vector<8x34xf32> to vector<8x34xbf16>
    %c0_10 = arith.constant 0 : index
    %c0_11 = arith.constant 0 : index
    %16 = vector.load %arg6[%c0_10, %c0_11] : memref<34x32xbf16, #tpu.memory_space<vmem>>, vector<34x32xbf16>
    %cst_12 = arith.constant dense<0.000000e+00> : vector<8x32xf32>
    %17 = tpu.matmul %15, %16, %cst_12 {dimension_numbers = #tpu.dot_dimension_numbers<[1], [0], [0], [1], [0, 0, 1, 1], [], []>} : vector<8x34xbf16>, vector<34x32xbf16>, vector<8x32xf32> -> vector<8x32xf32>
    %c0_13 = arith.constant 0 : index
    %c0_14 = arith.constant 0 : index
    %18 = vector.load %arg7[%c0_13, %c0_14] : memref<1x32xf32, #tpu.memory_space<vmem>>, vector<1x32xf32>
    %19 = vector.broadcast %18 : vector<1x32xf32> to vector<8x32xf32>
    %20 = arith.addf %17, %19 : vector<8x32xf32>
    %21 = math.tanh %20 : vector<8x32xf32>
    %22 = arith.truncf %21 : vector<8x32xf32> to vector<8x32xbf16>
    %c0_15 = arith.constant 0 : index
    %c0_16 = arith.constant 0 : index
    %c0_17 = arith.constant 0 : index
    %23 = vector.load %arg8[%c0_15, %c0_16, %c0_17] : memref<1x32x2048xbf16, #tpu.memory_space<vmem>>, vector<1x32x2048xbf16>
    %24 = vector.shape_cast %23 : vector<1x32x2048xbf16> to vector<32x2048xbf16>
    %cst_18 = arith.constant dense<0.000000e+00> : vector<8x2048xf32>
    %25 = tpu.matmul %22, %24, %cst_18 {dimension_numbers = #tpu.dot_dimension_numbers<[1], [0], [0], [1], [0, 0, 1, 1], [], []>} : vector<8x32xbf16>, vector<32x2048xbf16>, vector<8x2048xf32> -> vector<8x2048xf32>
    %c0_19 = arith.constant 0 : index
    %c0_20 = arith.constant 0 : index
    %c0_21 = arith.constant 0 : index
    %26 = vector.load %arg9[%c0_19, %c0_20, %c0_21] : memref<1x1x2048xf32, #tpu.memory_space<vmem>>, vector<1x1x2048xf32>
    %27 = vector.shape_cast %26 : vector<1x1x2048xf32> to vector<1x2048xf32>
    %28 = vector.broadcast %27 : vector<1x2048xf32> to vector<8x2048xf32>
    %29 = arith.addf %25, %28 : vector<8x2048xf32>
    %30 = math.tanh %29 : vector<8x2048xf32>
    %31 = arith.truncf %30 : vector<8x2048xf32> to vector<8x2048xbf16>
    %c0_22 = arith.constant 0 : index
    %c0_23 = arith.constant 0 : index
    %c0_24 = arith.constant 0 : index
    %32 = vector.load %arg10[%c0_22, %c0_23, %c0_24] : memref<1x2048x1024xbf16, #tpu.memory_space<vmem>>, vector<1x2048x1024xbf16>
    %33 = vector.shape_cast %32 : vector<1x2048x1024xbf16> to vector<2048x1024xbf16>
    %cst_25 = arith.constant dense<0.000000e+00> : vector<8x1024xf32>
    %34 = tpu.matmul %31, %33, %cst_25 {dimension_numbers = #tpu.dot_dimension_numbers<[1], [0], [0], [1], [0, 0, 1, 1], [], []>} : vector<8x2048xbf16>, vector<2048x1024xbf16>, vector<8x1024xf32> -> vector<8x1024xf32>
    %c0_26 = arith.constant 0 : index
    %c0_27 = arith.constant 0 : index
    %c0_28 = arith.constant 0 : index
    %35 = vector.load %arg11[%c0_26, %c0_27, %c0_28] : memref<1x1x1024xf32, #tpu.memory_space<vmem>>, vector<1x1x1024xf32>
    %36 = vector.shape_cast %35 : vector<1x1x1024xf32> to vector<1x1024xf32>
    %37 = vector.broadcast %36 : vector<1x1024xf32> to vector<8x1024xf32>
    %38 = arith.addf %34, %37 : vector<8x1024xf32>
    %39 = math.tanh %38 : vector<8x1024xf32>
    %40 = arith.truncf %39 : vector<8x1024xf32> to vector<8x1024xbf16>
    %c0_29 = arith.constant 0 : index
    %c0_30 = arith.constant 0 : index
    %c0_31 = arith.constant 0 : index
    %41 = vector.load %arg12[%c0_29, %c0_30, %c0_31] : memref<1x1024x512xbf16, #tpu.memory_space<vmem>>, vector<1x1024x512xbf16>
    %42 = vector.shape_cast %41 : vector<1x1024x512xbf16> to vector<1024x512xbf16>
    %cst_32 = arith.constant dense<0.000000e+00> : vector<8x512xf32>
    %43 = tpu.matmul %40, %42, %cst_32 {dimension_numbers = #tpu.dot_dimension_numbers<[1], [0], [0], [1], [0, 0, 1, 1], [], []>} : vector<8x1024xbf16>, vector<1024x512xbf16>, vector<8x512xf32> -> vector<8x512xf32>
    %c0_33 = arith.constant 0 : index
    %c0_34 = arith.constant 0 : index
    %c0_35 = arith.constant 0 : index
    %44 = vector.load %arg13[%c0_33, %c0_34, %c0_35] : memref<1x1x512xf32, #tpu.memory_space<vmem>>, vector<1x1x512xf32>
    %45 = vector.shape_cast %44 : vector<1x1x512xf32> to vector<1x512xf32>
    %46 = vector.broadcast %45 : vector<1x512xf32> to vector<8x512xf32>
    %47 = arith.addf %43, %46 : vector<8x512xf32>
    %48 = math.tanh %47 : vector<8x512xf32>
    %49 = arith.truncf %48 : vector<8x512xf32> to vector<8x512xbf16>
    %c0_36 = arith.constant 0 : index
    %c0_37 = arith.constant 0 : index
    %c0_38 = arith.constant 0 : index
    %50 = vector.load %arg14[%c0_36, %c0_37, %c0_38] : memref<1x512x256xbf16, #tpu.memory_space<vmem>>, vector<1x512x256xbf16>
    %51 = vector.shape_cast %50 : vector<1x512x256xbf16> to vector<512x256xbf16>
    %cst_39 = arith.constant dense<0.000000e+00> : vector<8x256xf32>
    %52 = tpu.matmul %49, %51, %cst_39 {dimension_numbers = #tpu.dot_dimension_numbers<[1], [0], [0], [1], [0, 0, 1, 1], [], []>} : vector<8x512xbf16>, vector<512x256xbf16>, vector<8x256xf32> -> vector<8x256xf32>
    %c0_40 = arith.constant 0 : index
    %c0_41 = arith.constant 0 : index
    %c0_42 = arith.constant 0 : index
    %53 = vector.load %arg15[%c0_40, %c0_41, %c0_42] : memref<1x1x256xf32, #tpu.memory_space<vmem>>, vector<1x1x256xf32>
    %54 = vector.shape_cast %53 : vector<1x1x256xf32> to vector<1x256xf32>
    %55 = vector.broadcast %54 : vector<1x256xf32> to vector<8x256xf32>
    %56 = arith.addf %52, %55 : vector<8x256xf32>
    %57 = math.tanh %56 : vector<8x256xf32>
    %58 = arith.truncf %57 : vector<8x256xf32> to vector<8x256xbf16>
    %c0_43 = arith.constant 0 : index
    %c0_44 = arith.constant 0 : index
    %c0_45 = arith.constant 0 : index
    %59 = vector.load %arg16[%c0_43, %c0_44, %c0_45] : memref<1x256x128xbf16, #tpu.memory_space<vmem>>, vector<1x256x128xbf16>
    %60 = vector.shape_cast %59 : vector<1x256x128xbf16> to vector<256x128xbf16>
    %cst_46 = arith.constant dense<0.000000e+00> : vector<8x128xf32>
    %61 = tpu.matmul %58, %60, %cst_46 {dimension_numbers = #tpu.dot_dimension_numbers<[1], [0], [0], [1], [0, 0, 1, 1], [], []>} : vector<8x256xbf16>, vector<256x128xbf16>, vector<8x128xf32> -> vector<8x128xf32>
    %c0_47 = arith.constant 0 : index
    %c0_48 = arith.constant 0 : index
    %c0_49 = arith.constant 0 : index
    %62 = vector.load %arg17[%c0_47, %c0_48, %c0_49] : memref<1x1x128xf32, #tpu.memory_space<vmem>>, vector<1x1x128xf32>
    %63 = vector.shape_cast %62 : vector<1x1x128xf32> to vector<1x128xf32>
    %64 = vector.broadcast %63 : vector<1x128xf32> to vector<8x128xf32>
    %65 = arith.addf %61, %64 : vector<8x128xf32>
    %66 = math.tanh %65 : vector<8x128xf32>
    %67 = arith.truncf %66 : vector<8x128xf32> to vector<8x128xbf16>
    %c0_50 = arith.constant 0 : index
    %c0_51 = arith.constant 0 : index
    %c0_52 = arith.constant 0 : index
    %68 = vector.load %arg18[%c0_50, %c0_51, %c0_52] : memref<1x128x64xbf16, #tpu.memory_space<vmem>>, vector<1x128x64xbf16>
    %69 = vector.shape_cast %68 : vector<1x128x64xbf16> to vector<128x64xbf16>
    %cst_53 = arith.constant dense<0.000000e+00> : vector<8x64xf32>
    %70 = tpu.matmul %67, %69, %cst_53 {dimension_numbers = #tpu.dot_dimension_numbers<[1], [0], [0], [1], [0, 0, 1, 1], [], []>} : vector<8x128xbf16>, vector<128x64xbf16>, vector<8x64xf32> -> vector<8x64xf32>
    %c0_54 = arith.constant 0 : index
    %c0_55 = arith.constant 0 : index
    %c0_56 = arith.constant 0 : index
    %71 = vector.load %arg19[%c0_54, %c0_55, %c0_56] : memref<1x1x64xf32, #tpu.memory_space<vmem>>, vector<1x1x64xf32>
    %72 = vector.shape_cast %71 : vector<1x1x64xf32> to vector<1x64xf32>
    %73 = vector.broadcast %72 : vector<1x64xf32> to vector<8x64xf32>
    %74 = arith.addf %70, %73 : vector<8x64xf32>
    %75 = math.tanh %74 : vector<8x64xf32>
    %76 = arith.truncf %75 : vector<8x64xf32> to vector<8x64xbf16>
    %c0_57 = arith.constant 0 : index
    %c0_58 = arith.constant 0 : index
    %c0_59 = arith.constant 0 : index
    %77 = vector.load %arg20[%c0_57, %c0_58, %c0_59] : memref<1x64x128xbf16, #tpu.memory_space<vmem>>, vector<1x64x128xbf16>
    %78 = vector.shape_cast %77 : vector<1x64x128xbf16> to vector<64x128xbf16>
    %cst_60 = arith.constant dense<0.000000e+00> : vector<8x128xf32>
    %79 = tpu.matmul %76, %78, %cst_60 {dimension_numbers = #tpu.dot_dimension_numbers<[1], [0], [0], [1], [0, 0, 1, 1], [], []>} : vector<8x64xbf16>, vector<64x128xbf16>, vector<8x128xf32> -> vector<8x128xf32>
    %c0_61 = arith.constant 0 : index
    %c0_62 = arith.constant 0 : index
    %c0_63 = arith.constant 0 : index
    %80 = vector.load %arg21[%c0_61, %c0_62, %c0_63] : memref<1x1x128xf32, #tpu.memory_space<vmem>>, vector<1x1x128xf32>
    %81 = vector.shape_cast %80 : vector<1x1x128xf32> to vector<1x128xf32>
    %82 = vector.broadcast %81 : vector<1x128xf32> to vector<8x128xf32>
    %83 = arith.addf %79, %82 : vector<8x128xf32>
    %c0_i32 = arith.constant 0 : i32
    %84 = arith.cmpi eq, %arg0, %c0_i32 : i32
    %85 = arith.extui %84 : i1 to i32
    %c0_i32_64 = arith.constant 0 : i32
    %86 = arith.cmpi ne, %85, %c0_i32_64 : i32
    scf.if %86 {
      %c0_66 = arith.constant 0 : index
      %c0_67 = arith.constant 0 : index
      %c0_68 = arith.constant 0 : index
      %90 = vector.load %arg22[%c0_66, %c0_67, %c0_68] : memref<1x8x128xf32, #tpu.memory_space<vmem>>, vector<1x8x128xf32>
      %91 = vector.shape_cast %90 : vector<1x8x128xf32> to vector<8x128xf32>
      %92 = vector.shape_cast %83 : vector<8x128xf32> to vector<1x8x128xf32>
      tpu.vector_store %arg22[%c0_66, %c0_67, %c0_68], %92 {strides = array<i32>} : memref<1x8x128xf32, #tpu.memory_space<vmem>>, vector<1x8x128xf32>,
    } else {
    }
    %c1_i32 = arith.constant 1 : i32
    %87 = arith.cmpi eq, %arg0, %c1_i32 : i32
    %88 = arith.extui %87 : i1 to i32
    %c0_i32_65 = arith.constant 0 : i32
    %89 = arith.cmpi ne, %88, %c0_i32_65 : i32
    scf.if %89 {
      %90 = tpu.iota {dimensions = array<i32: 1>} : vector<8x128xi32>
      %c2_i32 = arith.constant 2 : i32
      %91 = vector.broadcast %c2_i32 : i32 to vector<8x128xi32>
      %92 = arith.cmpi slt, %90, %91 : vector<8x128xi32>
      %cst_66 = arith.constant 0xFF800000 : f32
      %93 = vector.broadcast %cst_66 : f32 to vector<8x128xf32>
      %94 = arith.select %92, %83, %93 : vector<8x128xi1>, vector<8x128xf32>
      %cst_67 = arith.constant dense<0xFF800000> : vector<8xf32>
      %95 = vector.multi_reduction <maximumf>, %94, %cst_67 [1] : vector<8x128xf32> to vector<8xf32>
      %96 = vector.shape_cast %95 : vector<8xf32> to vector<8x1xf32>
      %97 = vector.broadcast %96 : vector<8x1xf32> to vector<8x128xf32>
      %98 = arith.subf %94, %97 : vector<8x128xf32>
      %99 = math.exp %98 : vector<8x128xf32>
      %cst_68 = arith.constant dense<0.000000e+00> : vector<8xf32>
      %100 = vector.multi_reduction <add>, %99, %cst_68 [1] : vector<8x128xf32> to vector<8xf32>
      %101 = vector.shape_cast %100 : vector<8xf32> to vector<8x1xf32>
      %102 = math.log %101 : vector<8x1xf32>
      %103 = vector.broadcast %102 : vector<8x1xf32> to vector<8x128xf32>
      %104 = arith.subf %98, %103 : vector<8x128xf32>
      %cst_69 = arith.constant 0.000000e+00 : f32
      %105 = vector.broadcast %cst_69 : f32 to vector<8x128xf32>
      %106 = arith.select %92, %104, %105 : vector<8x128xi1>, vector<8x128xf32>
      %c0_70 = arith.constant 0 : index
      %c0_71 = arith.constant 0 : index
      %c0_72 = arith.constant 0 : index
      %107 = vector.load %arg22[%c0_70, %c0_71, %c0_72] : memref<1x8x128xf32, #tpu.memory_space<vmem>>, vector<1x8x128xf32>
      %108 = vector.shape_cast %107 : vector<1x8x128xf32> to vector<8x128xf32>
      %109 = vector.shape_cast %106 : vector<8x128xf32> to vector<1x8x128xf32>
      tpu.vector_store %arg22[%c0_70, %c0_71, %c0_72], %109 {strides = array<i32>} : memref<1x8x128xf32, #tpu.memory_space<vmem>>, vector<1x8x128xf32>,
    } else {
    }
    return
  }
  func.func @transform_0(%arg0: i32) -> (i32, i32) {
    %c0_i32 = arith.constant 0 : i32
    %c0_i32_0 = arith.constant 0 : i32
    %c0_i32_1 = arith.constant 0 : i32
    return %c0_i32, %c0_i32_0 : i32, i32
  }
  func.func @transform_1(%arg0: i32) -> (i32, i32) {
    %c0_i32 = arith.constant 0 : i32
    %c0_i32_0 = arith.constant 0 : i32
    %c0_i32_1 = arith.constant 0 : i32
    return %c0_i32, %c0_i32_0 : i32, i32
  }
  func.func @transform_2(%arg0: i32) -> (i32, i32) {
    %c0_i32 = arith.constant 0 : i32
    %c0_i32_0 = arith.constant 0 : i32
    %c0_i32_1 = arith.constant 0 : i32
    return %c0_i32, %c0_i32_0 : i32, i32
  }
  func.func @transform_3(%arg0: i32) -> (i32, i32) {
    %c0_i32 = arith.constant 0 : i32
    %c0_i32_0 = arith.constant 0 : i32
    %c0_i32_1 = arith.constant 0 : i32
    return %c0_i32, %c0_i32_0 : i32, i32
  }
  func.func @transform_4(%arg0: i32) -> (i32, i32) {
    %c0_i32 = arith.constant 0 : i32
    %c0_i32_0 = arith.constant 0 : i32
    %c0_i32_1 = arith.constant 0 : i32
    return %c0_i32, %c0_i32_0 : i32, i32
  }
  func.func @transform_5(%arg0: i32) -> (i32, i32) {
    %c0_i32 = arith.constant 0 : i32
    %c0_i32_0 = arith.constant 0 : i32
    %c0_i32_1 = arith.constant 0 : i32
    return %c0_i32, %c0_i32_0 : i32, i32
  }
  func.func @transform_6(%arg0: i32) -> (i32, i32) {
    %c0_i32 = arith.constant 0 : i32
    %c0_i32_0 = arith.constant 0 : i32
    %c0_i32_1 = arith.constant 0 : i32
    return %c0_i32, %c0_i32_0 : i32, i32
  }
  func.func @transform_7(%arg0: i32) -> (i32, i32, i32) {
    %c0_i32 = arith.constant 0 : i32
    %c0_i32_0 = arith.constant 0 : i32
    %c0_i32_1 = arith.constant 0 : i32
    return %arg0, %c0_i32, %c0_i32_0 : i32, i32, i32
  }
  func.func @transform_8(%arg0: i32) -> (i32, i32, i32) {
    %c0_i32 = arith.constant 0 : i32
    %c0_i32_0 = arith.constant 0 : i32
    %c0_i32_1 = arith.constant 0 : i32
    return %arg0, %c0_i32, %c0_i32_0 : i32, i32, i32
  }
  func.func @transform_9(%arg0: i32) -> (i32, i32, i32) {
    %c0_i32 = arith.constant 0 : i32
    %c0_i32_0 = arith.constant 0 : i32
    %c0_i32_1 = arith.constant 0 : i32
    return %arg0, %c0_i32, %c0_i32_0 : i32, i32, i32
  }
  func.func @transform_10(%arg0: i32) -> (i32, i32, i32) {
    %c0_i32 = arith.constant 0 : i32
    %c0_i32_0 = arith.constant 0 : i32
    %c0_i32_1 = arith.constant 0 : i32
    return %arg0, %c0_i32, %c0_i32_0 : i32, i32, i32
  }
  func.func @transform_11(%arg0: i32) -> (i32, i32, i32) {
    %c0_i32 = arith.constant 0 : i32
    %c0_i32_0 = arith.constant 0 : i32
    %c0_i32_1 = arith.constant 0 : i32
    return %arg0, %c0_i32, %c0_i32_0 : i32, i32, i32
  }
  func.func @transform_12(%arg0: i32) -> (i32, i32, i32) {
    %c0_i32 = arith.constant 0 : i32
    %c0_i32_0 = arith.constant 0 : i32
    %c0_i32_1 = arith.constant 0 : i32
    return %arg0, %c0_i32, %c0_i32_0 : i32, i32, i32
  }
  func.func @transform_13(%arg0: i32) -> (i32, i32, i32) {
    %c0_i32 = arith.constant 0 : i32
    %c0_i32_0 = arith.constant 0 : i32
    %c0_i32_1 = arith.constant 0 : i32
    return %arg0, %c0_i32, %c0_i32_0 : i32, i32, i32
  }
  func.func @transform_14(%arg0: i32) -> (i32, i32, i32) {
    %c0_i32 = arith.constant 0 : i32
    %c0_i32_0 = arith.constant 0 : i32
    %c0_i32_1 = arith.constant 0 : i32
    return %arg0, %c0_i32, %c0_i32_0 : i32, i32, i32
  }
  func.func @transform_15(%arg0: i32) -> (i32, i32, i32) {
    %c0_i32 = arith.constant 0 : i32
    %c0_i32_0 = arith.constant 0 : i32
    %c0_i32_1 = arith.constant 0 : i32
    return %arg0, %c0_i32, %c0_i32_0 : i32, i32, i32
  }
  func.func @transform_16(%arg0: i32) -> (i32, i32, i32) {
    %c0_i32 = arith.constant 0 : i32
    %c0_i32_0 = arith.constant 0 : i32
    %c0_i32_1 = arith.constant 0 : i32
    return %arg0, %c0_i32, %c0_i32_0 : i32, i32, i32
  }
  func.func @transform_17(%arg0: i32) -> (i32, i32, i32) {
    %c0_i32 = arith.constant 0 : i32
    %c0_i32_0 = arith.constant 0 : i32
    %c0_i32_1 = arith.constant 0 : i32
    return %arg0, %c0_i32, %c0_i32_0 : i32, i32, i32
  }
  func.func @transform_18(%arg0: i32) -> (i32, i32, i32) {
    %c0_i32 = arith.constant 0 : i32
    %c0_i32_0 = arith.constant 0 : i32
    %c0_i32_1 = arith.constant 0 : i32
    return %arg0, %c0_i32, %c0_i32_0 : i32, i32, i32
  }
  func.func @transform_19(%arg0: i32) -> (i32, i32, i32) {
    %c0_i32 = arith.constant 0 : i32
    %c0_i32_0 = arith.constant 0 : i32
    %c0_i32_1 = arith.constant 0 : i32
    return %arg0, %c0_i32, %c0_i32_0 : i32, i32, i32
  }
  func.func @transform_20(%arg0: i32) -> (i32, i32, i32) {
    %c0_i32 = arith.constant 0 : i32
    %c0_i32_0 = arith.constant 0 : i32
    %c0_i32_1 = arith.constant 0 : i32
    return %arg0, %c0_i32, %c0_i32_0 : i32, i32, i32
  }
  func.func @transform_21(%arg0: i32) -> (i32, i32, i32) {
    %c0_i32 = arith.constant 0 : i32
    %c0_i32_0 = arith.constant 0 : i32
    %c0_i32_1 = arith.constant 0 : i32
    return %arg0, %c0_i32, %c0_i32_0 : i32, i32, i32
  }
}

</mosaic_0001>

<llo_original>
// kernel: tpu_custom_call.1
$region0: #{tpu_custom_call.1}
  #allocation0 [shape = 'u32[]', space=smem, size = 0x4, offset = 0x4, fixed_abs, tag = 'smem constant byte address 0x4 - core index']
  #allocation1 [shape = 'u32[144,128]{1,0:T(1,128)}', space=vmem, size = 0x12000, scoped, tag = 'internal scratch']
  %s0 = inlined_call_operand.hbm [shape: f32[8,40], index: 0, kind: input, shape index: {}]
  %s1 = inlined_call_operand.hbm [shape: bf16[40,36], index: 1, kind: input, shape index: {}]
  %s2 = inlined_call_operand.hbm [shape: f32[1,36], index: 2, kind: input, shape index: {}]
  %s3 = inlined_call_operand.hbm [shape: bf16[36,34], index: 3, kind: input, shape index: {}]
  %s4 = inlined_call_operand.hbm [shape: f32[1,34], index: 4, kind: input, shape index: {}]
  %s5 = inlined_call_operand.vmem [shape: bf16[34,32], index: 5, kind: input, shape index: {}]
  %s6 = inlined_call_operand.hbm [shape: f32[1,32], index: 6, kind: input, shape index: {}]
  %s7 = inlined_call_operand.hbm [shape: bf16[2,32,2048], index: 7, kind: input, shape index: {}]
  %s8 = inlined_call_operand.hbm [shape: f32[2,1,2048], index: 8, kind: input, shape index: {}]
  %s9 = inlined_call_operand.hbm [shape: bf16[2,2048,1024], index: 9, kind: input, shape index: {}]
  %s10 = inlined_call_operand.hbm [shape: f32[2,1,1024], index: 10, kind: input, shape index: {}]
  %s11 = inlined_call_operand.hbm [shape: bf16[2,1024,512], index: 11, kind: input, shape index: {}]
  %s12 = inlined_call_operand.hbm [shape: f32[2,1,512], index: 12, kind: input, shape index: {}]
  %s13 = inlined_call_operand.hbm [shape: bf16[2,512,256], index: 13, kind: input, shape index: {}]
  %s14 = inlined_call_operand.hbm [shape: f32[2,1,256], index: 14, kind: input, shape index: {}]
  %s15 = inlined_call_operand.hbm [shape: bf16[2,256,128], index: 15, kind: input, shape index: {}]
  %s16 = inlined_call_operand.hbm [shape: f32[2,1,128], index: 16, kind: input, shape index: {}]
  %s17 = inlined_call_operand.vmem [shape: bf16[2,128,64], index: 17, kind: input, shape index: {}]
  %s18 = inlined_call_operand.hbm [shape: f32[2,1,64], index: 18, kind: input, shape index: {}]
  %s19 = inlined_call_operand.hbm [shape: bf16[2,64,128], index: 19, kind: input, shape index: {}]
  %s20 = inlined_call_operand.hbm [shape: f32[2,1,128], index: 20, kind: input, shape index: {}]
  %s21 = inlined_call_operand.hbm [shape: f32[2,8,128], index: 21, kind: output, shape index: {}]
  %s22 = sld [smem:[#allocation0]]
  $region201: #{tpu_custom_call.1} parent=0
    _
  %s24 = ssub.s32 1, %s22
  %s25 = scalar_select 0, %s24, %s22
  $region1: #{tpu_custom_call.1} parent=0
    #allocation2 [shape = 'u8[4096]{0}', space=vmem, size = 0x1000, scoped, tag = 'input window, operand 0, single buffered']
    #allocation3 [shape = 's32[2]{0}', space=sflag, size = 0x8, scoped, tag = 'scoped memory for tpu_custom_call.1']
    #allocation4 [shape = 's32[2]{0}', space=sflag, size = 0x8, scoped, tag = 'scoped memory for tpu_custom_call.1']
    #allocation5 [shape = 'u8[10240]{0}', space=vmem, size = 0x2800, scoped, tag = 'input window, operand 1, single buffered']
    #allocation6 [shape = 's32[1]{0}', space=sflag, size = 0x4, scoped, tag = 'scoped memory for tpu_custom_call.1']
    #allocation7 [shape = 'u8[512]{0}', space=vmem, size = 0x400, scoped, tag = 'input window, operand 2, single buffered']
    #allocation8 [shape = 'u8[10240]{0}', space=vmem, size = 0x2800, scoped, tag = 'input window, operand 3, single buffered']
    #allocation9 [shape = 's32[1]{0}', space=sflag, size = 0x4, scoped, tag = 'scoped memory for tpu_custom_call.1']
    #allocation10 [shape = 'u8[512]{0}', space=vmem, size = 0x400, scoped, tag = 'input window, operand 4, single buffered']
    #allocation11 [shape = 'u8[512]{0}', space=vmem, size = 0x400, scoped, tag = 'input window, operand 6, single buffered']
    #allocation12 [shape = 's32[1]{0}', space=sflag, size = 0x4, scoped, tag = 'scoped memory for tpu_custom_call.1']
    #allocation13 [shape = 'u8[262144]{0}', space=vmem, size = 0x40000, scoped, tag = 'input window, operand 7']
    #allocation14 [shape = 'u8[16384]{0}', space=vmem, size = 0x4000, scoped, tag = 'input window, operand 8']
    #allocation15 [shape = 'u8[8388608]{0}', space=vmem, size = 0x800000, scoped, tag = 'input window, operand 9']
    #allocation16 [shape = 'u8[8192]{0}', space=vmem, size = 0x2000, scoped, tag = 'input window, operand 10']
    #allocation17 [shape = 'u8[2097152]{0}', space=vmem, size = 0x200000, scoped, tag = 'input window, operand 11']
    #allocation18 [shape = 'u8[4096]{0}', space=vmem, size = 0x1000, scoped, tag = 'input window, operand 12']
    #allocation19 [shape = 'u8[524288]{0}', space=vmem, size = 0x80000, scoped, tag = 'input window, operand 13']
    #allocation20 [shape = 'u8[2048]{0}', space=vmem, size = 0x800, scoped, tag = 'input window, operand 14']
    #allocation21 [shape = 'u8[131072]{0}', space=vmem, size = 0x20000, scoped, tag = 'input window, operand 15']
    #allocation22 [shape = 'u8[1024]{0}', space=vmem, size = 0x400, scoped, tag = 'input window, operand 16']
    #allocation23 [shape = 'u8[1024]{0}', space=vmem, size = 0x400, scoped, tag = 'input window, operand 18']
    #allocation24 [shape = 'u8[32768]{0}', space=vmem, size = 0x8000, scoped, tag = 'input window, operand 19']
    #allocation25 [shape = 'u8[1024]{0}', space=vmem, size = 0x400, scoped, tag = 'input window, operand 20']
    #allocation26 [shape = 'u8[8192]{0}', space=vmem, size = 0x2000, scoped, tag = 'output window, operand 0']
    %26 = vsyncpa [#allocation3], 0
    %27 = vsyncpa [#allocation6], 0
    %28 = vsyncpa [#allocation9], 0
    %29 = vsyncpa [#allocation12], 0
    %30 = vsyncpa [#allocation4], 0
    %s31 = scalar_lea.sflag [#allocation4], 1
    %32 = vsyncpa %s31, 0
    loop: start=0, step=1, limit=4
    $region2: #{tpu_custom_call.1} parent=1 // loop_pre_header
      _
    $region3: #{tpu_custom_call.1} parent=1 // loop_header
      %s34 = sphi 0, %s38
      %p35 = scmp.ge.s32.totalorder %s34, 4
      %s42 = sphi 0, %s42
      %s44 = sphi 0, %s42
      %s45 = sphi 0, %s44
      %s59 = sphi 0, %s45
      %s63 = sphi 0, %s63
      %s65 = sphi 0, %s63
      %s66 = sphi 0, %s65
      %s80 = sphi 0, %s66
      %s84 = sphi 0, %s84
      %s86 = sphi 0, %s84
      %s87 = sphi 0, %s86
      %s101 = sphi 0, %s87
      %s105 = sphi 0, %s105
      %s107 = sphi 0, %s105
      %s108 = sphi 0, %s107
      %s122 = sphi 0, %s108
      %s126 = sphi 0, %s126
      %s128 = sphi 0, %s126
      %s129 = sphi 0, %s128
      %s143 = sphi 0, %s129
      %s147 = sphi 0, %s147
      %s149 = sphi 0, %s147
      %s150 = sphi 0, %s149
      %s164 = sphi 0, %s150
      %s168 = sphi 0, %s168
      %s170 = sphi 0, %s168
      %s171 = sphi 0, %s170
      %s185 = sphi 0, %s171
      %s191 = sphi 0, %s193
      %s194 = sphi 0, %s191
      %s195 = sphi 0, %s194
      %s211 = sphi 0, %s195
      %s217 = sphi 0, %s219
      %s220 = sphi 0, %s217
      %s221 = sphi 0, %s220
      %s237 = sphi 0, %s221
      %s243 = sphi 0, %s245
      %s246 = sphi 0, %s243
      %s247 = sphi 0, %s246
      %s263 = sphi 0, %s247
      %s269 = sphi 0, %s271
      %s272 = sphi 0, %s269
      %s273 = sphi 0, %s272
      %s289 = sphi 0, %s273
      %s295 = sphi 0, %s297
      %s298 = sphi 0, %s295
      %s299 = sphi 0, %s298
      %s315 = sphi 0, %s299
      %s321 = sphi 0, %s323
      %s324 = sphi 0, %s321
      %s325 = sphi 0, %s324
      %s341 = sphi 0, %s325
      %s347 = sphi 0, %s349
      %s350 = sphi 0, %s347
      %s351 = sphi 0, %s350
      %s367 = sphi 0, %s351
      %s373 = sphi 0, %s375
      %s376 = sphi 0, %s373
      %s377 = sphi 0, %s376
      %s393 = sphi 0, %s377
      %s399 = sphi 0, %s401
      %s402 = sphi 0, %s399
      %s403 = sphi 0, %s402
      %s419 = sphi 0, %s403
      %s425 = sphi 0, %s427
      %s428 = sphi 0, %s425
      %s429 = sphi 0, %s428
      %s445 = sphi 0, %s429
      %s451 = sphi 0, %s453
      %s454 = sphi 0, %s451
      %s455 = sphi 0, %s454
      %s471 = sphi 0, %s455
      %s477 = sphi 0, %s479
      %s480 = sphi 0, %s477
      %s481 = sphi 0, %s480
      %s497 = sphi 0, %s481
      %s503 = sphi 0, %s505
      %s506 = sphi 0, %s503
      %s507 = sphi 0, %s506
      %s523 = sphi 0, %s507
      %s529 = sphi 0, %s531
      %s532 = sphi 0, %s529
      %s533 = sphi 0, %s532
      %s549 = sphi 0, %s533
      %s555 = sphi 0, %s557
      %s558 = sphi 0, %s555
      %s559 = sphi 0, %s558
      %s575 = sphi 0, %s559
    $region4: #{tpu_custom_call.1} parent=1 // loop_header_branch
      %37 = sbr.rel (%p35) target = $region8
    $region5: #{tpu_custom_call.1} parent=1 // loop_body
      %s39 = ssub.s32 %s34, 1
      %s40 = ssub.s32 %s34, 2
      %s41 = sadd.s32 %s34, 1
      %s43 = sadd.s32 %s42, 1
      %p46 = scmp.eq.s32.totalorder %s34, 1
      %p47 = scmp.ne.s32.totalorder %s42, %s44
      %p48 = scmp.eq.s32.totalorder %s34, 0
      %p49 = por %p47, %p48
      %p50 = scmp.ne.s32.totalorder %s42, %s44
      %p51 = scmp.eq.s32.totalorder %s39, 1
      %p52 = por %p50, %p51
      %p53 = scmp.ne.s32.totalorder %s44, %s45
      %p54 = scmp.eq.s32.totalorder %s39, 0
      %p55 = por %p53, %p54
      %p56 = scmp.ne.s32.totalorder %s44, %s45
      %p57 = scmp.eq.s32.totalorder %s40, 1
      %p58 = por %p56, %p57
      %p60 = scmp.ne.s32.totalorder %s45, %s59
      %p61 = scmp.eq.s32.totalorder %s40, 0
      %p62 = por %p60, %p61
      %s64 = sadd.s32 %s63, 1
      %p67 = scmp.eq.s32.totalorder %s34, 1
      %p68 = scmp.ne.s32.totalorder %s63, %s65
      %p69 = scmp.eq.s32.totalorder %s34, 0
      %p70 = por %p68, %p69
      %p71 = scmp.ne.s32.totalorder %s63, %s65
      %p72 = scmp.eq.s32.totalorder %s39, 1
      %p73 = por %p71, %p72
      %p74 = scmp.ne.s32.totalorder %s65, %s66
      %p75 = scmp.eq.s32.totalorder %s39, 0
      %p76 = por %p74, %p75
      %p77 = scmp.ne.s32.totalorder %s65, %s66
      %p78 = scmp.eq.s32.totalorder %s40, 1
      %p79 = por %p77, %p78
      %p81 = scmp.ne.s32.totalorder %s66, %s80
      %p82 = scmp.eq.s32.totalorder %s40, 0
      %p83 = por %p81, %p82
      %s85 = sadd.s32 %s84, 1
      %p88 = scmp.eq.s32.totalorder %s34, 1
      %p89 = scmp.ne.s32.totalorder %s84, %s86
      %p90 = scmp.eq.s32.totalorder %s34, 0
      %p91 = por %p89, %p90
      %p92 = scmp.ne.s32.totalorder %s84, %s86
      %p93 = scmp.eq.s32.totalorder %s39, 1
      %p94 = por %p92, %p93
      %p95 = scmp.ne.s32.totalorder %s86, %s87
      %p96 = scmp.eq.s32.totalorder %s39, 0
      %p97 = por %p95, %p96
      %p98 = scmp.ne.s32.totalorder %s86, %s87
      %p99 = scmp.eq.s32.totalorder %s40, 1
      %p100 = por %p98, %p99
      %p102 = scmp.ne.s32.totalorder %s87, %s101
      %p103 = scmp.eq.s32.totalorder %s40, 0
      %p104 = por %p102, %p103
      %s106 = sadd.s32 %s105, 1
      %p109 = scmp.eq.s32.totalorder %s34, 1
      %p110 = scmp.ne.s32.totalorder %s105, %s107
      %p111 = scmp.eq.s32.totalorder %s34, 0
      %p112 = por %p110, %p111
      %p113 = scmp.ne.s32.totalorder %s105, %s107
      %p114 = scmp.eq.s32.totalorder %s39, 1
      %p115 = por %p113, %p114
      %p116 = scmp.ne.s32.totalorder %s107, %s108
      %p117 = scmp.eq.s32.totalorder %s39, 0
      %p118 = por %p116, %p117
      %p119 = scmp.ne.s32.totalorder %s107, %s108
      %p120 = scmp.eq.s32.totalorder %s40, 1
      %p121 = por %p119, %p120
      %p123 = scmp.ne.s32.totalorder %s108, %s122
      %p124 = scmp.eq.s32.totalorder %s40, 0
      %p125 = por %p123, %p124
      %s127 = sadd.s32 %s126, 1
      %p130 = scmp.eq.s32.totalorder %s34, 1
      %p131 = scmp.ne.s32.totalorder %s126, %s128
      %p132 = scmp.eq.s32.totalorder %s34, 0
      %p133 = por %p131, %p132
      %p134 = scmp.ne.s32.totalorder %s126, %s128
      %p135 = scmp.eq.s32.totalorder %s39, 1
      %p136 = por %p134, %p135
      %p137 = scmp.ne.s32.totalorder %s128, %s129
      %p138 = scmp.eq.s32.totalorder %s39, 0
      %p139 = por %p137, %p138
      %p140 = scmp.ne.s32.totalorder %s128, %s129
      %p141 = scmp.eq.s32.totalorder %s40, 1
      %p142 = por %p140, %p141
      %p144 = scmp.ne.s32.totalorder %s129, %s143
      %p145 = scmp.eq.s32.totalorder %s40, 0
      %p146 = por %p144, %p145
      %s148 = sadd.s32 %s147, 1
      %p151 = scmp.eq.s32.totalorder %s34, 1
      %p152 = scmp.ne.s32.totalorder %s147, %s149
      %p153 = scmp.eq.s32.totalorder %s34, 0
      %p154 = por %p152, %p153
      %p155 = scmp.ne.s32.totalorder %s147, %s149
      %p156 = scmp.eq.s32.totalorder %s39, 1
      %p157 = por %p155, %p156
      %p158 = scmp.ne.s32.totalorder %s149, %s150
      %p159 = scmp.eq.s32.totalorder %s39, 0
      %p160 = por %p158, %p159
      %p161 = scmp.ne.s32.totalorder %s149, %s150
      %p162 = scmp.eq.s32.totalorder %s40, 1
      %p163 = por %p161, %p162
      %p165 = scmp.ne.s32.totalorder %s150, %s164
      %p166 = scmp.eq.s32.totalorder %s40, 0
      %p167 = por %p165, %p166
      %s169 = sadd.s32 %s168, 1
      %p172 = scmp.eq.s32.totalorder %s34, 1
      %p173 = scmp.ne.s32.totalorder %s168, %s170
      %p174 = scmp.eq.s32.totalorder %s34, 0
      %p175 = por %p173, %p174
      %p176 = scmp.ne.s32.totalorder %s168, %s170
      %p177 = scmp.eq.s32.totalorder %s39, 1
      %p178 = por %p176, %p177
      %p179 = scmp.ne.s32.totalorder %s170, %s171
      %p180 = scmp.eq.s32.totalorder %s39, 0
      %p181 = por %p179, %p180
      %p182 = scmp.ne.s32.totalorder %s170, %s171
      %p183 = scmp.eq.s32.totalorder %s40, 1
      %p184 = por %p182, %p183
      %p186 = scmp.ne.s32.totalorder %s171, %s185
      %p187 = scmp.eq.s32.totalorder %s40, 0
      %p188 = por %p186, %p187
      %s189 = ssub.s32 %s34, %s41
      %p190 = scmp.eq.s32.totalorder %s189, 0
      %s192 = sadd.s32 %s191, 1
      %s193 = scalar_select %p190, %s191, %s192
      %p196 = pneg %p190
      %p197 = scmp.eq.s32.totalorder %s34, 1
      %p198 = por %p196, %p197
      %p199 = scmp.ne.s32.totalorder %s191, %s194
      %p200 = scmp.eq.s32.totalorder %s34, 0
      %p201 = por %p199, %p200
      %p202 = scmp.ne.s32.totalorder %s191, %s194
      %p203 = scmp.eq.s32.totalorder %s39, 1
      %p204 = por %p202, %p203
      %p205 = scmp.ne.s32.totalorder %s194, %s195
      %p206 = scmp.eq.s32.totalorder %s39, 0
      %p207 = por %p205, %p206
      %p208 = scmp.ne.s32.totalorder %s194, %s195
      %p209 = scmp.eq.s32.totalorder %s40, 1
      %p210 = por %p208, %p209
      %p212 = scmp.ne.s32.totalorder %s195, %s211
      %p213 = scmp.eq.s32.totalorder %s40, 0
      %p214 = por %p212, %p213
      %s215 = ssub.s32 %s34, %s41
      %p216 = scmp.eq.s32.totalorder %s215, 0
      %s218 = sadd.s32 %s217, 1
      %s219 = scalar_select %p216, %s217, %s218
      %p222 = pneg %p216
      %p223 = scmp.eq.s32.totalorder %s34, 1
      %p224 = por %p222, %p223
      %p225 = scmp.ne.s32.totalorder %s217, %s220
      %p226 = scmp.eq.s32.totalorder %s34, 0
      %p227 = por %p225, %p226
      %p228 = scmp.ne.s32.totalorder %s217, %s220
      %p229 = scmp.eq.s32.totalorder %s39, 1
      %p230 = por %p228, %p229
      %p231 = scmp.ne.s32.totalorder %s220, %s221
      %p232 = scmp.eq.s32.totalorder %s39, 0
      %p233 = por %p231, %p232
      %p234 = scmp.ne.s32.totalorder %s220, %s221
      %p235 = scmp.eq.s32.totalorder %s40, 1
      %p236 = por %p234, %p235
      %p238 = scmp.ne.s32.totalorder %s221, %s237
      %p239 = scmp.eq.s32.totalorder %s40, 0
      %p240 = por %p238, %p239
      %s241 = ssub.s32 %s34, %s41
      %p242 = scmp.eq.s32.totalorder %s241, 0
      %s244 = sadd.s32 %s243, 1
      %s245 = scalar_select %p242, %s243, %s244
      %p248 = pneg %p242
      %p249 = scmp.eq.s32.totalorder %s34, 1
      %p250 = por %p248, %p249
      %p251 = scmp.ne.s32.totalorder %s243, %s246
      %p252 = scmp.eq.s32.totalorder %s34, 0
      %p253 = por %p251, %p252
      %p254 = scmp.ne.s32.totalorder %s243, %s246
      %p255 = scmp.eq.s32.totalorder %s39, 1
      %p256 = por %p254, %p255
      %p257 = scmp.ne.s32.totalorder %s246, %s247
      %p258 = scmp.eq.s32.totalorder %s39, 0
      %p259 = por %p257, %p258
      %p260 = scmp.ne.s32.totalorder %s246, %s247
      %p261 = scmp.eq.s32.totalorder %s40, 1
      %p262 = por %p260, %p261
      %p264 = scmp.ne.s32.totalorder %s247, %s263
      %p265 = scmp.eq.s32.totalorder %s40, 0
      %p266 = por %p264, %p265
      %s267 = ssub.s32 %s34, %s41
      %p268 = scmp.eq.s32.totalorder %s267, 0
      %s270 = sadd.s32 %s269, 1
      %s271 = scalar_select %p268, %s269, %s270
      %p274 = pneg %p268
      %p275 = scmp.eq.s32.totalorder %s34, 1
      %p276 = por %p274, %p275
      %p277 = scmp.ne.s32.totalorder %s269, %s272
      %p278 = scmp.eq.s32.totalorder %s34, 0
      %p279 = por %p277, %p278
      %p280 = scmp.ne.s32.totalorder %s269, %s272
      %p281 = scmp.eq.s32.totalorder %s39, 1
      %p282 = por %p280, %p281
      %p283 = scmp.ne.s32.totalorder %s272, %s273
      %p284 = scmp.eq.s32.totalorder %s39, 0
      %p285 = por %p283, %p284
      %p286 = scmp.ne.s32.totalorder %s272, %s273
      %p287 = scmp.eq.s32.totalorder %s40, 1
      %p288 = por %p286, %p287
      %p290 = scmp.ne.s32.totalorder %s273, %s289
      %p291 = scmp.eq.s32.totalorder %s40, 0
      %p292 = por %p290, %p291
      %s293 = ssub.s32 %s34, %s41
      %p294 = scmp.eq.s32.totalorder %s293, 0
      %s296 = sadd.s32 %s295, 1
      %s297 = scalar_select %p294, %s295, %s296
      %p300 = pneg %p294
      %p301 = scmp.eq.s32.totalorder %s34, 1
      %p302 = por %p300, %p301
      %p303 = scmp.ne.s32.totalorder %s295, %s298
      %p304 = scmp.eq.s32.totalorder %s34, 0
      %p305 = por %p303, %p304
      %p306 = scmp.ne.s32.totalorder %s295, %s298
      %p307 = scmp.eq.s32.totalorder %s39, 1
      %p308 = por %p306, %p307
      %p309 = scmp.ne.s32.totalorder %s298, %s299
      %p310 = scmp.eq.s32.totalorder %s39, 0
      %p311 = por %p309, %p310
      %p312 = scmp.ne.s32.totalorder %s298, %s299
      %p313 = scmp.eq.s32.totalorder %s40, 1
      %p314 = por %p312, %p313
      %p316 = scmp.ne.s32.totalorder %s299, %s315
      %p317 = scmp.eq.s32.totalorder %s40, 0
      %p318 = por %p316, %p317
      %s319 = ssub.s32 %s34, %s41
      %p320 = scmp.eq.s32.totalorder %s319, 0
      %s322 = sadd.s32 %s321, 1
      %s323 = scalar_select %p320, %s321, %s322
      %p326 = pneg %p320
      %p327 = scmp.eq.s32.totalorder %s34, 1
      %p328 = por %p326, %p327
      %p329 = scmp.ne.s32.totalorder %s321, %s324
      %p330 = scmp.eq.s32.totalorder %s34, 0
      %p331 = por %p329, %p330
      %p332 = scmp.ne.s32.totalorder %s321, %s324
      %p333 = scmp.eq.s32.totalorder %s39, 1
      %p334 = por %p332, %p333
      %p335 = scmp.ne.s32.totalorder %s324, %s325
      %p336 = scmp.eq.s32.totalorder %s39, 0
      %p337 = por %p335, %p336
      %p338 = scmp.ne.s32.totalorder %s324, %s325
      %p339 = scmp.eq.s32.totalorder %s40, 1
      %p340 = por %p338, %p339
      %p342 = scmp.ne.s32.totalorder %s325, %s341
      %p343 = scmp.eq.s32.totalorder %s40, 0
      %p344 = por %p342, %p343
      %s345 = ssub.s32 %s34, %s41
      %p346 = scmp.eq.s32.totalorder %s345, 0
      %s348 = sadd.s32 %s347, 1
      %s349 = scalar_select %p346, %s347, %s348
      %p352 = pneg %p346
      %p353 = scmp.eq.s32.totalorder %s34, 1
      %p354 = por %p352, %p353
      %p355 = scmp.ne.s32.totalorder %s347, %s350
      %p356 = scmp.eq.s32.totalorder %s34, 0
      %p357 = por %p355, %p356
      %p358 = scmp.ne.s32.totalorder %s347, %s350
      %p359 = scmp.eq.s32.totalorder %s39, 1
      %p360 = por %p358, %p359
      %p361 = scmp.ne.s32.totalorder %s350, %s351
      %p362 = scmp.eq.s32.totalorder %s39, 0
      %p363 = por %p361, %p362
      %p364 = scmp.ne.s32.totalorder %s350, %s351
      %p365 = scmp.eq.s32.totalorder %s40, 1
      %p366 = por %p364, %p365
      %p368 = scmp.ne.s32.totalorder %s351, %s367
      %p369 = scmp.eq.s32.totalorder %s40, 0
      %p370 = por %p368, %p369
      %s371 = ssub.s32 %s34, %s41
      %p372 = scmp.eq.s32.totalorder %s371, 0
      %s374 = sadd.s32 %s373, 1
      %s375 = scalar_select %p372, %s373, %s374
      %p378 = pneg %p372
      %p379 = scmp.eq.s32.totalorder %s34, 1
      %p380 = por %p378, %p379
      %p381 = scmp.ne.s32.totalorder %s373, %s376
      %p382 = scmp.eq.s32.totalorder %s34, 0
      %p383 = por %p381, %p382
      %p384 = scmp.ne.s32.totalorder %s373, %s376
      %p385 = scmp.eq.s32.totalorder %s39, 1
      %p386 = por %p384, %p385
      %p387 = scmp.ne.s32.totalorder %s376, %s377
      %p388 = scmp.eq.s32.totalorder %s39, 0
      %p389 = por %p387, %p388
      %p390 = scmp.ne.s32.totalorder %s376, %s377
      %p391 = scmp.eq.s32.totalorder %s40, 1
      %p392 = por %p390, %p391
      %p394 = scmp.ne.s32.totalorder %s377, %s393
      %p395 = scmp.eq.s32.totalorder %s40, 0
      %p396 = por %p394, %p395
      %s397 = ssub.s32 %s34, %s41
      %p398 = scmp.eq.s32.totalorder %s397, 0
      %s400 = sadd.s32 %s399, 1
      %s401 = scalar_select %p398, %s399, %s400
      %p404 = pneg %p398
      %p405 = scmp.eq.s32.totalorder %s34, 1
      %p406 = por %p404, %p405
      %p407 = scmp.ne.s32.totalorder %s399, %s402
      %p408 = scmp.eq.s32.totalorder %s34, 0
      %p409 = por %p407, %p408
      %p410 = scmp.ne.s32.totalorder %s399, %s402
      %p411 = scmp.eq.s32.totalorder %s39, 1
      %p412 = por %p410, %p411
      %p413 = scmp.ne.s32.totalorder %s402, %s403
      %p414 = scmp.eq.s32.totalorder %s39, 0
      %p415 = por %p413, %p414
      %p416 = scmp.ne.s32.totalorder %s402, %s403
      %p417 = scmp.eq.s32.totalorder %s40, 1
      %p418 = por %p416, %p417
      %p420 = scmp.ne.s32.totalorder %s403, %s419
      %p421 = scmp.eq.s32.totalorder %s40, 0
      %p422 = por %p420, %p421
      %s423 = ssub.s32 %s34, %s41
      %p424 = scmp.eq.s32.totalorder %s423, 0
      %s426 = sadd.s32 %s425, 1
      %s427 = scalar_select %p424, %s425, %s426
      %p430 = pneg %p424
      %p431 = scmp.eq.s32.totalorder %s34, 1
      %p432 = por %p430, %p431
      %p433 = scmp.ne.s32.totalorder %s425, %s428
      %p434 = scmp.eq.s32.totalorder %s34, 0
      %p435 = por %p433, %p434
      %p436 = scmp.ne.s32.totalorder %s425, %s428
      %p437 = scmp.eq.s32.totalorder %s39, 1
      %p438 = por %p436, %p437
      %p439 = scmp.ne.s32.totalorder %s428, %s429
      %p440 = scmp.eq.s32.totalorder %s39, 0
      %p441 = por %p439, %p440
      %p442 = scmp.ne.s32.totalorder %s428, %s429
      %p443 = scmp.eq.s32.totalorder %s40, 1
      %p444 = por %p442, %p443
      %p446 = scmp.ne.s32.totalorder %s429, %s445
      %p447 = scmp.eq.s32.totalorder %s40, 0
      %p448 = por %p446, %p447
      %s449 = ssub.s32 %s34, %s41
      %p450 = scmp.eq.s32.totalorder %s449, 0
      %s452 = sadd.s32 %s451, 1
      %s453 = scalar_select %p450, %s451, %s452
      %p456 = pneg %p450
      %p457 = scmp.eq.s32.totalorder %s34, 1
      %p458 = por %p456, %p457
      %p459 = scmp.ne.s32.totalorder %s451, %s454
      %p460 = scmp.eq.s32.totalorder %s34, 0
      %p461 = por %p459, %p460
      %p462 = scmp.ne.s32.totalorder %s451, %s454
      %p463 = scmp.eq.s32.totalorder %s39, 1
      %p464 = por %p462, %p463
      %p465 = scmp.ne.s32.totalorder %s454, %s455
      %p466 = scmp.eq.s32.totalorder %s39, 0
      %p467 = por %p465, %p466
      %p468 = scmp.ne.s32.totalorder %s454, %s455
      %p469 = scmp.eq.s32.totalorder %s40, 1
      %p470 = por %p468, %p469
      %p472 = scmp.ne.s32.totalorder %s455, %s471
      %p473 = scmp.eq.s32.totalorder %s40, 0
      %p474 = por %p472, %p473
      %s475 = ssub.s32 %s34, %s41
      %p476 = scmp.eq.s32.totalorder %s475, 0
      %s478 = sadd.s32 %s477, 1
      %s479 = scalar_select %p476, %s477, %s478
      %p482 = pneg %p476
      %p483 = scmp.eq.s32.totalorder %s34, 1
      %p484 = por %p482, %p483
      %p485 = scmp.ne.s32.totalorder %s477, %s480
      %p486 = scmp.eq.s32.totalorder %s34, 0
      %p487 = por %p485, %p486
      %p488 = scmp.ne.s32.totalorder %s477, %s480
      %p489 = scmp.eq.s32.totalorder %s39, 1
      %p490 = por %p488, %p489
      %p491 = scmp.ne.s32.totalorder %s480, %s481
      %p492 = scmp.eq.s32.totalorder %s39, 0
      %p493 = por %p491, %p492
      %p494 = scmp.ne.s32.totalorder %s480, %s481
      %p495 = scmp.eq.s32.totalorder %s40, 1
      %p496 = por %p494, %p495
      %p498 = scmp.ne.s32.totalorder %s481, %s497
      %p499 = scmp.eq.s32.totalorder %s40, 0
      %p500 = por %p498, %p499
      %s501 = ssub.s32 %s34, %s41
      %p502 = scmp.eq.s32.totalorder %s501, 0
      %s504 = sadd.s32 %s503, 1
      %s505 = scalar_select %p502, %s503, %s504
      %p508 = pneg %p502
      %p509 = scmp.eq.s32.totalorder %s34, 1
      %p510 = por %p508, %p509
      %p511 = scmp.ne.s32.totalorder %s503, %s506
      %p512 = scmp.eq.s32.totalorder %s34, 0
      %p513 = por %p511, %p512
      %p514 = scmp.ne.s32.totalorder %s503, %s506
      %p515 = scmp.eq.s32.totalorder %s39, 1
      %p516 = por %p514, %p515
      %p517 = scmp.ne.s32.totalorder %s506, %s507
      %p518 = scmp.eq.s32.totalorder %s39, 0
      %p519 = por %p517, %p518
      %p520 = scmp.ne.s32.totalorder %s506, %s507
      %p521 = scmp.eq.s32.totalorder %s40, 1
      %p522 = por %p520, %p521
      %p524 = scmp.ne.s32.totalorder %s507, %s523
      %p525 = scmp.eq.s32.totalorder %s40, 0
      %p526 = por %p524, %p525
      %s527 = ssub.s32 %s34, %s41
      %p528 = scmp.eq.s32.totalorder %s527, 0
      %s530 = sadd.s32 %s529, 1
      %s531 = scalar_select %p528, %s529, %s530
      %p534 = pneg %p528
      %p535 = scmp.eq.s32.totalorder %s34, 1
      %p536 = por %p534, %p535
      %p537 = scmp.ne.s32.totalorder %s529, %s532
      %p538 = scmp.eq.s32.totalorder %s34, 0
      %p539 = por %p537, %p538
      %p540 = scmp.ne.s32.totalorder %s529, %s532
      %p541 = scmp.eq.s32.totalorder %s39, 1
      %p542 = por %p540, %p541
      %p543 = scmp.ne.s32.totalorder %s532, %s533
      %p544 = scmp.eq.s32.totalorder %s39, 0
      %p545 = por %p543, %p544
      %p546 = scmp.ne.s32.totalorder %s532, %s533
      %p547 = scmp.eq.s32.totalorder %s40, 1
      %p548 = por %p546, %p547
      %p550 = scmp.ne.s32.totalorder %s533, %s549
      %p551 = scmp.eq.s32.totalorder %s40, 0
      %p552 = por %p550, %p551
      %s553 = ssub.s32 %s34, %s41
      %p554 = scmp.eq.s32.totalorder %s553, 0
      %s556 = sadd.s32 %s555, 1
      %s557 = scalar_select %p554, %s555, %s556
      %p560 = pneg %p554
      %p561 = scmp.eq.s32.totalorder %s34, 1
      %p562 = por %p560, %p561
      %p563 = scmp.ne.s32.totalorder %s555, %s558
      %p564 = scmp.eq.s32.totalorder %s34, 0
      %p565 = por %p563, %p564
      %p566 = scmp.ne.s32.totalorder %s555, %s558
      %p567 = scmp.eq.s32.totalorder %s39, 1
      %p568 = por %p566, %p567
      %p569 = scmp.ne.s32.totalorder %s558, %s559
      %p570 = scmp.eq.s32.totalorder %s39, 0
      %p571 = por %p569, %p570
      %p572 = scmp.ne.s32.totalorder %s558, %s559
      %p573 = scmp.eq.s32.totalorder %s40, 1
      %p574 = por %p572, %p573
      %p576 = scmp.ne.s32.totalorder %s559, %s575
      %p577 = scmp.eq.s32.totalorder %s40, 0
      %p578 = por %p576, %p577
      %p579 = scmp.le.s32.totalorder 1, %s34
      %p580 = scmp.lt.s32.totalorder %s34, 3
      %p581 = pnand %p579, %p580
      %p582 = pneg %p581
      // Predicated region
      $region9: #{tpu_custom_call.1} parent=5 // pred_check
        _
      $region10: #{tpu_custom_call.1} parent=5 // pred_check_branch
        %584 = sbr.rel (%p581) target = $region12
      $region11: #{tpu_custom_call.1} parent=5 // pred_region
        %s585 = ssub.s32 %s34, 1
        // Predicated region
        $region13: #{tpu_custom_call.1} parent=11 // pred_check
          %p586 = pneg %p55
        $region14: #{tpu_custom_call.1} parent=11 // pred_check_branch
          %588 = sbr.rel (%p586) target = $region16
        $region15: #{tpu_custom_call.1} parent=11 // pred_region
          %s590 = ssub.s32 128, 128
          %591 = vsyncadd [#allocation3], %s590
          %s593 = sshll.u32 [#allocation2], 4
          %s594 = int_to_ptr.vmem [resolvable:$true] %s593
          %596 = dma.hbm_to_vmem [thread:$0]  %s0, 128, %s594, [#allocation3]
        $region16: #{tpu_custom_call.1} parent=11 // pred_fallthru
          _
        // Predicated region
        $region17: #{tpu_custom_call.1} parent=11 // pred_check
          %p597 = pneg %p76
        $region18: #{tpu_custom_call.1} parent=11 // pred_check_branch
          %599 = sbr.rel (%p597) target = $region20
        $region19: #{tpu_custom_call.1} parent=11 // pred_region
          %s601 = ssub.s32 320, 320
          %602 = vsyncadd [#allocation6], %s601
          %s603 = sshll.u32 [#allocation5], 4
          %s604 = int_to_ptr.vmem [resolvable:$true] %s603
          %609 = dma.hbm_to_vmem [thread:$0]  %s1, 320, %s604, [#allocation6], 64, 64, 4
        $region20: #{tpu_custom_call.1} parent=11 // pred_fallthru
          _
        // Predicated region
        $region21: #{tpu_custom_call.1} parent=11 // pred_check
          %p610 = pneg %p97
        $region22: #{tpu_custom_call.1} parent=11 // pred_check_branch
          %612 = sbr.rel (%p610) target = $region24
        $region23: #{tpu_custom_call.1} parent=11 // pred_region
          %s614 = ssub.s32 16, 16
          %615 = vsyncadd [#allocation6], %s614
          %s617 = sshll.u32 [#allocation7], 4
          %s618 = int_to_ptr.vmem [resolvable:$true] %s617
          %620 = dma.hbm_to_vmem [thread:$0]  %s2, 16, %s618, [#allocation6]
        $region24: #{tpu_custom_call.1} parent=11 // pred_fallthru
          _
        // Predicated region
        $region25: #{tpu_custom_call.1} parent=11 // pred_check
          %p621 = pneg %p118
        $region26: #{tpu_custom_call.1} parent=11 // pred_check_branch
          %623 = sbr.rel (%p621) target = $region28
        $region27: #{tpu_custom_call.1} parent=11 // pred_region
          %s625 = ssub.s32 320, 320
          %626 = vsyncadd [#allocation9], %s625
          %s627 = sshll.u32 [#allocation8], 4
          %s628 = int_to_ptr.vmem [resolvable:$true] %s627
          %633 = dma.hbm_to_vmem [thread:$0]  %s3, 320, %s628, [#allocation9], 64, 64, 4
        $region28: #{tpu_custom_call.1} parent=11 // pred_fallthru
          _
        // Predicated region
        $region29: #{tpu_custom_call.1} parent=11 // pred_check
          %p634 = pneg %p139
        $region30: #{tpu_custom_call.1} parent=11 // pred_check_branch
          %636 = sbr.rel (%p634) target = $region32
        $region31: #{tpu_custom_call.1} parent=11 // pred_region
          %s638 = ssub.s32 16, 16
          %639 = vsyncadd [#allocation9], %s638
          %s641 = sshll.u32 [#allocation10], 4
          %s642 = int_to_ptr.vmem [resolvable:$true] %s641
          %644 = dma.hbm_to_vmem [thread:$0]  %s4, 16, %s642, [#allocation9]
        $region32: #{tpu_custom_call.1} parent=11 // pred_fallthru
          _
        // Predicated region
        $region33: #{tpu_custom_call.1} parent=11 // pred_check
          %p645 = pneg %p160
        $region34: #{tpu_custom_call.1} parent=11 // pred_check_branch
          %647 = sbr.rel (%p645) target = $region36
        $region35: #{tpu_custom_call.1} parent=11 // pred_region
          _
        $region36: #{tpu_custom_call.1} parent=11 // pred_fallthru
          _
        // Predicated region
        $region37: #{tpu_custom_call.1} parent=11 // pred_check
          %p648 = pneg %p181
        $region38: #{tpu_custom_call.1} parent=11 // pred_check_branch
          %650 = sbr.rel (%p648) target = $region40
        $region39: #{tpu_custom_call.1} parent=11 // pred_region
          %s652 = ssub.s32 16, 16
          %653 = vsyncadd [#allocation12], %s652
          %s655 = sshll.u32 [#allocation11], 4
          %s656 = int_to_ptr.vmem [resolvable:$true] %s655
          %658 = dma.hbm_to_vmem [thread:$0]  %s6, 16, %s656, [#allocation12]
        $region40: #{tpu_custom_call.1} parent=11 // pred_fallthru
          _
      $region12: #{tpu_custom_call.1} parent=5 // pred_fallthru
        _
      %p659 = scmp.lt.s32.totalorder %s34, 2
      // Predicated region
      $region41: #{tpu_custom_call.1} parent=5 // pred_check
        %p660 = pneg %p659
      $region42: #{tpu_custom_call.1} parent=5 // pred_check_branch
        %662 = sbr.rel (%p660) target = $region44
      $region43: #{tpu_custom_call.1} parent=5 // pred_region
        // Predicated region
        $region45: #{tpu_custom_call.1} parent=43 // pred_check
          %p663 = pneg %p201
        $region46: #{tpu_custom_call.1} parent=43 // pred_check_branch
          %665 = sbr.rel (%p663) target = $region48
        $region47: #{tpu_custom_call.1} parent=43 // pred_region
          %s666 = sand.u32 %s34, 1
          %s667 = scalar_lea.sflag [#allocation3], %s666
          %s668 = sand.u32 %s191, 1
          %s669 = smul.addr %s668, 256
          %s670 = scalar_lea.vmem [#allocation13], %s669
          %s672 = ssub.s32 4096, 4096
          %673 = vsyncadd %s667, %s672
          %s674 = smul.addr %s34, 64
          %s675 = smul.addr %s674, 64
          %s676 = scalar_lea.hbm %s7, %s675
          %s677 = sshll.u32 %s670, 4
          %s678 = int_to_ptr.vmem [resolvable:$true] %s677
          %683 = dma.hbm_to_vmem [thread:$0]  %s676, 4096, %s678, %s667, 1024, 1024, 64
        $region48: #{tpu_custom_call.1} parent=43 // pred_fallthru
          _
        // Predicated region
        $region49: #{tpu_custom_call.1} parent=43 // pred_check
          %p684 = pneg %p227
        $region50: #{tpu_custom_call.1} parent=43 // pred_check_branch
          %686 = sbr.rel (%p684) target = $region52
        $region51: #{tpu_custom_call.1} parent=43 // pred_region
          %s687 = sand.u32 %s34, 1
          %s688 = scalar_lea.sflag [#allocation3], %s687
          %s689 = sand.u32 %s217, 1
          %s690 = smul.addr %s689, 16
          %s691 = scalar_lea.vmem [#allocation14], %s690
          %s693 = ssub.s32 256, 256
          %694 = vsyncadd %s688, %s693
          %s695 = smul.addr %s34, 16
          %s696 = smul.addr %s695, 16
          %s697 = scalar_lea.hbm %s8, %s696
          %s699 = sshll.u32 %s691, 4
          %s700 = int_to_ptr.vmem [resolvable:$true] %s699
          %702 = dma.hbm_to_vmem [thread:$0]  %s697, 256, %s700, %s688
        $region52: #{tpu_custom_call.1} parent=43 // pred_fallthru
          _
        // Predicated region
        $region53: #{tpu_custom_call.1} parent=43 // pred_check
          %p703 = pneg %p253
        $region54: #{tpu_custom_call.1} parent=43 // pred_check_branch
          %705 = sbr.rel (%p703) target = $region56
        $region55: #{tpu_custom_call.1} parent=43 // pred_region
          %s706 = sand.u32 %s34, 1
          %s707 = scalar_lea.sflag [#allocation3], %s706
          %s708 = sand.u32 %s243, 1
          %s709 = smul.addr %s708, 8192
          %s710 = scalar_lea.vmem [#allocation15], %s709
          %s712 = ssub.s32 131072, 131072
          %713 = vsyncadd %s707, %s712
          %s714 = smul.addr %s34, 2048
          %s715 = smul.addr %s714, 64
          %s716 = scalar_lea.hbm %s9, %s715
          %s717 = sshll.u32 %s710, 4
          %s718 = int_to_ptr.vmem [resolvable:$true] %s717
          %723 = dma.hbm_to_vmem [thread:$0]  %s716, 131072, %s718, %s707, 512, 512, 32
        $region56: #{tpu_custom_call.1} parent=43 // pred_fallthru
          _
        // Predicated region
        $region57: #{tpu_custom_call.1} parent=43 // pred_check
          %p724 = pneg %p279
        $region58: #{tpu_custom_call.1} parent=43 // pred_check_branch
          %726 = sbr.rel (%p724) target = $region60
        $region59: #{tpu_custom_call.1} parent=43 // pred_region
          %s727 = sand.u32 %s34, 1
          %s728 = scalar_lea.sflag [#allocation3], %s727
          %s729 = sand.u32 %s269, 1
          %s730 = smul.addr %s729, 8
          %s731 = scalar_lea.vmem [#allocation16], %s730
          %s733 = ssub.s32 128, 128
          %734 = vsyncadd %s728, %s733
          %s735 = smul.addr %s34, 8
          %s736 = smul.addr %s735, 16
          %s737 = scalar_lea.hbm %s10, %s736
          %s739 = sshll.u32 %s731, 4
          %s740 = int_to_ptr.vmem [resolvable:$true] %s739
          %742 = dma.hbm_to_vmem [thread:$0]  %s737, 128, %s740, %s728
        $region60: #{tpu_custom_call.1} parent=43 // pred_fallthru
          _
        // Predicated region
        $region61: #{tpu_custom_call.1} parent=43 // pred_check
          %p743 = pneg %p305
        $region62: #{tpu_custom_call.1} parent=43 // pred_check_branch
          %745 = sbr.rel (%p743) target = $region64
        $region63: #{tpu_custom_call.1} parent=43 // pred_region
          %s746 = sand.u32 %s34, 1
          %s747 = scalar_lea.sflag [#allocation3], %s746
          %s748 = sand.u32 %s295, 1
          %s749 = smul.addr %s748, 2048
          %s750 = scalar_lea.vmem [#allocation17], %s749
          %s752 = ssub.s32 32768, 32768
          %753 = vsyncadd %s747, %s752
          %s754 = smul.addr %s34, 512
          %s755 = smul.addr %s754, 64
          %s756 = scalar_lea.hbm %s11, %s755
          %s757 = sshll.u32 %s750, 4
          %s758 = int_to_ptr.vmem [resolvable:$true] %s757
          %763 = dma.hbm_to_vmem [thread:$0]  %s756, 32768, %s758, %s747, 256, 256, 16
        $region64: #{tpu_custom_call.1} parent=43 // pred_fallthru
          _
        // Predicated region
        $region65: #{tpu_custom_call.1} parent=43 // pred_check
          %p764 = pneg %p331
        $region66: #{tpu_custom_call.1} parent=43 // pred_check_branch
          %766 = sbr.rel (%p764) target = $region68
        $region67: #{tpu_custom_call.1} parent=43 // pred_region
          %s767 = sand.u32 %s34, 1
          %s768 = scalar_lea.sflag [#allocation3], %s767
          %s769 = sand.u32 %s321, 1
          %s770 = smul.addr %s769, 4
          %s771 = scalar_lea.vmem [#allocation18], %s770
          %s773 = ssub.s32 64, 64
          %774 = vsyncadd %s768, %s773
          %s775 = smul.addr %s34, 4
          %s776 = smul.addr %s775, 16
          %s777 = scalar_lea.hbm %s12, %s776
          %s779 = sshll.u32 %s771, 4
          %s780 = int_to_ptr.vmem [resolvable:$true] %s779
          %782 = dma.hbm_to_vmem [thread:$0]  %s777, 64, %s780, %s768
        $region68: #{tpu_custom_call.1} parent=43 // pred_fallthru
          _
        // Predicated region
        $region69: #{tpu_custom_call.1} parent=43 // pred_check
          %p783 = pneg %p357
        $region70: #{tpu_custom_call.1} parent=43 // pred_check_branch
          %785 = sbr.rel (%p783) target = $region72
        $region71: #{tpu_custom_call.1} parent=43 // pred_region
          %s786 = sand.u32 %s34, 1
          %s787 = scalar_lea.sflag [#allocation3], %s786
          %s788 = sand.u32 %s347, 1
          %s789 = smul.addr %s788, 512
          %s790 = scalar_lea.vmem [#allocation19], %s789
          %s792 = ssub.s32 8192, 8192
          %793 = vsyncadd %s787, %s792
          %s794 = smul.addr %s34, 128
          %s795 = smul.addr %s794, 64
          %s796 = scalar_lea.hbm %s13, %s795
          %s797 = sshll.u32 %s790, 4
          %s798 = int_to_ptr.vmem [resolvable:$true] %s797
          %803 = dma.hbm_to_vmem [thread:$0]  %s796, 8192, %s798, %s787, 128, 128, 8
        $region72: #{tpu_custom_call.1} parent=43 // pred_fallthru
          _
        // Predicated region
        $region73: #{tpu_custom_call.1} parent=43 // pred_check
          %p804 = pneg %p383
        $region74: #{tpu_custom_call.1} parent=43 // pred_check_branch
          %806 = sbr.rel (%p804) target = $region76
        $region75: #{tpu_custom_call.1} parent=43 // pred_region
          %s807 = sand.u32 %s34, 1
          %s808 = scalar_lea.sflag [#allocation3], %s807
          %s809 = sand.u32 %s373, 1
          %s810 = smul.addr %s809, 2
          %s811 = scalar_lea.vmem [#allocation20], %s810
          %s813 = ssub.s32 32, 32
          %814 = vsyncadd %s808, %s813
          %s815 = smul.addr %s34, 2
          %s816 = smul.addr %s815, 16
          %s817 = scalar_lea.hbm %s14, %s816
          %s819 = sshll.u32 %s811, 4
          %s820 = int_to_ptr.vmem [resolvable:$true] %s819
          %822 = dma.hbm_to_vmem [thread:$0]  %s817, 32, %s820, %s808
        $region76: #{tpu_custom_call.1} parent=43 // pred_fallthru
          _
        // Predicated region
        $region77: #{tpu_custom_call.1} parent=43 // pred_check
          %p823 = pneg %p409
        $region78: #{tpu_custom_call.1} parent=43 // pred_check_branch
          %825 = sbr.rel (%p823) target = $region80
        $region79: #{tpu_custom_call.1} parent=43 // pred_region
          %s826 = sand.u32 %s34, 1
          %s827 = scalar_lea.sflag [#allocation3], %s826
          %s828 = sand.u32 %s399, 1
          %s829 = smul.addr %s828, 128
          %s830 = scalar_lea.vmem [#allocation21], %s829
          %s832 = ssub.s32 2048, 2048
          %833 = vsyncadd %s827, %s832
          %s834 = smul.addr %s34, 32
          %s835 = smul.addr %s834, 64
          %s836 = scalar_lea.hbm %s15, %s835
          %s837 = sshll.u32 %s830, 4
          %s838 = int_to_ptr.vmem [resolvable:$true] %s837
          %843 = dma.hbm_to_vmem [thread:$0]  %s836, 2048, %s838, %s827, 64, 64, 4
        $region80: #{tpu_custom_call.1} parent=43 // pred_fallthru
          _
        // Predicated region
        $region81: #{tpu_custom_call.1} parent=43 // pred_check
          %p844 = pneg %p435
        $region82: #{tpu_custom_call.1} parent=43 // pred_check_branch
          %846 = sbr.rel (%p844) target = $region84
        $region83: #{tpu_custom_call.1} parent=43 // pred_region
          %s847 = sand.u32 %s34, 1
          %s848 = scalar_lea.sflag [#allocation3], %s847
          %s849 = sand.u32 %s425, 1
          %s850 = scalar_lea.vmem [#allocation22], %s849
          %s852 = ssub.s32 16, 16
          %853 = vsyncadd %s848, %s852
          %s854 = smul.addr %s34, 16
          %s855 = scalar_lea.hbm %s16, %s854
          %s857 = sshll.u32 %s850, 4
          %s858 = int_to_ptr.vmem [resolvable:$true] %s857
          %860 = dma.hbm_to_vmem [thread:$0]  %s855, 16, %s858, %s848
        $region84: #{tpu_custom_call.1} parent=43 // pred_fallthru
          _
        // Predicated region
        $region85: #{tpu_custom_call.1} parent=43 // pred_check
          %p861 = pneg %p461
        $region86: #{tpu_custom_call.1} parent=43 // pred_check_branch
          %863 = sbr.rel (%p861) target = $region88
        $region87: #{tpu_custom_call.1} parent=43 // pred_region
          %p864 = scmp.lt.s32.totalorder %s34, 1
          %s865 = scalar_select %p864, %s34, 1
          %s866 = smul.addr %s865, 16
          %s867 = smul.addr %s866, 4
          %s868 = scalar_lea.vmem %s17, %s867
        $region88: #{tpu_custom_call.1} parent=43 // pred_fallthru
          _
        // Predicated region
        $region89: #{tpu_custom_call.1} parent=43 // pred_check
          %p869 = pneg %p487
        $region90: #{tpu_custom_call.1} parent=43 // pred_check_branch
          %871 = sbr.rel (%p869) target = $region92
        $region91: #{tpu_custom_call.1} parent=43 // pred_region
          %s872 = sand.u32 %s34, 1
          %s873 = scalar_lea.sflag [#allocation3], %s872
          %s874 = sand.u32 %s477, 1
          %s875 = scalar_lea.vmem [#allocation23], %s874
          %s877 = ssub.s32 16, 16
          %878 = vsyncadd %s873, %s877
          %s879 = smul.addr %s34, 16
          %s880 = scalar_lea.hbm %s18, %s879
          %s882 = sshll.u32 %s875, 4
          %s883 = int_to_ptr.vmem [resolvable:$true] %s882
          %885 = dma.hbm_to_vmem [thread:$0]  %s880, 16, %s883, %s873
        $region92: #{tpu_custom_call.1} parent=43 // pred_fallthru
          _
        // Predicated region
        $region93: #{tpu_custom_call.1} parent=43 // pred_check
          %p886 = pneg %p513
        $region94: #{tpu_custom_call.1} parent=43 // pred_check_branch
          %888 = sbr.rel (%p886) target = $region96
        $region95: #{tpu_custom_call.1} parent=43 // pred_region
          %s889 = sand.u32 %s34, 1
          %s890 = scalar_lea.sflag [#allocation3], %s889
          %s891 = sand.u32 %s503, 1
          %s892 = smul.addr %s891, 32
          %s893 = scalar_lea.vmem [#allocation24], %s892
          %s895 = ssub.s32 512, 512
          %896 = vsyncadd %s890, %s895
          %s897 = smul.addr %s34, 8
          %s898 = smul.addr %s897, 64
          %s899 = scalar_lea.hbm %s19, %s898
          %s900 = sshll.u32 %s893, 4
          %s901 = int_to_ptr.vmem [resolvable:$true] %s900
          %906 = dma.hbm_to_vmem [thread:$0]  %s899, 512, %s901, %s890, 64, 64, 4
        $region96: #{tpu_custom_call.1} parent=43 // pred_fallthru
          _
        // Predicated region
        $region97: #{tpu_custom_call.1} parent=43 // pred_check
          %p907 = pneg %p539
        $region98: #{tpu_custom_call.1} parent=43 // pred_check_branch
          %909 = sbr.rel (%p907) target = $region100
        $region99: #{tpu_custom_call.1} parent=43 // pred_region
          %s910 = sand.u32 %s34, 1
          %s911 = scalar_lea.sflag [#allocation3], %s910
          %s912 = sand.u32 %s529, 1
          %s913 = scalar_lea.vmem [#allocation25], %s912
          %s915 = ssub.s32 16, 16
          %916 = vsyncadd %s911, %s915
          %s917 = smul.addr %s34, 16
          %s918 = scalar_lea.hbm %s20, %s917
          %s920 = sshll.u32 %s913, 4
          %s921 = int_to_ptr.vmem [resolvable:$true] %s920
          %923 = dma.hbm_to_vmem [thread:$0]  %s918, 16, %s921, %s911
        $region100: #{tpu_custom_call.1} parent=43 // pred_fallthru
          _
      $region44: #{tpu_custom_call.1} parent=5 // pred_fallthru
        _
      %p924 = scmp.le.s32.totalorder 1, %s34
      %p925 = scmp.lt.s32.totalorder %s34, 3
      %p926 = pnand %p924, %p925
      %p927 = pneg %p926
      // Predicated region
      $region101: #{tpu_custom_call.1} parent=5 // pred_check
        _
      $region102: #{tpu_custom_call.1} parent=5 // pred_check_branch
        %929 = sbr.rel (%p926) target = $region104
      $region103: #{tpu_custom_call.1} parent=5 // pred_region
        %s930 = ssub.s32 %s34, 1
        // Predicated region
        $region105: #{tpu_custom_call.1} parent=103 // pred_check
          %p931 = pneg %p55
        $region106: #{tpu_custom_call.1} parent=103 // pred_check_branch
          %933 = sbr.rel (%p931) target = $region108
        $region107: #{tpu_custom_call.1} parent=103 // pred_region
          %934 = dma.done [#allocation3], 128
        $region108: #{tpu_custom_call.1} parent=103 // pred_fallthru
          _
        // Predicated region
        $region109: #{tpu_custom_call.1} parent=103 // pred_check
          %p935 = pneg %p76
        $region110: #{tpu_custom_call.1} parent=103 // pred_check_branch
          %937 = sbr.rel (%p935) target = $region112
        $region111: #{tpu_custom_call.1} parent=103 // pred_region
          %938 = dma.done [#allocation6], 320
        $region112: #{tpu_custom_call.1} parent=103 // pred_fallthru
          _
        // Predicated region
        $region113: #{tpu_custom_call.1} parent=103 // pred_check
          %p939 = pneg %p97
        $region114: #{tpu_custom_call.1} parent=103 // pred_check_branch
          %941 = sbr.rel (%p939) target = $region116
        $region115: #{tpu_custom_call.1} parent=103 // pred_region
          %942 = dma.done [#allocation6], 16
        $region116: #{tpu_custom_call.1} parent=103 // pred_fallthru
          _
        // Predicated region
        $region117: #{tpu_custom_call.1} parent=103 // pred_check
          %p943 = pneg %p118
        $region118: #{tpu_custom_call.1} parent=103 // pred_check_branch
          %945 = sbr.rel (%p943) target = $region120
        $region119: #{tpu_custom_call.1} parent=103 // pred_region
          %946 = dma.done [#allocation9], 320
        $region120: #{tpu_custom_call.1} parent=103 // pred_fallthru
          _
        // Predicated region
        $region121: #{tpu_custom_call.1} parent=103 // pred_check
          %p947 = pneg %p139
        $region122: #{tpu_custom_call.1} parent=103 // pred_check_branch
          %949 = sbr.rel (%p947) target = $region124
        $region123: #{tpu_custom_call.1} parent=103 // pred_region
          %950 = dma.done [#allocation9], 16
        $region124: #{tpu_custom_call.1} parent=103 // pred_fallthru
          _
        // Predicated region
        $region125: #{tpu_custom_call.1} parent=103 // pred_check
          %p951 = pneg %p181
        $region126: #{tpu_custom_call.1} parent=103 // pred_check_branch
          %953 = sbr.rel (%p951) target = $region128
        $region127: #{tpu_custom_call.1} parent=103 // pred_region
          %954 = dma.done [#allocation12], 16
        $region128: #{tpu_custom_call.1} parent=103 // pred_fallthru
          _
        %s955 = sand.u32 %s39, 1
        %s956 = scalar_lea.sflag [#allocation3], %s955
        %s957 = sand.u32 %s194, 1
        %s958 = smul.addr %s957, 256
        %s959 = scalar_lea.vmem [#allocation13], %s958
        // Predicated region
        $region129: #{tpu_custom_call.1} parent=103 // pred_check
          %p960 = pneg %p207
        $region130: #{tpu_custom_call.1} parent=103 // pred_check_branch
          %962 = sbr.rel (%p960) target = $region132
        $region131: #{tpu_custom_call.1} parent=103 // pred_region
          %963 = dma.done %s956, 4096
        $region132: #{tpu_custom_call.1} parent=103 // pred_fallthru
          _
        %s964 = sand.u32 %s39, 1
        %s965 = scalar_lea.sflag [#allocation3], %s964
        %s966 = sand.u32 %s220, 1
        %s967 = smul.addr %s966, 16
        %s968 = scalar_lea.vmem [#allocation14], %s967
        // Predicated region
        $region133: #{tpu_custom_call.1} parent=103 // pred_check
          %p969 = pneg %p233
        $region134: #{tpu_custom_call.1} parent=103 // pred_check_branch
          %971 = sbr.rel (%p969) target = $region136
        $region135: #{tpu_custom_call.1} parent=103 // pred_region
          %972 = dma.done %s965, 256
        $region136: #{tpu_custom_call.1} parent=103 // pred_fallthru
          _
        %s973 = sand.u32 %s39, 1
        %s974 = scalar_lea.sflag [#allocation3], %s973
        %s975 = sand.u32 %s246, 1
        %s976 = smul.addr %s975, 8192
        %s977 = scalar_lea.vmem [#allocation15], %s976
        // Predicated region
        $region137: #{tpu_custom_call.1} parent=103 // pred_check
          %p978 = pneg %p259
        $region138: #{tpu_custom_call.1} parent=103 // pred_check_branch
          %980 = sbr.rel (%p978) target = $region140
        $region139: #{tpu_custom_call.1} parent=103 // pred_region
          %981 = dma.done %s974, 131072
        $region140: #{tpu_custom_call.1} parent=103 // pred_fallthru
          _
        %s982 = sand.u32 %s39, 1
        %s983 = scalar_lea.sflag [#allocation3], %s982
        %s984 = sand.u32 %s272, 1
        %s985 = smul.addr %s984, 8
        %s986 = scalar_lea.vmem [#allocation16], %s985
        // Predicated region
        $region141: #{tpu_custom_call.1} parent=103 // pred_check
          %p987 = pneg %p285
        $region142: #{tpu_custom_call.1} parent=103 // pred_check_branch
          %989 = sbr.rel (%p987) target = $region144
        $region143: #{tpu_custom_call.1} parent=103 // pred_region
          %990 = dma.done %s983, 128
        $region144: #{tpu_custom_call.1} parent=103 // pred_fallthru
          _
        %s991 = sand.u32 %s39, 1
        %s992 = scalar_lea.sflag [#allocation3], %s991
        %s993 = sand.u32 %s298, 1
        %s994 = smul.addr %s993, 2048
        %s995 = scalar_lea.vmem [#allocation17], %s994
        // Predicated region
        $region145: #{tpu_custom_call.1} parent=103 // pred_check
          %p996 = pneg %p311
        $region146: #{tpu_custom_call.1} parent=103 // pred_check_branch
          %998 = sbr.rel (%p996) target = $region148
        $region147: #{tpu_custom_call.1} parent=103 // pred_region
          %999 = dma.done %s992, 32768
        $region148: #{tpu_custom_call.1} parent=103 // pred_fallthru
          _
        %s1000 = sand.u32 %s39, 1
        %s1001 = scalar_lea.sflag [#allocation3], %s1000
        %s1002 = sand.u32 %s324, 1
        %s1003 = smul.addr %s1002, 4
        %s1004 = scalar_lea.vmem [#allocation18], %s1003
        // Predicated region
        $region149: #{tpu_custom_call.1} parent=103 // pred_check
          %p1005 = pneg %p337
        $region150: #{tpu_custom_call.1} parent=103 // pred_check_branch
          %1007 = sbr.rel (%p1005) target = $region152
        $region151: #{tpu_custom_call.1} parent=103 // pred_region
          %1008 = dma.done %s1001, 64
        $region152: #{tpu_custom_call.1} parent=103 // pred_fallthru
          _
        %s1009 = sand.u32 %s39, 1
        %s1010 = scalar_lea.sflag [#allocation3], %s1009
        %s1011 = sand.u32 %s350, 1
        %s1012 = smul.addr %s1011, 512
        %s1013 = scalar_lea.vmem [#allocation19], %s1012
        // Predicated region
        $region153: #{tpu_custom_call.1} parent=103 // pred_check
          %p1014 = pneg %p363
        $region154: #{tpu_custom_call.1} parent=103 // pred_check_branch
          %1016 = sbr.rel (%p1014) target = $region156
        $region155: #{tpu_custom_call.1} parent=103 // pred_region
          %1017 = dma.done %s1010, 8192
        $region156: #{tpu_custom_call.1} parent=103 // pred_fallthru
          _
        %s1018 = sand.u32 %s39, 1
        %s1019 = scalar_lea.sflag [#allocation3], %s1018
        %s1020 = sand.u32 %s376, 1
        %s1021 = smul.addr %s1020, 2
        %s1022 = scalar_lea.vmem [#allocation20], %s1021
        // Predicated region
        $region157: #{tpu_custom_call.1} parent=103 // pred_check
          %p1023 = pneg %p389
        $region158: #{tpu_custom_call.1} parent=103 // pred_check_branch
          %1025 = sbr.rel (%p1023) target = $region160
        $region159: #{tpu_custom_call.1} parent=103 // pred_region
          %1026 = dma.done %s1019, 32
        $region160: #{tpu_custom_call.1} parent=103 // pred_fallthru
          _
        %s1027 = sand.u32 %s39, 1
        %s1028 = scalar_lea.sflag [#allocation3], %s1027
        %s1029 = sand.u32 %s402, 1
        %s1030 = smul.addr %s1029, 128
        %s1031 = scalar_lea.vmem [#allocation21], %s1030
        // Predicated region
        $region161: #{tpu_custom_call.1} parent=103 // pred_check
          %p1032 = pneg %p415
        $region162: #{tpu_custom_call.1} parent=103 // pred_check_branch
          %1034 = sbr.rel (%p1032) target = $region164
        $region163: #{tpu_custom_call.1} parent=103 // pred_region
          %1035 = dma.done %s1028, 2048
        $region164: #{tpu_custom_call.1} parent=103 // pred_fallthru
          _
        %s1036 = sand.u32 %s39, 1
        %s1037 = scalar_lea.sflag [#allocation3], %s1036
        %s1038 = sand.u32 %s428, 1
        %s1039 = scalar_lea.vmem [#allocation22], %s1038
        // Predicated region
        $region165: #{tpu_custom_call.1} parent=103 // pred_check
          %p1040 = pneg %p441
        $region166: #{tpu_custom_call.1} parent=103 // pred_check_branch
          %1042 = sbr.rel (%p1040) target = $region168
        $region167: #{tpu_custom_call.1} parent=103 // pred_region
          %1043 = dma.done %s1037, 16
        $region168: #{tpu_custom_call.1} parent=103 // pred_fallthru
          _
        %s1044 = sand.u32 %s39, 1
        %s1045 = scalar_lea.sflag [#allocation3], %s1044
        %s1046 = sand.u32 %s480, 1
        %s1047 = scalar_lea.vmem [#allocation23], %s1046
        // Predicated region
        $region169: #{tpu_custom_call.1} parent=103 // pred_check
          %p1048 = pneg %p493
        $region170: #{tpu_custom_call.1} parent=103 // pred_check_branch
          %1050 = sbr.rel (%p1048) target = $region172
        $region171: #{tpu_custom_call.1} parent=103 // pred_region
          %1051 = dma.done %s1045, 16
        $region172: #{tpu_custom_call.1} parent=103 // pred_fallthru
          _
        %s1052 = sand.u32 %s39, 1
        %s1053 = scalar_lea.sflag [#allocation3], %s1052
        %s1054 = sand.u32 %s506, 1
        %s1055 = smul.addr %s1054, 32
        %s1056 = scalar_lea.vmem [#allocation24], %s1055
        // Predicated region
        $region173: #{tpu_custom_call.1} parent=103 // pred_check
          %p1057 = pneg %p519
        $region174: #{tpu_custom_call.1} parent=103 // pred_check_branch
          %1059 = sbr.rel (%p1057) target = $region176
        $region175: #{tpu_custom_call.1} parent=103 // pred_region
          %1060 = dma.done %s1053, 512
        $region176: #{tpu_custom_call.1} parent=103 // pred_fallthru
          _
        %s1061 = sand.u32 %s39, 1
        %s1062 = scalar_lea.sflag [#allocation3], %s1061
        %s1063 = sand.u32 %s532, 1
        %s1064 = scalar_lea.vmem [#allocation25], %s1063
        // Predicated region
        $region177: #{tpu_custom_call.1} parent=103 // pred_check
          %p1065 = pneg %p545
        $region178: #{tpu_custom_call.1} parent=103 // pred_check_branch
          %1067 = sbr.rel (%p1065) target = $region180
        $region179: #{tpu_custom_call.1} parent=103 // pred_region
          %1068 = dma.done %s1062, 16
        $region180: #{tpu_custom_call.1} parent=103 // pred_fallthru
          _
        %p1069 = pneg %p55
        %p1070 = pneg %p52
        %p1071 = pneg %p76
        %p1072 = pneg %p73
        %p1073 = pneg %p97
        %p1074 = pneg %p94
        %p1075 = pneg %p118
        %p1076 = pneg %p115
        %p1077 = pneg %p139
        %p1078 = pneg %p136
        %p1079 = pneg %p160
        %p1080 = pneg %p157
        %p1081 = pneg %p181
        %p1082 = pneg %p178
        %s1083 = sand.u32 %s39, 1
        %s1084 = scalar_lea.sflag [#allocation3], %s1083
        %s1085 = sand.u32 %s194, 1
        %s1086 = smul.addr %s1085, 256
        %s1087 = scalar_lea.vmem [#allocation13], %s1086
        %p1088 = pneg %p207
        %p1089 = pneg %p204
        %s1090 = sand.u32 %s39, 1
        %s1091 = scalar_lea.sflag [#allocation3], %s1090
        %s1092 = sand.u32 %s220, 1
        %s1093 = smul.addr %s1092, 16
        %s1094 = scalar_lea.vmem [#allocation14], %s1093
        %p1095 = pneg %p233
        %p1096 = pneg %p230
        %s1097 = sand.u32 %s39, 1
        %s1098 = scalar_lea.sflag [#allocation3], %s1097
        %s1099 = sand.u32 %s246, 1
        %s1100 = smul.addr %s1099, 8192
        %s1101 = scalar_lea.vmem [#allocation15], %s1100
        %p1102 = pneg %p259
        %p1103 = pneg %p256
        %s1104 = sand.u32 %s39, 1
        %s1105 = scalar_lea.sflag [#allocation3], %s1104
        %s1106 = sand.u32 %s272, 1
        %s1107 = smul.addr %s1106, 8
        %s1108 = scalar_lea.vmem [#allocation16], %s1107
        %p1109 = pneg %p285
        %p1110 = pneg %p282
        %s1111 = sand.u32 %s39, 1
        %s1112 = scalar_lea.sflag [#allocation3], %s1111
        %s1113 = sand.u32 %s298, 1
        %s1114 = smul.addr %s1113, 2048
        %s1115 = scalar_lea.vmem [#allocation17], %s1114
        %p1116 = pneg %p311
        %p1117 = pneg %p308
        %s1118 = sand.u32 %s39, 1
        %s1119 = scalar_lea.sflag [#allocation3], %s1118
        %s1120 = sand.u32 %s324, 1
        %s1121 = smul.addr %s1120, 4
        %s1122 = scalar_lea.vmem [#allocation18], %s1121
        %p1123 = pneg %p337
        %p1124 = pneg %p334
        %s1125 = sand.u32 %s39, 1
        %s1126 = scalar_lea.sflag [#allocation3], %s1125
        %s1127 = sand.u32 %s350, 1
        %s1128 = smul.addr %s1127, 512
        %s1129 = scalar_lea.vmem [#allocation19], %s1128
        %p1130 = pneg %p363
        %p1131 = pneg %p360
        %s1132 = sand.u32 %s39, 1
        %s1133 = scalar_lea.sflag [#allocation3], %s1132
        %s1134 = sand.u32 %s376, 1
        %s1135 = smul.addr %s1134, 2
        %s1136 = scalar_lea.vmem [#allocation20], %s1135
        %p1137 = pneg %p389
        %p1138 = pneg %p386
        %s1139 = sand.u32 %s39, 1
        %s1140 = scalar_lea.sflag [#allocation3], %s1139
        %s1141 = sand.u32 %s402, 1
        %s1142 = smul.addr %s1141, 128
        %s1143 = scalar_lea.vmem [#allocation21], %s1142
        %p1144 = pneg %p415
        %p1145 = pneg %p412
        %s1146 = sand.u32 %s39, 1
        %s1147 = scalar_lea.sflag [#allocation3], %s1146
        %s1148 = sand.u32 %s428, 1
        %s1149 = scalar_lea.vmem [#allocation22], %s1148
        %p1150 = pneg %p441
        %p1151 = pneg %p438
        %p1152 = scmp.lt.s32.totalorder %s39, 1
        %s1153 = scalar_select %p1152, %s39, 1
        %s1154 = smul.addr %s1153, 16
        %s1155 = smul.addr %s1154, 4
        %s1156 = scalar_lea.vmem %s17, %s1155
        %p1157 = pneg %p467
        %p1158 = pneg %p464
        %s1159 = sand.u32 %s39, 1
        %s1160 = scalar_lea.sflag [#allocation3], %s1159
        %s1161 = sand.u32 %s480, 1
        %s1162 = scalar_lea.vmem [#allocation23], %s1161
        %p1163 = pneg %p493
        %p1164 = pneg %p490
        %s1165 = sand.u32 %s39, 1
        %s1166 = scalar_lea.sflag [#allocation3], %s1165
        %s1167 = sand.u32 %s506, 1
        %s1168 = smul.addr %s1167, 32
        %s1169 = scalar_lea.vmem [#allocation24], %s1168
        %p1170 = pneg %p519
        %p1171 = pneg %p516
        %s1172 = sand.u32 %s39, 1
        %s1173 = scalar_lea.sflag [#allocation3], %s1172
        %s1174 = sand.u32 %s532, 1
        %s1175 = scalar_lea.vmem [#allocation25], %s1174
        %p1176 = pneg %p545
        %p1177 = pneg %p542
        %p1178 = pneg %p571
        %p1179 = pneg %p568
        %s1180 = sand.u32 %s558, 1
        %s1181 = scalar_lea.sflag [#allocation4], %s1180
        %s1182 = sand.u32 %s558, 1
        %s1183 = smul.addr %s1182, 8
        %s1184 = scalar_lea.vmem [#allocation26], %s1183
        %p1185 = scmp.lt.s32.totalorder %s39, 1
        %s1186 = scalar_select %p1185, %s39, 1
        %s1187 = smul.addr %s1186, 16
        %s1188 = smul.addr %s1187, 4
        %s1189 = scalar_lea.vmem %s17, %s1188
        %v1191 = vld [vmem:[#allocation2] sm:$0xff]
        %v1192 = vpack.c.bf16 %v1191, %v1191
        %v1193 = vld [vmem:[#allocation5] sm:$0xf]
        %v1194 = vld [vmem:[#allocation5 + $0x4] sm:$0xf]
        %v1195 = vld [vmem:[#allocation5 + $0x8] sm:$0xf]
        %v1196 = vld [vmem:[#allocation5 + $0xc] sm:$0xf]
        %v1197 = vld [vmem:[#allocation5 + $0x10] sm:$0xf]
        %v1198 = vld [vmem:[#allocation7] sm:$0x1]
        %v1200 = vlaneseq
        %v1201 = vshrl.u32 %v1200, 7
        %v1202 = vsub.s32 0, %v1201
        %v1203 = vrot.slane %v1198, %v1202
        %v1210 = vunpack.c.l.b16 %v1193
        %v1211 = vunpack.c.l.b16 %v1194
        %v1212 = vunpack.c.l.b16 %v1195
        %v1213 = vunpack.c.l.b16 %v1196
        %v1214 = vunpack.c.l.b16 %v1197
        %v1215 = vpack.c.b16 %v1211, %v1210
        %v1216 = vpack.c.b16 %v1213, %v1212
        %v1217 = vpack.c.b16 %v1214, %v1214
        %vm1220 = vcmask 326656
        %v1222 = vsel %vm1220, %v1192, 0
        %vm1224 = vcmask 1043456
        %v1226 = vsel %vm1224, %v1217, 0
        %1228 = vmatprep.subr.bf16.mxu0 0
        %1229 = vmatpush1.bf16.msra.mxu0 %v1215
        %1230 = vmatprep.subr.bf16.mxu0 0
        %1231 = vmatpush1.bf16.msra.mxu0 %v1216
        %1232 = vmatprep.subr.bf16.mxu0 0
        %1233 = vmatpush1.bf16.msra.mxu0 %v1226
        %1234 = vmatprep.subr.bf16.mxu0 0
        %1235 = vmatpush1.bf16.msra.mxu0 0
        %1236 = vmatprep.subr.bf16.mxu0 0
        %1237 = vmatpush1.bf16.msra.mxu0 0
        %1238 = vmatprep.subr.bf16.mxu0 0
        %1239 = vmatpush1.bf16.msra.mxu0 0
        %1240 = vmatprep.subr.bf16.mxu0 0
        %1241 = vmatpush1.bf16.msra.mxu0 0
        %1242 = vmatprep.subr.bf16.mxu0 0
        %1243 = vmatpush1.bf16.msra.mxu0 0
        %1244 = vmatprep.subr.bf16.mxu0 0
        %1245 = vmatpush1.bf16.msra.mxu0 0
        %1246 = vmatprep.subr.bf16.mxu0 0
        %1247 = vmatpush1.bf16.msra.mxu0 0
        %1248 = vmatprep.subr.bf16.mxu0 0
        %1249 = vmatpush1.bf16.msra.mxu0 0
        %1250 = vmatprep.subr.bf16.mxu0 0
        %1251 = vmatpush1.bf16.msra.mxu0 0
        %1252 = vmatprep.subr.bf16.mxu0 0
        %1253 = vmatpush1.bf16.msra.mxu0 0
        %1254 = vmatprep.subr.bf16.mxu0 0
        %1255 = vmatpush1.bf16.msra.mxu0 0
        %1256 = vmatprep.subr.bf16.mxu0 0
        %1257 = vmatpush1.bf16.msra.mxu0 0
        %1258 = vmatprep.subr.bf16.mxu0 0
        %1259 = vmatpush1.bf16.msra.mxu0 0
        %1260 = vmatprep.mubr.bf16.mxu0 0
        %1261 = vmatmul.mubr.bf16.gmra.mrb[0].mxu0 %v1222
        %v1262 = vpop.f32.mrb[0].mxu0
        %v1263 = vadd.f32 %v1203, %v1262
        %v1264 = vpop.f32.mrb[0].mxu0
        %v1265 = vpop.f32.mrb[0].mxu0
        %v1266 = vpop.f32.mrb[0].mxu0
        %1267 = vdwg.mxu0
        %v1268 = vtanh.pop %v1263
        %v1269 = vpack.c.bf16 %v1268, %v1268
        %v1270 = vld [vmem:[#allocation8] sm:$0xf]
        %v1271 = vld [vmem:[#allocation8 + $0x4] sm:$0xf]
        %v1272 = vld [vmem:[#allocation8 + $0x8] sm:$0xf]
        %v1273 = vld [vmem:[#allocation8 + $0xc] sm:$0xf]
        %v1274 = vld [vmem:[#allocation8 + $0x10] sm:$0x3]
        %v1275 = vld [vmem:[#allocation10] sm:$0x1]
        %v1277 = vlaneseq
        %v1278 = vshrl.u32 %v1277, 7
        %v1279 = vsub.s32 0, %v1278
        %v1280 = vrot.slane %v1275, %v1279
        %v1287 = vunpack.c.l.b16 %v1270
        %v1288 = vunpack.c.l.b16 %v1271
        %v1289 = vunpack.c.l.b16 %v1272
        %v1290 = vunpack.c.l.b16 %v1273
        %v1291 = vunpack.c.l.b16 %v1274
        %v1292 = vpack.c.b16 %v1288, %v1287
        %v1293 = vpack.c.b16 %v1290, %v1289
        %v1294 = vpack.c.b16 %v1291, %v1291
        %vm1297 = vcmask 293888
        %v1299 = vsel %vm1297, %v1269, 0
        %vm1301 = vcmask 1041408
        %v1303 = vsel %vm1301, %v1294, 0
        %1305 = vmatprep.subr.bf16.mxu0 0
        %1306 = vmatpush1.bf16.msra.mxu0 %v1292
        %1307 = vmatprep.subr.bf16.mxu0 0
        %1308 = vmatpush1.bf16.msra.mxu0 %v1293
        %1309 = vmatprep.subr.bf16.mxu0 0
        %1310 = vmatpush1.bf16.msra.mxu0 %v1303
        %1311 = vmatprep.subr.bf16.mxu0 0
        %1312 = vmatpush1.bf16.msra.mxu0 0
        %1313 = vmatprep.subr.bf16.mxu0 0
        %1314 = vmatpush1.bf16.msra.mxu0 0
        %1315 = vmatprep.subr.bf16.mxu0 0
        %1316 = vmatpush1.bf16.msra.mxu0 0
        %1317 = vmatprep.subr.bf16.mxu0 0
        %1318 = vmatpush1.bf16.msra.mxu0 0
        %1319 = vmatprep.subr.bf16.mxu0 0
        %1320 = vmatpush1.bf16.msra.mxu0 0
        %1321 = vmatprep.subr.bf16.mxu0 0
        %1322 = vmatpush1.bf16.msra.mxu0 0
        %1323 = vmatprep.subr.bf16.mxu0 0
        %1324 = vmatpush1.bf16.msra.mxu0 0
        %1325 = vmatprep.subr.bf16.mxu0 0
        %1326 = vmatpush1.bf16.msra.mxu0 0
        %1327 = vmatprep.subr.bf16.mxu0 0
        %1328 = vmatpush1.bf16.msra.mxu0 0
        %1329 = vmatprep.subr.bf16.mxu0 0
        %1330 = vmatpush1.bf16.msra.mxu0 0
        %1331 = vmatprep.subr.bf16.mxu0 0
        %1332 = vmatpush1.bf16.msra.mxu0 0
        %1333 = vmatprep.subr.bf16.mxu0 0
        %1334 = vmatpush1.bf16.msra.mxu0 0
        %1335 = vmatprep.subr.bf16.mxu0 0
        %1336 = vmatpush1.bf16.msra.mxu0 0
        %1337 = vmatprep.mubr.bf16.mxu0 0
        %1338 = vmatmul.mubr.bf16.gmra.mrb[0].mxu0 %v1299
        %v1339 = vpop.f32.mrb[0].mxu0
        %v1340 = vadd.f32 %v1280, %v1339
        %v1341 = vpop.f32.mrb[0].mxu0
        %v1342 = vpop.f32.mrb[0].mxu0
        %v1343 = vpop.f32.mrb[0].mxu0
        %1344 = vdwg.mxu0
        %v1345 = vtanh.pop %v1340
        %v1346 = vpack.c.bf16 %v1345, %v1345
        %v1347 = vld [vmem:[%s5] sm:$0xf]
        %v1348 = vld [vmem:[%s5 + $0x4] sm:$0xf]
        %v1349 = vld [vmem:[%s5 + $0x8] sm:$0xf]
        %v1350 = vld [vmem:[%s5 + $0xc] sm:$0xf]
        %v1351 = vld [vmem:[%s5 + $0x10] sm:$0x1]
        %v1352 = vld [vmem:[#allocation11] sm:$0x1]
        %v1354 = vlaneseq
        %v1355 = vshrl.u32 %v1354, 7
        %v1356 = vsub.s32 0, %v1355
        %v1357 = vrot.slane %v1352, %v1356
        %v1364 = vunpack.c.l.b16 %v1347
        %v1365 = vunpack.c.l.b16 %v1348
        %v1366 = vunpack.c.l.b16 %v1349
        %v1367 = vunpack.c.l.b16 %v1350
        %v1368 = vunpack.c.l.b16 %v1351
        %v1369 = vpack.c.b16 %v1365, %v1364
        %v1370 = vpack.c.b16 %v1367, %v1366
        %v1371 = vpack.c.b16 %v1368, %v1368
        %vm1374 = vcmask 277504
        %v1376 = vsel %vm1374, %v1346, 0
        %vm1378 = vcmask 1040384
        %v1380 = vsel %vm1378, %v1371, 0
        %1382 = vmatprep.subr.bf16.mxu0 0
        %1383 = vmatpush1.bf16.msra.mxu0 %v1369
        %1384 = vmatprep.subr.bf16.mxu0 0
        %1385 = vmatpush1.bf16.msra.mxu0 %v1370
        %1386 = vmatprep.subr.bf16.mxu0 0
        %1387 = vmatpush1.bf16.msra.mxu0 %v1380
        %1388 = vmatprep.subr.bf16.mxu0 0
        %1389 = vmatpush1.bf16.msra.mxu0 0
        %1390 = vmatprep.subr.bf16.mxu0 0
        %1391 = vmatpush1.bf16.msra.mxu0 0
        %1392 = vmatprep.subr.bf16.mxu0 0
        %1393 = vmatpush1.bf16.msra.mxu0 0
        %1394 = vmatprep.subr.bf16.mxu0 0
        %1395 = vmatpush1.bf16.msra.mxu0 0
        %1396 = vmatprep.subr.bf16.mxu0 0
        %1397 = vmatpush1.bf16.msra.mxu0 0
        %1398 = vmatprep.subr.bf16.mxu0 0
        %1399 = vmatpush1.bf16.msra.mxu0 0
        %1400 = vmatprep.subr.bf16.mxu0 0
        %1401 = vmatpush1.bf16.msra.mxu0 0
        %1402 = vmatprep.subr.bf16.mxu0 0
        %1403 = vmatpush1.bf16.msra.mxu0 0
        %1404 = vmatprep.subr.bf16.mxu0 0
        %1405 = vmatpush1.bf16.msra.mxu0 0
        %1406 = vmatprep.subr.bf16.mxu0 0
        %1407 = vmatpush1.bf16.msra.mxu0 0
        %1408 = vmatprep.subr.bf16.mxu0 0
        %1409 = vmatpush1.bf16.msra.mxu0 0
        %1410 = vmatprep.subr.bf16.mxu0 0
        %1411 = vmatpush1.bf16.msra.mxu0 0
        %1412 = vmatprep.subr.bf16.mxu0 0
        %1413 = vmatpush1.bf16.msra.mxu0 0
        %1414 = vmatprep.mubr.bf16.mxu0 0
        %1415 = vmatmul.mubr.bf16.gmra.mrb[0].mxu0 %v1376
        %v1416 = vpop.f32.mrb[0].mxu0
        %v1417 = vadd.f32 %v1357, %v1416
        %v1418 = vpop.f32.mrb[0].mxu0
        %v1419 = vpop.f32.mrb[0].mxu0
        %v1420 = vpop.f32.mrb[0].mxu0
        %1421 = vdwg.mxu0
        %v1422 = vtanh.pop %v1417
        %v1423 = vpack.c.bf16 %v1422, %v1422
        %v1424 = vld [vmem:[%s959] sm:$0xff]
        %v1425 = vld [vmem:[%s959 + $0x8] sm:$0xff]
        %v1426 = vld [vmem:[%s959 + $0x10] sm:$0xff]
        %v1427 = vld [vmem:[%s959 + $0x18] sm:$0xff]
        %v1428 = vld [vmem:[%s959 + $0x20] sm:$0xff]
        %v1429 = vld [vmem:[%s959 + $0x28] sm:$0xff]
        %v1430 = vld [vmem:[%s959 + $0x30] sm:$0xff]
        %v1431 = vld [vmem:[%s959 + $0x38] sm:$0xff]
        %v1432 = vld [vmem:[%s959 + $0x40] sm:$0xff]
        %v1433 = vld [vmem:[%s959 + $0x48] sm:$0xff]
        %v1434 = vld [vmem:[%s959 + $0x50] sm:$0xff]
        %v1435 = vld [vmem:[%s959 + $0x58] sm:$0xff]
        %v1436 = vld [vmem:[%s959 + $0x60] sm:$0xff]
        %v1437 = vld [vmem:[%s959 + $0x68] sm:$0xff]
        %v1438 = vld [vmem:[%s959 + $0x70] sm:$0xff]
        %v1439 = vld [vmem:[%s959 + $0x78] sm:$0xff]
        %v1440 = vld [vmem:[%s959 + $0x80] sm:$0xff]
        %v1441 = vld [vmem:[%s959 + $0x88] sm:$0xff]
        %v1442 = vld [vmem:[%s959 + $0x90] sm:$0xff]
        %v1443 = vld [vmem:[%s959 + $0x98] sm:$0xff]
        %v1444 = vld [vmem:[%s959 + $0xa0] sm:$0xff]
        %v1445 = vld [vmem:[%s959 + $0xa8] sm:$0xff]
        %v1446 = vld [vmem:[%s959 + $0xb0] sm:$0xff]
        %v1447 = vld [vmem:[%s959 + $0xb8] sm:$0xff]
        %v1448 = vld [vmem:[%s959 + $0xc0] sm:$0xff]
        %v1449 = vld [vmem:[%s959 + $0xc8] sm:$0xff]
        %v1450 = vld [vmem:[%s959 + $0xd0] sm:$0xff]
        %v1451 = vld [vmem:[%s959 + $0xd8] sm:$0xff]
        %v1452 = vld [vmem:[%s959 + $0xe0] sm:$0xff]
        %v1453 = vld [vmem:[%s959 + $0xe8] sm:$0xff]
        %v1454 = vld [vmem:[%s959 + $0xf0] sm:$0xff]
        %v1455 = vld [vmem:[%s959 + $0xf8] sm:$0xff]
        %v1456 = vld [vmem:[%s968] sm:$0xff]
        %v1457 = vld [vmem:[%s968 + $0x8] sm:$0xff]
        %v1460 = vlaneseq
        %v1461 = vshrl.u32 %v1460, 7
        %v1462 = vsub.s32 0, %v1461
        %v1463 = vrot.slane %v1456, %v1462
        %v1464 = vlaneseq
        %v1465 = vshrl.u32 %v1464, 7
        %v1466 = vsub.s32 1, %v1465
        %v1467 = vrot.slane %v1456, %v1466
        %v1468 = vlaneseq
        %v1469 = vshrl.u32 %v1468, 7
        %v1470 = vsub.s32 2, %v1469
        %v1471 = vrot.slane %v1456, %v1470
        %v1472 = vlaneseq
        %v1473 = vshrl.u32 %v1472, 7
        %v1474 = vsub.s32 3, %v1473
        %v1475 = vrot.slane %v1456, %v1474
        %v1476 = vlaneseq
        %v1477 = vshrl.u32 %v1476, 7
        %v1478 = vsub.s32 4, %v1477
        %v1479 = vrot.slane %v1456, %v1478
        %v1480 = vlaneseq
        %v1481 = vshrl.u32 %v1480, 7
        %v1482 = vsub.s32 5, %v1481
        %v1483 = vrot.slane %v1456, %v1482
        %v1484 = vlaneseq
        %v1485 = vshrl.u32 %v1484, 7
        %v1486 = vsub.s32 6, %v1485
        %v1487 = vrot.slane %v1456, %v1486
        %v1488 = vlaneseq
        %v1489 = vshrl.u32 %v1488, 7
        %v1490 = vsub.s32 7, %v1489
        %v1491 = vrot.slane %v1456, %v1490
        %v1492 = vlaneseq
        %v1493 = vshrl.u32 %v1492, 7
        %v1494 = vsub.s32 0, %v1493
        %v1495 = vrot.slane %v1457, %v1494
        %v1496 = vlaneseq
        %v1497 = vshrl.u32 %v1496, 7
        %v1498 = vsub.s32 1, %v1497
        %v1499 = vrot.slane %v1457, %v1498
        %v1500 = vlaneseq
        %v1501 = vshrl.u32 %v1500, 7
        %v1502 = vsub.s32 2, %v1501
        %v1503 = vrot.slane %v1457, %v1502
        %v1504 = vlaneseq
        %v1505 = vshrl.u32 %v1504, 7
        %v1506 = vsub.s32 3, %v1505
        %v1507 = vrot.slane %v1457, %v1506
        %v1508 = vlaneseq
        %v1509 = vshrl.u32 %v1508, 7
        %v1510 = vsub.s32 4, %v1509
        %v1511 = vrot.slane %v1457, %v1510
        %v1512 = vlaneseq
        %v1513 = vshrl.u32 %v1512, 7
        %v1514 = vsub.s32 5, %v1513
        %v1515 = vrot.slane %v1457, %v1514
        %v1516 = vlaneseq
        %v1517 = vshrl.u32 %v1516, 7
        %v1518 = vsub.s32 6, %v1517
        %v1519 = vrot.slane %v1457, %v1518
        %v1520 = vlaneseq
        %v1521 = vshrl.u32 %v1520, 7
        %v1522 = vsub.s32 7, %v1521
        %v1523 = vrot.slane %v1457, %v1522
        %v1572 = vunpack.c.l.b16 %v1424
        %v1573 = vunpack.c.h.b16 %v1424
        %v1574 = vunpack.c.l.b16 %v1425
        %v1575 = vunpack.c.h.b16 %v1425
        %v1576 = vunpack.c.l.b16 %v1426
        %v1577 = vunpack.c.h.b16 %v1426
        %v1578 = vunpack.c.l.b16 %v1427
        %v1579 = vunpack.c.h.b16 %v1427
        %v1580 = vunpack.c.l.b16 %v1428
        %v1581 = vunpack.c.h.b16 %v1428
        %v1582 = vunpack.c.l.b16 %v1429
        %v1583 = vunpack.c.h.b16 %v1429
        %v1584 = vunpack.c.l.b16 %v1430
        %v1585 = vunpack.c.h.b16 %v1430
        %v1586 = vunpack.c.l.b16 %v1431
        %v1587 = vunpack.c.h.b16 %v1431
        %v1588 = vunpack.c.l.b16 %v1432
        %v1589 = vunpack.c.h.b16 %v1432
        %v1590 = vunpack.c.l.b16 %v1433
        %v1591 = vunpack.c.h.b16 %v1433
        %v1592 = vunpack.c.l.b16 %v1434
        %v1593 = vunpack.c.h.b16 %v1434
        %v1594 = vunpack.c.l.b16 %v1435
        %v1595 = vunpack.c.h.b16 %v1435
        %v1596 = vunpack.c.l.b16 %v1436
        %v1597 = vunpack.c.h.b16 %v1436
        %v1598 = vunpack.c.l.b16 %v1437
        %v1599 = vunpack.c.h.b16 %v1437
        %v1600 = vunpack.c.l.b16 %v1438
        %v1601 = vunpack.c.h.b16 %v1438
        %v1602 = vunpack.c.l.b16 %v1439
        %v1603 = vunpack.c.h.b16 %v1439
        %v1604 = vunpack.c.l.b16 %v1440
        %v1605 = vunpack.c.h.b16 %v1440
        %v1606 = vunpack.c.l.b16 %v1441
        %v1607 = vunpack.c.h.b16 %v1441
        %v1608 = vunpack.c.l.b16 %v1442
        %v1609 = vunpack.c.h.b16 %v1442
        %v1610 = vunpack.c.l.b16 %v1443
        %v1611 = vunpack.c.h.b16 %v1443
        %v1612 = vunpack.c.l.b16 %v1444
        %v1613 = vunpack.c.h.b16 %v1444
        %v1614 = vunpack.c.l.b16 %v1445
        %v1615 = vunpack.c.h.b16 %v1445
        %v1616 = vunpack.c.l.b16 %v1446
        %v1617 = vunpack.c.h.b16 %v1446
        %v1618 = vunpack.c.l.b16 %v1447
        %v1619 = vunpack.c.h.b16 %v1447
        %v1620 = vunpack.c.l.b16 %v1448
        %v1621 = vunpack.c.h.b16 %v1448
        %v1622 = vunpack.c.l.b16 %v1449
        %v1623 = vunpack.c.h.b16 %v1449
        %v1624 = vunpack.c.l.b16 %v1450
        %v1625 = vunpack.c.h.b16 %v1450
        %v1626 = vunpack.c.l.b16 %v1451
        %v1627 = vunpack.c.h.b16 %v1451
        %v1628 = vunpack.c.l.b16 %v1452
        %v1629 = vunpack.c.h.b16 %v1452
        %v1630 = vunpack.c.l.b16 %v1453
        %v1631 = vunpack.c.h.b16 %v1453
        %v1632 = vunpack.c.l.b16 %v1454
        %v1633 = vunpack.c.h.b16 %v1454
        %v1634 = vunpack.c.l.b16 %v1455
        %v1635 = vunpack.c.h.b16 %v1455
        %v1636 = vpack.c.b16 %v1588, %v1572
        %v1637 = vpack.c.b16 %v1589, %v1573
        %v1638 = vpack.c.b16 %v1590, %v1574
        %v1639 = vpack.c.b16 %v1591, %v1575
        %v1640 = vpack.c.b16 %v1592, %v1576
        %v1641 = vpack.c.b16 %v1593, %v1577
        %v1642 = vpack.c.b16 %v1594, %v1578
        %v1643 = vpack.c.b16 %v1595, %v1579
        %v1644 = vpack.c.b16 %v1596, %v1580
        %v1645 = vpack.c.b16 %v1597, %v1581
        %v1646 = vpack.c.b16 %v1598, %v1582
        %v1647 = vpack.c.b16 %v1599, %v1583
        %v1648 = vpack.c.b16 %v1600, %v1584
        %v1649 = vpack.c.b16 %v1601, %v1585
        %v1650 = vpack.c.b16 %v1602, %v1586
        %v1651 = vpack.c.b16 %v1603, %v1587
        %v1652 = vpack.c.b16 %v1620, %v1604
        %v1653 = vpack.c.b16 %v1621, %v1605
        %v1654 = vpack.c.b16 %v1622, %v1606
        %v1655 = vpack.c.b16 %v1623, %v1607
        %v1656 = vpack.c.b16 %v1624, %v1608
        %v1657 = vpack.c.b16 %v1625, %v1609
        %v1658 = vpack.c.b16 %v1626, %v1610
        %v1659 = vpack.c.b16 %v1627, %v1611
        %v1660 = vpack.c.b16 %v1628, %v1612
        %v1661 = vpack.c.b16 %v1629, %v1613
        %v1662 = vpack.c.b16 %v1630, %v1614
        %v1663 = vpack.c.b16 %v1631, %v1615
        %v1664 = vpack.c.b16 %v1632, %v1616
        %v1665 = vpack.c.b16 %v1633, %v1617
        %v1666 = vpack.c.b16 %v1634, %v1618
        %v1667 = vpack.c.b16 %v1635, %v1619
        %vm1700 = vcmask 261120
        %v1702 = vsel %vm1700, %v1423, 0
        %1704 = vmatprep.subr.bf16.mxu0 %v1637
        %1705 = vmatpush1.bf16.msra.mxu0 %v1636
        %1706 = vmatprep.subr.bf16.mxu0 %v1653
        %1707 = vmatpush1.bf16.msra.mxu0 %v1652
        %1708 = vmatprep.subr.bf16.mxu0 0
        %1709 = vmatpush1.bf16.msra.mxu0 0
        %1710 = vmatprep.subr.bf16.mxu0 0
        %1711 = vmatpush1.bf16.msra.mxu0 0
        %1712 = vmatprep.subr.bf16.mxu0 0
        %1713 = vmatpush1.bf16.msra.mxu0 0
        %1714 = vmatprep.subr.bf16.mxu0 0
        %1715 = vmatpush1.bf16.msra.mxu0 0
        %1716 = vmatprep.subr.bf16.mxu0 0
        %1717 = vmatpush1.bf16.msra.mxu0 0
        %1718 = vmatprep.subr.bf16.mxu0 0
        %1719 = vmatpush1.bf16.msra.mxu0 0
        %1720 = vmatprep.subr.bf16.mxu0 0
        %1721 = vmatpush1.bf16.msra.mxu0 0
        %1722 = vmatprep.subr.bf16.mxu0 0
        %1723 = vmatpush1.bf16.msra.mxu0 0
        %1724 = vmatprep.subr.bf16.mxu0 0
        %1725 = vmatpush1.bf16.msra.mxu0 0
        %1726 = vmatprep.subr.bf16.mxu0 0
        %1727 = vmatpush1.bf16.msra.mxu0 0
        %1728 = vmatprep.subr.bf16.mxu0 0
        %1729 = vmatpush1.bf16.msra.mxu0 0
        %1730 = vmatprep.subr.bf16.mxu0 0
        %1731 = vmatpush1.bf16.msra.mxu0 0
        %1732 = vmatprep.subr.bf16.mxu0 0
        %1733 = vmatpush1.bf16.msra.mxu0 0
        %1734 = vmatprep.subr.bf16.mxu0 0
        %1735 = vmatpush1.bf16.msra.mxu0 0
        %1736 = vmatprep.mubr.bf16.mxu0 0
        %1737 = vmatmul.mubr.bf16.gmra.mrb[0].mxu0 %v1702
        %v1738 = vpop.f32.mrb[0].mxu0
        %v1739 = vadd.f32 %v1463, %v1738
        %v1740 = vpop.f32.mrb[0].mxu0
        %v1741 = vadd.f32 %v1467, %v1740
        %v1742 = vpop.f32.mrb[0].mxu0
        %v1743 = vpop.f32.mrb[0].mxu0
        %1744 = vdwg.mxu0
        %1745 = vmatprep.subr.bf16.mxu0 %v1639
        %1746 = vmatpush1.bf16.msra.mxu0 %v1638
        %1747 = vmatprep.subr.bf16.mxu0 %v1655
        %1748 = vmatpush1.bf16.msra.mxu0 %v1654
        %1749 = vmatprep.subr.bf16.mxu0 0
        %1750 = vmatpush1.bf16.msra.mxu0 0
        %1751 = vmatprep.subr.bf16.mxu0 0
        %1752 = vmatpush1.bf16.msra.mxu0 0
        %1753 = vmatprep.subr.bf16.mxu0 0
        %1754 = vmatpush1.bf16.msra.mxu0 0
        %1755 = vmatprep.subr.bf16.mxu0 0
        %1756 = vmatpush1.bf16.msra.mxu0 0
        %1757 = vmatprep.subr.bf16.mxu0 0
        %1758 = vmatpush1.bf16.msra.mxu0 0
        %1759 = vmatprep.subr.bf16.mxu0 0
        %1760 = vmatpush1.bf16.msra.mxu0 0
        %1761 = vmatprep.subr.bf16.mxu0 0
        %1762 = vmatpush1.bf16.msra.mxu0 0
        %1763 = vmatprep.subr.bf16.mxu0 0
        %1764 = vmatpush1.bf16.msra.mxu0 0
        %1765 = vmatprep.subr.bf16.mxu0 0
        %1766 = vmatpush1.bf16.msra.mxu0 0
        %1767 = vmatprep.subr.bf16.mxu0 0
        %1768 = vmatpush1.bf16.msra.mxu0 0
        %1769 = vmatprep.subr.bf16.mxu0 0
        %1770 = vmatpush1.bf16.msra.mxu0 0
        %1771 = vmatprep.subr.bf16.mxu0 0
        %1772 = vmatpush1.bf16.msra.mxu0 0
        %1773 = vmatprep.subr.bf16.mxu0 0
        %1774 = vmatpush1.bf16.msra.mxu0 0
        %1775 = vmatprep.subr.bf16.mxu0 0
        %1776 = vmatpush1.bf16.msra.mxu0 0
        %1777 = vmatprep.mubr.bf16.mxu0 0
        %1778 = vmatmul.mubr.bf16.gmra.mrb[0].mxu0 %v1702
        %v1779 = vpop.f32.mrb[0].mxu0
        %v1780 = vadd.f32 %v1471, %v1779
        %v1781 = vpop.f32.mrb[0].mxu0
        %v1782 = vadd.f32 %v1475, %v1781
        %v1783 = vpop.f32.mrb[0].mxu0
        %v1784 = vpop.f32.mrb[0].mxu0
        %1785 = vdwg.mxu0
        %1786 = vmatprep.subr.bf16.mxu0 %v1641
        %1787 = vmatpush1.bf16.msra.mxu0 %v1640
        %1788 = vmatprep.subr.bf16.mxu0 %v1657
        %1789 = vmatpush1.bf16.msra.mxu0 %v1656
        %1790 = vmatprep.subr.bf16.mxu0 0
        %1791 = vmatpush1.bf16.msra.mxu0 0
        %1792 = vmatprep.subr.bf16.mxu0 0
        %1793 = vmatpush1.bf16.msra.mxu0 0
        %1794 = vmatprep.subr.bf16.mxu0 0
        %1795 = vmatpush1.bf16.msra.mxu0 0
        %1796 = vmatprep.subr.bf16.mxu0 0
        %1797 = vmatpush1.bf16.msra.mxu0 0
        %1798 = vmatprep.subr.bf16.mxu0 0
        %1799 = vmatpush1.bf16.msra.mxu0 0
        %1800 = vmatprep.subr.bf16.mxu0 0
        %1801 = vmatpush1.bf16.msra.mxu0 0
        %1802 = vmatprep.subr.bf16.mxu0 0
        %1803 = vmatpush1.bf16.msra.mxu0 0
        %1804 = vmatprep.subr.bf16.mxu0 0
        %1805 = vmatpush1.bf16.msra.mxu0 0
        %1806 = vmatprep.subr.bf16.mxu0 0
        %1807 = vmatpush1.bf16.msra.mxu0 0
        %1808 = vmatprep.subr.bf16.mxu0 0
        %1809 = vmatpush1.bf16.msra.mxu0 0
        %1810 = vmatprep.subr.bf16.mxu0 0
        %1811 = vmatpush1.bf16.msra.mxu0 0
        %1812 = vmatprep.subr.bf16.mxu0 0
        %1813 = vmatpush1.bf16.msra.mxu0 0
        %1814 = vmatprep.subr.bf16.mxu0 0
        %1815 = vmatpush1.bf16.msra.mxu0 0
        %1816 = vmatprep.subr.bf16.mxu0 0
        %1817 = vmatpush1.bf16.msra.mxu0 0
        %1818 = vmatprep.mubr.bf16.mxu0 0
        %1819 = vmatmul.mubr.bf16.gmra.mrb[0].mxu0 %v1702
        %v1820 = vpop.f32.mrb[0].mxu0
        %v1821 = vadd.f32 %v1479, %v1820
        %v1822 = vpop.f32.mrb[0].mxu0
        %v1823 = vadd.f32 %v1483, %v1822
        %v1824 = vpop.f32.mrb[0].mxu0
        %v1825 = vpop.f32.mrb[0].mxu0
        %1826 = vdwg.mxu0
        %1827 = vmatprep.subr.bf16.mxu0 %v1643
        %1828 = vmatpush1.bf16.msra.mxu0 %v1642
        %1829 = vmatprep.subr.bf16.mxu0 %v1659
        %1830 = vmatpush1.bf16.msra.mxu0 %v1658
        %1831 = vmatprep.subr.bf16.mxu0 0
        %1832 = vmatpush1.bf16.msra.mxu0 0
        %1833 = vmatprep.subr.bf16.mxu0 0
        %1834 = vmatpush1.bf16.msra.mxu0 0
        %1835 = vmatprep.subr.bf16.mxu0 0
        %1836 = vmatpush1.bf16.msra.mxu0 0
        %1837 = vmatprep.subr.bf16.mxu0 0
        %1838 = vmatpush1.bf16.msra.mxu0 0
        %1839 = vmatprep.subr.bf16.mxu0 0
        %1840 = vmatpush1.bf16.msra.mxu0 0
        %1841 = vmatprep.subr.bf16.mxu0 0
        %1842 = vmatpush1.bf16.msra.mxu0 0
        %1843 = vmatprep.subr.bf16.mxu0 0
        %1844 = vmatpush1.bf16.msra.mxu0 0
        %1845 = vmatprep.subr.bf16.mxu0 0
        %1846 = vmatpush1.bf16.msra.mxu0 0
        %1847 = vmatprep.subr.bf16.mxu0 0
        %1848 = vmatpush1.bf16.msra.mxu0 0
        %1849 = vmatprep.subr.bf16.mxu0 0
        %1850 = vmatpush1.bf16.msra.mxu0 0
        %1851 = vmatprep.subr.bf16.mxu0 0
        %1852 = vmatpush1.bf16.msra.mxu0 0
        %1853 = vmatprep.subr.bf16.mxu0 0
        %1854 = vmatpush1.bf16.msra.mxu0 0
        %1855 = vmatprep.subr.bf16.mxu0 0
        %1856 = vmatpush1.bf16.msra.mxu0 0
        %1857 = vmatprep.subr.bf16.mxu0 0
        %1858 = vmatpush1.bf16.msra.mxu0 0
        %1859 = vmatprep.mubr.bf16.mxu0 0
        %1860 = vmatmul.mubr.bf16.gmra.mrb[0].mxu0 %v1702
        %v1861 = vpop.f32.mrb[0].mxu0
        %v1862 = vadd.f32 %v1487, %v1861
        %v1863 = vpop.f32.mrb[0].mxu0
        %v1864 = vadd.f32 %v1491, %v1863
        %v1865 = vpop.f32.mrb[0].mxu0
        %v1866 = vpop.f32.mrb[0].mxu0
        %1867 = vdwg.mxu0
        %1868 = vmatprep.subr.bf16.mxu0 %v1645
        %1869 = vmatpush1.bf16.msra.mxu0 %v1644
        %1870 = vmatprep.subr.bf16.mxu0 %v1661
        %1871 = vmatpush1.bf16.msra.mxu0 %v1660
        %1872 = vmatprep.subr.bf16.mxu0 0
        %1873 = vmatpush1.bf16.msra.mxu0 0
        %1874 = vmatprep.subr.bf16.mxu0 0
        %1875 = vmatpush1.bf16.msra.mxu0 0
        %1876 = vmatprep.subr.bf16.mxu0 0
        %1877 = vmatpush1.bf16.msra.mxu0 0
        %1878 = vmatprep.subr.bf16.mxu0 0
        %1879 = vmatpush1.bf16.msra.mxu0 0
        %1880 = vmatprep.subr.bf16.mxu0 0
        %1881 = vmatpush1.bf16.msra.mxu0 0
        %1882 = vmatprep.subr.bf16.mxu0 0
        %1883 = vmatpush1.bf16.msra.mxu0 0
        %1884 = vmatprep.subr.bf16.mxu0 0
        %1885 = vmatpush1.bf16.msra.mxu0 0
        %1886 = vmatprep.subr.bf16.mxu0 0
        %1887 = vmatpush1.bf16.msra.mxu0 0
        %1888 = vmatprep.subr.bf16.mxu0 0
        %1889 = vmatpush1.bf16.msra.mxu0 0
        %1890 = vmatprep.subr.bf16.mxu0 0
        %1891 = vmatpush1.bf16.msra.mxu0 0
        %1892 = vmatprep.subr.bf16.mxu0 0
        %1893 = vmatpush1.bf16.msra.mxu0 0
        %1894 = vmatprep.subr.bf16.mxu0 0
        %1895 = vmatpush1.bf16.msra.mxu0 0
        %1896 = vmatprep.subr.bf16.mxu0 0
        %1897 = vmatpush1.bf16.msra.mxu0 0
        %1898 = vmatprep.subr.bf16.mxu0 0
        %1899 = vmatpush1.bf16.msra.mxu0 0
        %1900 = vmatprep.mubr.bf16.mxu0 0
        %1901 = vmatmul.mubr.bf16.gmra.mrb[0].mxu0 %v1702
        %v1902 = vpop.f32.mrb[0].mxu0
        %v1903 = vadd.f32 %v1495, %v1902
        %v1904 = vpop.f32.mrb[0].mxu0
        %v1905 = vadd.f32 %v1499, %v1904
        %v1906 = vpop.f32.mrb[0].mxu0
        %v1907 = vpop.f32.mrb[0].mxu0
        %1908 = vdwg.mxu0
        %1909 = vmatprep.subr.bf16.mxu0 %v1647
        %1910 = vmatpush1.bf16.msra.mxu0 %v1646
        %1911 = vmatprep.subr.bf16.mxu0 %v1663
        %1912 = vmatpush1.bf16.msra.mxu0 %v1662
        %1913 = vmatprep.subr.bf16.mxu0 0
        %1914 = vmatpush1.bf16.msra.mxu0 0
        %1915 = vmatprep.subr.bf16.mxu0 0
        %1916 = vmatpush1.bf16.msra.mxu0 0
        %1917 = vmatprep.subr.bf16.mxu0 0
        %1918 = vmatpush1.bf16.msra.mxu0 0
        %1919 = vmatprep.subr.bf16.mxu0 0
        %1920 = vmatpush1.bf16.msra.mxu0 0
        %1921 = vmatprep.subr.bf16.mxu0 0
        %1922 = vmatpush1.bf16.msra.mxu0 0
        %1923 = vmatprep.subr.bf16.mxu0 0
        %1924 = vmatpush1.bf16.msra.mxu0 0
        %1925 = vmatprep.subr.bf16.mxu0 0
        %1926 = vmatpush1.bf16.msra.mxu0 0
        %1927 = vmatprep.subr.bf16.mxu0 0
        %1928 = vmatpush1.bf16.msra.mxu0 0
        %1929 = vmatprep.subr.bf16.mxu0 0
        %1930 = vmatpush1.bf16.msra.mxu0 0
        %1931 = vmatprep.subr.bf16.mxu0 0
        %1932 = vmatpush1.bf16.msra.mxu0 0
        %1933 = vmatprep.subr.bf16.mxu0 0
        %1934 = vmatpush1.bf16.msra.mxu0 0
        %1935 = vmatprep.subr.bf16.mxu0 0
        %1936 = vmatpush1.bf16.msra.mxu0 0
        %1937 = vmatprep.subr.bf16.mxu0 0
        %1938 = vmatpush1.bf16.msra.mxu0 0
        %1939 = vmatprep.subr.bf16.mxu0 0
        %1940 = vmatpush1.bf16.msra.mxu0 0
        %1941 = vmatprep.mubr.bf16.mxu0 0
        %1942 = vmatmul.mubr.bf16.gmra.mrb[0].mxu0 %v1702
        %v1943 = vpop.f32.mrb[0].mxu0
        %v1944 = vadd.f32 %v1503, %v1943
        %v1945 = vpop.f32.mrb[0].mxu0
        %v1946 = vadd.f32 %v1507, %v1945
        %v1947 = vpop.f32.mrb[0].mxu0
        %v1948 = vpop.f32.mrb[0].mxu0
        %1949 = vdwg.mxu0
        %1950 = vmatprep.subr.bf16.mxu0 %v1649
        %1951 = vmatpush1.bf16.msra.mxu0 %v1648
        %1952 = vmatprep.subr.bf16.mxu0 %v1665
        %1953 = vmatpush1.bf16.msra.mxu0 %v1664
        %1954 = vmatprep.subr.bf16.mxu0 0
        %1955 = vmatpush1.bf16.msra.mxu0 0
        %1956 = vmatprep.subr.bf16.mxu0 0
        %1957 = vmatpush1.bf16.msra.mxu0 0
        %1958 = vmatprep.subr.bf16.mxu0 0
        %1959 = vmatpush1.bf16.msra.mxu0 0
        %1960 = vmatprep.subr.bf16.mxu0 0
        %1961 = vmatpush1.bf16.msra.mxu0 0
        %1962 = vmatprep.subr.bf16.mxu0 0
        %1963 = vmatpush1.bf16.msra.mxu0 0
        %1964 = vmatprep.subr.bf16.mxu0 0
        %1965 = vmatpush1.bf16.msra.mxu0 0
        %1966 = vmatprep.subr.bf16.mxu0 0
        %1967 = vmatpush1.bf16.msra.mxu0 0
        %1968 = vmatprep.subr.bf16.mxu0 0
        %1969 = vmatpush1.bf16.msra.mxu0 0
        %1970 = vmatprep.subr.bf16.mxu0 0
        %1971 = vmatpush1.bf16.msra.mxu0 0
        %1972 = vmatprep.subr.bf16.mxu0 0
        %1973 = vmatpush1.bf16.msra.mxu0 0
        %1974 = vmatprep.subr.bf16.mxu0 0
        %1975 = vmatpush1.bf16.msra.mxu0 0
        %1976 = vmatprep.subr.bf16.mxu0 0
        %1977 = vmatpush1.bf16.msra.mxu0 0
        %1978 = vmatprep.subr.bf16.mxu0 0
        %1979 = vmatpush1.bf16.msra.mxu0 0
        %1980 = vmatprep.subr.bf16.mxu0 0
        %1981 = vmatpush1.bf16.msra.mxu0 0
        %1982 = vmatprep.mubr.bf16.mxu0 0
        %1983 = vmatmul.mubr.bf16.gmra.mrb[0].mxu0 %v1702
        %v1984 = vpop.f32.mrb[0].mxu0
        %v1985 = vadd.f32 %v1511, %v1984
        %v1986 = vpop.f32.mrb[0].mxu0
        %v1987 = vadd.f32 %v1515, %v1986
        %v1988 = vpop.f32.mrb[0].mxu0
        %v1989 = vpop.f32.mrb[0].mxu0
        %1990 = vdwg.mxu0
        %1991 = vmatprep.subr.bf16.mxu0 %v1651
        %1992 = vmatpush1.bf16.msra.mxu0 %v1650
        %1993 = vmatprep.subr.bf16.mxu0 %v1667
        %1994 = vmatpush1.bf16.msra.mxu0 %v1666
        %1995 = vmatprep.subr.bf16.mxu0 0
        %1996 = vmatpush1.bf16.msra.mxu0 0
        %1997 = vmatprep.subr.bf16.mxu0 0
        %1998 = vmatpush1.bf16.msra.mxu0 0
        %1999 = vmatprep.subr.bf16.mxu0 0
        %2000 = vmatpush1.bf16.msra.mxu0 0
        %2001 = vmatprep.subr.bf16.mxu0 0
        %2002 = vmatpush1.bf16.msra.mxu0 0
        %2003 = vmatprep.subr.bf16.mxu0 0
        %2004 = vmatpush1.bf16.msra.mxu0 0
        %2005 = vmatprep.subr.bf16.mxu0 0
        %2006 = vmatpush1.bf16.msra.mxu0 0
        %2007 = vmatprep.subr.bf16.mxu0 0
        %2008 = vmatpush1.bf16.msra.mxu0 0
        %2009 = vmatprep.subr.bf16.mxu0 0
        %2010 = vmatpush1.bf16.msra.mxu0 0
        %2011 = vmatprep.subr.bf16.mxu0 0
        %2012 = vmatpush1.bf16.msra.mxu0 0
        %2013 = vmatprep.subr.bf16.mxu0 0
        %2014 = vmatpush1.bf16.msra.mxu0 0
        %2015 = vmatprep.subr.bf16.mxu0 0
        %2016 = vmatpush1.bf16.msra.mxu0 0
        %2017 = vmatprep.subr.bf16.mxu0 0
        %2018 = vmatpush1.bf16.msra.mxu0 0
        %2019 = vmatprep.subr.bf16.mxu0 0
        %2020 = vmatpush1.bf16.msra.mxu0 0
        %2021 = vmatprep.subr.bf16.mxu0 0
        %2022 = vmatpush1.bf16.msra.mxu0 0
        %2023 = vmatprep.mubr.bf16.mxu0 0
        %2024 = vmatmul.mubr.bf16.gmra.mrb[0].mxu0 %v1702
        %v2025 = vpop.f32.mrb[0].mxu0
        %v2026 = vadd.f32 %v1519, %v2025
        %v2027 = vpop.f32.mrb[0].mxu0
        %v2028 = vadd.f32 %v1523, %v2027
        %v2029 = vpop.f32.mrb[0].mxu0
        %v2030 = vpop.f32.mrb[0].mxu0
        %2031 = vdwg.mxu0
        %v2032 = vtanh.pop %v1739
        %v2033 = vtanh.pop %v1741
        %v2034 = vtanh.pop %v1780
        %v2035 = vtanh.pop %v1782
        %v2036 = vtanh.pop %v1821
        %v2037 = vtanh.pop %v1823
        %v2038 = vtanh.pop %v1862
        %v2039 = vtanh.pop %v1864
        %v2040 = vtanh.pop %v1903
        %v2041 = vtanh.pop %v1905
        %v2042 = vtanh.pop %v1944
        %v2043 = vtanh.pop %v1946
        %v2044 = vtanh.pop %v1985
        %v2045 = vtanh.pop %v1987
        %v2046 = vtanh.pop %v2026
        %v2047 = vtanh.pop %v2028
        %v2048 = vpack.c.bf16 %v2032, %v2032
        %v2049 = vpack.c.bf16 %v2033, %v2033
        %v2050 = vpack.c.bf16 %v2034, %v2034
        %v2051 = vpack.c.bf16 %v2035, %v2035
        %v2052 = vpack.c.bf16 %v2036, %v2036
        %v2053 = vpack.c.bf16 %v2037, %v2037
        %v2054 = vpack.c.bf16 %v2038, %v2038
        %v2055 = vpack.c.bf16 %v2039, %v2039
        %v2056 = vpack.c.bf16 %v2040, %v2040
        %v2057 = vpack.c.bf16 %v2041, %v2041
        %v2058 = vpack.c.bf16 %v2042, %v2042
        %v2059 = vpack.c.bf16 %v2043, %v2043
        %v2060 = vpack.c.bf16 %v2044, %v2044
        %v2061 = vpack.c.bf16 %v2045, %v2045
        %v2062 = vpack.c.bf16 %v2046, %v2046
        %v2063 = vpack.c.bf16 %v2047, %v2047
        %v2064 = vld [vmem:[%s977] sm:$0xff]
        %v2065 = vld [vmem:[%s977 + $0x8] sm:$0xff]
        %v2066 = vld [vmem:[%s977 + $0x10] sm:$0xff]
        %v2067 = vld [vmem:[%s977 + $0x18] sm:$0xff]
        %v2068 = vld [vmem:[%s977 + $0x20] sm:$0xff]
        %v2069 = vld [vmem:[%s977 + $0x28] sm:$0xff]
        %v2070 = vld [vmem:[%s977 + $0x30] sm:$0xff]
        %v2071 = vld [vmem:[%s977 + $0x38] sm:$0xff]
        %v2072 = vld [vmem:[%s977 + $0x40] sm:$0xff]
        %v2073 = vld [vmem:[%s977 + $0x48] sm:$0xff]
        %v2074 = vld [vmem:[%s977 + $0x50] sm:$0xff]
        %v2075 = vld [vmem:[%s977 + $0x58] sm:$0xff]
        %v2076 = vld [vmem:[%s977 + $0x60] sm:$0xff]
        %v2077 = vld [vmem:[%s977 + $0x68] sm:$0xff]
        %v2078 = vld [vmem:[%s977 + $0x70] sm:$0xff]
        %v2079 = vld [vmem:[%s977 + $0x78] sm:$0xff]
        %v2080 = vld [vmem:[%s977 + $0x80] sm:$0xff]
        %v2081 = vld [vmem:[%s977 + $0x88] sm:$0xff]
        %v2082 = vld [vmem:[%s977 + $0x90] sm:$0xff]
        %v2083 = vld [vmem:[%s977 + $0x98] sm:$0xff]
        %v2084 = vld [vmem:[%s977 + $0xa0] sm:$0xff]
        %v2085 = vld [vmem:[%s977 + $0xa8] sm:$0xff]
        %v2086 = vld [vmem:[%s977 + $0xb0] sm:$0xff]
        %v2087 = vld [vmem:[%s977 + $0xb8] sm:$0xff]
        %v2088 = vld [vmem:[%s977 + $0xc0] sm:$0xff]
        %v2089 = vld [vmem:[%s977 + $0xc8] sm:$0xff]
        %v2090 = vld [vmem:[%s977 + $0xd0] sm:$0xff]
        %v2091 = vld [vmem:[%s977 + $0xd8] sm:$0xff]
        %v2092 = vld [vmem:[%s977 + $0xe0] sm:$0xff]
        %v2093 = vld [vmem:[%s977 + $0xe8] sm:$0xff]
        %v2094 = vld [vmem:[%s977 + $0xf0] sm:$0xff]
        %v2095 = vld [vmem:[%s977 + $0xf8] sm:$0xff]
        %v2096 = vld [vmem:[%s977 + $0x100] sm:$0xff]
        %v2097 = vld [vmem:[%s977 + $0x108] sm:$0xff]
        %v2098 = vld [vmem:[%s977 + $0x110] sm:$0xff]
        %v2099 = vld [vmem:[%s977 + $0x118] sm:$0xff]
        %v2100 = vld [vmem:[%s977 + $0x120] sm:$0xff]
        %v2101 = vld [vmem:[%s977 + $0x128] sm:$0xff]
        %v2102 = vld [vmem:[%s977 + $0x130] sm:$0xff]
        %v2103 = vld [vmem:[%s977 + $0x138] sm:$0xff]
        %v2104 = vld [vmem:[%s977 + $0x140] sm:$0xff]
        %v2105 = vld [vmem:[%s977 + $0x148] sm:$0xff]
        %v2106 = vld [vmem:[%s977 + $0x150] sm:$0xff]
        %v2107 = vld [vmem:[%s977 + $0x158] sm:$0xff]
        %v2108 = vld [vmem:[%s977 + $0x160] sm:$0xff]
        %v2109 = vld [vmem:[%s977 + $0x168] sm:$0xff]
        %v2110 = vld [vmem:[%s977 + $0x170] sm:$0xff]
        %v2111 = vld [vmem:[%s977 + $0x178] sm:$0xff]
        %v2112 = vld [vmem:[%s977 + $0x180] sm:$0xff]
        %v2113 = vld [vmem:[%s977 + $0x188] sm:$0xff]
        %v2114 = vld [vmem:[%s977 + $0x190] sm:$0xff]
        %v2115 = vld [vmem:[%s977 + $0x198] sm:$0xff]
        %v2116 = vld [vmem:[%s977 + $0x1a0] sm:$0xff]
        %v2117 = vld [vmem:[%s977 + $0x1a8] sm:$0xff]
        %v2118 = vld [vmem:[%s977 + $0x1b0] sm:$0xff]
        %v2119 = vld [vmem:[%s977 + $0x1b8] sm:$0xff]
        %v2120 = vld [vmem:[%s977 + $0x1c0] sm:$0xff]
        %v2121 = vld [vmem:[%s977 + $0x1c8] sm:$0xff]
        %v2122 = vld [vmem:[%s977 + $0x1d0] sm:$0xff]
        %v2123 = vld [vmem:[%s977 + $0x1d8] sm:$0xff]
        %v2124 = vld [vmem:[%s977 + $0x1e0] sm:$0xff]
        %v2125 = vld [vmem:[%s977 + $0x1e8] sm:$0xff]
        %v2126 = vld [vmem:[%s977 + $0x1f0] sm:$0xff]
        %v2127 = vld [vmem:[%s977 + $0x1f8] sm:$0xff]
        %v2128 = vld [vmem:[%s977 + $0x200] sm:$0xff]
        %v2129 = vld [vmem:[%s977 + $0x208] sm:$0xff]
        %v2130 = vld [vmem:[%s977 + $0x210] sm:$0xff]
        %v2131 = vld [vmem:[%s977 + $0x218] sm:$0xff]
        %v2132 = vld [vmem:[%s977 + $0x220] sm:$0xff]
        %v2133 = vld [vmem:[%s977 + $0x228] sm:$0xff]
        %v2134 = vld [vmem:[%s977 + $0x230] sm:$0xff]
        %v2135 = vld [vmem:[%s977 + $0x238] sm:$0xff]
        %v2136 = vld [vmem:[%s977 + $0x240] sm:$0xff]
        %v2137 = vld [vmem:[%s977 + $0x248] sm:$0xff]
        %v2138 = vld [vmem:[%s977 + $0x250] sm:$0xff]
        %v2139 = vld [vmem:[%s977 + $0x258] sm:$0xff]
        %v2140 = vld [vmem:[%s977 + $0x260] sm:$0xff]
        %v2141 = vld [vmem:[%s977 + $0x268] sm:$0xff]
        %v2142 = vld [vmem:[%s977 + $0x270] sm:$0xff]
        %v2143 = vld [vmem:[%s977 + $0x278] sm:$0xff]
        %v2144 = vld [vmem:[%s977 + $0x280] sm:$0xff]
        %v2145 = vld [vmem:[%s977 + $0x288] sm:$0xff]
        %v2146 = vld [vmem:[%s977 + $0x290] sm:$0xff]
        %v2147 = vld [vmem:[%s977 + $0x298] sm:$0xff]
        %v2148 = vld [vmem:[%s977 + $0x2a0] sm:$0xff]
        %v2149 = vld [vmem:[%s977 + $0x2a8] sm:$0xff]
        %v2150 = vld [vmem:[%s977 + $0x2b0] sm:$0xff]
        %v2151 = vld [vmem:[%s977 + $0x2b8] sm:$0xff]
        %v2152 = vld [vmem:[%s977 + $0x2c0] sm:$0xff]
        %v2153 = vld [vmem:[%s977 + $0x2c8] sm:$0xff]
        %v2154 = vld [vmem:[%s977 + $0x2d0] sm:$0xff]
        %v2155 = vld [vmem:[%s977 + $0x2d8] sm:$0xff]
        %v2156 = vld [vmem:[%s977 + $0x2e0] sm:$0xff]
        %v2157 = vld [vmem:[%s977 + $0x2e8] sm:$0xff]
        %v2158 = vld [vmem:[%s977 + $0x2f0] sm:$0xff]
        %v2159 = vld [vmem:[%s977 + $0x2f8] sm:$0xff]
        %v2160 = vld [vmem:[%s977 + $0x300] sm:$0xff]
        %v2161 = vld [vmem:[%s977 + $0x308] sm:$0xff]
        %v2162 = vld [vmem:[%s977 + $0x310] sm:$0xff]
        %v2163 = vld [vmem:[%s977 + $0x318] sm:$0xff]
        %v2164 = vld [vmem:[%s977 + $0x320] sm:$0xff]
        %v2165 = vld [vmem:[%s977 + $0x328] sm:$0xff]
        %v2166 = vld [vmem:[%s977 + $0x330] sm:$0xff]
        %v2167 = vld [vmem:[%s977 + $0x338] sm:$0xff]
        %v2168 = vld [vmem:[%s977 + $0x340] sm:$0xff]
        %v2169 = vld [vmem:[%s977 + $0x348] sm:$0xff]
        %v2170 = vld [vmem:[%s977 + $0x350] sm:$0xff]
        %v2171 = vld [vmem:[%s977 + $0x358] sm:$0xff]
        %v2172 = vld [vmem:[%s977 + $0x360] sm:$0xff]
        %v2173 = vld [vmem:[%s977 + $0x368] sm:$0xff]
        %v2174 = vld [vmem:[%s977 + $0x370] sm:$0xff]
        %v2175 = vld [vmem:[%s977 + $0x378] sm:$0xff]
        %v2176 = vld [vmem:[%s977 + $0x380] sm:$0xff]
        %v2177 = vld [vmem:[%s977 + $0x388] sm:$0xff]
        %v2178 = vld [vmem:[%s977 + $0x390] sm:$0xff]
        %v2179 = vld [vmem:[%s977 + $0x398] sm:$0xff]
        %v2180 = vld [vmem:[%s977 + $0x3a0] sm:$0xff]
        %v2181 = vld [vmem:[%s977 + $0x3a8] sm:$0xff]
        %v2182 = vld [vmem:[%s977 + $0x3b0] sm:$0xff]
        %v2183 = vld [vmem:[%s977 + $0x3b8] sm:$0xff]
        %v2184 = vld [vmem:[%s977 + $0x3c0] sm:$0xff]
        %v2185 = vld [vmem:[%s977 + $0x3c8] sm:$0xff]
        %v2186 = vld [vmem:[%s977 + $0x3d0] sm:$0xff]
        %v2187 = vld [vmem:[%s977 + $0x3d8] sm:$0xff]
        %v2188 = vld [vmem:[%s977 + $0x3e0] sm:$0xff]
        %v2189 = vld [vmem:[%s977 + $0x3e8] sm:$0xff]
        %v2190 = vld [vmem:[%s977 + $0x3f0] sm:$0xff]
        %v2191 = vld [vmem:[%s977 + $0x3f8] sm:$0xff]
        %v2192 = vld [vmem:[%s977 + $0x400] sm:$0xff]
        %v2193 = vld [vmem:[%s977 + $0x408] sm:$0xff]
        %v2194 = vld [vmem:[%s977 + $0x410] sm:$0xff]
        %v2195 = vld [vmem:[%s977 + $0x418] sm:$0xff]
        %v2196 = vld [vmem:[%s977 + $0x420] sm:$0xff]
        %v2197 = vld [vmem:[%s977 + $0x428] sm:$0xff]
        %v2198 = vld [vmem:[%s977 + $0x430] sm:$0xff]
        %v2199 = vld [vmem:[%s977 + $0x438] sm:$0xff]
        %v2200 = vld [vmem:[%s977 + $0x440] sm:$0xff]
        %v2201 = vld [vmem:[%s977 + $0x448] sm:$0xff]
        %v2202 = vld [vmem:[%s977 + $0x450] sm:$0xff]
        %v2203 = vld [vmem:[%s977 + $0x458] sm:$0xff]
        %v2204 = vld [vmem:[%s977 + $0x460] sm:$0xff]
        %v2205 = vld [vmem:[%s977 + $0x468] sm:$0xff]
        %v2206 = vld [vmem:[%s977 + $0x470] sm:$0xff]
        %v2207 = vld [vmem:[%s977 + $0x478] sm:$0xff]
        %v2208 = vld [vmem:[%s977 + $0x480] sm:$0xff]
        %v2209 = vld [vmem:[%s977 + $0x488] sm:$0xff]
        %v2210 = vld [vmem:[%s977 + $0x490] sm:$0xff]
        %v2211 = vld [vmem:[%s977 + $0x498] sm:$0xff]
        %v2212 = vld [vmem:[%s977 + $0x4a0] sm:$0xff]
        %v2213 = vld [vmem:[%s977 + $0x4a8] sm:$0xff]
        %v2214 = vld [vmem:[%s977 + $0x4b0] sm:$0xff]
        %v2215 = vld [vmem:[%s977 + $0x4b8] sm:$0xff]
        %v2216 = vld [vmem:[%s977 + $0x4c0] sm:$0xff]
        %v2217 = vld [vmem:[%s977 + $0x4c8] sm:$0xff]
        %v2218 = vld [vmem:[%s977 + $0x4d0] sm:$0xff]
        %v2219 = vld [vmem:[%s977 + $0x4d8] sm:$0xff]
        %v2220 = vld [vmem:[%s977 + $0x4e0] sm:$0xff]
        %v2221 = vld [vmem:[%s977 + $0x4e8] sm:$0xff]
        %v2222 = vld [vmem:[%s977 + $0x4f0] sm:$0xff]
        %v2223 = vld [vmem:[%s977 + $0x4f8] sm:$0xff]
        %v2224 = vld [vmem:[%s977 + $0x500] sm:$0xff]
        %v2225 = vld [vmem:[%s977 + $0x508] sm:$0xff]
        %v2226 = vld [vmem:[%s977 + $0x510] sm:$0xff]
        %v2227 = vld [vmem:[%s977 + $0x518] sm:$0xff]
        %v2228 = vld [vmem:[%s977 + $0x520] sm:$0xff]
        %v2229 = vld [vmem:[%s977 + $0x528] sm:$0xff]
        %v2230 = vld [vmem:[%s977 + $0x530] sm:$0xff]
        %v2231 = vld [vmem:[%s977 + $0x538] sm:$0xff]
        %v2232 = vld [vmem:[%s977 + $0x540] sm:$0xff]
        %v2233 = vld [vmem:[%s977 + $0x548] sm:$0xff]
        %v2234 = vld [vmem:[%s977 + $0x550] sm:$0xff]
        %v2235 = vld [vmem:[%s977 + $0x558] sm:$0xff]
        %v2236 = vld [vmem:[%s977 + $0x560] sm:$0xff]
        %v2237 = vld [vmem:[%s977 + $0x568] sm:$0xff]
        %v2238 = vld [vmem:[%s977 + $0x570] sm:$0xff]
        %v2239 = vld [vmem:[%s977 + $0x578] sm:$0xff]
        %v2240 = vld [vmem:[%s977 + $0x580] sm:$0xff]
        %v2241 = vld [vmem:[%s977 + $0x588] sm:$0xff]
        %v2242 = vld [vmem:[%s977 + $0x590] sm:$0xff]
        %v2243 = vld [vmem:[%s977 + $0x598] sm:$0xff]
        %v2244 = vld [vmem:[%s977 + $0x5a0] sm:$0xff]
        %v2245 = vld [vmem:[%s977 + $0x5a8] sm:$0xff]
        %v2246 = vld [vmem:[%s977 + $0x5b0] sm:$0xff]
        %v2247 = vld [vmem:[%s977 + $0x5b8] sm:$0xff]
        %v2248 = vld [vmem:[%s977 + $0x5c0] sm:$0xff]
        %v2249 = vld [vmem:[%s977 + $0x5c8] sm:$0xff]
        %v2250 = vld [vmem:[%s977 + $0x5d0] sm:$0xff]
        %v2251 = vld [vmem:[%s977 + $0x5d8] sm:$0xff]
        %v2252 = vld [vmem:[%s977 + $0x5e0] sm:$0xff]
        %v2253 = vld [vmem:[%s977 + $0x5e8] sm:$0xff]
        %v2254 = vld [vmem:[%s977 + $0x5f0] sm:$0xff]
        %v2255 = vld [vmem:[%s977 + $0x5f8] sm:$0xff]
        %v2256 = vld [vmem:[%s977 + $0x600] sm:$0xff]
        %v2257 = vld [vmem:[%s977 + $0x608] sm:$0xff]
        %v2258 = vld [vmem:[%s977 + $0x610] sm:$0xff]
        %v2259 = vld [vmem:[%s977 + $0x618] sm:$0xff]
        %v2260 = vld [vmem:[%s977 + $0x620] sm:$0xff]
        %v2261 = vld [vmem:[%s977 + $0x628] sm:$0xff]
        %v2262 = vld [vmem:[%s977 + $0x630] sm:$0xff]
        %v2263 = vld [vmem:[%s977 + $0x638] sm:$0xff]
        %v2264 = vld [vmem:[%s977 + $0x640] sm:$0xff]
        %v2265 = vld [vmem:[%s977 + $0x648] sm:$0xff]
        %v2266 = vld [vmem:[%s977 + $0x650] sm:$0xff]
        %v2267 = vld [vmem:[%s977 + $0x658] sm:$0xff]
        %v2268 = vld [vmem:[%s977 + $0x660] sm:$0xff]
        %v2269 = vld [vmem:[%s977 + $0x668] sm:$0xff]
        %v2270 = vld [vmem:[%s977 + $0x670] sm:$0xff]
        %v2271 = vld [vmem:[%s977 + $0x678] sm:$0xff]
        %v2272 = vld [vmem:[%s977 + $0x680] sm:$0xff]
        %v2273 = vld [vmem:[%s977 + $0x688] sm:$0xff]
        %v2274 = vld [vmem:[%s977 + $0x690] sm:$0xff]
        %v2275 = vld [vmem:[%s977 + $0x698] sm:$0xff]
        %v2276 = vld [vmem:[%s977 + $0x6a0] sm:$0xff]
        %v2277 = vld [vmem:[%s977 + $0x6a8] sm:$0xff]
        %v2278 = vld [vmem:[%s977 + $0x6b0] sm:$0xff]
        %v2279 = vld [vmem:[%s977 + $0x6b8] sm:$0xff]
        %v2280 = vld [vmem:[%s977 + $0x6c0] sm:$0xff]
        %v2281 = vld [vmem:[%s977 + $0x6c8] sm:$0xff]
        %v2282 = vld [vmem:[%s977 + $0x6d0] sm:$0xff]
        %v2283 = vld [vmem:[%s977 + $0x6d8] sm:$0xff]
        %v2284 = vld [vmem:[%s977 + $0x6e0] sm:$0xff]
        %v2285 = vld [vmem:[%s977 + $0x6e8] sm:$0xff]
        %v2286 = vld [vmem:[%s977 + $0x6f0] sm:$0xff]
        %v2287 = vld [vmem:[%s977 + $0x6f8] sm:$0xff]
        %v2288 = vld [vmem:[%s977 + $0x700] sm:$0xff]
        %v2289 = vld [vmem:[%s977 + $0x708] sm:$0xff]
        %v2290 = vld [vmem:[%s977 + $0x710] sm:$0xff]
        %v2291 = vld [vmem:[%s977 + $0x718] sm:$0xff]
        %v2292 = vld [vmem:[%s977 + $0x720] sm:$0xff]
        %v2293 = vld [vmem:[%s977 + $0x728] sm:$0xff]
        %v2294 = vld [vmem:[%s977 + $0x730] sm:$0xff]
        %v2295 = vld [vmem:[%s977 + $0x738] sm:$0xff]
        %v2296 = vld [vmem:[%s977 + $0x740] sm:$0xff]
        %v2297 = vld [vmem:[%s977 + $0x748] sm:$0xff]
        %v2298 = vld [vmem:[%s977 + $0x750] sm:$0xff]
        %v2299 = vld [vmem:[%s977 + $0x758] sm:$0xff]
        %v2300 = vld [vmem:[%s977 + $0x760] sm:$0xff]
        %v2301 = vld [vmem:[%s977 + $0x768] sm:$0xff]
        %v2302 = vld [vmem:[%s977 + $0x770] sm:$0xff]
        %v2303 = vld [vmem:[%s977 + $0x778] sm:$0xff]
        %v2304 = vld [vmem:[%s977 + $0x780] sm:$0xff]
        %v2305 = vld [vmem:[%s977 + $0x788] sm:$0xff]
        %v2306 = vld [vmem:[%s977 + $0x790] sm:$0xff]
        %v2307 = vld [vmem:[%s977 + $0x798] sm:$0xff]
        %v2308 = vld [vmem:[%s977 + $0x7a0] sm:$0xff]
        %v2309 = vld [vmem:[%s977 + $0x7a8] sm:$0xff]
        %v2310 = vld [vmem:[%s977 + $0x7b0] sm:$0xff]
        %v2311 = vld [vmem:[%s977 + $0x7b8] sm:$0xff]
        %v2312 = vld [vmem:[%s977 + $0x7c0] sm:$0xff]
        %v2313 = vld [vmem:[%s977 + $0x7c8] sm:$0xff]
        %v2314 = vld [vmem:[%s977 + $0x7d0] sm:$0xff]
        %v2315 = vld [vmem:[%s977 + $0x7d8] sm:$0xff]
        %v2316 = vld [vmem:[%s977 + $0x7e0] sm:$0xff]
        %v2317 = vld [vmem:[%s977 + $0x7e8] sm:$0xff]
        %v2318 = vld [vmem:[%s977 + $0x7f0] sm:$0xff]
        %v2319 = vld [vmem:[%s977 + $0x7f8] sm:$0xff]
        %v2320 = vld [vmem:[%s977 + $0x800] sm:$0xff]
        %v2321 = vld [vmem:[%s977 + $0x808] sm:$0xff]
        %v2322 = vld [vmem:[%s977 + $0x810] sm:$0xff]
        %v2323 = vld [vmem:[%s977 + $0x818] sm:$0xff]
        %v2324 = vld [vmem:[%s977 + $0x820] sm:$0xff]
        %v2325 = vld [vmem:[%s977 + $0x828] sm:$0xff]
        %v2326 = vld [vmem:[%s977 + $0x830] sm:$0xff]
        %v2327 = vld [vmem:[%s977 + $0x838] sm:$0xff]
        %v2328 = vld [vmem:[%s977 + $0x840] sm:$0xff]
        %v2329 = vld [vmem:[%s977 + $0x848] sm:$0xff]
        %v2330 = vld [vmem:[%s977 + $0x850] sm:$0xff]
        %v2331 = vld [vmem:[%s977 + $0x858] sm:$0xff]
        %v2332 = vld [vmem:[%s977 + $0x860] sm:$0xff]
        %v2333 = vld [vmem:[%s977 + $0x868] sm:$0xff]
        %v2334 = vld [vmem:[%s977 + $0x870] sm:$0xff]
        %v2335 = vld [vmem:[%s977 + $0x878] sm:$0xff]
        %v2336 = vld [vmem:[%s977 + $0x880] sm:$0xff]
        %v2337 = vld [vmem:[%s977 + $0x888] sm:$0xff]
        %v2338 = vld [vmem:[%s977 + $0x890] sm:$0xff]
        %v2339 = vld [vmem:[%s977 + $0x898] sm:$0xff]
        %v2340 = vld [vmem:[%s977 + $0x8a0] sm:$0xff]
        %v2341 = vld [vmem:[%s977 + $0x8a8] sm:$0xff]
        %v2342 = vld [vmem:[%s977 + $0x8b0] sm:$0xff]
        %v2343 = vld [vmem:[%s977 + $0x8b8] sm:$0xff]
        %v2344 = vld [vmem:[%s977 + $0x8c0] sm:$0xff]
        %v2345 = vld [vmem:[%s977 + $0x8c8] sm:$0xff]
        %v2346 = vld [vmem:[%s977 + $0x8d0] sm:$0xff]
        %v2347 = vld [vmem:[%s977 + $0x8d8] sm:$0xff]
        %v2348 = vld [vmem:[%s977 + $0x8e0] sm:$0xff]
        %v2349 = vld [vmem:[%s977 + $0x8e8] sm:$0xff]
        %v2350 = vld [vmem:[%s977 + $0x8f0] sm:$0xff]
        %v2351 = vld [vmem:[%s977 + $0x8f8] sm:$0xff]
        %v2352 = vld [vmem:[%s977 + $0x900] sm:$0xff]
        %v2353 = vld [vmem:[%s977 + $0x908] sm:$0xff]
        %v2354 = vld [vmem:[%s977 + $0x910] sm:$0xff]
        %v2355 = vld [vmem:[%s977 + $0x918] sm:$0xff]
        %v2356 = vld [vmem:[%s977 + $0x920] sm:$0xff]
        %v2357 = vld [vmem:[%s977 + $0x928] sm:$0xff]
        %v2358 = vld [vmem:[%s977 + $0x930] sm:$0xff]
        %v2359 = vld [vmem:[%s977 + $0x938] sm:$0xff]
        %v2360 = vld [vmem:[%s977 + $0x940] sm:$0xff]
        %v2361 = vld [vmem:[%s977 + $0x948] sm:$0xff]
        %v2362 = vld [vmem:[%s977 + $0x950] sm:$0xff]
        %v2363 = vld [vmem:[%s977 + $0x958] sm:$0xff]
        %v2364 = vld [vmem:[%s977 + $0x960] sm:$0xff]
        %v2365 = vld [vmem:[%s977 + $0x968] sm:$0xff]
        %v2366 = vld [vmem:[%s977 + $0x970] sm:$0xff]
        %v2367 = vld [vmem:[%s977 + $0x978] sm:$0xff]
        %v2368 = vld [vmem:[%s977 + $0x980] sm:$0xff]
        %v2369 = vld [vmem:[%s977 + $0x988] sm:$0xff]
        %v2370 = vld [vmem:[%s977 + $0x990] sm:$0xff]
        %v2371 = vld [vmem:[%s977 + $0x998] sm:$0xff]
        %v2372 = vld [vmem:[%s977 + $0x9a0] sm:$0xff]
        %v2373 = vld [vmem:[%s977 + $0x9a8] sm:$0xff]
        %v2374 = vld [vmem:[%s977 + $0x9b0] sm:$0xff]
        %v2375 = vld [vmem:[%s977 + $0x9b8] sm:$0xff]
        %v2376 = vld [vmem:[%s977 + $0x9c0] sm:$0xff]
        %v2377 = vld [vmem:[%s977 + $0x9c8] sm:$0xff]
        %v2378 = vld [vmem:[%s977 + $0x9d0] sm:$0xff]
        %v2379 = vld [vmem:[%s977 + $0x9d8] sm:$0xff]
        %v2380 = vld [vmem:[%s977 + $0x9e0] sm:$0xff]
        %v2381 = vld [vmem:[%s977 + $0x9e8] sm:$0xff]
        %v2382 = vld [vmem:[%s977 + $0x9f0] sm:$0xff]
        %v2383 = vld [vmem:[%s977 + $0x9f8] sm:$0xff]
        %v2384 = vld [vmem:[%s977 + $0xa00] sm:$0xff]
        %v2385 = vld [vmem:[%s977 + $0xa08] sm:$0xff]
        %v2386 = vld [vmem:[%s977 + $0xa10] sm:$0xff]
        %v2387 = vld [vmem:[%s977 + $0xa18] sm:$0xff]
        %v2388 = vld [vmem:[%s977 + $0xa20] sm:$0xff]
        %v2389 = vld [vmem:[%s977 + $0xa28] sm:$0xff]
        %v2390 = vld [vmem:[%s977 + $0xa30] sm:$0xff]
        %v2391 = vld [vmem:[%s977 + $0xa38] sm:$0xff]
        %v2392 = vld [vmem:[%s977 + $0xa40] sm:$0xff]
        %v2393 = vld [vmem:[%s977 + $0xa48] sm:$0xff]
        %v2394 = vld [vmem:[%s977 + $0xa50] sm:$0xff]
        %v2395 = vld [vmem:[%s977 + $0xa58] sm:$0xff]
        %v2396 = vld [vmem:[%s977 + $0xa60] sm:$0xff]
        %v2397 = vld [vmem:[%s977 + $0xa68] sm:$0xff]
        %v2398 = vld [vmem:[%s977 + $0xa70] sm:$0xff]
        %v2399 = vld [vmem:[%s977 + $0xa78] sm:$0xff]
        %v2400 = vld [vmem:[%s977 + $0xa80] sm:$0xff]
        %v2401 = vld [vmem:[%s977 + $0xa88] sm:$0xff]
        %v2402 = vld [vmem:[%s977 + $0xa90] sm:$0xff]
        %v2403 = vld [vmem:[%s977 + $0xa98] sm:$0xff]
        %v2404 = vld [vmem:[%s977 + $0xaa0] sm:$0xff]
        %v2405 = vld [vmem:[%s977 + $0xaa8] sm:$0xff]
        %v2406 = vld [vmem:[%s977 + $0xab0] sm:$0xff]
        %v2407 = vld [vmem:[%s977 + $0xab8] sm:$0xff]
        %v2408 = vld [vmem:[%s977 + $0xac0] sm:$0xff]
        %v2409 = vld [vmem:[%s977 + $0xac8] sm:$0xff]
        %v2410 = vld [vmem:[%s977 + $0xad0] sm:$0xff]
        %v2411 = vld [vmem:[%s977 + $0xad8] sm:$0xff]
        %v2412 = vld [vmem:[%s977 + $0xae0] sm:$0xff]
        %v2413 = vld [vmem:[%s977 + $0xae8] sm:$0xff]
        %v2414 = vld [vmem:[%s977 + $0xaf0] sm:$0xff]
        %v2415 = vld [vmem:[%s977 + $0xaf8] sm:$0xff]
        %v2416 = vld [vmem:[%s977 + $0xb00] sm:$0xff]
        %v2417 = vld [vmem:[%s977 + $0xb08] sm:$0xff]
        %v2418 = vld [vmem:[%s977 + $0xb10] sm:$0xff]
        %v2419 = vld [vmem:[%s977 + $0xb18] sm:$0xff]
        %v2420 = vld [vmem:[%s977 + $0xb20] sm:$0xff]
        %v2421 = vld [vmem:[%s977 + $0xb28] sm:$0xff]
        %v2422 = vld [vmem:[%s977 + $0xb30] sm:$0xff]
        %v2423 = vld [vmem:[%s977 + $0xb38] sm:$0xff]
        %v2424 = vld [vmem:[%s977 + $0xb40] sm:$0xff]
        %v2425 = vld [vmem:[%s977 + $0xb48] sm:$0xff]
        %v2426 = vld [vmem:[%s977 + $0xb50] sm:$0xff]
        %v2427 = vld [vmem:[%s977 + $0xb58] sm:$0xff]
        %v2428 = vld [vmem:[%s977 + $0xb60] sm:$0xff]
        %v2429 = vld [vmem:[%s977 + $0xb68] sm:$0xff]
        %v2430 = vld [vmem:[%s977 + $0xb70] sm:$0xff]
        %v2431 = vld [vmem:[%s977 + $0xb78] sm:$0xff]
        %v2432 = vld [vmem:[%s977 + $0xb80] sm:$0xff]
        %v2433 = vld [vmem:[%s977 + $0xb88] sm:$0xff]
        %v2434 = vld [vmem:[%s977 + $0xb90] sm:$0xff]
        %v2435 = vld [vmem:[%s977 + $0xb98] sm:$0xff]
        %v2436 = vld [vmem:[%s977 + $0xba0] sm:$0xff]
        %v2437 = vld [vmem:[%s977 + $0xba8] sm:$0xff]
        %v2438 = vld [vmem:[%s977 + $0xbb0] sm:$0xff]
        %v2439 = vld [vmem:[%s977 + $0xbb8] sm:$0xff]
        %v2440 = vld [vmem:[%s977 + $0xbc0] sm:$0xff]
        %v2441 = vld [vmem:[%s977 + $0xbc8] sm:$0xff]
        %v2442 = vld [vmem:[%s977 + $0xbd0] sm:$0xff]
        %v2443 = vld [vmem:[%s977 + $0xbd8] sm:$0xff]
        %v2444 = vld [vmem:[%s977 + $0xbe0] sm:$0xff]
        %v2445 = vld [vmem:[%s977 + $0xbe8] sm:$0xff]
        %v2446 = vld [vmem:[%s977 + $0xbf0] sm:$0xff]
        %v2447 = vld [vmem:[%s977 + $0xbf8] sm:$0xff]
        %v2448 = vld [vmem:[%s977 + $0xc00] sm:$0xff]
        %v2449 = vld [vmem:[%s977 + $0xc08] sm:$0xff]
        %v2450 = vld [vmem:[%s977 + $0xc10] sm:$0xff]
        %v2451 = vld [vmem:[%s977 + $0xc18] sm:$0xff]
        %v2452 = vld [vmem:[%s977 + $0xc20] sm:$0xff]
        %v2453 = vld [vmem:[%s977 + $0xc28] sm:$0xff]
        %v2454 = vld [vmem:[%s977 + $0xc30] sm:$0xff]
        %v2455 = vld [vmem:[%s977 + $0xc38] sm:$0xff]
        %v2456 = vld [vmem:[%s977 + $0xc40] sm:$0xff]
        %v2457 = vld [vmem:[%s977 + $0xc48] sm:$0xff]
        %v2458 = vld [vmem:[%s977 + $0xc50] sm:$0xff]
        %v2459 = vld [vmem:[%s977 + $0xc58] sm:$0xff]
        %v2460 = vld [vmem:[%s977 + $0xc60] sm:$0xff]
        %v2461 = vld [vmem:[%s977 + $0xc68] sm:$0xff]
        %v2462 = vld [vmem:[%s977 + $0xc70] sm:$0xff]
        %v2463 = vld [vmem:[%s977 + $0xc78] sm:$0xff]
        %v2464 = vld [vmem:[%s977 + $0xc80] sm:$0xff]
        %v2465 = vld [vmem:[%s977 + $0xc88] sm:$0xff]
        %v2466 = vld [vmem:[%s977 + $0xc90] sm:$0xff]
        %v2467 = vld [vmem:[%s977 + $0xc98] sm:$0xff]
        %v2468 = vld [vmem:[%s977 + $0xca0] sm:$0xff]
        %v2469 = vld [vmem:[%s977 + $0xca8] sm:$0xff]
        %v2470 = vld [vmem:[%s977 + $0xcb0] sm:$0xff]
        %v2471 = vld [vmem:[%s977 + $0xcb8] sm:$0xff]
        %v2472 = vld [vmem:[%s977 + $0xcc0] sm:$0xff]
        %v2473 = vld [vmem:[%s977 + $0xcc8] sm:$0xff]
        %v2474 = vld [vmem:[%s977 + $0xcd0] sm:$0xff]
        %v2475 = vld [vmem:[%s977 + $0xcd8] sm:$0xff]
        %v2476 = vld [vmem:[%s977 + $0xce0] sm:$0xff]
        %v2477 = vld [vmem:[%s977 + $0xce8] sm:$0xff]
        %v2478 = vld [vmem:[%s977 + $0xcf0] sm:$0xff]
        %v2479 = vld [vmem:[%s977 + $0xcf8] sm:$0xff]
        %v2480 = vld [vmem:[%s977 + $0xd00] sm:$0xff]
        %v2481 = vld [vmem:[%s977 + $0xd08] sm:$0xff]
        %v2482 = vld [vmem:[%s977 + $0xd10] sm:$0xff]
        %v2483 = vld [vmem:[%s977 + $0xd18] sm:$0xff]
        %v2484 = vld [vmem:[%s977 + $0xd20] sm:$0xff]
        %v2485 = vld [vmem:[%s977 + $0xd28] sm:$0xff]
        %v2486 = vld [vmem:[%s977 + $0xd30] sm:$0xff]
        %v2487 = vld [vmem:[%s977 + $0xd38] sm:$0xff]
        %v2488 = vld [vmem:[%s977 + $0xd40] sm:$0xff]
        %v2489 = vld [vmem:[%s977 + $0xd48] sm:$0xff]
        %v2490 = vld [vmem:[%s977 + $0xd50] sm:$0xff]
        %v2491 = vld [vmem:[%s977 + $0xd58] sm:$0xff]
        %v2492 = vld [vmem:[%s977 + $0xd60] sm:$0xff]
        %v2493 = vld [vmem:[%s977 + $0xd68] sm:$0xff]
        %v2494 = vld [vmem:[%s977 + $0xd70] sm:$0xff]
        %v2495 = vld [vmem:[%s977 + $0xd78] sm:$0xff]
        %v2496 = vld [vmem:[%s977 + $0xd80] sm:$0xff]
        %v2497 = vld [vmem:[%s977 + $0xd88] sm:$0xff]
        %v2498 = vld [vmem:[%s977 + $0xd90] sm:$0xff]
        %v2499 = vld [vmem:[%s977 + $0xd98] sm:$0xff]
        %v2500 = vld [vmem:[%s977 + $0xda0] sm:$0xff]
        %v2501 = vld [vmem:[%s977 + $0xda8] sm:$0xff]
        %v2502 = vld [vmem:[%s977 + $0xdb0] sm:$0xff]
        %v2503 = vld [vmem:[%s977 + $0xdb8] sm:$0xff]
        %v2504 = vld [vmem:[%s977 + $0xdc0] sm:$0xff]
        %v2505 = vld [vmem:[%s977 + $0xdc8] sm:$0xff]
        %v2506 = vld [vmem:[%s977 + $0xdd0] sm:$0xff]
        %v2507 = vld [vmem:[%s977 + $0xdd8] sm:$0xff]
        %v2508 = vld [vmem:[%s977 + $0xde0] sm:$0xff]
        %v2509 = vld [vmem:[%s977 + $0xde8] sm:$0xff]
        %v2510 = vld [vmem:[%s977 + $0xdf0] sm:$0xff]
        %v2511 = vld [vmem:[%s977 + $0xdf8] sm:$0xff]
        %v2512 = vld [vmem:[%s977 + $0xe00] sm:$0xff]
        %v2513 = vld [vmem:[%s977 + $0xe08] sm:$0xff]
        %v2514 = vld [vmem:[%s977 + $0xe10] sm:$0xff]
        %v2515 = vld [vmem:[%s977 + $0xe18] sm:$0xff]
        %v2516 = vld [vmem:[%s977 + $0xe20] sm:$0xff]
        %v2517 = vld [vmem:[%s977 + $0xe28] sm:$0xff]
        %v2518 = vld [vmem:[%s977 + $0xe30] sm:$0xff]
        %v2519 = vld [vmem:[%s977 + $0xe38] sm:$0xff]
        %v2520 = vld [vmem:[%s977 + $0xe40] sm:$0xff]
        %v2521 = vld [vmem:[%s977 + $0xe48] sm:$0xff]
        %v2522 = vld [vmem:[%s977 + $0xe50] sm:$0xff]
        %v2523 = vld [vmem:[%s977 + $0xe58] sm:$0xff]
        %v2524 = vld [vmem:[%s977 + $0xe60] sm:$0xff]
        %v2525 = vld [vmem:[%s977 + $0xe68] sm:$0xff]
        %v2526 = vld [vmem:[%s977 + $0xe70] sm:$0xff]
        %v2527 = vld [vmem:[%s977 + $0xe78] sm:$0xff]
        %v2528 = vld [vmem:[%s977 + $0xe80] sm:$0xff]
        %v2529 = vld [vmem:[%s977 + $0xe88] sm:$0xff]
        %v2530 = vld [vmem:[%s977 + $0xe90] sm:$0xff]
        %v2531 = vld [vmem:[%s977 + $0xe98] sm:$0xff]
        %v2532 = vld [vmem:[%s977 + $0xea0] sm:$0xff]
        %v2533 = vld [vmem:[%s977 + $0xea8] sm:$0xff]
        %v2534 = vld [vmem:[%s977 + $0xeb0] sm:$0xff]
        %v2535 = vld [vmem:[%s977 + $0xeb8] sm:$0xff]
        %v2536 = vld [vmem:[%s977 + $0xec0] sm:$0xff]
        %v2537 = vld [vmem:[%s977 + $0xec8] sm:$0xff]
        %v2538 = vld [vmem:[%s977 + $0xed0] sm:$0xff]
        %v2539 = vld [vmem:[%s977 + $0xed8] sm:$0xff]
        %v2540 = vld [vmem:[%s977 + $0xee0] sm:$0xff]
        %v2541 = vld [vmem:[%s977 + $0xee8] sm:$0xff]
        %v2542 = vld [vmem:[%s977 + $0xef0] sm:$0xff]
        %v2543 = vld [vmem:[%s977 + $0xef8] sm:$0xff]
        %v2544 = vld [vmem:[%s977 + $0xf00] sm:$0xff]
        %v2545 = vld [vmem:[%s977 + $0xf08] sm:$0xff]
        %v2546 = vld [vmem:[%s977 + $0xf10] sm:$0xff]
        %v2547 = vld [vmem:[%s977 + $0xf18] sm:$0xff]
        %v2548 = vld [vmem:[%s977 + $0xf20] sm:$0xff]
        %v2549 = vld [vmem:[%s977 + $0xf28] sm:$0xff]
        %v2550 = vld [vmem:[%s977 + $0xf30] sm:$0xff]
        %v2551 = vld [vmem:[%s977 + $0xf38] sm:$0xff]
        %v2552 = vld [vmem:[%s977 + $0xf40] sm:$0xff]
        %v2553 = vld [vmem:[%s977 + $0xf48] sm:$0xff]
        %v2554 = vld [vmem:[%s977 + $0xf50] sm:$0xff]
        %v2555 = vld [vmem:[%s977 + $0xf58] sm:$0xff]
        %v2556 = vld [vmem:[%s977 + $0xf60] sm:$0xff]
        %v2557 = vld [vmem:[%s977 + $0xf68] sm:$0xff]
        %v2558 = vld [vmem:[%s977 + $0xf70] sm:$0xff]
        %v2559 = vld [vmem:[%s977 + $0xf78] sm:$0xff]
        %v2560 = vld [vmem:[%s977 + $0xf80] sm:$0xff]
        %v2561 = vld [vmem:[%s977 + $0xf88] sm:$0xff]
        %v2562 = vld [vmem:[%s977 + $0xf90] sm:$0xff]
        %v2563 = vld [vmem:[%s977 + $0xf98] sm:$0xff]
        %v2564 = vld [vmem:[%s977 + $0xfa0] sm:$0xff]
        %v2565 = vld [vmem:[%s977 + $0xfa8] sm:$0xff]
        %v2566 = vld [vmem:[%s977 + $0xfb0] sm:$0xff]
        %v2567 = vld [vmem:[%s977 + $0xfb8] sm:$0xff]
        %v2568 = vld [vmem:[%s977 + $0xfc0] sm:$0xff]
        %v2569 = vld [vmem:[%s977 + $0xfc8] sm:$0xff]
        %v2570 = vld [vmem:[%s977 + $0xfd0] sm:$0xff]
        %v2571 = vld [vmem:[%s977 + $0xfd8] sm:$0xff]
        %v2572 = vld [vmem:[%s977 + $0xfe0] sm:$0xff]
        %v2573 = vld [vmem:[%s977 + $0xfe8] sm:$0xff]
        %v2574 = vld [vmem:[%s977 + $0xff0] sm:$0xff]
        %v2575 = vld [vmem:[%s977 + $0xff8] sm:$0xff]
        %v2576 = vld [vmem:[%s977 + $0x1000] sm:$0xff]
        %v2577 = vld [vmem:[%s977 + $0x1008] sm:$0xff]
        %v2578 = vld [vmem:[%s977 + $0x1010] sm:$0xff]
        %v2579 = vld [vmem:[%s977 + $0x1018] sm:$0xff]
        %v2580 = vld [vmem:[%s977 + $0x1020] sm:$0xff]
        %v2581 = vld [vmem:[%s977 + $0x1028] sm:$0xff]
        %v2582 = vld [vmem:[%s977 + $0x1030] sm:$0xff]
        %v2583 = vld [vmem:[%s977 + $0x1038] sm:$0xff]
        %v2584 = vld [vmem:[%s977 + $0x1040] sm:$0xff]
        %v2585 = vld [vmem:[%s977 + $0x1048] sm:$0xff]
        %v2586 = vld [vmem:[%s977 + $0x1050] sm:$0xff]
        %v2587 = vld [vmem:[%s977 + $0x1058] sm:$0xff]
        %v2588 = vld [vmem:[%s977 + $0x1060] sm:$0xff]
        %v2589 = vld [vmem:[%s977 + $0x1068] sm:$0xff]
        %v2590 = vld [vmem:[%s977 + $0x1070] sm:$0xff]
        %v2591 = vld [vmem:[%s977 + $0x1078] sm:$0xff]
        %v2592 = vld [vmem:[%s977 + $0x1080] sm:$0xff]
        %v2593 = vld [vmem:[%s977 + $0x1088] sm:$0xff]
        %v2594 = vld [vmem:[%s977 + $0x1090] sm:$0xff]
        %v2595 = vld [vmem:[%s977 + $0x1098] sm:$0xff]
        %v2596 = vld [vmem:[%s977 + $0x10a0] sm:$0xff]
        %v2597 = vld [vmem:[%s977 + $0x10a8] sm:$0xff]
        %v2598 = vld [vmem:[%s977 + $0x10b0] sm:$0xff]
        %v2599 = vld [vmem:[%s977 + $0x10b8] sm:$0xff]
        %v2600 = vld [vmem:[%s977 + $0x10c0] sm:$0xff]
        %v2601 = vld [vmem:[%s977 + $0x10c8] sm:$0xff]
        %v2602 = vld [vmem:[%s977 + $0x10d0] sm:$0xff]
        %v2603 = vld [vmem:[%s977 + $0x10d8] sm:$0xff]
        %v2604 = vld [vmem:[%s977 + $0x10e0] sm:$0xff]
        %v2605 = vld [vmem:[%s977 + $0x10e8] sm:$0xff]
        %v2606 = vld [vmem:[%s977 + $0x10f0] sm:$0xff]
        %v2607 = vld [vmem:[%s977 + $0x10f8] sm:$0xff]
        %v2608 = vld [vmem:[%s977 + $0x1100] sm:$0xff]
        %v2609 = vld [vmem:[%s977 + $0x1108] sm:$0xff]
        %v2610 = vld [vmem:[%s977 + $0x1110] sm:$0xff]
        %v2611 = vld [vmem:[%s977 + $0x1118] sm:$0xff]
        %v2612 = vld [vmem:[%s977 + $0x1120] sm:$0xff]
        %v2613 = vld [vmem:[%s977 + $0x1128] sm:$0xff]
        %v2614 = vld [vmem:[%s977 + $0x1130] sm:$0xff]
        %v2615 = vld [vmem:[%s977 + $0x1138] sm:$0xff]
        %v2616 = vld [vmem:[%s977 + $0x1140] sm:$0xff]
        %v2617 = vld [vmem:[%s977 + $0x1148] sm:$0xff]
        %v2618 = vld [vmem:[%s977 + $0x1150] sm:$0xff]
        %v2619 = vld [vmem:[%s977 + $0x1158] sm:$0xff]
        %v2620 = vld [vmem:[%s977 + $0x1160] sm:$0xff]
        %v2621 = vld [vmem:[%s977 + $0x1168] sm:$0xff]
        %v2622 = vld [vmem:[%s977 + $0x1170] sm:$0xff]
        %v2623 = vld [vmem:[%s977 + $0x1178] sm:$0xff]
        %v2624 = vld [vmem:[%s977 + $0x1180] sm:$0xff]
        %v2625 = vld [vmem:[%s977 + $0x1188] sm:$0xff]
        %v2626 = vld [vmem:[%s977 + $0x1190] sm:$0xff]
        %v2627 = vld [vmem:[%s977 + $0x1198] sm:$0xff]
        %v2628 = vld [vmem:[%s977 + $0x11a0] sm:$0xff]
        %v2629 = vld [vmem:[%s977 + $0x11a8] sm:$0xff]
        %v2630 = vld [vmem:[%s977 + $0x11b0] sm:$0xff]
        %v2631 = vld [vmem:[%s977 + $0x11b8] sm:$0xff]
        %v2632 = vld [vmem:[%s977 + $0x11c0] sm:$0xff]
        %v2633 = vld [vmem:[%s977 + $0x11c8] sm:$0xff]
        %v2634 = vld [vmem:[%s977 + $0x11d0] sm:$0xff]
        %v2635 = vld [vmem:[%s977 + $0x11d8] sm:$0xff]
        %v2636 = vld [vmem:[%s977 + $0x11e0] sm:$0xff]
        %v2637 = vld [vmem:[%s977 + $0x11e8] sm:$0xff]
        %v2638 = vld [vmem:[%s977 + $0x11f0] sm:$0xff]
        %v2639 = vld [vmem:[%s977 + $0x11f8] sm:$0xff]
        %v2640 = vld [vmem:[%s977 + $0x1200] sm:$0xff]
        %v2641 = vld [vmem:[%s977 + $0x1208] sm:$0xff]
        %v2642 = vld [vmem:[%s977 + $0x1210] sm:$0xff]
        %v2643 = vld [vmem:[%s977 + $0x1218] sm:$0xff]
        %v2644 = vld [vmem:[%s977 + $0x1220] sm:$0xff]
        %v2645 = vld [vmem:[%s977 + $0x1228] sm:$0xff]
        %v2646 = vld [vmem:[%s977 + $0x1230] sm:$0xff]
        %v2647 = vld [vmem:[%s977 + $0x1238] sm:$0xff]
        %v2648 = vld [vmem:[%s977 + $0x1240] sm:$0xff]
        %v2649 = vld [vmem:[%s977 + $0x1248] sm:$0xff]
        %v2650 = vld [vmem:[%s977 + $0x1250] sm:$0xff]
        %v2651 = vld [vmem:[%s977 + $0x1258] sm:$0xff]
        %v2652 = vld [vmem:[%s977 + $0x1260] sm:$0xff]
        %v2653 = vld [vmem:[%s977 + $0x1268] sm:$0xff]
        %v2654 = vld [vmem:[%s977 + $0x1270] sm:$0xff]
        %v2655 = vld [vmem:[%s977 + $0x1278] sm:$0xff]
        %v2656 = vld [vmem:[%s977 + $0x1280] sm:$0xff]
        %v2657 = vld [vmem:[%s977 + $0x1288] sm:$0xff]
        %v2658 = vld [vmem:[%s977 + $0x1290] sm:$0xff]
        %v2659 = vld [vmem:[%s977 + $0x1298] sm:$0xff]
        %v2660 = vld [vmem:[%s977 + $0x12a0] sm:$0xff]
        %v2661 = vld [vmem:[%s977 + $0x12a8] sm:$0xff]
        %v2662 = vld [vmem:[%s977 + $0x12b0] sm:$0xff]
        %v2663 = vld [vmem:[%s977 + $0x12b8] sm:$0xff]
        %v2664 = vld [vmem:[%s977 + $0x12c0] sm:$0xff]
        %v2665 = vld [vmem:[%s977 + $0x12c8] sm:$0xff]
        %v2666 = vld [vmem:[%s977 + $0x12d0] sm:$0xff]
        %v2667 = vld [vmem:[%s977 + $0x12d8] sm:$0xff]
        %v2668 = vld [vmem:[%s977 + $0x12e0] sm:$0xff]
        %v2669 = vld [vmem:[%s977 + $0x12e8] sm:$0xff]
        %v2670 = vld [vmem:[%s977 + $0x12f0] sm:$0xff]
        %v2671 = vld [vmem:[%s977 + $0x12f8] sm:$0xff]
        %v2672 = vld [vmem:[%s977 + $0x1300] sm:$0xff]
        %v2673 = vld [vmem:[%s977 + $0x1308] sm:$0xff]
        %v2674 = vld [vmem:[%s977 + $0x1310] sm:$0xff]
        %v2675 = vld [vmem:[%s977 + $0x1318] sm:$0xff]
        %v2676 = vld [vmem:[%s977 + $0x1320] sm:$0xff]
        %v2677 = vld [vmem:[%s977 + $0x1328] sm:$0xff]
        %v2678 = vld [vmem:[%s977 + $0x1330] sm:$0xff]
        %v2679 = vld [vmem:[%s977 + $0x1338] sm:$0xff]
        %v2680 = vld [vmem:[%s977 + $0x1340] sm:$0xff]
        %v2681 = vld [vmem:[%s977 + $0x1348] sm:$0xff]
        %v2682 = vld [vmem:[%s977 + $0x1350] sm:$0xff]
        %v2683 = vld [vmem:[%s977 + $0x1358] sm:$0xff]
        %v2684 = vld [vmem:[%s977 + $0x1360] sm:$0xff]
        %v2685 = vld [vmem:[%s977 + $0x1368] sm:$0xff]
        %v2686 = vld [vmem:[%s977 + $0x1370] sm:$0xff]
        %v2687 = vld [vmem:[%s977 + $0x1378] sm:$0xff]
        %v2688 = vld [vmem:[%s977 + $0x1380] sm:$0xff]
        %v2689 = vld [vmem:[%s977 + $0x1388] sm:$0xff]
        %v2690 = vld [vmem:[%s977 + $0x1390] sm:$0xff]
        %v2691 = vld [vmem:[%s977 + $0x1398] sm:$0xff]
        %v2692 = vld [vmem:[%s977 + $0x13a0] sm:$0xff]
        %v2693 = vld [vmem:[%s977 + $0x13a8] sm:$0xff]
        %v2694 = vld [vmem:[%s977 + $0x13b0] sm:$0xff]
        %v2695 = vld [vmem:[%s977 + $0x13b8] sm:$0xff]
        %v2696 = vld [vmem:[%s977 + $0x13c0] sm:$0xff]
        %v2697 = vld [vmem:[%s977 + $0x13c8] sm:$0xff]
        %v2698 = vld [vmem:[%s977 + $0x13d0] sm:$0xff]
        %v2699 = vld [vmem:[%s977 + $0x13d8] sm:$0xff]
        %v2700 = vld [vmem:[%s977 + $0x13e0] sm:$0xff]
        %v2701 = vld [vmem:[%s977 + $0x13e8] sm:$0xff]
        %v2702 = vld [vmem:[%s977 + $0x13f0] sm:$0xff]
        %v2703 = vld [vmem:[%s977 + $0x13f8] sm:$0xff]
        %v2704 = vld [vmem:[%s977 + $0x1400] sm:$0xff]
        %v2705 = vld [vmem:[%s977 + $0x1408] sm:$0xff]
        %v2706 = vld [vmem:[%s977 + $0x1410] sm:$0xff]
        %v2707 = vld [vmem:[%s977 + $0x1418] sm:$0xff]
        %v2708 = vld [vmem:[%s977 + $0x1420] sm:$0xff]
        %v2709 = vld [vmem:[%s977 + $0x1428] sm:$0xff]
        %v2710 = vld [vmem:[%s977 + $0x1430] sm:$0xff]
        %v2711 = vld [vmem:[%s977 + $0x1438] sm:$0xff]
        %v2712 = vld [vmem:[%s977 + $0x1440] sm:$0xff]
        %v2713 = vld [vmem:[%s977 + $0x1448] sm:$0xff]
        %v2714 = vld [vmem:[%s977 + $0x1450] sm:$0xff]
        %v2715 = vld [vmem:[%s977 + $0x1458] sm:$0xff]
        %v2716 = vld [vmem:[%s977 + $0x1460] sm:$0xff]
        %v2717 = vld [vmem:[%s977 + $0x1468] sm:$0xff]
        %v2718 = vld [vmem:[%s977 + $0x1470] sm:$0xff]
        %v2719 = vld [vmem:[%s977 + $0x1478] sm:$0xff]
        %v2720 = vld [vmem:[%s977 + $0x1480] sm:$0xff]
        %v2721 = vld [vmem:[%s977 + $0x1488] sm:$0xff]
        %v2722 = vld [vmem:[%s977 + $0x1490] sm:$0xff]
        %v2723 = vld [vmem:[%s977 + $0x1498] sm:$0xff]
        %v2724 = vld [vmem:[%s977 + $0x14a0] sm:$0xff]
        %v2725 = vld [vmem:[%s977 + $0x14a8] sm:$0xff]
        %v2726 = vld [vmem:[%s977 + $0x14b0] sm:$0xff]
        %v2727 = vld [vmem:[%s977 + $0x14b8] sm:$0xff]
        %v2728 = vld [vmem:[%s977 + $0x14c0] sm:$0xff]
        %v2729 = vld [vmem:[%s977 + $0x14c8] sm:$0xff]
        %v2730 = vld [vmem:[%s977 + $0x14d0] sm:$0xff]
        %v2731 = vld [vmem:[%s977 + $0x14d8] sm:$0xff]
        %v2732 = vld [vmem:[%s977 + $0x14e0] sm:$0xff]
        %v2733 = vld [vmem:[%s977 + $0x14e8] sm:$0xff]
        %v2734 = vld [vmem:[%s977 + $0x14f0] sm:$0xff]
        %v2735 = vld [vmem:[%s977 + $0x14f8] sm:$0xff]
        %v2736 = vld [vmem:[%s977 + $0x1500] sm:$0xff]
        %v2737 = vld [vmem:[%s977 + $0x1508] sm:$0xff]
        %v2738 = vld [vmem:[%s977 + $0x1510] sm:$0xff]
        %v2739 = vld [vmem:[%s977 + $0x1518] sm:$0xff]
        %v2740 = vld [vmem:[%s977 + $0x1520] sm:$0xff]
        %v2741 = vld [vmem:[%s977 + $0x1528] sm:$0xff]
        %v2742 = vld [vmem:[%s977 + $0x1530] sm:$0xff]
        %v2743 = vld [vmem:[%s977 + $0x1538] sm:$0xff]
        %v2744 = vld [vmem:[%s977 + $0x1540] sm:$0xff]
        %v2745 = vld [vmem:[%s977 + $0x1548] sm:$0xff]
        %v2746 = vld [vmem:[%s977 + $0x1550] sm:$0xff]
        %v2747 = vld [vmem:[%s977 + $0x1558] sm:$0xff]
        %v2748 = vld [vmem:[%s977 + $0x1560] sm:$0xff]
        %v2749 = vld [vmem:[%s977 + $0x1568] sm:$0xff]
        %v2750 = vld [vmem:[%s977 + $0x1570] sm:$0xff]
        %v2751 = vld [vmem:[%s977 + $0x1578] sm:$0xff]
        %v2752 = vld [vmem:[%s977 + $0x1580] sm:$0xff]
        %v2753 = vld [vmem:[%s977 + $0x1588] sm:$0xff]
        %v2754 = vld [vmem:[%s977 + $0x1590] sm:$0xff]
        %v2755 = vld [vmem:[%s977 + $0x1598] sm:$0xff]
        %v2756 = vld [vmem:[%s977 + $0x15a0] sm:$0xff]
        %v2757 = vld [vmem:[%s977 + $0x15a8] sm:$0xff]
        %v2758 = vld [vmem:[%s977 + $0x15b0] sm:$0xff]
        %v2759 = vld [vmem:[%s977 + $0x15b8] sm:$0xff]
        %v2760 = vld [vmem:[%s977 + $0x15c0] sm:$0xff]
        %v2761 = vld [vmem:[%s977 + $0x15c8] sm:$0xff]
        %v2762 = vld [vmem:[%s977 + $0x15d0] sm:$0xff]
        %v2763 = vld [vmem:[%s977 + $0x15d8] sm:$0xff]
        %v2764 = vld [vmem:[%s977 + $0x15e0] sm:$0xff]
        %v2765 = vld [vmem:[%s977 + $0x15e8] sm:$0xff]
        %v2766 = vld [vmem:[%s977 + $0x15f0] sm:$0xff]
        %v2767 = vld [vmem:[%s977 + $0x15f8] sm:$0xff]
        %v2768 = vld [vmem:[%s977 + $0x1600] sm:$0xff]
        %v2769 = vld [vmem:[%s977 + $0x1608] sm:$0xff]
        %v2770 = vld [vmem:[%s977 + $0x1610] sm:$0xff]
        %v2771 = vld [vmem:[%s977 + $0x1618] sm:$0xff]
        %v2772 = vld [vmem:[%s977 + $0x1620] sm:$0xff]
        %v2773 = vld [vmem:[%s977 + $0x1628] sm:$0xff]
        %v2774 = vld [vmem:[%s977 + $0x1630] sm:$0xff]
        %v2775 = vld [vmem:[%s977 + $0x1638] sm:$0xff]
        %v2776 = vld [vmem:[%s977 + $0x1640] sm:$0xff]
        %v2777 = vld [vmem:[%s977 + $0x1648] sm:$0xff]
        %v2778 = vld [vmem:[%s977 + $0x1650] sm:$0xff]
        %v2779 = vld [vmem:[%s977 + $0x1658] sm:$0xff]
        %v2780 = vld [vmem:[%s977 + $0x1660] sm:$0xff]
        %v2781 = vld [vmem:[%s977 + $0x1668] sm:$0xff]
        %v2782 = vld [vmem:[%s977 + $0x1670] sm:$0xff]
        %v2783 = vld [vmem:[%s977 + $0x1678] sm:$0xff]
        %v2784 = vld [vmem:[%s977 + $0x1680] sm:$0xff]
        %v2785 = vld [vmem:[%s977 + $0x1688] sm:$0xff]
        %v2786 = vld [vmem:[%s977 + $0x1690] sm:$0xff]
        %v2787 = vld [vmem:[%s977 + $0x1698] sm:$0xff]
        %v2788 = vld [vmem:[%s977 + $0x16a0] sm:$0xff]
        %v2789 = vld [vmem:[%s977 + $0x16a8] sm:$0xff]
        %v2790 = vld [vmem:[%s977 + $0x16b0] sm:$0xff]
        %v2791 = vld [vmem:[%s977 + $0x16b8] sm:$0xff]
        %v2792 = vld [vmem:[%s977 + $0x16c0] sm:$0xff]
        %v2793 = vld [vmem:[%s977 + $0x16c8] sm:$0xff]
        %v2794 = vld [vmem:[%s977 + $0x16d0] sm:$0xff]
        %v2795 = vld [vmem:[%s977 + $0x16d8] sm:$0xff]
        %v2796 = vld [vmem:[%s977 + $0x16e0] sm:$0xff]
        %v2797 = vld [vmem:[%s977 + $0x16e8] sm:$0xff]
        %v2798 = vld [vmem:[%s977 + $0x16f0] sm:$0xff]
        %v2799 = vld [vmem:[%s977 + $0x16f8] sm:$0xff]
        %v2800 = vld [vmem:[%s977 + $0x1700] sm:$0xff]
        %v2801 = vld [vmem:[%s977 + $0x1708] sm:$0xff]
        %v2802 = vld [vmem:[%s977 + $0x1710] sm:$0xff]
        %v2803 = vld [vmem:[%s977 + $0x1718] sm:$0xff]
        %v2804 = vld [vmem:[%s977 + $0x1720] sm:$0xff]
        %v2805 = vld [vmem:[%s977 + $0x1728] sm:$0xff]
        %v2806 = vld [vmem:[%s977 + $0x1730] sm:$0xff]
        %v2807 = vld [vmem:[%s977 + $0x1738] sm:$0xff]
        %v2808 = vld [vmem:[%s977 + $0x1740] sm:$0xff]
        %v2809 = vld [vmem:[%s977 + $0x1748] sm:$0xff]
        %v2810 = vld [vmem:[%s977 + $0x1750] sm:$0xff]
        %v2811 = vld [vmem:[%s977 + $0x1758] sm:$0xff]
        %v2812 = vld [vmem:[%s977 + $0x1760] sm:$0xff]
        %v2813 = vld [vmem:[%s977 + $0x1768] sm:$0xff]
        %v2814 = vld [vmem:[%s977 + $0x1770] sm:$0xff]
        %v2815 = vld [vmem:[%s977 + $0x1778] sm:$0xff]
        %v2816 = vld [vmem:[%s977 + $0x1780] sm:$0xff]
        %v2817 = vld [vmem:[%s977 + $0x1788] sm:$0xff]
        %v2818 = vld [vmem:[%s977 + $0x1790] sm:$0xff]
        %v2819 = vld [vmem:[%s977 + $0x1798] sm:$0xff]
        %v2820 = vld [vmem:[%s977 + $0x17a0] sm:$0xff]
        %v2821 = vld [vmem:[%s977 + $0x17a8] sm:$0xff]
        %v2822 = vld [vmem:[%s977 + $0x17b0] sm:$0xff]
        %v2823 = vld [vmem:[%s977 + $0x17b8] sm:$0xff]
        %v2824 = vld [vmem:[%s977 + $0x17c0] sm:$0xff]
        %v2825 = vld [vmem:[%s977 + $0x17c8] sm:$0xff]
        %v2826 = vld [vmem:[%s977 + $0x17d0] sm:$0xff]
        %v2827 = vld [vmem:[%s977 + $0x17d8] sm:$0xff]
        %v2828 = vld [vmem:[%s977 + $0x17e0] sm:$0xff]
        %v2829 = vld [vmem:[%s977 + $0x17e8] sm:$0xff]
        %v2830 = vld [vmem:[%s977 + $0x17f0] sm:$0xff]
        %v2831 = vld [vmem:[%s977 + $0x17f8] sm:$0xff]
        %v2832 = vld [vmem:[%s977 + $0x1800] sm:$0xff]
        %v2833 = vld [vmem:[%s977 + $0x1808] sm:$0xff]
        %v2834 = vld [vmem:[%s977 + $0x1810] sm:$0xff]
        %v2835 = vld [vmem:[%s977 + $0x1818] sm:$0xff]
        %v2836 = vld [vmem:[%s977 + $0x1820] sm:$0xff]
        %v2837 = vld [vmem:[%s977 + $0x1828] sm:$0xff]
        %v2838 = vld [vmem:[%s977 + $0x1830] sm:$0xff]
        %v2839 = vld [vmem:[%s977 + $0x1838] sm:$0xff]
        %v2840 = vld [vmem:[%s977 + $0x1840] sm:$0xff]
        %v2841 = vld [vmem:[%s977 + $0x1848] sm:$0xff]
        %v2842 = vld [vmem:[%s977 + $0x1850] sm:$0xff]
        %v2843 = vld [vmem:[%s977 + $0x1858] sm:$0xff]
        %v2844 = vld [vmem:[%s977 + $0x1860] sm:$0xff]
        %v2845 = vld [vmem:[%s977 + $0x1868] sm:$0xff]
        %v2846 = vld [vmem:[%s977 + $0x1870] sm:$0xff]
        %v2847 = vld [vmem:[%s977 + $0x1878] sm:$0xff]
        %v2848 = vld [vmem:[%s977 + $0x1880] sm:$0xff]
        %v2849 = vld [vmem:[%s977 + $0x1888] sm:$0xff]
        %v2850 = vld [vmem:[%s977 + $0x1890] sm:$0xff]
        %v2851 = vld [vmem:[%s977 + $0x1898] sm:$0xff]
        %v2852 = vld [vmem:[%s977 + $0x18a0] sm:$0xff]
        %v2853 = vld [vmem:[%s977 + $0x18a8] sm:$0xff]
        %v2854 = vld [vmem:[%s977 + $0x18b0] sm:$0xff]
        %v2855 = vld [vmem:[%s977 + $0x18b8] sm:$0xff]
        %v2856 = vld [vmem:[%s977 + $0x18c0] sm:$0xff]
        %v2857 = vld [vmem:[%s977 + $0x18c8] sm:$0xff]
        %v2858 = vld [vmem:[%s977 + $0x18d0] sm:$0xff]
        %v2859 = vld [vmem:[%s977 + $0x18d8] sm:$0xff]
        %v2860 = vld [vmem:[%s977 + $0x18e0] sm:$0xff]
        %v2861 = vld [vmem:[%s977 + $0x18e8] sm:$0xff]
        %v2862 = vld [vmem:[%s977 + $0x18f0] sm:$0xff]
        %v2863 = vld [vmem:[%s977 + $0x18f8] sm:$0xff]
        %v2864 = vld [vmem:[%s977 + $0x1900] sm:$0xff]
        %v2865 = vld [vmem:[%s977 + $0x1908] sm:$0xff]
        %v2866 = vld [vmem:[%s977 + $0x1910] sm:$0xff]
        %v2867 = vld [vmem:[%s977 + $0x1918] sm:$0xff]
        %v2868 = vld [vmem:[%s977 + $0x1920] sm:$0xff]
        %v2869 = vld [vmem:[%s977 + $0x1928] sm:$0xff]
        %v2870 = vld [vmem:[%s977 + $0x1930] sm:$0xff]
        %v2871 = vld [vmem:[%s977 + $0x1938] sm:$0xff]
        %v2872 = vld [vmem:[%s977 + $0x1940] sm:$0xff]
        %v2873 = vld [vmem:[%s977 + $0x1948] sm:$0xff]
        %v2874 = vld [vmem:[%s977 + $0x1950] sm:$0xff]
        %v2875 = vld [vmem:[%s977 + $0x1958] sm:$0xff]
        %v2876 = vld [vmem:[%s977 + $0x1960] sm:$0xff]
        %v2877 = vld [vmem:[%s977 + $0x1968] sm:$0xff]
        %v2878 = vld [vmem:[%s977 + $0x1970] sm:$0xff]
        %v2879 = vld [vmem:[%s977 + $0x1978] sm:$0xff]
        %v2880 = vld [vmem:[%s977 + $0x1980] sm:$0xff]
        %v2881 = vld [vmem:[%s977 + $0x1988] sm:$0xff]
        %v2882 = vld [vmem:[%s977 + $0x1990] sm:$0xff]
        %v2883 = vld [vmem:[%s977 + $0x1998] sm:$0xff]
        %v2884 = vld [vmem:[%s977 + $0x19a0] sm:$0xff]
        %v2885 = vld [vmem:[%s977 + $0x19a8] sm:$0xff]
        %v2886 = vld [vmem:[%s977 + $0x19b0] sm:$0xff]
        %v2887 = vld [vmem:[%s977 + $0x19b8] sm:$0xff]
        %v2888 = vld [vmem:[%s977 + $0x19c0] sm:$0xff]
        %v2889 = vld [vmem:[%s977 + $0x19c8] sm:$0xff]
        %v2890 = vld [vmem:[%s977 + $0x19d0] sm:$0xff]
        %v2891 = vld [vmem:[%s977 + $0x19d8] sm:$0xff]
        %v2892 = vld [vmem:[%s977 + $0x19e0] sm:$0xff]
        %v2893 = vld [vmem:[%s977 + $0x19e8] sm:$0xff]
        %v2894 = vld [vmem:[%s977 + $0x19f0] sm:$0xff]
        %v2895 = vld [vmem:[%s977 + $0x19f8] sm:$0xff]
        %v2896 = vld [vmem:[%s977 + $0x1a00] sm:$0xff]
        %v2897 = vld [vmem:[%s977 + $0x1a08] sm:$0xff]
        %v2898 = vld [vmem:[%s977 + $0x1a10] sm:$0xff]
        %v2899 = vld [vmem:[%s977 + $0x1a18] sm:$0xff]
        %v2900 = vld [vmem:[%s977 + $0x1a20] sm:$0xff]
        %v2901 = vld [vmem:[%s977 + $0x1a28] sm:$0xff]
        %v2902 = vld [vmem:[%s977 + $0x1a30] sm:$0xff]
        %v2903 = vld [vmem:[%s977 + $0x1a38] sm:$0xff]
        %v2904 = vld [vmem:[%s977 + $0x1a40] sm:$0xff]
        %v2905 = vld [vmem:[%s977 + $0x1a48] sm:$0xff]
        %v2906 = vld [vmem:[%s977 + $0x1a50] sm:$0xff]
        %v2907 = vld [vmem:[%s977 + $0x1a58] sm:$0xff]
        %v2908 = vld [vmem:[%s977 + $0x1a60] sm:$0xff]
        %v2909 = vld [vmem:[%s977 + $0x1a68] sm:$0xff]
        %v2910 = vld [vmem:[%s977 + $0x1a70] sm:$0xff]
        %v2911 = vld [vmem:[%s977 + $0x1a78] sm:$0xff]
        %v2912 = vld [vmem:[%s977 + $0x1a80] sm:$0xff]
        %v2913 = vld [vmem:[%s977 + $0x1a88] sm:$0xff]
        %v2914 = vld [vmem:[%s977 + $0x1a90] sm:$0xff]
        %v2915 = vld [vmem:[%s977 + $0x1a98] sm:$0xff]
        %v2916 = vld [vmem:[%s977 + $0x1aa0] sm:$0xff]
        %v2917 = vld [vmem:[%s977 + $0x1aa8] sm:$0xff]
        %v2918 = vld [vmem:[%s977 + $0x1ab0] sm:$0xff]
        %v2919 = vld [vmem:[%s977 + $0x1ab8] sm:$0xff]
        %v2920 = vld [vmem:[%s977 + $0x1ac0] sm:$0xff]
        %v2921 = vld [vmem:[%s977 + $0x1ac8] sm:$0xff]
        %v2922 = vld [vmem:[%s977 + $0x1ad0] sm:$0xff]
        %v2923 = vld [vmem:[%s977 + $0x1ad8] sm:$0xff]
        %v2924 = vld [vmem:[%s977 + $0x1ae0] sm:$0xff]
        %v2925 = vld [vmem:[%s977 + $0x1ae8] sm:$0xff]
        %v2926 = vld [vmem:[%s977 + $0x1af0] sm:$0xff]
        %v2927 = vld [vmem:[%s977 + $0x1af8] sm:$0xff]
        %v2928 = vld [vmem:[%s977 + $0x1b00] sm:$0xff]
        %v2929 = vld [vmem:[%s977 + $0x1b08] sm:$0xff]
        %v2930 = vld [vmem:[%s977 + $0x1b10] sm:$0xff]
        %v2931 = vld [vmem:[%s977 + $0x1b18] sm:$0xff]
        %v2932 = vld [vmem:[%s977 + $0x1b20] sm:$0xff]
        %v2933 = vld [vmem:[%s977 + $0x1b28] sm:$0xff]
        %v2934 = vld [vmem:[%s977 + $0x1b30] sm:$0xff]
        %v2935 = vld [vmem:[%s977 + $0x1b38] sm:$0xff]
        %v2936 = vld [vmem:[%s977 + $0x1b40] sm:$0xff]
        %v2937 = vld [vmem:[%s977 + $0x1b48] sm:$0xff]
        %v2938 = vld [vmem:[%s977 + $0x1b50] sm:$0xff]
        %v2939 = vld [vmem:[%s977 + $0x1b58] sm:$0xff]
        %v2940 = vld [vmem:[%s977 + $0x1b60] sm:$0xff]
        %v2941 = vld [vmem:[%s977 + $0x1b68] sm:$0xff]
        %v2942 = vld [vmem:[%s977 + $0x1b70] sm:$0xff]
        %v2943 = vld [vmem:[%s977 + $0x1b78] sm:$0xff]
        %v2944 = vld [vmem:[%s977 + $0x1b80] sm:$0xff]
        %v2945 = vld [vmem:[%s977 + $0x1b88] sm:$0xff]
        %v2946 = vld [vmem:[%s977 + $0x1b90] sm:$0xff]
        %v2947 = vld [vmem:[%s977 + $0x1b98] sm:$0xff]
        %v2948 = vld [vmem:[%s977 + $0x1ba0] sm:$0xff]
        %v2949 = vld [vmem:[%s977 + $0x1ba8] sm:$0xff]
        %v2950 = vld [vmem:[%s977 + $0x1bb0] sm:$0xff]
        %v2951 = vld [vmem:[%s977 + $0x1bb8] sm:$0xff]
        %v2952 = vld [vmem:[%s977 + $0x1bc0] sm:$0xff]
        %v2953 = vld [vmem:[%s977 + $0x1bc8] sm:$0xff]
        %v2954 = vld [vmem:[%s977 + $0x1bd0] sm:$0xff]
        %v2955 = vld [vmem:[%s977 + $0x1bd8] sm:$0xff]
        %v2956 = vld [vmem:[%s977 + $0x1be0] sm:$0xff]
        %v2957 = vld [vmem:[%s977 + $0x1be8] sm:$0xff]
        %v2958 = vld [vmem:[%s977 + $0x1bf0] sm:$0xff]
        %v2959 = vld [vmem:[%s977 + $0x1bf8] sm:$0xff]
        %v2960 = vld [vmem:[%s977 + $0x1c00] sm:$0xff]
        %v2961 = vld [vmem:[%s977 + $0x1c08] sm:$0xff]
        %v2962 = vld [vmem:[%s977 + $0x1c10] sm:$0xff]
        %v2963 = vld [vmem:[%s977 + $0x1c18] sm:$0xff]
        %v2964 = vld [vmem:[%s977 + $0x1c20] sm:$0xff]
        %v2965 = vld [vmem:[%s977 + $0x1c28] sm:$0xff]
        %v2966 = vld [vmem:[%s977 + $0x1c30] sm:$0xff]
        %v2967 = vld [vmem:[%s977 + $0x1c38] sm:$0xff]
        %v2968 = vld [vmem:[%s977 + $0x1c40] sm:$0xff]
        %v2969 = vld [vmem:[%s977 + $0x1c48] sm:$0xff]
        %v2970 = vld [vmem:[%s977 + $0x1c50] sm:$0xff]
        %v2971 = vld [vmem:[%s977 + $0x1c58] sm:$0xff]
        %v2972 = vld [vmem:[%s977 + $0x1c60] sm:$0xff]
        %v2973 = vld [vmem:[%s977 + $0x1c68] sm:$0xff]
        %v2974 = vld [vmem:[%s977 + $0x1c70] sm:$0xff]
        %v2975 = vld [vmem:[%s977 + $0x1c78] sm:$0xff]
        %v2976 = vld [vmem:[%s977 + $0x1c80] sm:$0xff]
        %v2977 = vld [vmem:[%s977 + $0x1c88] sm:$0xff]
        %v2978 = vld [vmem:[%s977 + $0x1c90] sm:$0xff]
        %v2979 = vld [vmem:[%s977 + $0x1c98] sm:$0xff]
        %v2980 = vld [vmem:[%s977 + $0x1ca0] sm:$0xff]
        %v2981 = vld [vmem:[%s977 + $0x1ca8] sm:$0xff]
        %v2982 = vld [vmem:[%s977 + $0x1cb0] sm:$0xff]
        %v2983 = vld [vmem:[%s977 + $0x1cb8] sm:$0xff]
        %v2984 = vld [vmem:[%s977 + $0x1cc0] sm:$0xff]
        %v2985 = vld [vmem:[%s977 + $0x1cc8] sm:$0xff]
        %v2986 = vld [vmem:[%s977 + $0x1cd0] sm:$0xff]
        %v2987 = vld [vmem:[%s977 + $0x1cd8] sm:$0xff]
        %v2988 = vld [vmem:[%s977 + $0x1ce0] sm:$0xff]
        %v2989 = vld [vmem:[%s977 + $0x1ce8] sm:$0xff]
        %v2990 = vld [vmem:[%s977 + $0x1cf0] sm:$0xff]
        %v2991 = vld [vmem:[%s977 + $0x1cf8] sm:$0xff]
        %v2992 = vld [vmem:[%s977 + $0x1d00] sm:$0xff]
        %v2993 = vld [vmem:[%s977 + $0x1d08] sm:$0xff]
        %v2994 = vld [vmem:[%s977 + $0x1d10] sm:$0xff]
        %v2995 = vld [vmem:[%s977 + $0x1d18] sm:$0xff]
        %v2996 = vld [vmem:[%s977 + $0x1d20] sm:$0xff]
        %v2997 = vld [vmem:[%s977 + $0x1d28] sm:$0xff]
        %v2998 = vld [vmem:[%s977 + $0x1d30] sm:$0xff]
        %v2999 = vld [vmem:[%s977 + $0x1d38] sm:$0xff]
        %v3000 = vld [vmem:[%s977 + $0x1d40] sm:$0xff]
        %v3001 = vld [vmem:[%s977 + $0x1d48] sm:$0xff]
        %v3002 = vld [vmem:[%s977 + $0x1d50] sm:$0xff]
        %v3003 = vld [vmem:[%s977 + $0x1d58] sm:$0xff]
        %v3004 = vld [vmem:[%s977 + $0x1d60] sm:$0xff]
        %v3005 = vld [vmem:[%s977 + $0x1d68] sm:$0xff]
        %v3006 = vld [vmem:[%s977 + $0x1d70] sm:$0xff]
        %v3007 = vld [vmem:[%s977 + $0x1d78] sm:$0xff]
        %v3008 = vld [vmem:[%s977 + $0x1d80] sm:$0xff]
        %v3009 = vld [vmem:[%s977 + $0x1d88] sm:$0xff]
        %v3010 = vld [vmem:[%s977 + $0x1d90] sm:$0xff]
        %v3011 = vld [vmem:[%s977 + $0x1d98] sm:$0xff]
        %v3012 = vld [vmem:[%s977 + $0x1da0] sm:$0xff]
        %v3013 = vld [vmem:[%s977 + $0x1da8] sm:$0xff]
        %v3014 = vld [vmem:[%s977 + $0x1db0] sm:$0xff]
        %v3015 = vld [vmem:[%s977 + $0x1db8] sm:$0xff]
        %v3016 = vld [vmem:[%s977 + $0x1dc0] sm:$0xff]
        %v3017 = vld [vmem:[%s977 + $0x1dc8] sm:$0xff]
        %v3018 = vld [vmem:[%s977 + $0x1dd0] sm:$0xff]
        %v3019 = vld [vmem:[%s977 + $0x1dd8] sm:$0xff]
        %v3020 = vld [vmem:[%s977 + $0x1de0] sm:$0xff]
        %v3021 = vld [vmem:[%s977 + $0x1de8] sm:$0xff]
        %v3022 = vld [vmem:[%s977 + $0x1df0] sm:$0xff]
        %v3023 = vld [vmem:[%s977 + $0x1df8] sm:$0xff]
        %v3024 = vld [vmem:[%s977 + $0x1e00] sm:$0xff]
        %v3025 = vld [vmem:[%s977 + $0x1e08] sm:$0xff]
        %v3026 = vld [vmem:[%s977 + $0x1e10] sm:$0xff]
        %v3027 = vld [vmem:[%s977 + $0x1e18] sm:$0xff]
        %v3028 = vld [vmem:[%s977 + $0x1e20] sm:$0xff]
        %v3029 = vld [vmem:[%s977 + $0x1e28] sm:$0xff]
        %v3030 = vld [vmem:[%s977 + $0x1e30] sm:$0xff]
        %v3031 = vld [vmem:[%s977 + $0x1e38] sm:$0xff]
        %v3032 = vld [vmem:[%s977 + $0x1e40] sm:$0xff]
        %v3033 = vld [vmem:[%s977 + $0x1e48] sm:$0xff]
        %v3034 = vld [vmem:[%s977 + $0x1e50] sm:$0xff]
        %v3035 = vld [vmem:[%s977 + $0x1e58] sm:$0xff]
        %v3036 = vld [vmem:[%s977 + $0x1e60] sm:$0xff]
        %v3037 = vld [vmem:[%s977 + $0x1e68] sm:$0xff]
        %v3038 = vld [vmem:[%s977 + $0x1e70] sm:$0xff]
        %v3039 = vld [vmem:[%s977 + $0x1e78] sm:$0xff]
        %v3040 = vld [vmem:[%s977 + $0x1e80] sm:$0xff]
        %v3041 = vld [vmem:[%s977 + $0x1e88] sm:$0xff]
        %v3042 = vld [vmem:[%s977 + $0x1e90] sm:$0xff]
        %v3043 = vld [vmem:[%s977 + $0x1e98] sm:$0xff]
        %v3044 = vld [vmem:[%s977 + $0x1ea0] sm:$0xff]
        %v3045 = vld [vmem:[%s977 + $0x1ea8] sm:$0xff]
        %v3046 = vld [vmem:[%s977 + $0x1eb0] sm:$0xff]
        %v3047 = vld [vmem:[%s977 + $0x1eb8] sm:$0xff]
        %v3048 = vld [vmem:[%s977 + $0x1ec0] sm:$0xff]
        %v3049 = vld [vmem:[%s977 + $0x1ec8] sm:$0xff]
        %v3050 = vld [vmem:[%s977 + $0x1ed0] sm:$0xff]
        %v3051 = vld [vmem:[%s977 + $0x1ed8] sm:$0xff]
        %v3052 = vld [vmem:[%s977 + $0x1ee0] sm:$0xff]
        %v3053 = vld [vmem:[%s977 + $0x1ee8] sm:$0xff]
        %v3054 = vld [vmem:[%s977 + $0x1ef0] sm:$0xff]
        %v3055 = vld [vmem:[%s977 + $0x1ef8] sm:$0xff]
        %v3056 = vld [vmem:[%s977 + $0x1f00] sm:$0xff]
        %v3057 = vld [vmem:[%s977 + $0x1f08] sm:$0xff]
        %v3058 = vld [vmem:[%s977 + $0x1f10] sm:$0xff]
        %v3059 = vld [vmem:[%s977 + $0x1f18] sm:$0xff]
        %v3060 = vld [vmem:[%s977 + $0x1f20] sm:$0xff]
        %v3061 = vld [vmem:[%s977 + $0x1f28] sm:$0xff]
        %v3062 = vld [vmem:[%s977 + $0x1f30] sm:$0xff]
        %v3063 = vld [vmem:[%s977 + $0x1f38] sm:$0xff]
        %v3064 = vld [vmem:[%s977 + $0x1f40] sm:$0xff]
        %v3065 = vld [vmem:[%s977 + $0x1f48] sm:$0xff]
        %v3066 = vld [vmem:[%s977 + $0x1f50] sm:$0xff]
        %v3067 = vld [vmem:[%s977 + $0x1f58] sm:$0xff]
        %v3068 = vld [vmem:[%s977 + $0x1f60] sm:$0xff]
        %v3069 = vld [vmem:[%s977 + $0x1f68] sm:$0xff]
        %v3070 = vld [vmem:[%s977 + $0x1f70] sm:$0xff]
        %v3071 = vld [vmem:[%s977 + $0x1f78] sm:$0xff]
        %v3072 = vld [vmem:[%s977 + $0x1f80] sm:$0xff]
        %v3073 = vld [vmem:[%s977 + $0x1f88] sm:$0xff]
        %v3074 = vld [vmem:[%s977 + $0x1f90] sm:$0xff]
        %v3075 = vld [vmem:[%s977 + $0x1f98] sm:$0xff]
        %v3076 = vld [vmem:[%s977 + $0x1fa0] sm:$0xff]
        %v3077 = vld [vmem:[%s977 + $0x1fa8] sm:$0xff]
        %v3078 = vld [vmem:[%s977 + $0x1fb0] sm:$0xff]
        %v3079 = vld [vmem:[%s977 + $0x1fb8] sm:$0xff]
        %v3080 = vld [vmem:[%s977 + $0x1fc0] sm:$0xff]
        %v3081 = vld [vmem:[%s977 + $0x1fc8] sm:$0xff]
        %v3082 = vld [vmem:[%s977 + $0x1fd0] sm:$0xff]
        %v3083 = vld [vmem:[%s977 + $0x1fd8] sm:$0xff]
        %v3084 = vld [vmem:[%s977 + $0x1fe0] sm:$0xff]
        %v3085 = vld [vmem:[%s977 + $0x1fe8] sm:$0xff]
        %v3086 = vld [vmem:[%s977 + $0x1ff0] sm:$0xff]
        %v3087 = vld [vmem:[%s977 + $0x1ff8] sm:$0xff]
        %v3088 = vld [vmem:[%s986] sm:$0xff]
        %v3090 = vlaneseq
        %v3091 = vshrl.u32 %v3090, 7
        %v3092 = vsub.s32 0, %v3091
        %v3093 = vrot.slane %v3088, %v3092
        %v3094 = vlaneseq
        %v3095 = vshrl.u32 %v3094, 7
        %v3096 = vsub.s32 1, %v3095
        %v3097 = vrot.slane %v3088, %v3096
        %v3098 = vlaneseq
        %v3099 = vshrl.u32 %v3098, 7
        %v3100 = vsub.s32 2, %v3099
        %v3101 = vrot.slane %v3088, %v3100
        %v3102 = vlaneseq
        %v3103 = vshrl.u32 %v3102, 7
        %v3104 = vsub.s32 3, %v3103
        %v3105 = vrot.slane %v3088, %v3104
        %v3106 = vlaneseq
        %v3107 = vshrl.u32 %v3106, 7
        %v3108 = vsub.s32 4, %v3107
        %v3109 = vrot.slane %v3088, %v3108
        %v3110 = vlaneseq
        %v3111 = vshrl.u32 %v3110, 7
        %v3112 = vsub.s32 5, %v3111
        %v3113 = vrot.slane %v3088, %v3112
        %v3114 = vlaneseq
        %v3115 = vshrl.u32 %v3114, 7
        %v3116 = vsub.s32 6, %v3115
        %v3117 = vrot.slane %v3088, %v3116
        %v3118 = vlaneseq
        %v3119 = vshrl.u32 %v3118, 7
        %v3120 = vsub.s32 7, %v3119
        %v3121 = vrot.slane %v3088, %v3120
        %v4154 = vunpack.c.l.b16 %v2064
        %v4155 = vunpack.c.h.b16 %v2064
        %v4156 = vunpack.c.l.b16 %v2065
        %v4157 = vunpack.c.h.b16 %v2065
        %v4158 = vunpack.c.l.b16 %v2066
        %v4159 = vunpack.c.h.b16 %v2066
        %v4160 = vunpack.c.l.b16 %v2067
        %v4161 = vunpack.c.h.b16 %v2067
        %v4162 = vunpack.c.l.b16 %v2068
        %v4163 = vunpack.c.h.b16 %v2068
        %v4164 = vunpack.c.l.b16 %v2069
        %v4165 = vunpack.c.h.b16 %v2069
        %v4166 = vunpack.c.l.b16 %v2070
        %v4167 = vunpack.c.h.b16 %v2070
        %v4168 = vunpack.c.l.b16 %v2071
        %v4169 = vunpack.c.h.b16 %v2071
        %v4170 = vunpack.c.l.b16 %v2072
        %v4171 = vunpack.c.h.b16 %v2072
        %v4172 = vunpack.c.l.b16 %v2073
        %v4173 = vunpack.c.h.b16 %v2073
        %v4174 = vunpack.c.l.b16 %v2074
        %v4175 = vunpack.c.h.b16 %v2074
        %v4176 = vunpack.c.l.b16 %v2075
        %v4177 = vunpack.c.h.b16 %v2075
        %v4178 = vunpack.c.l.b16 %v2076
        %v4179 = vunpack.c.h.b16 %v2076
        %v4180 = vunpack.c.l.b16 %v2077
        %v4181 = vunpack.c.h.b16 %v2077
        %v4182 = vunpack.c.l.b16 %v2078
        %v4183 = vunpack.c.h.b16 %v2078
        %v4184 = vunpack.c.l.b16 %v2079
        %v4185 = vunpack.c.h.b16 %v2079
        %v4186 = vunpack.c.l.b16 %v2080
        %v4187 = vunpack.c.h.b16 %v2080
        %v4188 = vunpack.c.l.b16 %v2081
        %v4189 = vunpack.c.h.b16 %v2081
        %v4190 = vunpack.c.l.b16 %v2082
        %v4191 = vunpack.c.h.b16 %v2082
        %v4192 = vunpack.c.l.b16 %v2083
        %v4193 = vunpack.c.h.b16 %v2083
        %v4194 = vunpack.c.l.b16 %v2084
        %v4195 = vunpack.c.h.b16 %v2084
        %v4196 = vunpack.c.l.b16 %v2085
        %v4197 = vunpack.c.h.b16 %v2085
        %v4198 = vunpack.c.l.b16 %v2086
        %v4199 = vunpack.c.h.b16 %v2086
        %v4200 = vunpack.c.l.b16 %v2087
        %v4201 = vunpack.c.h.b16 %v2087
        %v4202 = vunpack.c.l.b16 %v2088
        %v4203 = vunpack.c.h.b16 %v2088
        %v4204 = vunpack.c.l.b16 %v2089
        %v4205 = vunpack.c.h.b16 %v2089
        %v4206 = vunpack.c.l.b16 %v2090
        %v4207 = vunpack.c.h.b16 %v2090
        %v4208 = vunpack.c.l.b16 %v2091
        %v4209 = vunpack.c.h.b16 %v2091
        %v4210 = vunpack.c.l.b16 %v2092
        %v4211 = vunpack.c.h.b16 %v2092
        %v4212 = vunpack.c.l.b16 %v2093
        %v4213 = vunpack.c.h.b16 %v2093
        %v4214 = vunpack.c.l.b16 %v2094
        %v4215 = vunpack.c.h.b16 %v2094
        %v4216 = vunpack.c.l.b16 %v2095
        %v4217 = vunpack.c.h.b16 %v2095
        %v4218 = vunpack.c.l.b16 %v2096
        %v4219 = vunpack.c.h.b16 %v2096
        %v4220 = vunpack.c.l.b16 %v2097
        %v4221 = vunpack.c.h.b16 %v2097
        %v4222 = vunpack.c.l.b16 %v2098
        %v4223 = vunpack.c.h.b16 %v2098
        %v4224 = vunpack.c.l.b16 %v2099
        %v4225 = vunpack.c.h.b16 %v2099
        %v4226 = vunpack.c.l.b16 %v2100
        %v4227 = vunpack.c.h.b16 %v2100
        %v4228 = vunpack.c.l.b16 %v2101
        %v4229 = vunpack.c.h.b16 %v2101
        %v4230 = vunpack.c.l.b16 %v2102
        %v4231 = vunpack.c.h.b16 %v2102
        %v4232 = vunpack.c.l.b16 %v2103
        %v4233 = vunpack.c.h.b16 %v2103
        %v4234 = vunpack.c.l.b16 %v2104
        %v4235 = vunpack.c.h.b16 %v2104
        %v4236 = vunpack.c.l.b16 %v2105
        %v4237 = vunpack.c.h.b16 %v2105
        %v4238 = vunpack.c.l.b16 %v2106
        %v4239 = vunpack.c.h.b16 %v2106
        %v4240 = vunpack.c.l.b16 %v2107
        %v4241 = vunpack.c.h.b16 %v2107
        %v4242 = vunpack.c.l.b16 %v2108
        %v4243 = vunpack.c.h.b16 %v2108
        %v4244 = vunpack.c.l.b16 %v2109
        %v4245 = vunpack.c.h.b16 %v2109
        %v4246 = vunpack.c.l.b16 %v2110
        %v4247 = vunpack.c.h.b16 %v2110
        %v4248 = vunpack.c.l.b16 %v2111
        %v4249 = vunpack.c.h.b16 %v2111
        %v4250 = vunpack.c.l.b16 %v2112
        %v4251 = vunpack.c.h.b16 %v2112
        %v4252 = vunpack.c.l.b16 %v2113
        %v4253 = vunpack.c.h.b16 %v2113
        %v4254 = vunpack.c.l.b16 %v2114
        %v4255 = vunpack.c.h.b16 %v2114
        %v4256 = vunpack.c.l.b16 %v2115
        %v4257 = vunpack.c.h.b16 %v2115
        %v4258 = vunpack.c.l.b16 %v2116
        %v4259 = vunpack.c.h.b16 %v2116
        %v4260 = vunpack.c.l.b16 %v2117
        %v4261 = vunpack.c.h.b16 %v2117
        %v4262 = vunpack.c.l.b16 %v2118
        %v4263 = vunpack.c.h.b16 %v2118
        %v4264 = vunpack.c.l.b16 %v2119
        %v4265 = vunpack.c.h.b16 %v2119
        %v4266 = vunpack.c.l.b16 %v2120
        %v4267 = vunpack.c.h.b16 %v2120
        %v4268 = vunpack.c.l.b16 %v2121
        %v4269 = vunpack.c.h.b16 %v2121
        %v4270 = vunpack.c.l.b16 %v2122
        %v4271 = vunpack.c.h.b16 %v2122
        %v4272 = vunpack.c.l.b16 %v2123
        %v4273 = vunpack.c.h.b16 %v2123
        %v4274 = vunpack.c.l.b16 %v2124
        %v4275 = vunpack.c.h.b16 %v2124
        %v4276 = vunpack.c.l.b16 %v2125
        %v4277 = vunpack.c.h.b16 %v2125
        %v4278 = vunpack.c.l.b16 %v2126
        %v4279 = vunpack.c.h.b16 %v2126
        %v4280 = vunpack.c.l.b16 %v2127
        %v4281 = vunpack.c.h.b16 %v2127
        %v4282 = vunpack.c.l.b16 %v2128
        %v4283 = vunpack.c.h.b16 %v2128
        %v4284 = vunpack.c.l.b16 %v2129
        %v4285 = vunpack.c.h.b16 %v2129
        %v4286 = vunpack.c.l.b16 %v2130
        %v4287 = vunpack.c.h.b16 %v2130
        %v4288 = vunpack.c.l.b16 %v2131
        %v4289 = vunpack.c.h.b16 %v2131
        %v4290 = vunpack.c.l.b16 %v2132
        %v4291 = vunpack.c.h.b16 %v2132
        %v4292 = vunpack.c.l.b16 %v2133
        %v4293 = vunpack.c.h.b16 %v2133
        %v4294 = vunpack.c.l.b16 %v2134
        %v4295 = vunpack.c.h.b16 %v2134
        %v4296 = vunpack.c.l.b16 %v2135
        %v4297 = vunpack.c.h.b16 %v2135
        %v4298 = vunpack.c.l.b16 %v2136
        %v4299 = vunpack.c.h.b16 %v2136
        %v4300 = vunpack.c.l.b16 %v2137
        %v4301 = vunpack.c.h.b16 %v2137
        %v4302 = vunpack.c.l.b16 %v2138
        %v4303 = vunpack.c.h.b16 %v2138
        %v4304 = vunpack.c.l.b16 %v2139
        %v4305 = vunpack.c.h.b16 %v2139
        %v4306 = vunpack.c.l.b16 %v2140
        %v4307 = vunpack.c.h.b16 %v2140
        %v4308 = vunpack.c.l.b16 %v2141
        %v4309 = vunpack.c.h.b16 %v2141
        %v4310 = vunpack.c.l.b16 %v2142
        %v4311 = vunpack.c.h.b16 %v2142
        %v4312 = vunpack.c.l.b16 %v2143
        %v4313 = vunpack.c.h.b16 %v2143
        %v4314 = vunpack.c.l.b16 %v2144
        %v4315 = vunpack.c.h.b16 %v2144
        %v4316 = vunpack.c.l.b16 %v2145
        %v4317 = vunpack.c.h.b16 %v2145
        %v4318 = vunpack.c.l.b16 %v2146
        %v4319 = vunpack.c.h.b16 %v2146
        %v4320 = vunpack.c.l.b16 %v2147
        %v4321 = vunpack.c.h.b16 %v2147
        %v4322 = vunpack.c.l.b16 %v2148
        %v4323 = vunpack.c.h.b16 %v2148
        %v4324 = vunpack.c.l.b16 %v2149
        %v4325 = vunpack.c.h.b16 %v2149
        %v4326 = vunpack.c.l.b16 %v2150
        %v4327 = vunpack.c.h.b16 %v2150
        %v4328 = vunpack.c.l.b16 %v2151
        %v4329 = vunpack.c.h.b16 %v2151
        %v4330 = vunpack.c.l.b16 %v2152
        %v4331 = vunpack.c.h.b16 %v2152
        %v4332 = vunpack.c.l.b16 %v2153
        %v4333 = vunpack.c.h.b16 %v2153
        %v4334 = vunpack.c.l.b16 %v2154
        %v4335 = vunpack.c.h.b16 %v2154
        %v4336 = vunpack.c.l.b16 %v2155
        %v4337 = vunpack.c.h.b16 %v2155
        %v4338 = vunpack.c.l.b16 %v2156
        %v4339 = vunpack.c.h.b16 %v2156
        %v4340 = vunpack.c.l.b16 %v2157
        %v4341 = vunpack.c.h.b16 %v2157
        %v4342 = vunpack.c.l.b16 %v2158
        %v4343 = vunpack.c.h.b16 %v2158
        %v4344 = vunpack.c.l.b16 %v2159
        %v4345 = vunpack.c.h.b16 %v2159
        %v4346 = vunpack.c.l.b16 %v2160
        %v4347 = vunpack.c.h.b16 %v2160
        %v4348 = vunpack.c.l.b16 %v2161
        %v4349 = vunpack.c.h.b16 %v2161
        %v4350 = vunpack.c.l.b16 %v2162
        %v4351 = vunpack.c.h.b16 %v2162
        %v4352 = vunpack.c.l.b16 %v2163
        %v4353 = vunpack.c.h.b16 %v2163
        %v4354 = vunpack.c.l.b16 %v2164
        %v4355 = vunpack.c.h.b16 %v2164
        %v4356 = vunpack.c.l.b16 %v2165
        %v4357 = vunpack.c.h.b16 %v2165
        %v4358 = vunpack.c.l.b16 %v2166
        %v4359 = vunpack.c.h.b16 %v2166
        %v4360 = vunpack.c.l.b16 %v2167
        %v4361 = vunpack.c.h.b16 %v2167
        %v4362 = vunpack.c.l.b16 %v2168
        %v4363 = vunpack.c.h.b16 %v2168
        %v4364 = vunpack.c.l.b16 %v2169
        %v4365 = vunpack.c.h.b16 %v2169
        %v4366 = vunpack.c.l.b16 %v2170
        %v4367 = vunpack.c.h.b16 %v2170
        %v4368 = vunpack.c.l.b16 %v2171
        %v4369 = vunpack.c.h.b16 %v2171
        %v4370 = vunpack.c.l.b16 %v2172
        %v4371 = vunpack.c.h.b16 %v2172
        %v4372 = vunpack.c.l.b16 %v2173
        %v4373 = vunpack.c.h.b16 %v2173
        %v4374 = vunpack.c.l.b16 %v2174
        %v4375 = vunpack.c.h.b16 %v2174
        %v4376 = vunpack.c.l.b16 %v2175
        %v4377 = vunpack.c.h.b16 %v2175
        %v4378 = vunpack.c.l.b16 %v2176
        %v4379 = vunpack.c.h.b16 %v2176
        %v4380 = vunpack.c.l.b16 %v2177
        %v4381 = vunpack.c.h.b16 %v2177
        %v4382 = vunpack.c.l.b16 %v2178
        %v4383 = vunpack.c.h.b16 %v2178
        %v4384 = vunpack.c.l.b16 %v2179
        %v4385 = vunpack.c.h.b16 %v2179
        %v4386 = vunpack.c.l.b16 %v2180
        %v4387 = vunpack.c.h.b16 %v2180
        %v4388 = vunpack.c.l.b16 %v2181
        %v4389 = vunpack.c.h.b16 %v2181
        %v4390 = vunpack.c.l.b16 %v2182
        %v4391 = vunpack.c.h.b16 %v2182
        %v4392 = vunpack.c.l.b16 %v2183
        %v4393 = vunpack.c.h.b16 %v2183
        %v4394 = vunpack.c.l.b16 %v2184
        %v4395 = vunpack.c.h.b16 %v2184
        %v4396 = vunpack.c.l.b16 %v2185
        %v4397 = vunpack.c.h.b16 %v2185
        %v4398 = vunpack.c.l.b16 %v2186
        %v4399 = vunpack.c.h.b16 %v2186
        %v4400 = vunpack.c.l.b16 %v2187
        %v4401 = vunpack.c.h.b16 %v2187
        %v4402 = vunpack.c.l.b16 %v2188
        %v4403 = vunpack.c.h.b16 %v2188
        %v4404 = vunpack.c.l.b16 %v2189
        %v4405 = vunpack.c.h.b16 %v2189
        %v4406 = vunpack.c.l.b16 %v2190
        %v4407 = vunpack.c.h.b16 %v2190
        %v4408 = vunpack.c.l.b16 %v2191
        %v4409 = vunpack.c.h.b16 %v2191
        %v4410 = vunpack.c.l.b16 %v2192
        %v4411 = vunpack.c.h.b16 %v2192
        %v4412 = vunpack.c.l.b16 %v2193
        %v4413 = vunpack.c.h.b16 %v2193
        %v4414 = vunpack.c.l.b16 %v2194
        %v4415 = vunpack.c.h.b16 %v2194
        %v4416 = vunpack.c.l.b16 %v2195
        %v4417 = vunpack.c.h.b16 %v2195
        %v4418 = vunpack.c.l.b16 %v2196
        %v4419 = vunpack.c.h.b16 %v2196
        %v4420 = vunpack.c.l.b16 %v2197
        %v4421 = vunpack.c.h.b16 %v2197
        %v4422 = vunpack.c.l.b16 %v2198
        %v4423 = vunpack.c.h.b16 %v2198
        %v4424 = vunpack.c.l.b16 %v2199
        %v4425 = vunpack.c.h.b16 %v2199
        %v4426 = vunpack.c.l.b16 %v2200
        %v4427 = vunpack.c.h.b16 %v2200
        %v4428 = vunpack.c.l.b16 %v2201
        %v4429 = vunpack.c.h.b16 %v2201
        %v4430 = vunpack.c.l.b16 %v2202
        %v4431 = vunpack.c.h.b16 %v2202
        %v4432 = vunpack.c.l.b16 %v2203
        %v4433 = vunpack.c.h.b16 %v2203
        %v4434 = vunpack.c.l.b16 %v2204
        %v4435 = vunpack.c.h.b16 %v2204
        %v4436 = vunpack.c.l.b16 %v2205
        %v4437 = vunpack.c.h.b16 %v2205
        %v4438 = vunpack.c.l.b16 %v2206
        %v4439 = vunpack.c.h.b16 %v2206
        %v4440 = vunpack.c.l.b16 %v2207
        %v4441 = vunpack.c.h.b16 %v2207
        %v4442 = vunpack.c.l.b16 %v2208
        %v4443 = vunpack.c.h.b16 %v2208
        %v4444 = vunpack.c.l.b16 %v2209
        %v4445 = vunpack.c.h.b16 %v2209
        %v4446 = vunpack.c.l.b16 %v2210
        %v4447 = vunpack.c.h.b16 %v2210
        %v4448 = vunpack.c.l.b16 %v2211
        %v4449 = vunpack.c.h.b16 %v2211
        %v4450 = vunpack.c.l.b16 %v2212
        %v4451 = vunpack.c.h.b16 %v2212
        %v4452 = vunpack.c.l.b16 %v2213
        %v4453 = vunpack.c.h.b16 %v2213
        %v4454 = vunpack.c.l.b16 %v2214
        %v4455 = vunpack.c.h.b16 %v2214
        %v4456 = vunpack.c.l.b16 %v2215
        %v4457 = vunpack.c.h.b16 %v2215
        %v4458 = vunpack.c.l.b16 %v2216
        %v4459 = vunpack.c.h.b16 %v2216
        %v4460 = vunpack.c.l.b16 %v2217
        %v4461 = vunpack.c.h.b16 %v2217
        %v4462 = vunpack.c.l.b16 %v2218
        %v4463 = vunpack.c.h.b16 %v2218
        %v4464 = vunpack.c.l.b16 %v2219
        %v4465 = vunpack.c.h.b16 %v2219
        %v4466 = vunpack.c.l.b16 %v2220
        %v4467 = vunpack.c.h.b16 %v2220
        %v4468 = vunpack.c.l.b16 %v2221
        %v4469 = vunpack.c.h.b16 %v2221
        %v4470 = vunpack.c.l.b16 %v2222
        %v4471 = vunpack.c.h.b16 %v2222
        %v4472 = vunpack.c.l.b16 %v2223
        %v4473 = vunpack.c.h.b16 %v2223
        %v4474 = vunpack.c.l.b16 %v2224
        %v4475 = vunpack.c.h.b16 %v2224
        %v4476 = vunpack.c.l.b16 %v2225
        %v4477 = vunpack.c.h.b16 %v2225
        %v4478 = vunpack.c.l.b16 %v2226
        %v4479 = vunpack.c.h.b16 %v2226
        %v4480 = vunpack.c.l.b16 %v2227
        %v4481 = vunpack.c.h.b16 %v2227
        %v4482 = vunpack.c.l.b16 %v2228
        %v4483 = vunpack.c.h.b16 %v2228
        %v4484 = vunpack.c.l.b16 %v2229
        %v4485 = vunpack.c.h.b16 %v2229
        %v4486 = vunpack.c.l.b16 %v2230
        %v4487 = vunpack.c.h.b16 %v2230
        %v4488 = vunpack.c.l.b16 %v2231
        %v4489 = vunpack.c.h.b16 %v2231
        %v4490 = vunpack.c.l.b16 %v2232
        %v4491 = vunpack.c.h.b16 %v2232
        %v4492 = vunpack.c.l.b16 %v2233
        %v4493 = vunpack.c.h.b16 %v2233
        %v4494 = vunpack.c.l.b16 %v2234
        %v4495 = vunpack.c.h.b16 %v2234
        %v4496 = vunpack.c.l.b16 %v2235
        %v4497 = vunpack.c.h.b16 %v2235
        %v4498 = vunpack.c.l.b16 %v2236
        %v4499 = vunpack.c.h.b16 %v2236
        %v4500 = vunpack.c.l.b16 %v2237
        %v4501 = vunpack.c.h.b16 %v2237
        %v4502 = vunpack.c.l.b16 %v2238
        %v4503 = vunpack.c.h.b16 %v2238
        %v4504 = vunpack.c.l.b16 %v2239
        %v4505 = vunpack.c.h.b16 %v2239
        %v4506 = vunpack.c.l.b16 %v2240
        %v4507 = vunpack.c.h.b16 %v2240
        %v4508 = vunpack.c.l.b16 %v2241
        %v4509 = vunpack.c.h.b16 %v2241
        %v4510 = vunpack.c.l.b16 %v2242
        %v4511 = vunpack.c.h.b16 %v2242
        %v4512 = vunpack.c.l.b16 %v2243
        %v4513 = vunpack.c.h.b16 %v2243
        %v4514 = vunpack.c.l.b16 %v2244
        %v4515 = vunpack.c.h.b16 %v2244
        %v4516 = vunpack.c.l.b16 %v2245
        %v4517 = vunpack.c.h.b16 %v2245
        %v4518 = vunpack.c.l.b16 %v2246
        %v4519 = vunpack.c.h.b16 %v2246
        %v4520 = vunpack.c.l.b16 %v2247
        %v4521 = vunpack.c.h.b16 %v2247
        %v4522 = vunpack.c.l.b16 %v2248
        %v4523 = vunpack.c.h.b16 %v2248
        %v4524 = vunpack.c.l.b16 %v2249
        %v4525 = vunpack.c.h.b16 %v2249
        %v4526 = vunpack.c.l.b16 %v2250
        %v4527 = vunpack.c.h.b16 %v2250
        %v4528 = vunpack.c.l.b16 %v2251
        %v4529 = vunpack.c.h.b16 %v2251
        %v4530 = vunpack.c.l.b16 %v2252
        %v4531 = vunpack.c.h.b16 %v2252
        %v4532 = vunpack.c.l.b16 %v2253
        %v4533 = vunpack.c.h.b16 %v2253
        %v4534 = vunpack.c.l.b16 %v2254
        %v4535 = vunpack.c.h.b16 %v2254
        %v4536 = vunpack.c.l.b16 %v2255
        %v4537 = vunpack.c.h.b16 %v2255
        %v4538 = vunpack.c.l.b16 %v2256
        %v4539 = vunpack.c.h.b16 %v2256
        %v4540 = vunpack.c.l.b16 %v2257
        %v4541 = vunpack.c.h.b16 %v2257
        %v4542 = vunpack.c.l.b16 %v2258
        %v4543 = vunpack.c.h.b16 %v2258
        %v4544 = vunpack.c.l.b16 %v2259
        %v4545 = vunpack.c.h.b16 %v2259
        %v4546 = vunpack.c.l.b16 %v2260
        %v4547 = vunpack.c.h.b16 %v2260
        %v4548 = vunpack.c.l.b16 %v2261
        %v4549 = vunpack.c.h.b16 %v2261
        %v4550 = vunpack.c.l.b16 %v2262
        %v4551 = vunpack.c.h.b16 %v2262
        %v4552 = vunpack.c.l.b16 %v2263
        %v4553 = vunpack.c.h.b16 %v2263
        %v4554 = vunpack.c.l.b16 %v2264
        %v4555 = vunpack.c.h.b16 %v2264
        %v4556 = vunpack.c.l.b16 %v2265
        %v4557 = vunpack.c.h.b16 %v2265
        %v4558 = vunpack.c.l.b16 %v2266
        %v4559 = vunpack.c.h.b16 %v2266
        %v4560 = vunpack.c.l.b16 %v2267
        %v4561 = vunpack.c.h.b16 %v2267
        %v4562 = vunpack.c.l.b16 %v2268
        %v4563 = vunpack.c.h.b16 %v2268
        %v4564 = vunpack.c.l.b16 %v2269
        %v4565 = vunpack.c.h.b16 %v2269
        %v4566 = vunpack.c.l.b16 %v2270
        %v4567 = vunpack.c.h.b16 %v2270
        %v4568 = vunpack.c.l.b16 %v2271
        %v4569 = vunpack.c.h.b16 %v2271
        %v4570 = vunpack.c.l.b16 %v2272
        %v4571 = vunpack.c.h.b16 %v2272
        %v4572 = vunpack.c.l.b16 %v2273
        %v4573 = vunpack.c.h.b16 %v2273
        %v4574 = vunpack.c.l.b16 %v2274
        %v4575 = vunpack.c.h.b16 %v2274
        %v4576 = vunpack.c.l.b16 %v2275
        %v4577 = vunpack.c.h.b16 %v2275
        %v4578 = vunpack.c.l.b16 %v2276
        %v4579 = vunpack.c.h.b16 %v2276
        %v4580 = vunpack.c.l.b16 %v2277
        %v4581 = vunpack.c.h.b16 %v2277
        %v4582 = vunpack.c.l.b16 %v2278
        %v4583 = vunpack.c.h.b16 %v2278
        %v4584 = vunpack.c.l.b16 %v2279
        %v4585 = vunpack.c.h.b16 %v2279
        %v4586 = vunpack.c.l.b16 %v2280
        %v4587 = vunpack.c.h.b16 %v2280
        %v4588 = vunpack.c.l.b16 %v2281
        %v4589 = vunpack.c.h.b16 %v2281
        %v4590 = vunpack.c.l.b16 %v2282
        %v4591 = vunpack.c.h.b16 %v2282
        %v4592 = vunpack.c.l.b16 %v2283
        %v4593 = vunpack.c.h.b16 %v2283
        %v4594 = vunpack.c.l.b16 %v2284
        %v4595 = vunpack.c.h.b16 %v2284
        %v4596 = vunpack.c.l.b16 %v2285
        %v4597 = vunpack.c.h.b16 %v2285
        %v4598 = vunpack.c.l.b16 %v2286
        %v4599 = vunpack.c.h.b16 %v2286
        %v4600 = vunpack.c.l.b16 %v2287
        %v4601 = vunpack.c.h.b16 %v2287
        %v4602 = vunpack.c.l.b16 %v2288
        %v4603 = vunpack.c.h.b16 %v2288
        %v4604 = vunpack.c.l.b16 %v2289
        %v4605 = vunpack.c.h.b16 %v2289
        %v4606 = vunpack.c.l.b16 %v2290
        %v4607 = vunpack.c.h.b16 %v2290
        %v4608 = vunpack.c.l.b16 %v2291
        %v4609 = vunpack.c.h.b16 %v2291
        %v4610 = vunpack.c.l.b16 %v2292
        %v4611 = vunpack.c.h.b16 %v2292
        %v4612 = vunpack.c.l.b16 %v2293
        %v4613 = vunpack.c.h.b16 %v2293
        %v4614 = vunpack.c.l.b16 %v2294
        %v4615 = vunpack.c.h.b16 %v2294
        %v4616 = vunpack.c.l.b16 %v2295
        %v4617 = vunpack.c.h.b16 %v2295
        %v4618 = vunpack.c.l.b16 %v2296
        %v4619 = vunpack.c.h.b16 %v2296
        %v4620 = vunpack.c.l.b16 %v2297
        %v4621 = vunpack.c.h.b16 %v2297
        %v4622 = vunpack.c.l.b16 %v2298
        %v4623 = vunpack.c.h.b16 %v2298
        %v4624 = vunpack.c.l.b16 %v2299
        %v4625 = vunpack.c.h.b16 %v2299
        %v4626 = vunpack.c.l.b16 %v2300
        %v4627 = vunpack.c.h.b16 %v2300
        %v4628 = vunpack.c.l.b16 %v2301
        %v4629 = vunpack.c.h.b16 %v2301
        %v4630 = vunpack.c.l.b16 %v2302
        %v4631 = vunpack.c.h.b16 %v2302
        %v4632 = vunpack.c.l.b16 %v2303
        %v4633 = vunpack.c.h.b16 %v2303
        %v4634 = vunpack.c.l.b16 %v2304
        %v4635 = vunpack.c.h.b16 %v2304
        %v4636 = vunpack.c.l.b16 %v2305
        %v4637 = vunpack.c.h.b16 %v2305
        %v4638 = vunpack.c.l.b16 %v2306
        %v4639 = vunpack.c.h.b16 %v2306
        %v4640 = vunpack.c.l.b16 %v2307
        %v4641 = vunpack.c.h.b16 %v2307
        %v4642 = vunpack.c.l.b16 %v2308
        %v4643 = vunpack.c.h.b16 %v2308
        %v4644 = vunpack.c.l.b16 %v2309
        %v4645 = vunpack.c.h.b16 %v2309
        %v4646 = vunpack.c.l.b16 %v2310
        %v4647 = vunpack.c.h.b16 %v2310
        %v4648 = vunpack.c.l.b16 %v2311
        %v4649 = vunpack.c.h.b16 %v2311
        %v4650 = vunpack.c.l.b16 %v2312
        %v4651 = vunpack.c.h.b16 %v2312
        %v4652 = vunpack.c.l.b16 %v2313
        %v4653 = vunpack.c.h.b16 %v2313
        %v4654 = vunpack.c.l.b16 %v2314
        %v4655 = vunpack.c.h.b16 %v2314
        %v4656 = vunpack.c.l.b16 %v2315
        %v4657 = vunpack.c.h.b16 %v2315
        %v4658 = vunpack.c.l.b16 %v2316
        %v4659 = vunpack.c.h.b16 %v2316
        %v4660 = vunpack.c.l.b16 %v2317
        %v4661 = vunpack.c.h.b16 %v2317
        %v4662 = vunpack.c.l.b16 %v2318
        %v4663 = vunpack.c.h.b16 %v2318
        %v4664 = vunpack.c.l.b16 %v2319
        %v4665 = vunpack.c.h.b16 %v2319
        %v4666 = vunpack.c.l.b16 %v2320
        %v4667 = vunpack.c.h.b16 %v2320
        %v4668 = vunpack.c.l.b16 %v2321
        %v4669 = vunpack.c.h.b16 %v2321
        %v4670 = vunpack.c.l.b16 %v2322
        %v4671 = vunpack.c.h.b16 %v2322
        %v4672 = vunpack.c.l.b16 %v2323
        %v4673 = vunpack.c.h.b16 %v2323
        %v4674 = vunpack.c.l.b16 %v2324
        %v4675 = vunpack.c.h.b16 %v2324
        %v4676 = vunpack.c.l.b16 %v2325
        %v4677 = vunpack.c.h.b16 %v2325
        %v4678 = vunpack.c.l.b16 %v2326
        %v4679 = vunpack.c.h.b16 %v2326
        %v4680 = vunpack.c.l.b16 %v2327
        %v4681 = vunpack.c.h.b16 %v2327
        %v4682 = vunpack.c.l.b16 %v2328
        %v4683 = vunpack.c.h.b16 %v2328
        %v4684 = vunpack.c.l.b16 %v2329
        %v4685 = vunpack.c.h.b16 %v2329
        %v4686 = vunpack.c.l.b16 %v2330
        %v4687 = vunpack.c.h.b16 %v2330
        %v4688 = vunpack.c.l.b16 %v2331
        %v4689 = vunpack.c.h.b16 %v2331
        %v4690 = vunpack.c.l.b16 %v2332
        %v4691 = vunpack.c.h.b16 %v2332
        %v4692 = vunpack.c.l.b16 %v2333
        %v4693 = vunpack.c.h.b16 %v2333
        %v4694 = vunpack.c.l.b16 %v2334
        %v4695 = vunpack.c.h.b16 %v2334
        %v4696 = vunpack.c.l.b16 %v2335
        %v4697 = vunpack.c.h.b16 %v2335
        %v4698 = vunpack.c.l.b16 %v2336
        %v4699 = vunpack.c.h.b16 %v2336
        %v4700 = vunpack.c.l.b16 %v2337
        %v4701 = vunpack.c.h.b16 %v2337
        %v4702 = vunpack.c.l.b16 %v2338
        %v4703 = vunpack.c.h.b16 %v2338
        %v4704 = vunpack.c.l.b16 %v2339
        %v4705 = vunpack.c.h.b16 %v2339
        %v4706 = vunpack.c.l.b16 %v2340
        %v4707 = vunpack.c.h.b16 %v2340
        %v4708 = vunpack.c.l.b16 %v2341
        %v4709 = vunpack.c.h.b16 %v2341
        %v4710 = vunpack.c.l.b16 %v2342
        %v4711 = vunpack.c.h.b16 %v2342
        %v4712 = vunpack.c.l.b16 %v2343
        %v4713 = vunpack.c.h.b16 %v2343
        %v4714 = vunpack.c.l.b16 %v2344
        %v4715 = vunpack.c.h.b16 %v2344
        %v4716 = vunpack.c.l.b16 %v2345
        %v4717 = vunpack.c.h.b16 %v2345
        %v4718 = vunpack.c.l.b16 %v2346
        %v4719 = vunpack.c.h.b16 %v2346
        %v4720 = vunpack.c.l.b16 %v2347
        %v4721 = vunpack.c.h.b16 %v2347
        %v4722 = vunpack.c.l.b16 %v2348
        %v4723 = vunpack.c.h.b16 %v2348
        %v4724 = vunpack.c.l.b16 %v2349
        %v4725 = vunpack.c.h.b16 %v2349
        %v4726 = vunpack.c.l.b16 %v2350
        %v4727 = vunpack.c.h.b16 %v2350
        %v4728 = vunpack.c.l.b16 %v2351
        %v4729 = vunpack.c.h.b16 %v2351
        %v4730 = vunpack.c.l.b16 %v2352
        %v4731 = vunpack.c.h.b16 %v2352
        %v4732 = vunpack.c.l.b16 %v2353
        %v4733 = vunpack.c.h.b16 %v2353
        %v4734 = vunpack.c.l.b16 %v2354
        %v4735 = vunpack.c.h.b16 %v2354
        %v4736 = vunpack.c.l.b16 %v2355
        %v4737 = vunpack.c.h.b16 %v2355
        %v4738 = vunpack.c.l.b16 %v2356
        %v4739 = vunpack.c.h.b16 %v2356
        %v4740 = vunpack.c.l.b16 %v2357
        %v4741 = vunpack.c.h.b16 %v2357
        %v4742 = vunpack.c.l.b16 %v2358
        %v4743 = vunpack.c.h.b16 %v2358
        %v4744 = vunpack.c.l.b16 %v2359
        %v4745 = vunpack.c.h.b16 %v2359
        %v4746 = vunpack.c.l.b16 %v2360
        %v4747 = vunpack.c.h.b16 %v2360
        %v4748 = vunpack.c.l.b16 %v2361
        %v4749 = vunpack.c.h.b16 %v2361
        %v4750 = vunpack.c.l.b16 %v2362
        %v4751 = vunpack.c.h.b16 %v2362
        %v4752 = vunpack.c.l.b16 %v2363
        %v4753 = vunpack.c.h.b16 %v2363
        %v4754 = vunpack.c.l.b16 %v2364
        %v4755 = vunpack.c.h.b16 %v2364
        %v4756 = vunpack.c.l.b16 %v2365
        %v4757 = vunpack.c.h.b16 %v2365
        %v4758 = vunpack.c.l.b16 %v2366
        %v4759 = vunpack.c.h.b16 %v2366
        %v4760 = vunpack.c.l.b16 %v2367
        %v4761 = vunpack.c.h.b16 %v2367
        %v4762 = vunpack.c.l.b16 %v2368
        %v4763 = vunpack.c.h.b16 %v2368
        %v4764 = vunpack.c.l.b16 %v2369
        %v4765 = vunpack.c.h.b16 %v2369
        %v4766 = vunpack.c.l.b16 %v2370
        %v4767 = vunpack.c.h.b16 %v2370
        %v4768 = vunpack.c.l.b16 %v2371
        %v4769 = vunpack.c.h.b16 %v2371
        %v4770 = vunpack.c.l.b16 %v2372
        %v4771 = vunpack.c.h.b16 %v2372
        %v4772 = vunpack.c.l.b16 %v2373
        %v4773 = vunpack.c.h.b16 %v2373
        %v4774 = vunpack.c.l.b16 %v2374
        %v4775 = vunpack.c.h.b16 %v2374
        %v4776 = vunpack.c.l.b16 %v2375
        %v4777 = vunpack.c.h.b16 %v2375
        %v4778 = vunpack.c.l.b16 %v2376
        %v4779 = vunpack.c.h.b16 %v2376
        %v4780 = vunpack.c.l.b16 %v2377
        %v4781 = vunpack.c.h.b16 %v2377
        %v4782 = vunpack.c.l.b16 %v2378
        %v4783 = vunpack.c.h.b16 %v2378
        %v4784 = vunpack.c.l.b16 %v2379
        %v4785 = vunpack.c.h.b16 %v2379
        %v4786 = vunpack.c.l.b16 %v2380
        %v4787 = vunpack.c.h.b16 %v2380
        %v4788 = vunpack.c.l.b16 %v2381
        %v4789 = vunpack.c.h.b16 %v2381
        %v4790 = vunpack.c.l.b16 %v2382
        %v4791 = vunpack.c.h.b16 %v2382
        %v4792 = vunpack.c.l.b16 %v2383
        %v4793 = vunpack.c.h.b16 %v2383
        %v4794 = vunpack.c.l.b16 %v2384
        %v4795 = vunpack.c.h.b16 %v2384
        %v4796 = vunpack.c.l.b16 %v2385
        %v4797 = vunpack.c.h.b16 %v2385
        %v4798 = vunpack.c.l.b16 %v2386
        %v4799 = vunpack.c.h.b16 %v2386
        %v4800 = vunpack.c.l.b16 %v2387
        %v4801 = vunpack.c.h.b16 %v2387
        %v4802 = vunpack.c.l.b16 %v2388
        %v4803 = vunpack.c.h.b16 %v2388
        %v4804 = vunpack.c.l.b16 %v2389
        %v4805 = vunpack.c.h.b16 %v2389
        %v4806 = vunpack.c.l.b16 %v2390
        %v4807 = vunpack.c.h.b16 %v2390
        %v4808 = vunpack.c.l.b16 %v2391
        %v4809 = vunpack.c.h.b16 %v2391
        %v4810 = vunpack.c.l.b16 %v2392
        %v4811 = vunpack.c.h.b16 %v2392
        %v4812 = vunpack.c.l.b16 %v2393
        %v4813 = vunpack.c.h.b16 %v2393
        %v4814 = vunpack.c.l.b16 %v2394
        %v4815 = vunpack.c.h.b16 %v2394
        %v4816 = vunpack.c.l.b16 %v2395
        %v4817 = vunpack.c.h.b16 %v2395
        %v4818 = vunpack.c.l.b16 %v2396
        %v4819 = vunpack.c.h.b16 %v2396
        %v4820 = vunpack.c.l.b16 %v2397
        %v4821 = vunpack.c.h.b16 %v2397
        %v4822 = vunpack.c.l.b16 %v2398
        %v4823 = vunpack.c.h.b16 %v2398
        %v4824 = vunpack.c.l.b16 %v2399
        %v4825 = vunpack.c.h.b16 %v2399
        %v4826 = vunpack.c.l.b16 %v2400
        %v4827 = vunpack.c.h.b16 %v2400
        %v4828 = vunpack.c.l.b16 %v2401
        %v4829 = vunpack.c.h.b16 %v2401
        %v4830 = vunpack.c.l.b16 %v2402
        %v4831 = vunpack.c.h.b16 %v2402
        %v4832 = vunpack.c.l.b16 %v2403
        %v4833 = vunpack.c.h.b16 %v2403
        %v4834 = vunpack.c.l.b16 %v2404
        %v4835 = vunpack.c.h.b16 %v2404
        %v4836 = vunpack.c.l.b16 %v2405
        %v4837 = vunpack.c.h.b16 %v2405
        %v4838 = vunpack.c.l.b16 %v2406
        %v4839 = vunpack.c.h.b16 %v2406
        %v4840 = vunpack.c.l.b16 %v2407
        %v4841 = vunpack.c.h.b16 %v2407
        %v4842 = vunpack.c.l.b16 %v2408
        %v4843 = vunpack.c.h.b16 %v2408
        %v4844 = vunpack.c.l.b16 %v2409
        %v4845 = vunpack.c.h.b16 %v2409
        %v4846 = vunpack.c.l.b16 %v2410
        %v4847 = vunpack.c.h.b16 %v2410
        %v4848 = vunpack.c.l.b16 %v2411
        %v4849 = vunpack.c.h.b16 %v2411
        %v4850 = vunpack.c.l.b16 %v2412
        %v4851 = vunpack.c.h.b16 %v2412
        %v4852 = vunpack.c.l.b16 %v2413
        %v4853 = vunpack.c.h.b16 %v2413
        %v4854 = vunpack.c.l.b16 %v2414
        %v4855 = vunpack.c.h.b16 %v2414
        %v4856 = vunpack.c.l.b16 %v2415
        %v4857 = vunpack.c.h.b16 %v2415
        %v4858 = vunpack.c.l.b16 %v2416
        %v4859 = vunpack.c.h.b16 %v2416
        %v4860 = vunpack.c.l.b16 %v2417
        %v4861 = vunpack.c.h.b16 %v2417
        %v4862 = vunpack.c.l.b16 %v2418
        %v4863 = vunpack.c.h.b16 %v2418
        %v4864 = vunpack.c.l.b16 %v2419
        %v4865 = vunpack.c.h.b16 %v2419
        %v4866 = vunpack.c.l.b16 %v2420
        %v4867 = vunpack.c.h.b16 %v2420
        %v4868 = vunpack.c.l.b16 %v2421
        %v4869 = vunpack.c.h.b16 %v2421
        %v4870 = vunpack.c.l.b16 %v2422
        %v4871 = vunpack.c.h.b16 %v2422
        %v4872 = vunpack.c.l.b16 %v2423
        %v4873 = vunpack.c.h.b16 %v2423
        %v4874 = vunpack.c.l.b16 %v2424
        %v4875 = vunpack.c.h.b16 %v2424
        %v4876 = vunpack.c.l.b16 %v2425
        %v4877 = vunpack.c.h.b16 %v2425
        %v4878 = vunpack.c.l.b16 %v2426
        %v4879 = vunpack.c.h.b16 %v2426
        %v4880 = vunpack.c.l.b16 %v2427
        %v4881 = vunpack.c.h.b16 %v2427
        %v4882 = vunpack.c.l.b16 %v2428
        %v4883 = vunpack.c.h.b16 %v2428
        %v4884 = vunpack.c.l.b16 %v2429
        %v4885 = vunpack.c.h.b16 %v2429
        %v4886 = vunpack.c.l.b16 %v2430
        %v4887 = vunpack.c.h.b16 %v2430
        %v4888 = vunpack.c.l.b16 %v2431
        %v4889 = vunpack.c.h.b16 %v2431
        %v4890 = vunpack.c.l.b16 %v2432
        %v4891 = vunpack.c.h.b16 %v2432
        %v4892 = vunpack.c.l.b16 %v2433
        %v4893 = vunpack.c.h.b16 %v2433
        %v4894 = vunpack.c.l.b16 %v2434
        %v4895 = vunpack.c.h.b16 %v2434
        %v4896 = vunpack.c.l.b16 %v2435
        %v4897 = vunpack.c.h.b16 %v2435
        %v4898 = vunpack.c.l.b16 %v2436
        %v4899 = vunpack.c.h.b16 %v2436
        %v4900 = vunpack.c.l.b16 %v2437
        %v4901 = vunpack.c.h.b16 %v2437
        %v4902 = vunpack.c.l.b16 %v2438
        %v4903 = vunpack.c.h.b16 %v2438
        %v4904 = vunpack.c.l.b16 %v2439
        %v4905 = vunpack.c.h.b16 %v2439
        %v4906 = vunpack.c.l.b16 %v2440
        %v4907 = vunpack.c.h.b16 %v2440
        %v4908 = vunpack.c.l.b16 %v2441
        %v4909 = vunpack.c.h.b16 %v2441
        %v4910 = vunpack.c.l.b16 %v2442
        %v4911 = vunpack.c.h.b16 %v2442
        %v4912 = vunpack.c.l.b16 %v2443
        %v4913 = vunpack.c.h.b16 %v2443
        %v4914 = vunpack.c.l.b16 %v2444
        %v4915 = vunpack.c.h.b16 %v2444
        %v4916 = vunpack.c.l.b16 %v2445
        %v4917 = vunpack.c.h.b16 %v2445
        %v4918 = vunpack.c.l.b16 %v2446
        %v4919 = vunpack.c.h.b16 %v2446
        %v4920 = vunpack.c.l.b16 %v2447
        %v4921 = vunpack.c.h.b16 %v2447
        %v4922 = vunpack.c.l.b16 %v2448
        %v4923 = vunpack.c.h.b16 %v2448
        %v4924 = vunpack.c.l.b16 %v2449
        %v4925 = vunpack.c.h.b16 %v2449
        %v4926 = vunpack.c.l.b16 %v2450
        %v4927 = vunpack.c.h.b16 %v2450
        %v4928 = vunpack.c.l.b16 %v2451
        %v4929 = vunpack.c.h.b16 %v2451
        %v4930 = vunpack.c.l.b16 %v2452
        %v4931 = vunpack.c.h.b16 %v2452
        %v4932 = vunpack.c.l.b16 %v2453
        %v4933 = vunpack.c.h.b16 %v2453
        %v4934 = vunpack.c.l.b16 %v2454
        %v4935 = vunpack.c.h.b16 %v2454
        %v4936 = vunpack.c.l.b16 %v2455
        %v4937 = vunpack.c.h.b16 %v2455
        %v4938 = vunpack.c.l.b16 %v2456
        %v4939 = vunpack.c.h.b16 %v2456
        %v4940 = vunpack.c.l.b16 %v2457
        %v4941 = vunpack.c.h.b16 %v2457
        %v4942 = vunpack.c.l.b16 %v2458
        %v4943 = vunpack.c.h.b16 %v2458
        %v4944 = vunpack.c.l.b16 %v2459
        %v4945 = vunpack.c.h.b16 %v2459
        %v4946 = vunpack.c.l.b16 %v2460
        %v4947 = vunpack.c.h.b16 %v2460
        %v4948 = vunpack.c.l.b16 %v2461
        %v4949 = vunpack.c.h.b16 %v2461
        %v4950 = vunpack.c.l.b16 %v2462
        %v4951 = vunpack.c.h.b16 %v2462
        %v4952 = vunpack.c.l.b16 %v2463
        %v4953 = vunpack.c.h.b16 %v2463
        %v4954 = vunpack.c.l.b16 %v2464
        %v4955 = vunpack.c.h.b16 %v2464
        %v4956 = vunpack.c.l.b16 %v2465
        %v4957 = vunpack.c.h.b16 %v2465
        %v4958 = vunpack.c.l.b16 %v2466
        %v4959 = vunpack.c.h.b16 %v2466
        %v4960 = vunpack.c.l.b16 %v2467
        %v4961 = vunpack.c.h.b16 %v2467
        %v4962 = vunpack.c.l.b16 %v2468
        %v4963 = vunpack.c.h.b16 %v2468
        %v4964 = vunpack.c.l.b16 %v2469
        %v4965 = vunpack.c.h.b16 %v2469
        %v4966 = vunpack.c.l.b16 %v2470
        %v4967 = vunpack.c.h.b16 %v2470
        %v4968 = vunpack.c.l.b16 %v2471
        %v4969 = vunpack.c.h.b16 %v2471
        %v4970 = vunpack.c.l.b16 %v2472
        %v4971 = vunpack.c.h.b16 %v2472
        %v4972 = vunpack.c.l.b16 %v2473
        %v4973 = vunpack.c.h.b16 %v2473
        %v4974 = vunpack.c.l.b16 %v2474
        %v4975 = vunpack.c.h.b16 %v2474
        %v4976 = vunpack.c.l.b16 %v2475
        %v4977 = vunpack.c.h.b16 %v2475
        %v4978 = vunpack.c.l.b16 %v2476
        %v4979 = vunpack.c.h.b16 %v2476
        %v4980 = vunpack.c.l.b16 %v2477
        %v4981 = vunpack.c.h.b16 %v2477
        %v4982 = vunpack.c.l.b16 %v2478
        %v4983 = vunpack.c.h.b16 %v2478
        %v4984 = vunpack.c.l.b16 %v2479
        %v4985 = vunpack.c.h.b16 %v2479
        %v4986 = vunpack.c.l.b16 %v2480
        %v4987 = vunpack.c.h.b16 %v2480
        %v4988 = vunpack.c.l.b16 %v2481
        %v4989 = vunpack.c.h.b16 %v2481
        %v4990 = vunpack.c.l.b16 %v2482
        %v4991 = vunpack.c.h.b16 %v2482
        %v4992 = vunpack.c.l.b16 %v2483
        %v4993 = vunpack.c.h.b16 %v2483
        %v4994 = vunpack.c.l.b16 %v2484
        %v4995 = vunpack.c.h.b16 %v2484
        %v4996 = vunpack.c.l.b16 %v2485
        %v4997 = vunpack.c.h.b16 %v2485
        %v4998 = vunpack.c.l.b16 %v2486
        %v4999 = vunpack.c.h.b16 %v2486
        %v5000 = vunpack.c.l.b16 %v2487
        %v5001 = vunpack.c.h.b16 %v2487
        %v5002 = vunpack.c.l.b16 %v2488
        %v5003 = vunpack.c.h.b16 %v2488
        %v5004 = vunpack.c.l.b16 %v2489
        %v5005 = vunpack.c.h.b16 %v2489
        %v5006 = vunpack.c.l.b16 %v2490
        %v5007 = vunpack.c.h.b16 %v2490
        %v5008 = vunpack.c.l.b16 %v2491
        %v5009 = vunpack.c.h.b16 %v2491
        %v5010 = vunpack.c.l.b16 %v2492
        %v5011 = vunpack.c.h.b16 %v2492
        %v5012 = vunpack.c.l.b16 %v2493
        %v5013 = vunpack.c.h.b16 %v2493
        %v5014 = vunpack.c.l.b16 %v2494
        %v5015 = vunpack.c.h.b16 %v2494
        %v5016 = vunpack.c.l.b16 %v2495
        %v5017 = vunpack.c.h.b16 %v2495
        %v5018 = vunpack.c.l.b16 %v2496
        %v5019 = vunpack.c.h.b16 %v2496
        %v5020 = vunpack.c.l.b16 %v2497
        %v5021 = vunpack.c.h.b16 %v2497
        %v5022 = vunpack.c.l.b16 %v2498
        %v5023 = vunpack.c.h.b16 %v2498
        %v5024 = vunpack.c.l.b16 %v2499
        %v5025 = vunpack.c.h.b16 %v2499
        %v5026 = vunpack.c.l.b16 %v2500
        %v5027 = vunpack.c.h.b16 %v2500
        %v5028 = vunpack.c.l.b16 %v2501
        %v5029 = vunpack.c.h.b16 %v2501
        %v5030 = vunpack.c.l.b16 %v2502
        %v5031 = vunpack.c.h.b16 %v2502
        %v5032 = vunpack.c.l.b16 %v2503
        %v5033 = vunpack.c.h.b16 %v2503
        %v5034 = vunpack.c.l.b16 %v2504
        %v5035 = vunpack.c.h.b16 %v2504
        %v5036 = vunpack.c.l.b16 %v2505
        %v5037 = vunpack.c.h.b16 %v2505
        %v5038 = vunpack.c.l.b16 %v2506
        %v5039 = vunpack.c.h.b16 %v2506
        %v5040 = vunpack.c.l.b16 %v2507
        %v5041 = vunpack.c.h.b16 %v2507
        %v5042 = vunpack.c.l.b16 %v2508
        %v5043 = vunpack.c.h.b16 %v2508
        %v5044 = vunpack.c.l.b16 %v2509
        %v5045 = vunpack.c.h.b16 %v2509
        %v5046 = vunpack.c.l.b16 %v2510
        %v5047 = vunpack.c.h.b16 %v2510
        %v5048 = vunpack.c.l.b16 %v2511
        %v5049 = vunpack.c.h.b16 %v2511
        %v5050 = vunpack.c.l.b16 %v2512
        %v5051 = vunpack.c.h.b16 %v2512
        %v5052 = vunpack.c.l.b16 %v2513
        %v5053 = vunpack.c.h.b16 %v2513
        %v5054 = vunpack.c.l.b16 %v2514
        %v5055 = vunpack.c.h.b16 %v2514
        %v5056 = vunpack.c.l.b16 %v2515
        %v5057 = vunpack.c.h.b16 %v2515
        %v5058 = vunpack.c.l.b16 %v2516
        %v5059 = vunpack.c.h.b16 %v2516
        %v5060 = vunpack.c.l.b16 %v2517
        %v5061 = vunpack.c.h.b16 %v2517
        %v5062 = vunpack.c.l.b16 %v2518
        %v5063 = vunpack.c.h.b16 %v2518
        %v5064 = vunpack.c.l.b16 %v2519
        %v5065 = vunpack.c.h.b16 %v2519
        %v5066 = vunpack.c.l.b16 %v2520
        %v5067 = vunpack.c.h.b16 %v2520
        %v5068 = vunpack.c.l.b16 %v2521
        %v5069 = vunpack.c.h.b16 %v2521
        %v5070 = vunpack.c.l.b16 %v2522
        %v5071 = vunpack.c.h.b16 %v2522
        %v5072 = vunpack.c.l.b16 %v2523
        %v5073 = vunpack.c.h.b16 %v2523
        %v5074 = vunpack.c.l.b16 %v2524
        %v5075 = vunpack.c.h.b16 %v2524
        %v5076 = vunpack.c.l.b16 %v2525
        %v5077 = vunpack.c.h.b16 %v2525
        %v5078 = vunpack.c.l.b16 %v2526
        %v5079 = vunpack.c.h.b16 %v2526
        %v5080 = vunpack.c.l.b16 %v2527
        %v5081 = vunpack.c.h.b16 %v2527
        %v5082 = vunpack.c.l.b16 %v2528
        %v5083 = vunpack.c.h.b16 %v2528
        %v5084 = vunpack.c.l.b16 %v2529
        %v5085 = vunpack.c.h.b16 %v2529
        %v5086 = vunpack.c.l.b16 %v2530
        %v5087 = vunpack.c.h.b16 %v2530
        %v5088 = vunpack.c.l.b16 %v2531
        %v5089 = vunpack.c.h.b16 %v2531
        %v5090 = vunpack.c.l.b16 %v2532
        %v5091 = vunpack.c.h.b16 %v2532
        %v5092 = vunpack.c.l.b16 %v2533
        %v5093 = vunpack.c.h.b16 %v2533
        %v5094 = vunpack.c.l.b16 %v2534
        %v5095 = vunpack.c.h.b16 %v2534
        %v5096 = vunpack.c.l.b16 %v2535
        %v5097 = vunpack.c.h.b16 %v2535
        %v5098 = vunpack.c.l.b16 %v2536
        %v5099 = vunpack.c.h.b16 %v2536
        %v5100 = vunpack.c.l.b16 %v2537
        %v5101 = vunpack.c.h.b16 %v2537
        %v5102 = vunpack.c.l.b16 %v2538
        %v5103 = vunpack.c.h.b16 %v2538
        %v5104 = vunpack.c.l.b16 %v2539
        %v5105 = vunpack.c.h.b16 %v2539
        %v5106 = vunpack.c.l.b16 %v2540
        %v5107 = vunpack.c.h.b16 %v2540
        %v5108 = vunpack.c.l.b16 %v2541
        %v5109 = vunpack.c.h.b16 %v2541
        %v5110 = vunpack.c.l.b16 %v2542
        %v5111 = vunpack.c.h.b16 %v2542
        %v5112 = vunpack.c.l.b16 %v2543
        %v5113 = vunpack.c.h.b16 %v2543
        %v5114 = vunpack.c.l.b16 %v2544
        %v5115 = vunpack.c.h.b16 %v2544
        %v5116 = vunpack.c.l.b16 %v2545
        %v5117 = vunpack.c.h.b16 %v2545
        %v5118 = vunpack.c.l.b16 %v2546
        %v5119 = vunpack.c.h.b16 %v2546
        %v5120 = vunpack.c.l.b16 %v2547
        %v5121 = vunpack.c.h.b16 %v2547
        %v5122 = vunpack.c.l.b16 %v2548
        %v5123 = vunpack.c.h.b16 %v2548
        %v5124 = vunpack.c.l.b16 %v2549
        %v5125 = vunpack.c.h.b16 %v2549
        %v5126 = vunpack.c.l.b16 %v2550
        %v5127 = vunpack.c.h.b16 %v2550
        %v5128 = vunpack.c.l.b16 %v2551
        %v5129 = vunpack.c.h.b16 %v2551
        %v5130 = vunpack.c.l.b16 %v2552
        %v5131 = vunpack.c.h.b16 %v2552
        %v5132 = vunpack.c.l.b16 %v2553
        %v5133 = vunpack.c.h.b16 %v2553
        %v5134 = vunpack.c.l.b16 %v2554
        %v5135 = vunpack.c.h.b16 %v2554
        %v5136 = vunpack.c.l.b16 %v2555
        %v5137 = vunpack.c.h.b16 %v2555
        %v5138 = vunpack.c.l.b16 %v2556
        %v5139 = vunpack.c.h.b16 %v2556
        %v5140 = vunpack.c.l.b16 %v2557
        %v5141 = vunpack.c.h.b16 %v2557
        %v5142 = vunpack.c.l.b16 %v2558
        %v5143 = vunpack.c.h.b16 %v2558
        %v5144 = vunpack.c.l.b16 %v2559
        %v5145 = vunpack.c.h.b16 %v2559
        %v5146 = vunpack.c.l.b16 %v2560
        %v5147 = vunpack.c.h.b16 %v2560
        %v5148 = vunpack.c.l.b16 %v2561
        %v5149 = vunpack.c.h.b16 %v2561
        %v5150 = vunpack.c.l.b16 %v2562
        %v5151 = vunpack.c.h.b16 %v2562
        %v5152 = vunpack.c.l.b16 %v2563
        %v5153 = vunpack.c.h.b16 %v2563
        %v5154 = vunpack.c.l.b16 %v2564
        %v5155 = vunpack.c.h.b16 %v2564
        %v5156 = vunpack.c.l.b16 %v2565
        %v5157 = vunpack.c.h.b16 %v2565
        %v5158 = vunpack.c.l.b16 %v2566
        %v5159 = vunpack.c.h.b16 %v2566
        %v5160 = vunpack.c.l.b16 %v2567
        %v5161 = vunpack.c.h.b16 %v2567
        %v5162 = vunpack.c.l.b16 %v2568
        %v5163 = vunpack.c.h.b16 %v2568
        %v5164 = vunpack.c.l.b16 %v2569
        %v5165 = vunpack.c.h.b16 %v2569
        %v5166 = vunpack.c.l.b16 %v2570
        %v5167 = vunpack.c.h.b16 %v2570
        %v5168 = vunpack.c.l.b16 %v2571
        %v5169 = vunpack.c.h.b16 %v2571
        %v5170 = vunpack.c.l.b16 %v2572
        %v5171 = vunpack.c.h.b16 %v2572
        %v5172 = vunpack.c.l.b16 %v2573
        %v5173 = vunpack.c.h.b16 %v2573
        %v5174 = vunpack.c.l.b16 %v2574
        %v5175 = vunpack.c.h.b16 %v2574
        %v5176 = vunpack.c.l.b16 %v2575
        %v5177 = vunpack.c.h.b16 %v2575
        %v5178 = vunpack.c.l.b16 %v2576
        %v5179 = vunpack.c.h.b16 %v2576
        %v5180 = vunpack.c.l.b16 %v2577
        %v5181 = vunpack.c.h.b16 %v2577
        %v5182 = vunpack.c.l.b16 %v2578
        %v5183 = vunpack.c.h.b16 %v2578
        %v5184 = vunpack.c.l.b16 %v2579
        %v5185 = vunpack.c.h.b16 %v2579
        %v5186 = vunpack.c.l.b16 %v2580
        %v5187 = vunpack.c.h.b16 %v2580
        %v5188 = vunpack.c.l.b16 %v2581
        %v5189 = vunpack.c.h.b16 %v2581
        %v5190 = vunpack.c.l.b16 %v2582
        %v5191 = vunpack.c.h.b16 %v2582
        %v5192 = vunpack.c.l.b16 %v2583
        %v5193 = vunpack.c.h.b16 %v2583
        %v5194 = vunpack.c.l.b16 %v2584
        %v5195 = vunpack.c.h.b16 %v2584
        %v5196 = vunpack.c.l.b16 %v2585
        %v5197 = vunpack.c.h.b16 %v2585
        %v5198 = vunpack.c.l.b16 %v2586
        %v5199 = vunpack.c.h.b16 %v2586
        %v5200 = vunpack.c.l.b16 %v2587
        %v5201 = vunpack.c.h.b16 %v2587
        %v5202 = vunpack.c.l.b16 %v2588
        %v5203 = vunpack.c.h.b16 %v2588
        %v5204 = vunpack.c.l.b16 %v2589
        %v5205 = vunpack.c.h.b16 %v2589
        %v5206 = vunpack.c.l.b16 %v2590
        %v5207 = vunpack.c.h.b16 %v2590
        %v5208 = vunpack.c.l.b16 %v2591
        %v5209 = vunpack.c.h.b16 %v2591
        %v5210 = vunpack.c.l.b16 %v2592
        %v5211 = vunpack.c.h.b16 %v2592
        %v5212 = vunpack.c.l.b16 %v2593
        %v5213 = vunpack.c.h.b16 %v2593
        %v5214 = vunpack.c.l.b16 %v2594
        %v5215 = vunpack.c.h.b16 %v2594
        %v5216 = vunpack.c.l.b16 %v2595
        %v5217 = vunpack.c.h.b16 %v2595
        %v5218 = vunpack.c.l.b16 %v2596
        %v5219 = vunpack.c.h.b16 %v2596
        %v5220 = vunpack.c.l.b16 %v2597
        %v5221 = vunpack.c.h.b16 %v2597
        %v5222 = vunpack.c.l.b16 %v2598
        %v5223 = vunpack.c.h.b16 %v2598
        %v5224 = vunpack.c.l.b16 %v2599
        %v5225 = vunpack.c.h.b16 %v2599
        %v5226 = vunpack.c.l.b16 %v2600
        %v5227 = vunpack.c.h.b16 %v2600
        %v5228 = vunpack.c.l.b16 %v2601
        %v5229 = vunpack.c.h.b16 %v2601
        %v5230 = vunpack.c.l.b16 %v2602
        %v5231 = vunpack.c.h.b16 %v2602
        %v5232 = vunpack.c.l.b16 %v2603
        %v5233 = vunpack.c.h.b16 %v2603
        %v5234 = vunpack.c.l.b16 %v2604
        %v5235 = vunpack.c.h.b16 %v2604
        %v5236 = vunpack.c.l.b16 %v2605
        %v5237 = vunpack.c.h.b16 %v2605
        %v5238 = vunpack.c.l.b16 %v2606
        %v5239 = vunpack.c.h.b16 %v2606
        %v5240 = vunpack.c.l.b16 %v2607
        %v5241 = vunpack.c.h.b16 %v2607
        %v5242 = vunpack.c.l.b16 %v2608
        %v5243 = vunpack.c.h.b16 %v2608
        %v5244 = vunpack.c.l.b16 %v2609
        %v5245 = vunpack.c.h.b16 %v2609
        %v5246 = vunpack.c.l.b16 %v2610
        %v5247 = vunpack.c.h.b16 %v2610
        %v5248 = vunpack.c.l.b16 %v2611
        %v5249 = vunpack.c.h.b16 %v2611
        %v5250 = vunpack.c.l.b16 %v2612
        %v5251 = vunpack.c.h.b16 %v2612
        %v5252 = vunpack.c.l.b16 %v2613
        %v5253 = vunpack.c.h.b16 %v2613
        %v5254 = vunpack.c.l.b16 %v2614
        %v5255 = vunpack.c.h.b16 %v2614
        %v5256 = vunpack.c.l.b16 %v2615
        %v5257 = vunpack.c.h.b16 %v2615
        %v5258 = vunpack.c.l.b16 %v2616
        %v5259 = vunpack.c.h.b16 %v2616
        %v5260 = vunpack.c.l.b16 %v2617
        %v5261 = vunpack.c.h.b16 %v2617
        %v5262 = vunpack.c.l.b16 %v2618
        %v5263 = vunpack.c.h.b16 %v2618
        %v5264 = vunpack.c.l.b16 %v2619
        %v5265 = vunpack.c.h.b16 %v2619
        %v5266 = vunpack.c.l.b16 %v2620
        %v5267 = vunpack.c.h.b16 %v2620
        %v5268 = vunpack.c.l.b16 %v2621
        %v5269 = vunpack.c.h.b16 %v2621
        %v5270 = vunpack.c.l.b16 %v2622
        %v5271 = vunpack.c.h.b16 %v2622
        %v5272 = vunpack.c.l.b16 %v2623
        %v5273 = vunpack.c.h.b16 %v2623
        %v5274 = vunpack.c.l.b16 %v2624
        %v5275 = vunpack.c.h.b16 %v2624
        %v5276 = vunpack.c.l.b16 %v2625
        %v5277 = vunpack.c.h.b16 %v2625
        %v5278 = vunpack.c.l.b16 %v2626
        %v5279 = vunpack.c.h.b16 %v2626
        %v5280 = vunpack.c.l.b16 %v2627
        %v5281 = vunpack.c.h.b16 %v2627
        %v5282 = vunpack.c.l.b16 %v2628
        %v5283 = vunpack.c.h.b16 %v2628
        %v5284 = vunpack.c.l.b16 %v2629
        %v5285 = vunpack.c.h.b16 %v2629
        %v5286 = vunpack.c.l.b16 %v2630
        %v5287 = vunpack.c.h.b16 %v2630
        %v5288 = vunpack.c.l.b16 %v2631
        %v5289 = vunpack.c.h.b16 %v2631
        %v5290 = vunpack.c.l.b16 %v2632
        %v5291 = vunpack.c.h.b16 %v2632
        %v5292 = vunpack.c.l.b16 %v2633
        %v5293 = vunpack.c.h.b16 %v2633
        %v5294 = vunpack.c.l.b16 %v2634
        %v5295 = vunpack.c.h.b16 %v2634
        %v5296 = vunpack.c.l.b16 %v2635
        %v5297 = vunpack.c.h.b16 %v2635
        %v5298 = vunpack.c.l.b16 %v2636
        %v5299 = vunpack.c.h.b16 %v2636
        %v5300 = vunpack.c.l.b16 %v2637
        %v5301 = vunpack.c.h.b16 %v2637
        %v5302 = vunpack.c.l.b16 %v2638
        %v5303 = vunpack.c.h.b16 %v2638
        %v5304 = vunpack.c.l.b16 %v2639
        %v5305 = vunpack.c.h.b16 %v2639
        %v5306 = vunpack.c.l.b16 %v2640
        %v5307 = vunpack.c.h.b16 %v2640
        %v5308 = vunpack.c.l.b16 %v2641
        %v5309 = vunpack.c.h.b16 %v2641
        %v5310 = vunpack.c.l.b16 %v2642
        %v5311 = vunpack.c.h.b16 %v2642
        %v5312 = vunpack.c.l.b16 %v2643
        %v5313 = vunpack.c.h.b16 %v2643
        %v5314 = vunpack.c.l.b16 %v2644
        %v5315 = vunpack.c.h.b16 %v2644
        %v5316 = vunpack.c.l.b16 %v2645
        %v5317 = vunpack.c.h.b16 %v2645
        %v5318 = vunpack.c.l.b16 %v2646
        %v5319 = vunpack.c.h.b16 %v2646
        %v5320 = vunpack.c.l.b16 %v2647
        %v5321 = vunpack.c.h.b16 %v2647
        %v5322 = vunpack.c.l.b16 %v2648
        %v5323 = vunpack.c.h.b16 %v2648
        %v5324 = vunpack.c.l.b16 %v2649
        %v5325 = vunpack.c.h.b16 %v2649
        %v5326 = vunpack.c.l.b16 %v2650
        %v5327 = vunpack.c.h.b16 %v2650
        %v5328 = vunpack.c.l.b16 %v2651
        %v5329 = vunpack.c.h.b16 %v2651
        %v5330 = vunpack.c.l.b16 %v2652
        %v5331 = vunpack.c.h.b16 %v2652
        %v5332 = vunpack.c.l.b16 %v2653
        %v5333 = vunpack.c.h.b16 %v2653
        %v5334 = vunpack.c.l.b16 %v2654
        %v5335 = vunpack.c.h.b16 %v2654
        %v5336 = vunpack.c.l.b16 %v2655
        %v5337 = vunpack.c.h.b16 %v2655
        %v5338 = vunpack.c.l.b16 %v2656
        %v5339 = vunpack.c.h.b16 %v2656
        %v5340 = vunpack.c.l.b16 %v2657
        %v5341 = vunpack.c.h.b16 %v2657
        %v5342 = vunpack.c.l.b16 %v2658
        %v5343 = vunpack.c.h.b16 %v2658
        %v5344 = vunpack.c.l.b16 %v2659
        %v5345 = vunpack.c.h.b16 %v2659
        %v5346 = vunpack.c.l.b16 %v2660
        %v5347 = vunpack.c.h.b16 %v2660
        %v5348 = vunpack.c.l.b16 %v2661
        %v5349 = vunpack.c.h.b16 %v2661
        %v5350 = vunpack.c.l.b16 %v2662
        %v5351 = vunpack.c.h.b16 %v2662
        %v5352 = vunpack.c.l.b16 %v2663
        %v5353 = vunpack.c.h.b16 %v2663
        %v5354 = vunpack.c.l.b16 %v2664
        %v5355 = vunpack.c.h.b16 %v2664
        %v5356 = vunpack.c.l.b16 %v2665
        %v5357 = vunpack.c.h.b16 %v2665
        %v5358 = vunpack.c.l.b16 %v2666
        %v5359 = vunpack.c.h.b16 %v2666
        %v5360 = vunpack.c.l.b16 %v2667
        %v5361 = vunpack.c.h.b16 %v2667
        %v5362 = vunpack.c.l.b16 %v2668
        %v5363 = vunpack.c.h.b16 %v2668
        %v5364 = vunpack.c.l.b16 %v2669
        %v5365 = vunpack.c.h.b16 %v2669
        %v5366 = vunpack.c.l.b16 %v2670
        %v5367 = vunpack.c.h.b16 %v2670
        %v5368 = vunpack.c.l.b16 %v2671
        %v5369 = vunpack.c.h.b16 %v2671
        %v5370 = vunpack.c.l.b16 %v2672
        %v5371 = vunpack.c.h.b16 %v2672
        %v5372 = vunpack.c.l.b16 %v2673
        %v5373 = vunpack.c.h.b16 %v2673
        %v5374 = vunpack.c.l.b16 %v2674
        %v5375 = vunpack.c.h.b16 %v2674
        %v5376 = vunpack.c.l.b16 %v2675
        %v5377 = vunpack.c.h.b16 %v2675
        %v5378 = vunpack.c.l.b16 %v2676
        %v5379 = vunpack.c.h.b16 %v2676
        %v5380 = vunpack.c.l.b16 %v2677
        %v5381 = vunpack.c.h.b16 %v2677
        %v5382 = vunpack.c.l.b16 %v2678
        %v5383 = vunpack.c.h.b16 %v2678
        %v5384 = vunpack.c.l.b16 %v2679
        %v5385 = vunpack.c.h.b16 %v2679
        %v5386 = vunpack.c.l.b16 %v2680
        %v5387 = vunpack.c.h.b16 %v2680
        %v5388 = vunpack.c.l.b16 %v2681
        %v5389 = vunpack.c.h.b16 %v2681
        %v5390 = vunpack.c.l.b16 %v2682
        %v5391 = vunpack.c.h.b16 %v2682
        %v5392 = vunpack.c.l.b16 %v2683
        %v5393 = vunpack.c.h.b16 %v2683
        %v5394 = vunpack.c.l.b16 %v2684
        %v5395 = vunpack.c.h.b16 %v2684
        %v5396 = vunpack.c.l.b16 %v2685
        %v5397 = vunpack.c.h.b16 %v2685
        %v5398 = vunpack.c.l.b16 %v2686
        %v5399 = vunpack.c.h.b16 %v2686
        %v5400 = vunpack.c.l.b16 %v2687
        %v5401 = vunpack.c.h.b16 %v2687
        %v5402 = vunpack.c.l.b16 %v2688
        %v5403 = vunpack.c.h.b16 %v2688
        %v5404 = vunpack.c.l.b16 %v2689
        %v5405 = vunpack.c.h.b16 %v2689
        %v5406 = vunpack.c.l.b16 %v2690
        %v5407 = vunpack.c.h.b16 %v2690
        %v5408 = vunpack.c.l.b16 %v2691
        %v5409 = vunpack.c.h.b16 %v2691
        %v5410 = vunpack.c.l.b16 %v2692
        %v5411 = vunpack.c.h.b16 %v2692
        %v5412 = vunpack.c.l.b16 %v2693
        %v5413 = vunpack.c.h.b16 %v2693
        %v5414 = vunpack.c.l.b16 %v2694
        %v5415 = vunpack.c.h.b16 %v2694
        %v5416 = vunpack.c.l.b16 %v2695
        %v5417 = vunpack.c.h.b16 %v2695
        %v5418 = vunpack.c.l.b16 %v2696
        %v5419 = vunpack.c.h.b16 %v2696
        %v5420 = vunpack.c.l.b16 %v2697
        %v5421 = vunpack.c.h.b16 %v2697
        %v5422 = vunpack.c.l.b16 %v2698
        %v5423 = vunpack.c.h.b16 %v2698
        %v5424 = vunpack.c.l.b16 %v2699
        %v5425 = vunpack.c.h.b16 %v2699
        %v5426 = vunpack.c.l.b16 %v2700
        %v5427 = vunpack.c.h.b16 %v2700
        %v5428 = vunpack.c.l.b16 %v2701
        %v5429 = vunpack.c.h.b16 %v2701
        %v5430 = vunpack.c.l.b16 %v2702
        %v5431 = vunpack.c.h.b16 %v2702
        %v5432 = vunpack.c.l.b16 %v2703
        %v5433 = vunpack.c.h.b16 %v2703
        %v5434 = vunpack.c.l.b16 %v2704
        %v5435 = vunpack.c.h.b16 %v2704
        %v5436 = vunpack.c.l.b16 %v2705
        %v5437 = vunpack.c.h.b16 %v2705
        %v5438 = vunpack.c.l.b16 %v2706
        %v5439 = vunpack.c.h.b16 %v2706
        %v5440 = vunpack.c.l.b16 %v2707
        %v5441 = vunpack.c.h.b16 %v2707
        %v5442 = vunpack.c.l.b16 %v2708
        %v5443 = vunpack.c.h.b16 %v2708
        %v5444 = vunpack.c.l.b16 %v2709
        %v5445 = vunpack.c.h.b16 %v2709
        %v5446 = vunpack.c.l.b16 %v2710
        %v5447 = vunpack.c.h.b16 %v2710
        %v5448 = vunpack.c.l.b16 %v2711
        %v5449 = vunpack.c.h.b16 %v2711
        %v5450 = vunpack.c.l.b16 %v2712
        %v5451 = vunpack.c.h.b16 %v2712
        %v5452 = vunpack.c.l.b16 %v2713
        %v5453 = vunpack.c.h.b16 %v2713
        %v5454 = vunpack.c.l.b16 %v2714
        %v5455 = vunpack.c.h.b16 %v2714
        %v5456 = vunpack.c.l.b16 %v2715
        %v5457 = vunpack.c.h.b16 %v2715
        %v5458 = vunpack.c.l.b16 %v2716
        %v5459 = vunpack.c.h.b16 %v2716
        %v5460 = vunpack.c.l.b16 %v2717
        %v5461 = vunpack.c.h.b16 %v2717
        %v5462 = vunpack.c.l.b16 %v2718
        %v5463 = vunpack.c.h.b16 %v2718
        %v5464 = vunpack.c.l.b16 %v2719
        %v5465 = vunpack.c.h.b16 %v2719
        %v5466 = vunpack.c.l.b16 %v2720
        %v5467 = vunpack.c.h.b16 %v2720
        %v5468 = vunpack.c.l.b16 %v2721
        %v5469 = vunpack.c.h.b16 %v2721
        %v5470 = vunpack.c.l.b16 %v2722
        %v5471 = vunpack.c.h.b16 %v2722
        %v5472 = vunpack.c.l.b16 %v2723
        %v5473 = vunpack.c.h.b16 %v2723
        %v5474 = vunpack.c.l.b16 %v2724
        %v5475 = vunpack.c.h.b16 %v2724
        %v5476 = vunpack.c.l.b16 %v2725
        %v5477 = vunpack.c.h.b16 %v2725
        %v5478 = vunpack.c.l.b16 %v2726
        %v5479 = vunpack.c.h.b16 %v2726
        %v5480 = vunpack.c.l.b16 %v2727
        %v5481 = vunpack.c.h.b16 %v2727
        %v5482 = vunpack.c.l.b16 %v2728
        %v5483 = vunpack.c.h.b16 %v2728
        %v5484 = vunpack.c.l.b16 %v2729
        %v5485 = vunpack.c.h.b16 %v2729
        %v5486 = vunpack.c.l.b16 %v2730
        %v5487 = vunpack.c.h.b16 %v2730
        %v5488 = vunpack.c.l.b16 %v2731
        %v5489 = vunpack.c.h.b16 %v2731
        %v5490 = vunpack.c.l.b16 %v2732
        %v5491 = vunpack.c.h.b16 %v2732
        %v5492 = vunpack.c.l.b16 %v2733
        %v5493 = vunpack.c.h.b16 %v2733
        %v5494 = vunpack.c.l.b16 %v2734
        %v5495 = vunpack.c.h.b16 %v2734
        %v5496 = vunpack.c.l.b16 %v2735
        %v5497 = vunpack.c.h.b16 %v2735
        %v5498 = vunpack.c.l.b16 %v2736
        %v5499 = vunpack.c.h.b16 %v2736
        %v5500 = vunpack.c.l.b16 %v2737
        %v5501 = vunpack.c.h.b16 %v2737
        %v5502 = vunpack.c.l.b16 %v2738
        %v5503 = vunpack.c.h.b16 %v2738
        %v5504 = vunpack.c.l.b16 %v2739
        %v5505 = vunpack.c.h.b16 %v2739
        %v5506 = vunpack.c.l.b16 %v2740
        %v5507 = vunpack.c.h.b16 %v2740
        %v5508 = vunpack.c.l.b16 %v2741
        %v5509 = vunpack.c.h.b16 %v2741
        %v5510 = vunpack.c.l.b16 %v2742
        %v5511 = vunpack.c.h.b16 %v2742
        %v5512 = vunpack.c.l.b16 %v2743
        %v5513 = vunpack.c.h.b16 %v2743
        %v5514 = vunpack.c.l.b16 %v2744
        %v5515 = vunpack.c.h.b16 %v2744
        %v5516 = vunpack.c.l.b16 %v2745
        %v5517 = vunpack.c.h.b16 %v2745
        %v5518 = vunpack.c.l.b16 %v2746
        %v5519 = vunpack.c.h.b16 %v2746
        %v5520 = vunpack.c.l.b16 %v2747
        %v5521 = vunpack.c.h.b16 %v2747
        %v5522 = vunpack.c.l.b16 %v2748
        %v5523 = vunpack.c.h.b16 %v2748
        %v5524 = vunpack.c.l.b16 %v2749
        %v5525 = vunpack.c.h.b16 %v2749
        %v5526 = vunpack.c.l.b16 %v2750
        %v5527 = vunpack.c.h.b16 %v2750
        %v5528 = vunpack.c.l.b16 %v2751
        %v5529 = vunpack.c.h.b16 %v2751
        %v5530 = vunpack.c.l.b16 %v2752
        %v5531 = vunpack.c.h.b16 %v2752
        %v5532 = vunpack.c.l.b16 %v2753
        %v5533 = vunpack.c.h.b16 %v2753
        %v5534 = vunpack.c.l.b16 %v2754
        %v5535 = vunpack.c.h.b16 %v2754
        %v5536 = vunpack.c.l.b16 %v2755
        %v5537 = vunpack.c.h.b16 %v2755
        %v5538 = vunpack.c.l.b16 %v2756
        %v5539 = vunpack.c.h.b16 %v2756
        %v5540 = vunpack.c.l.b16 %v2757
        %v5541 = vunpack.c.h.b16 %v2757
        %v5542 = vunpack.c.l.b16 %v2758
        %v5543 = vunpack.c.h.b16 %v2758
        %v5544 = vunpack.c.l.b16 %v2759
        %v5545 = vunpack.c.h.b16 %v2759
        %v5546 = vunpack.c.l.b16 %v2760
        %v5547 = vunpack.c.h.b16 %v2760
        %v5548 = vunpack.c.l.b16 %v2761
        %v5549 = vunpack.c.h.b16 %v2761
        %v5550 = vunpack.c.l.b16 %v2762
        %v5551 = vunpack.c.h.b16 %v2762
        %v5552 = vunpack.c.l.b16 %v2763
        %v5553 = vunpack.c.h.b16 %v2763
        %v5554 = vunpack.c.l.b16 %v2764
        %v5555 = vunpack.c.h.b16 %v2764
        %v5556 = vunpack.c.l.b16 %v2765
        %v5557 = vunpack.c.h.b16 %v2765
        %v5558 = vunpack.c.l.b16 %v2766
        %v5559 = vunpack.c.h.b16 %v2766
        %v5560 = vunpack.c.l.b16 %v2767
        %v5561 = vunpack.c.h.b16 %v2767
        %v5562 = vunpack.c.l.b16 %v2768
        %v5563 = vunpack.c.h.b16 %v2768
        %v5564 = vunpack.c.l.b16 %v2769
        %v5565 = vunpack.c.h.b16 %v2769
        %v5566 = vunpack.c.l.b16 %v2770
        %v5567 = vunpack.c.h.b16 %v2770
        %v5568 = vunpack.c.l.b16 %v2771
        %v5569 = vunpack.c.h.b16 %v2771
        %v5570 = vunpack.c.l.b16 %v2772
        %v5571 = vunpack.c.h.b16 %v2772
        %v5572 = vunpack.c.l.b16 %v2773
        %v5573 = vunpack.c.h.b16 %v2773
        %v5574 = vunpack.c.l.b16 %v2774
        %v5575 = vunpack.c.h.b16 %v2774
        %v5576 = vunpack.c.l.b16 %v2775
        %v5577 = vunpack.c.h.b16 %v2775
        %v5578 = vunpack.c.l.b16 %v2776
        %v5579 = vunpack.c.h.b16 %v2776
        %v5580 = vunpack.c.l.b16 %v2777
        %v5581 = vunpack.c.h.b16 %v2777
        %v5582 = vunpack.c.l.b16 %v2778
        %v5583 = vunpack.c.h.b16 %v2778
        %v5584 = vunpack.c.l.b16 %v2779
        %v5585 = vunpack.c.h.b16 %v2779
        %v5586 = vunpack.c.l.b16 %v2780
        %v5587 = vunpack.c.h.b16 %v2780
        %v5588 = vunpack.c.l.b16 %v2781
        %v5589 = vunpack.c.h.b16 %v2781
        %v5590 = vunpack.c.l.b16 %v2782
        %v5591 = vunpack.c.h.b16 %v2782
        %v5592 = vunpack.c.l.b16 %v2783
        %v5593 = vunpack.c.h.b16 %v2783
        %v5594 = vunpack.c.l.b16 %v2784
        %v5595 = vunpack.c.h.b16 %v2784
        %v5596 = vunpack.c.l.b16 %v2785
        %v5597 = vunpack.c.h.b16 %v2785
        %v5598 = vunpack.c.l.b16 %v2786
        %v5599 = vunpack.c.h.b16 %v2786
        %v5600 = vunpack.c.l.b16 %v2787
        %v5601 = vunpack.c.h.b16 %v2787
        %v5602 = vunpack.c.l.b16 %v2788
        %v5603 = vunpack.c.h.b16 %v2788
        %v5604 = vunpack.c.l.b16 %v2789
        %v5605 = vunpack.c.h.b16 %v2789
        %v5606 = vunpack.c.l.b16 %v2790
        %v5607 = vunpack.c.h.b16 %v2790
        %v5608 = vunpack.c.l.b16 %v2791
        %v5609 = vunpack.c.h.b16 %v2791
        %v5610 = vunpack.c.l.b16 %v2792
        %v5611 = vunpack.c.h.b16 %v2792
        %v5612 = vunpack.c.l.b16 %v2793
        %v5613 = vunpack.c.h.b16 %v2793
        %v5614 = vunpack.c.l.b16 %v2794
        %v5615 = vunpack.c.h.b16 %v2794
        %v5616 = vunpack.c.l.b16 %v2795
        %v5617 = vunpack.c.h.b16 %v2795
        %v5618 = vunpack.c.l.b16 %v2796
        %v5619 = vunpack.c.h.b16 %v2796
        %v5620 = vunpack.c.l.b16 %v2797
        %v5621 = vunpack.c.h.b16 %v2797
        %v5622 = vunpack.c.l.b16 %v2798
        %v5623 = vunpack.c.h.b16 %v2798
        %v5624 = vunpack.c.l.b16 %v2799
        %v5625 = vunpack.c.h.b16 %v2799
        %v5626 = vunpack.c.l.b16 %v2800
        %v5627 = vunpack.c.h.b16 %v2800
        %v5628 = vunpack.c.l.b16 %v2801
        %v5629 = vunpack.c.h.b16 %v2801
        %v5630 = vunpack.c.l.b16 %v2802
        %v5631 = vunpack.c.h.b16 %v2802
        %v5632 = vunpack.c.l.b16 %v2803
        %v5633 = vunpack.c.h.b16 %v2803
        %v5634 = vunpack.c.l.b16 %v2804
        %v5635 = vunpack.c.h.b16 %v2804
        %v5636 = vunpack.c.l.b16 %v2805
        %v5637 = vunpack.c.h.b16 %v2805
        %v5638 = vunpack.c.l.b16 %v2806
        %v5639 = vunpack.c.h.b16 %v2806
        %v5640 = vunpack.c.l.b16 %v2807
        %v5641 = vunpack.c.h.b16 %v2807
        %v5642 = vunpack.c.l.b16 %v2808
        %v5643 = vunpack.c.h.b16 %v2808
        %v5644 = vunpack.c.l.b16 %v2809
        %v5645 = vunpack.c.h.b16 %v2809
        %v5646 = vunpack.c.l.b16 %v2810
        %v5647 = vunpack.c.h.b16 %v2810
        %v5648 = vunpack.c.l.b16 %v2811
        %v5649 = vunpack.c.h.b16 %v2811
        %v5650 = vunpack.c.l.b16 %v2812
        %v5651 = vunpack.c.h.b16 %v2812
        %v5652 = vunpack.c.l.b16 %v2813
        %v5653 = vunpack.c.h.b16 %v2813
        %v5654 = vunpack.c.l.b16 %v2814
        %v5655 = vunpack.c.h.b16 %v2814
        %v5656 = vunpack.c.l.b16 %v2815
        %v5657 = vunpack.c.h.b16 %v2815
        %v5658 = vunpack.c.l.b16 %v2816
        %v5659 = vunpack.c.h.b16 %v2816
        %v5660 = vunpack.c.l.b16 %v2817
        %v5661 = vunpack.c.h.b16 %v2817
        %v5662 = vunpack.c.l.b16 %v2818
        %v5663 = vunpack.c.h.b16 %v2818
        %v5664 = vunpack.c.l.b16 %v2819
        %v5665 = vunpack.c.h.b16 %v2819
        %v5666 = vunpack.c.l.b16 %v2820
        %v5667 = vunpack.c.h.b16 %v2820
        %v5668 = vunpack.c.l.b16 %v2821
        %v5669 = vunpack.c.h.b16 %v2821
        %v5670 = vunpack.c.l.b16 %v2822
        %v5671 = vunpack.c.h.b16 %v2822
        %v5672 = vunpack.c.l.b16 %v2823
        %v5673 = vunpack.c.h.b16 %v2823
        %v5674 = vunpack.c.l.b16 %v2824
        %v5675 = vunpack.c.h.b16 %v2824
        %v5676 = vunpack.c.l.b16 %v2825
        %v5677 = vunpack.c.h.b16 %v2825
        %v5678 = vunpack.c.l.b16 %v2826
        %v5679 = vunpack.c.h.b16 %v2826
        %v5680 = vunpack.c.l.b16 %v2827
        %v5681 = vunpack.c.h.b16 %v2827
        %v5682 = vunpack.c.l.b16 %v2828
        %v5683 = vunpack.c.h.b16 %v2828
        %v5684 = vunpack.c.l.b16 %v2829
        %v5685 = vunpack.c.h.b16 %v2829
        %v5686 = vunpack.c.l.b16 %v2830
        %v5687 = vunpack.c.h.b16 %v2830
        %v5688 = vunpack.c.l.b16 %v2831
        %v5689 = vunpack.c.h.b16 %v2831
        %v5690 = vunpack.c.l.b16 %v2832
        %v5691 = vunpack.c.h.b16 %v2832
        %v5692 = vunpack.c.l.b16 %v2833
        %v5693 = vunpack.c.h.b16 %v2833
        %v5694 = vunpack.c.l.b16 %v2834
        %v5695 = vunpack.c.h.b16 %v2834
        %v5696 = vunpack.c.l.b16 %v2835
        %v5697 = vunpack.c.h.b16 %v2835
        %v5698 = vunpack.c.l.b16 %v2836
        %v5699 = vunpack.c.h.b16 %v2836
        %v5700 = vunpack.c.l.b16 %v2837
        %v5701 = vunpack.c.h.b16 %v2837
        %v5702 = vunpack.c.l.b16 %v2838
        %v5703 = vunpack.c.h.b16 %v2838
        %v5704 = vunpack.c.l.b16 %v2839
        %v5705 = vunpack.c.h.b16 %v2839
        %v5706 = vunpack.c.l.b16 %v2840
        %v5707 = vunpack.c.h.b16 %v2840
        %v5708 = vunpack.c.l.b16 %v2841
        %v5709 = vunpack.c.h.b16 %v2841
        %v5710 = vunpack.c.l.b16 %v2842
        %v5711 = vunpack.c.h.b16 %v2842
        %v5712 = vunpack.c.l.b16 %v2843
        %v5713 = vunpack.c.h.b16 %v2843
        %v5714 = vunpack.c.l.b16 %v2844
        %v5715 = vunpack.c.h.b16 %v2844
        %v5716 = vunpack.c.l.b16 %v2845
        %v5717 = vunpack.c.h.b16 %v2845
        %v5718 = vunpack.c.l.b16 %v2846
        %v5719 = vunpack.c.h.b16 %v2846
        %v5720 = vunpack.c.l.b16 %v2847
        %v5721 = vunpack.c.h.b16 %v2847
        %v5722 = vunpack.c.l.b16 %v2848
        %v5723 = vunpack.c.h.b16 %v2848
        %v5724 = vunpack.c.l.b16 %v2849
        %v5725 = vunpack.c.h.b16 %v2849
        %v5726 = vunpack.c.l.b16 %v2850
        %v5727 = vunpack.c.h.b16 %v2850
        %v5728 = vunpack.c.l.b16 %v2851
        %v5729 = vunpack.c.h.b16 %v2851
        %v5730 = vunpack.c.l.b16 %v2852
        %v5731 = vunpack.c.h.b16 %v2852
        %v5732 = vunpack.c.l.b16 %v2853
        %v5733 = vunpack.c.h.b16 %v2853
        %v5734 = vunpack.c.l.b16 %v2854
        %v5735 = vunpack.c.h.b16 %v2854
        %v5736 = vunpack.c.l.b16 %v2855
        %v5737 = vunpack.c.h.b16 %v2855
        %v5738 = vunpack.c.l.b16 %v2856
        %v5739 = vunpack.c.h.b16 %v2856
        %v5740 = vunpack.c.l.b16 %v2857
        %v5741 = vunpack.c.h.b16 %v2857
        %v5742 = vunpack.c.l.b16 %v2858
        %v5743 = vunpack.c.h.b16 %v2858
        %v5744 = vunpack.c.l.b16 %v2859
        %v5745 = vunpack.c.h.b16 %v2859
        %v5746 = vunpack.c.l.b16 %v2860
        %v5747 = vunpack.c.h.b16 %v2860
        %v5748 = vunpack.c.l.b16 %v2861
        %v5749 = vunpack.c.h.b16 %v2861
        %v5750 = vunpack.c.l.b16 %v2862
        %v5751 = vunpack.c.h.b16 %v2862
        %v5752 = vunpack.c.l.b16 %v2863
        %v5753 = vunpack.c.h.b16 %v2863
        %v5754 = vunpack.c.l.b16 %v2864
        %v5755 = vunpack.c.h.b16 %v2864
        %v5756 = vunpack.c.l.b16 %v2865
        %v5757 = vunpack.c.h.b16 %v2865
        %v5758 = vunpack.c.l.b16 %v2866
        %v5759 = vunpack.c.h.b16 %v2866
        %v5760 = vunpack.c.l.b16 %v2867
        %v5761 = vunpack.c.h.b16 %v2867
        %v5762 = vunpack.c.l.b16 %v2868
        %v5763 = vunpack.c.h.b16 %v2868
        %v5764 = vunpack.c.l.b16 %v2869
        %v5765 = vunpack.c.h.b16 %v2869
        %v5766 = vunpack.c.l.b16 %v2870
        %v5767 = vunpack.c.h.b16 %v2870
        %v5768 = vunpack.c.l.b16 %v2871
        %v5769 = vunpack.c.h.b16 %v2871
        %v5770 = vunpack.c.l.b16 %v2872
        %v5771 = vunpack.c.h.b16 %v2872
        %v5772 = vunpack.c.l.b16 %v2873
        %v5773 = vunpack.c.h.b16 %v2873
        %v5774 = vunpack.c.l.b16 %v2874
        %v5775 = vunpack.c.h.b16 %v2874
        %v5776 = vunpack.c.l.b16 %v2875
        %v5777 = vunpack.c.h.b16 %v2875
        %v5778 = vunpack.c.l.b16 %v2876
        %v5779 = vunpack.c.h.b16 %v2876
        %v5780 = vunpack.c.l.b16 %v2877
        %v5781 = vunpack.c.h.b16 %v2877
        %v5782 = vunpack.c.l.b16 %v2878
        %v5783 = vunpack.c.h.b16 %v2878
        %v5784 = vunpack.c.l.b16 %v2879
        %v5785 = vunpack.c.h.b16 %v2879
        %v5786 = vunpack.c.l.b16 %v2880
        %v5787 = vunpack.c.h.b16 %v2880
        %v5788 = vunpack.c.l.b16 %v2881
        %v5789 = vunpack.c.h.b16 %v2881
        %v5790 = vunpack.c.l.b16 %v2882
        %v5791 = vunpack.c.h.b16 %v2882
        %v5792 = vunpack.c.l.b16 %v2883
        %v5793 = vunpack.c.h.b16 %v2883
        %v5794 = vunpack.c.l.b16 %v2884
        %v5795 = vunpack.c.h.b16 %v2884
        %v5796 = vunpack.c.l.b16 %v2885
        %v5797 = vunpack.c.h.b16 %v2885
        %v5798 = vunpack.c.l.b16 %v2886
        %v5799 = vunpack.c.h.b16 %v2886
        %v5800 = vunpack.c.l.b16 %v2887
        %v5801 = vunpack.c.h.b16 %v2887
        %v5802 = vunpack.c.l.b16 %v2888
        %v5803 = vunpack.c.h.b16 %v2888
        %v5804 = vunpack.c.l.b16 %v2889
        %v5805 = vunpack.c.h.b16 %v2889
        %v5806 = vunpack.c.l.b16 %v2890
        %v5807 = vunpack.c.h.b16 %v2890
        %v5808 = vunpack.c.l.b16 %v2891
        %v5809 = vunpack.c.h.b16 %v2891
        %v5810 = vunpack.c.l.b16 %v2892
        %v5811 = vunpack.c.h.b16 %v2892
        %v5812 = vunpack.c.l.b16 %v2893
        %v5813 = vunpack.c.h.b16 %v2893
        %v5814 = vunpack.c.l.b16 %v2894
        %v5815 = vunpack.c.h.b16 %v2894
        %v5816 = vunpack.c.l.b16 %v2895
        %v5817 = vunpack.c.h.b16 %v2895
        %v5818 = vunpack.c.l.b16 %v2896
        %v5819 = vunpack.c.h.b16 %v2896
        %v5820 = vunpack.c.l.b16 %v2897
        %v5821 = vunpack.c.h.b16 %v2897
        %v5822 = vunpack.c.l.b16 %v2898
        %v5823 = vunpack.c.h.b16 %v2898
        %v5824 = vunpack.c.l.b16 %v2899
        %v5825 = vunpack.c.h.b16 %v2899
        %v5826 = vunpack.c.l.b16 %v2900
        %v5827 = vunpack.c.h.b16 %v2900
        %v5828 = vunpack.c.l.b16 %v2901
        %v5829 = vunpack.c.h.b16 %v2901
        %v5830 = vunpack.c.l.b16 %v2902
        %v5831 = vunpack.c.h.b16 %v2902
        %v5832 = vunpack.c.l.b16 %v2903
        %v5833 = vunpack.c.h.b16 %v2903
        %v5834 = vunpack.c.l.b16 %v2904
        %v5835 = vunpack.c.h.b16 %v2904
        %v5836 = vunpack.c.l.b16 %v2905
        %v5837 = vunpack.c.h.b16 %v2905
        %v5838 = vunpack.c.l.b16 %v2906
        %v5839 = vunpack.c.h.b16 %v2906
        %v5840 = vunpack.c.l.b16 %v2907
        %v5841 = vunpack.c.h.b16 %v2907
        %v5842 = vunpack.c.l.b16 %v2908
        %v5843 = vunpack.c.h.b16 %v2908
        %v5844 = vunpack.c.l.b16 %v2909
        %v5845 = vunpack.c.h.b16 %v2909
        %v5846 = vunpack.c.l.b16 %v2910
        %v5847 = vunpack.c.h.b16 %v2910
        %v5848 = vunpack.c.l.b16 %v2911
        %v5849 = vunpack.c.h.b16 %v2911
        %v5850 = vunpack.c.l.b16 %v2912
        %v5851 = vunpack.c.h.b16 %v2912
        %v5852 = vunpack.c.l.b16 %v2913
        %v5853 = vunpack.c.h.b16 %v2913
        %v5854 = vunpack.c.l.b16 %v2914
        %v5855 = vunpack.c.h.b16 %v2914
        %v5856 = vunpack.c.l.b16 %v2915
        %v5857 = vunpack.c.h.b16 %v2915
        %v5858 = vunpack.c.l.b16 %v2916
        %v5859 = vunpack.c.h.b16 %v2916
        %v5860 = vunpack.c.l.b16 %v2917
        %v5861 = vunpack.c.h.b16 %v2917
        %v5862 = vunpack.c.l.b16 %v2918
        %v5863 = vunpack.c.h.b16 %v2918
        %v5864 = vunpack.c.l.b16 %v2919
        %v5865 = vunpack.c.h.b16 %v2919
        %v5866 = vunpack.c.l.b16 %v2920
        %v5867 = vunpack.c.h.b16 %v2920
        %v5868 = vunpack.c.l.b16 %v2921
        %v5869 = vunpack.c.h.b16 %v2921
        %v5870 = vunpack.c.l.b16 %v2922
        %v5871 = vunpack.c.h.b16 %v2922
        %v5872 = vunpack.c.l.b16 %v2923
        %v5873 = vunpack.c.h.b16 %v2923
        %v5874 = vunpack.c.l.b16 %v2924
        %v5875 = vunpack.c.h.b16 %v2924
        %v5876 = vunpack.c.l.b16 %v2925
        %v5877 = vunpack.c.h.b16 %v2925
        %v5878 = vunpack.c.l.b16 %v2926
        %v5879 = vunpack.c.h.b16 %v2926
        %v5880 = vunpack.c.l.b16 %v2927
        %v5881 = vunpack.c.h.b16 %v2927
        %v5882 = vunpack.c.l.b16 %v2928
        %v5883 = vunpack.c.h.b16 %v2928
        %v5884 = vunpack.c.l.b16 %v2929
        %v5885 = vunpack.c.h.b16 %v2929
        %v5886 = vunpack.c.l.b16 %v2930
        %v5887 = vunpack.c.h.b16 %v2930
        %v5888 = vunpack.c.l.b16 %v2931
        %v5889 = vunpack.c.h.b16 %v2931
        %v5890 = vunpack.c.l.b16 %v2932
        %v5891 = vunpack.c.h.b16 %v2932
        %v5892 = vunpack.c.l.b16 %v2933
        %v5893 = vunpack.c.h.b16 %v2933
        %v5894 = vunpack.c.l.b16 %v2934
        %v5895 = vunpack.c.h.b16 %v2934
        %v5896 = vunpack.c.l.b16 %v2935
        %v5897 = vunpack.c.h.b16 %v2935
        %v5898 = vunpack.c.l.b16 %v2936
        %v5899 = vunpack.c.h.b16 %v2936
        %v5900 = vunpack.c.l.b16 %v2937
        %v5901 = vunpack.c.h.b16 %v2937
        %v5902 = vunpack.c.l.b16 %v2938
        %v5903 = vunpack.c.h.b16 %v2938
        %v5904 = vunpack.c.l.b16 %v2939
        %v5905 = vunpack.c.h.b16 %v2939
        %v5906 = vunpack.c.l.b16 %v2940
        %v5907 = vunpack.c.h.b16 %v2940
        %v5908 = vunpack.c.l.b16 %v2941
        %v5909 = vunpack.c.h.b16 %v2941
        %v5910 = vunpack.c.l.b16 %v2942
        %v5911 = vunpack.c.h.b16 %v2942
        %v5912 = vunpack.c.l.b16 %v2943
        %v5913 = vunpack.c.h.b16 %v2943
        %v5914 = vunpack.c.l.b16 %v2944
        %v5915 = vunpack.c.h.b16 %v2944
        %v5916 = vunpack.c.l.b16 %v2945
        %v5917 = vunpack.c.h.b16 %v2945
        %v5918 = vunpack.c.l.b16 %v2946
        %v5919 = vunpack.c.h.b16 %v2946
        %v5920 = vunpack.c.l.b16 %v2947
        %v5921 = vunpack.c.h.b16 %v2947
        %v5922 = vunpack.c.l.b16 %v2948
        %v5923 = vunpack.c.h.b16 %v2948
        %v5924 = vunpack.c.l.b16 %v2949
        %v5925 = vunpack.c.h.b16 %v2949
        %v5926 = vunpack.c.l.b16 %v2950
        %v5927 = vunpack.c.h.b16 %v2950
        %v5928 = vunpack.c.l.b16 %v2951
        %v5929 = vunpack.c.h.b16 %v2951
        %v5930 = vunpack.c.l.b16 %v2952
        %v5931 = vunpack.c.h.b16 %v2952
        %v5932 = vunpack.c.l.b16 %v2953
        %v5933 = vunpack.c.h.b16 %v2953
        %v5934 = vunpack.c.l.b16 %v2954
        %v5935 = vunpack.c.h.b16 %v2954
        %v5936 = vunpack.c.l.b16 %v2955
        %v5937 = vunpack.c.h.b16 %v2955
        %v5938 = vunpack.c.l.b16 %v2956
        %v5939 = vunpack.c.h.b16 %v2956
        %v5940 = vunpack.c.l.b16 %v2957
        %v5941 = vunpack.c.h.b16 %v2957
        %v5942 = vunpack.c.l.b16 %v2958
        %v5943 = vunpack.c.h.b16 %v2958
        %v5944 = vunpack.c.l.b16 %v2959
        %v5945 = vunpack.c.h.b16 %v2959
        %v5946 = vunpack.c.l.b16 %v2960
        %v5947 = vunpack.c.h.b16 %v2960
        %v5948 = vunpack.c.l.b16 %v2961
        %v5949 = vunpack.c.h.b16 %v2961
        %v5950 = vunpack.c.l.b16 %v2962
        %v5951 = vunpack.c.h.b16 %v2962
        %v5952 = vunpack.c.l.b16 %v2963
        %v5953 = vunpack.c.h.b16 %v2963
        %v5954 = vunpack.c.l.b16 %v2964
        %v5955 = vunpack.c.h.b16 %v2964
        %v5956 = vunpack.c.l.b16 %v2965
        %v5957 = vunpack.c.h.b16 %v2965
        %v5958 = vunpack.c.l.b16 %v2966
        %v5959 = vunpack.c.h.b16 %v2966
        %v5960 = vunpack.c.l.b16 %v2967
        %v5961 = vunpack.c.h.b16 %v2967
        %v5962 = vunpack.c.l.b16 %v2968
        %v5963 = vunpack.c.h.b16 %v2968
        %v5964 = vunpack.c.l.b16 %v2969
        %v5965 = vunpack.c.h.b16 %v2969
        %v5966 = vunpack.c.l.b16 %v2970
        %v5967 = vunpack.c.h.b16 %v2970
        %v5968 = vunpack.c.l.b16 %v2971
        %v5969 = vunpack.c.h.b16 %v2971
        %v5970 = vunpack.c.l.b16 %v2972
        %v5971 = vunpack.c.h.b16 %v2972
        %v5972 = vunpack.c.l.b16 %v2973
        %v5973 = vunpack.c.h.b16 %v2973
        %v5974 = vunpack.c.l.b16 %v2974
        %v5975 = vunpack.c.h.b16 %v2974
        %v5976 = vunpack.c.l.b16 %v2975
        %v5977 = vunpack.c.h.b16 %v2975
        %v5978 = vunpack.c.l.b16 %v2976
        %v5979 = vunpack.c.h.b16 %v2976
        %v5980 = vunpack.c.l.b16 %v2977
        %v5981 = vunpack.c.h.b16 %v2977
        %v5982 = vunpack.c.l.b16 %v2978
        %v5983 = vunpack.c.h.b16 %v2978
        %v5984 = vunpack.c.l.b16 %v2979
        %v5985 = vunpack.c.h.b16 %v2979
        %v5986 = vunpack.c.l.b16 %v2980
        %v5987 = vunpack.c.h.b16 %v2980
        %v5988 = vunpack.c.l.b16 %v2981
        %v5989 = vunpack.c.h.b16 %v2981
        %v5990 = vunpack.c.l.b16 %v2982
        %v5991 = vunpack.c.h.b16 %v2982
        %v5992 = vunpack.c.l.b16 %v2983
        %v5993 = vunpack.c.h.b16 %v2983
        %v5994 = vunpack.c.l.b16 %v2984
        %v5995 = vunpack.c.h.b16 %v2984
        %v5996 = vunpack.c.l.b16 %v2985
        %v5997 = vunpack.c.h.b16 %v2985
        %v5998 = vunpack.c.l.b16 %v2986
        %v5999 = vunpack.c.h.b16 %v2986
        %v6000 = vunpack.c.l.b16 %v2987
        %v6001 = vunpack.c.h.b16 %v2987
        %v6002 = vunpack.c.l.b16 %v2988
        %v6003 = vunpack.c.h.b16 %v2988
        %v6004 = vunpack.c.l.b16 %v2989
        %v6005 = vunpack.c.h.b16 %v2989
        %v6006 = vunpack.c.l.b16 %v2990
        %v6007 = vunpack.c.h.b16 %v2990
        %v6008 = vunpack.c.l.b16 %v2991
        %v6009 = vunpack.c.h.b16 %v2991
        %v6010 = vunpack.c.l.b16 %v2992
        %v6011 = vunpack.c.h.b16 %v2992
        %v6012 = vunpack.c.l.b16 %v2993
        %v6013 = vunpack.c.h.b16 %v2993
        %v6014 = vunpack.c.l.b16 %v2994
        %v6015 = vunpack.c.h.b16 %v2994
        %v6016 = vunpack.c.l.b16 %v2995
        %v6017 = vunpack.c.h.b16 %v2995
        %v6018 = vunpack.c.l.b16 %v2996
        %v6019 = vunpack.c.h.b16 %v2996
        %v6020 = vunpack.c.l.b16 %v2997
        %v6021 = vunpack.c.h.b16 %v2997
        %v6022 = vunpack.c.l.b16 %v2998
        %v6023 = vunpack.c.h.b16 %v2998
        %v6024 = vunpack.c.l.b16 %v2999
        %v6025 = vunpack.c.h.b16 %v2999
        %v6026 = vunpack.c.l.b16 %v3000
        %v6027 = vunpack.c.h.b16 %v3000
        %v6028 = vunpack.c.l.b16 %v3001
        %v6029 = vunpack.c.h.b16 %v3001
        %v6030 = vunpack.c.l.b16 %v3002
        %v6031 = vunpack.c.h.b16 %v3002
        %v6032 = vunpack.c.l.b16 %v3003
        %v6033 = vunpack.c.h.b16 %v3003
        %v6034 = vunpack.c.l.b16 %v3004
        %v6035 = vunpack.c.h.b16 %v3004
        %v6036 = vunpack.c.l.b16 %v3005
        %v6037 = vunpack.c.h.b16 %v3005
        %v6038 = vunpack.c.l.b16 %v3006
        %v6039 = vunpack.c.h.b16 %v3006
        %v6040 = vunpack.c.l.b16 %v3007
        %v6041 = vunpack.c.h.b16 %v3007
        %v6042 = vunpack.c.l.b16 %v3008
        %v6043 = vunpack.c.h.b16 %v3008
        %v6044 = vunpack.c.l.b16 %v3009
        %v6045 = vunpack.c.h.b16 %v3009
        %v6046 = vunpack.c.l.b16 %v3010
        %v6047 = vunpack.c.h.b16 %v3010
        %v6048 = vunpack.c.l.b16 %v3011
        %v6049 = vunpack.c.h.b16 %v3011
        %v6050 = vunpack.c.l.b16 %v3012
        %v6051 = vunpack.c.h.b16 %v3012
        %v6052 = vunpack.c.l.b16 %v3013
        %v6053 = vunpack.c.h.b16 %v3013
        %v6054 = vunpack.c.l.b16 %v3014
        %v6055 = vunpack.c.h.b16 %v3014
        %v6056 = vunpack.c.l.b16 %v3015
        %v6057 = vunpack.c.h.b16 %v3015
        %v6058 = vunpack.c.l.b16 %v3016
        %v6059 = vunpack.c.h.b16 %v3016
        %v6060 = vunpack.c.l.b16 %v3017
        %v6061 = vunpack.c.h.b16 %v3017
        %v6062 = vunpack.c.l.b16 %v3018
        %v6063 = vunpack.c.h.b16 %v3018
        %v6064 = vunpack.c.l.b16 %v3019
        %v6065 = vunpack.c.h.b16 %v3019
        %v6066 = vunpack.c.l.b16 %v3020
        %v6067 = vunpack.c.h.b16 %v3020
        %v6068 = vunpack.c.l.b16 %v3021
        %v6069 = vunpack.c.h.b16 %v3021
        %v6070 = vunpack.c.l.b16 %v3022
        %v6071 = vunpack.c.h.b16 %v3022
        %v6072 = vunpack.c.l.b16 %v3023
        %v6073 = vunpack.c.h.b16 %v3023
        %v6074 = vunpack.c.l.b16 %v3024
        %v6075 = vunpack.c.h.b16 %v3024
        %v6076 = vunpack.c.l.b16 %v3025
        %v6077 = vunpack.c.h.b16 %v3025
        %v6078 = vunpack.c.l.b16 %v3026
        %v6079 = vunpack.c.h.b16 %v3026
        %v6080 = vunpack.c.l.b16 %v3027
        %v6081 = vunpack.c.h.b16 %v3027
        %v6082 = vunpack.c.l.b16 %v3028
        %v6083 = vunpack.c.h.b16 %v3028
        %v6084 = vunpack.c.l.b16 %v3029
        %v6085 = vunpack.c.h.b16 %v3029
        %v6086 = vunpack.c.l.b16 %v3030
        %v6087 = vunpack.c.h.b16 %v3030
        %v6088 = vunpack.c.l.b16 %v3031
        %v6089 = vunpack.c.h.b16 %v3031
        %v6090 = vunpack.c.l.b16 %v3032
        %v6091 = vunpack.c.h.b16 %v3032
        %v6092 = vunpack.c.l.b16 %v3033
        %v6093 = vunpack.c.h.b16 %v3033
        %v6094 = vunpack.c.l.b16 %v3034
        %v6095 = vunpack.c.h.b16 %v3034
        %v6096 = vunpack.c.l.b16 %v3035
        %v6097 = vunpack.c.h.b16 %v3035
        %v6098 = vunpack.c.l.b16 %v3036
        %v6099 = vunpack.c.h.b16 %v3036
        %v6100 = vunpack.c.l.b16 %v3037
        %v6101 = vunpack.c.h.b16 %v3037
        %v6102 = vunpack.c.l.b16 %v3038
        %v6103 = vunpack.c.h.b16 %v3038
        %v6104 = vunpack.c.l.b16 %v3039
        %v6105 = vunpack.c.h.b16 %v3039
        %v6106 = vunpack.c.l.b16 %v3040
        %v6107 = vunpack.c.h.b16 %v3040
        %v6108 = vunpack.c.l.b16 %v3041
        %v6109 = vunpack.c.h.b16 %v3041
        %v6110 = vunpack.c.l.b16 %v3042
        %v6111 = vunpack.c.h.b16 %v3042
        %v6112 = vunpack.c.l.b16 %v3043
        %v6113 = vunpack.c.h.b16 %v3043
        %v6114 = vunpack.c.l.b16 %v3044
        %v6115 = vunpack.c.h.b16 %v3044
        %v6116 = vunpack.c.l.b16 %v3045
        %v6117 = vunpack.c.h.b16 %v3045
        %v6118 = vunpack.c.l.b16 %v3046
        %v6119 = vunpack.c.h.b16 %v3046
        %v6120 = vunpack.c.l.b16 %v3047
        %v6121 = vunpack.c.h.b16 %v3047
        %v6122 = vunpack.c.l.b16 %v3048
        %v6123 = vunpack.c.h.b16 %v3048
        %v6124 = vunpack.c.l.b16 %v3049
        %v6125 = vunpack.c.h.b16 %v3049
        %v6126 = vunpack.c.l.b16 %v3050
        %v6127 = vunpack.c.h.b16 %v3050
        %v6128 = vunpack.c.l.b16 %v3051
        %v6129 = vunpack.c.h.b16 %v3051
        %v6130 = vunpack.c.l.b16 %v3052
        %v6131 = vunpack.c.h.b16 %v3052
        %v6132 = vunpack.c.l.b16 %v3053
        %v6133 = vunpack.c.h.b16 %v3053
        %v6134 = vunpack.c.l.b16 %v3054
        %v6135 = vunpack.c.h.b16 %v3054
        %v6136 = vunpack.c.l.b16 %v3055
        %v6137 = vunpack.c.h.b16 %v3055
        %v6138 = vunpack.c.l.b16 %v3056
        %v6139 = vunpack.c.h.b16 %v3056
        %v6140 = vunpack.c.l.b16 %v3057
        %v6141 = vunpack.c.h.b16 %v3057
        %v6142 = vunpack.c.l.b16 %v3058
        %v6143 = vunpack.c.h.b16 %v3058
        %v6144 = vunpack.c.l.b16 %v3059
        %v6145 = vunpack.c.h.b16 %v3059
        %v6146 = vunpack.c.l.b16 %v3060
        %v6147 = vunpack.c.h.b16 %v3060
        %v6148 = vunpack.c.l.b16 %v3061
        %v6149 = vunpack.c.h.b16 %v3061
        %v6150 = vunpack.c.l.b16 %v3062
        %v6151 = vunpack.c.h.b16 %v3062
        %v6152 = vunpack.c.l.b16 %v3063
        %v6153 = vunpack.c.h.b16 %v3063
        %v6154 = vunpack.c.l.b16 %v3064
        %v6155 = vunpack.c.h.b16 %v3064
        %v6156 = vunpack.c.l.b16 %v3065
        %v6157 = vunpack.c.h.b16 %v3065
        %v6158 = vunpack.c.l.b16 %v3066
        %v6159 = vunpack.c.h.b16 %v3066
        %v6160 = vunpack.c.l.b16 %v3067
        %v6161 = vunpack.c.h.b16 %v3067
        %v6162 = vunpack.c.l.b16 %v3068
        %v6163 = vunpack.c.h.b16 %v3068
        %v6164 = vunpack.c.l.b16 %v3069
        %v6165 = vunpack.c.h.b16 %v3069
        %v6166 = vunpack.c.l.b16 %v3070
        %v6167 = vunpack.c.h.b16 %v3070
        %v6168 = vunpack.c.l.b16 %v3071
        %v6169 = vunpack.c.h.b16 %v3071
        %v6170 = vunpack.c.l.b16 %v3072
        %v6171 = vunpack.c.h.b16 %v3072
        %v6172 = vunpack.c.l.b16 %v3073
        %v6173 = vunpack.c.h.b16 %v3073
        %v6174 = vunpack.c.l.b16 %v3074
        %v6175 = vunpack.c.h.b16 %v3074
        %v6176 = vunpack.c.l.b16 %v3075
        %v6177 = vunpack.c.h.b16 %v3075
        %v6178 = vunpack.c.l.b16 %v3076
        %v6179 = vunpack.c.h.b16 %v3076
        %v6180 = vunpack.c.l.b16 %v3077
        %v6181 = vunpack.c.h.b16 %v3077
        %v6182 = vunpack.c.l.b16 %v3078
        %v6183 = vunpack.c.h.b16 %v3078
        %v6184 = vunpack.c.l.b16 %v3079
        %v6185 = vunpack.c.h.b16 %v3079
        %v6186 = vunpack.c.l.b16 %v3080
        %v6187 = vunpack.c.h.b16 %v3080
        %v6188 = vunpack.c.l.b16 %v3081
        %v6189 = vunpack.c.h.b16 %v3081
        %v6190 = vunpack.c.l.b16 %v3082
        %v6191 = vunpack.c.h.b16 %v3082
        %v6192 = vunpack.c.l.b16 %v3083
        %v6193 = vunpack.c.h.b16 %v3083
        %v6194 = vunpack.c.l.b16 %v3084
        %v6195 = vunpack.c.h.b16 %v3084
        %v6196 = vunpack.c.l.b16 %v3085
        %v6197 = vunpack.c.h.b16 %v3085
        %v6198 = vunpack.c.l.b16 %v3086
        %v6199 = vunpack.c.h.b16 %v3086
        %v6200 = vunpack.c.l.b16 %v3087
        %v6201 = vunpack.c.h.b16 %v3087
        %v6202 = vpack.c.b16 %v4162, %v4154
        %v6203 = vpack.c.b16 %v4163, %v4155
        %v6204 = vpack.c.b16 %v4164, %v4156
        %v6205 = vpack.c.b16 %v4165, %v4157
        %v6206 = vpack.c.b16 %v4166, %v4158
        %v6207 = vpack.c.b16 %v4167, %v4159
        %v6208 = vpack.c.b16 %v4168, %v4160
        %v6209 = vpack.c.b16 %v4169, %v4161
        %v6210 = vpack.c.b16 %v4178, %v4170
        %v6211 = vpack.c.b16 %v4179, %v4171
        %v6212 = vpack.c.b16 %v4180, %v4172
        %v6213 = vpack.c.b16 %v4181, %v4173
        %v6214 = vpack.c.b16 %v4182, %v4174
        %v6215 = vpack.c.b16 %v4183, %v4175
        %v6216 = vpack.c.b16 %v4184, %v4176
        %v6217 = vpack.c.b16 %v4185, %v4177
        %v6218 = vpack.c.b16 %v4194, %v4186
        %v6219 = vpack.c.b16 %v4195, %v4187
        %v6220 = vpack.c.b16 %v4196, %v4188
        %v6221 = vpack.c.b16 %v4197, %v4189
        %v6222 = vpack.c.b16 %v4198, %v4190
        %v6223 = vpack.c.b16 %v4199, %v4191
        %v6224 = vpack.c.b16 %v4200, %v4192
        %v6225 = vpack.c.b16 %v4201, %v4193
        %v6226 = vpack.c.b16 %v4210, %v4202
        %v6227 = vpack.c.b16 %v4211, %v4203
        %v6228 = vpack.c.b16 %v4212, %v4204
        %v6229 = vpack.c.b16 %v4213, %v4205
        %v6230 = vpack.c.b16 %v4214, %v4206
        %v6231 = vpack.c.b16 %v4215, %v4207
        %v6232 = vpack.c.b16 %v4216, %v4208
        %v6233 = vpack.c.b16 %v4217, %v4209
        %v6234 = vpack.c.b16 %v4226, %v4218
        %v6235 = vpack.c.b16 %v4227, %v4219
        %v6236 = vpack.c.b16 %v4228, %v4220
        %v6237 = vpack.c.b16 %v4229, %v4221
        %v6238 = vpack.c.b16 %v4230, %v4222
        %v6239 = vpack.c.b16 %v4231, %v4223
        %v6240 = vpack.c.b16 %v4232, %v4224
        %v6241 = vpack.c.b16 %v4233, %v4225
        %v6242 = vpack.c.b16 %v4242, %v4234
        %v6243 = vpack.c.b16 %v4243, %v4235
        %v6244 = vpack.c.b16 %v4244, %v4236
        %v6245 = vpack.c.b16 %v4245, %v4237
        %v6246 = vpack.c.b16 %v4246, %v4238
        %v6247 = vpack.c.b16 %v4247, %v4239
        %v6248 = vpack.c.b16 %v4248, %v4240
        %v6249 = vpack.c.b16 %v4249, %v4241
        %v6250 = vpack.c.b16 %v4258, %v4250
        %v6251 = vpack.c.b16 %v4259, %v4251
        %v6252 = vpack.c.b16 %v4260, %v4252
        %v6253 = vpack.c.b16 %v4261, %v4253
        %v6254 = vpack.c.b16 %v4262, %v4254
        %v6255 = vpack.c.b16 %v4263, %v4255
        %v6256 = vpack.c.b16 %v4264, %v4256
        %v6257 = vpack.c.b16 %v4265, %v4257
        %v6258 = vpack.c.b16 %v4274, %v4266
        %v6259 = vpack.c.b16 %v4275, %v4267
        %v6260 = vpack.c.b16 %v4276, %v4268
        %v6261 = vpack.c.b16 %v4277, %v4269
        %v6262 = vpack.c.b16 %v4278, %v4270
        %v6263 = vpack.c.b16 %v4279, %v4271
        %v6264 = vpack.c.b16 %v4280, %v4272
        %v6265 = vpack.c.b16 %v4281, %v4273
        %v6266 = vpack.c.b16 %v4290, %v4282
        %v6267 = vpack.c.b16 %v4291, %v4283
        %v6268 = vpack.c.b16 %v4292, %v4284
        %v6269 = vpack.c.b16 %v4293, %v4285
        %v6270 = vpack.c.b16 %v4294, %v4286
        %v6271 = vpack.c.b16 %v4295, %v4287
        %v6272 = vpack.c.b16 %v4296, %v4288
        %v6273 = vpack.c.b16 %v4297, %v4289
        %v6274 = vpack.c.b16 %v4306, %v4298
        %v6275 = vpack.c.b16 %v4307, %v4299
        %v6276 = vpack.c.b16 %v4308, %v4300
        %v6277 = vpack.c.b16 %v4309, %v4301
        %v6278 = vpack.c.b16 %v4310, %v4302
        %v6279 = vpack.c.b16 %v4311, %v4303
        %v6280 = vpack.c.b16 %v4312, %v4304
        %v6281 = vpack.c.b16 %v4313, %v4305
        %v6282 = vpack.c.b16 %v4322, %v4314
        %v6283 = vpack.c.b16 %v4323, %v4315
        %v6284 = vpack.c.b16 %v4324, %v4316
        %v6285 = vpack.c.b16 %v4325, %v4317
        %v6286 = vpack.c.b16 %v4326, %v4318
        %v6287 = vpack.c.b16 %v4327, %v4319
        %v6288 = vpack.c.b16 %v4328, %v4320
        %v6289 = vpack.c.b16 %v4329, %v4321
        %v6290 = vpack.c.b16 %v4338, %v4330
        %v6291 = vpack.c.b16 %v4339, %v4331
        %v6292 = vpack.c.b16 %v4340, %v4332
        %v6293 = vpack.c.b16 %v4341, %v4333
        %v6294 = vpack.c.b16 %v4342, %v4334
        %v6295 = vpack.c.b16 %v4343, %v4335
        %v6296 = vpack.c.b16 %v4344, %v4336
        %v6297 = vpack.c.b16 %v4345, %v4337
        %v6298 = vpack.c.b16 %v4354, %v4346
        %v6299 = vpack.c.b16 %v4355, %v4347
        %v6300 = vpack.c.b16 %v4356, %v4348
        %v6301 = vpack.c.b16 %v4357, %v4349
        %v6302 = vpack.c.b16 %v4358, %v4350
        %v6303 = vpack.c.b16 %v4359, %v4351
        %v6304 = vpack.c.b16 %v4360, %v4352
        %v6305 = vpack.c.b16 %v4361, %v4353
        %v6306 = vpack.c.b16 %v4370, %v4362
        %v6307 = vpack.c.b16 %v4371, %v4363
        %v6308 = vpack.c.b16 %v4372, %v4364
        %v6309 = vpack.c.b16 %v4373, %v4365
        %v6310 = vpack.c.b16 %v4374, %v4366
        %v6311 = vpack.c.b16 %v4375, %v4367
        %v6312 = vpack.c.b16 %v4376, %v4368
        %v6313 = vpack.c.b16 %v4377, %v4369
        %v6314 = vpack.c.b16 %v4386, %v4378
        %v6315 = vpack.c.b16 %v4387, %v4379
        %v6316 = vpack.c.b16 %v4388, %v4380
        %v6317 = vpack.c.b16 %v4389, %v4381
        %v6318 = vpack.c.b16 %v4390, %v4382
        %v6319 = vpack.c.b16 %v4391, %v4383
        %v6320 = vpack.c.b16 %v4392, %v4384
        %v6321 = vpack.c.b16 %v4393, %v4385
        %v6322 = vpack.c.b16 %v4402, %v4394
        %v6323 = vpack.c.b16 %v4403, %v4395
        %v6324 = vpack.c.b16 %v4404, %v4396
        %v6325 = vpack.c.b16 %v4405, %v4397
        %v6326 = vpack.c.b16 %v4406, %v4398
        %v6327 = vpack.c.b16 %v4407, %v4399
        %v6328 = vpack.c.b16 %v4408, %v4400
        %v6329 = vpack.c.b16 %v4409, %v4401
        %v6330 = vpack.c.b16 %v4418, %v4410
        %v6331 = vpack.c.b16 %v4419, %v4411
        %v6332 = vpack.c.b16 %v4420, %v4412
        %v6333 = vpack.c.b16 %v4421, %v4413
        %v6334 = vpack.c.b16 %v4422, %v4414
        %v6335 = vpack.c.b16 %v4423, %v4415
        %v6336 = vpack.c.b16 %v4424, %v4416
        %v6337 = vpack.c.b16 %v4425, %v4417
        %v6338 = vpack.c.b16 %v4434, %v4426
        %v6339 = vpack.c.b16 %v4435, %v4427
        %v6340 = vpack.c.b16 %v4436, %v4428
        %v6341 = vpack.c.b16 %v4437, %v4429
        %v6342 = vpack.c.b16 %v4438, %v4430
        %v6343 = vpack.c.b16 %v4439, %v4431
        %v6344 = vpack.c.b16 %v4440, %v4432
        %v6345 = vpack.c.b16 %v4441, %v4433
        %v6346 = vpack.c.b16 %v4450, %v4442
        %v6347 = vpack.c.b16 %v4451, %v4443
        %v6348 = vpack.c.b16 %v4452, %v4444
        %v6349 = vpack.c.b16 %v4453, %v4445
        %v6350 = vpack.c.b16 %v4454, %v4446
        %v6351 = vpack.c.b16 %v4455, %v4447
        %v6352 = vpack.c.b16 %v4456, %v4448
        %v6353 = vpack.c.b16 %v4457, %v4449
        %v6354 = vpack.c.b16 %v4466, %v4458
        %v6355 = vpack.c.b16 %v4467, %v4459
        %v6356 = vpack.c.b16 %v4468, %v4460
        %v6357 = vpack.c.b16 %v4469, %v4461
        %v6358 = vpack.c.b16 %v4470, %v4462
        %v6359 = vpack.c.b16 %v4471, %v4463
        %v6360 = vpack.c.b16 %v4472, %v4464
        %v6361 = vpack.c.b16 %v4473, %v4465
        %v6362 = vpack.c.b16 %v4482, %v4474
        %v6363 = vpack.c.b16 %v4483, %v4475
        %v6364 = vpack.c.b16 %v4484, %v4476
        %v6365 = vpack.c.b16 %v4485, %v4477
        %v6366 = vpack.c.b16 %v4486, %v4478
        %v6367 = vpack.c.b16 %v4487, %v4479
        %v6368 = vpack.c.b16 %v4488, %v4480
        %v6369 = vpack.c.b16 %v4489, %v4481
        %v6370 = vpack.c.b16 %v4498, %v4490
        %v6371 = vpack.c.b16 %v4499, %v4491
        %v6372 = vpack.c.b16 %v4500, %v4492
        %v6373 = vpack.c.b16 %v4501, %v4493
        %v6374 = vpack.c.b16 %v4502, %v4494
        %v6375 = vpack.c.b16 %v4503, %v4495
        %v6376 = vpack.c.b16 %v4504, %v4496
        %v6377 = vpack.c.b16 %v4505, %v4497
        %v6378 = vpack.c.b16 %v4514, %v4506
        %v6379 = vpack.c.b16 %v4515, %v4507
        %v6380 = vpack.c.b16 %v4516, %v4508
        %v6381 = vpack.c.b16 %v4517, %v4509
        %v6382 = vpack.c.b16 %v4518, %v4510
        %v6383 = vpack.c.b16 %v4519, %v4511
        %v6384 = vpack.c.b16 %v4520, %v4512
        %v6385 = vpack.c.b16 %v4521, %v4513
        %v6386 = vpack.c.b16 %v4530, %v4522
        %v6387 = vpack.c.b16 %v4531, %v4523
        %v6388 = vpack.c.b16 %v4532, %v4524
        %v6389 = vpack.c.b16 %v4533, %v4525
        %v6390 = vpack.c.b16 %v4534, %v4526
        %v6391 = vpack.c.b16 %v4535, %v4527
        %v6392 = vpack.c.b16 %v4536, %v4528
        %v6393 = vpack.c.b16 %v4537, %v4529
        %v6394 = vpack.c.b16 %v4546, %v4538
        %v6395 = vpack.c.b16 %v4547, %v4539
        %v6396 = vpack.c.b16 %v4548, %v4540
        %v6397 = vpack.c.b16 %v4549, %v4541
        %v6398 = vpack.c.b16 %v4550, %v4542
        %v6399 = vpack.c.b16 %v4551, %v4543
        %v6400 = vpack.c.b16 %v4552, %v4544
        %v6401 = vpack.c.b16 %v4553, %v4545
        %v6402 = vpack.c.b16 %v4562, %v4554
        %v6403 = vpack.c.b16 %v4563, %v4555
        %v6404 = vpack.c.b16 %v4564, %v4556
        %v6405 = vpack.c.b16 %v4565, %v4557
        %v6406 = vpack.c.b16 %v4566, %v4558
        %v6407 = vpack.c.b16 %v4567, %v4559
        %v6408 = vpack.c.b16 %v4568, %v4560
        %v6409 = vpack.c.b16 %v4569, %v4561
        %v6410 = vpack.c.b16 %v4578, %v4570
        %v6411 = vpack.c.b16 %v4579, %v4571
        %v6412 = vpack.c.b16 %v4580, %v4572
        %v6413 = vpack.c.b16 %v4581, %v4573
        %v6414 = vpack.c.b16 %v4582, %v4574
        %v6415 = vpack.c.b16 %v4583, %v4575
        %v6416 = vpack.c.b16 %v4584, %v4576
        %v6417 = vpack.c.b16 %v4585, %v4577
        %v6418 = vpack.c.b16 %v4594, %v4586
        %v6419 = vpack.c.b16 %v4595, %v4587
        %v6420 = vpack.c.b16 %v4596, %v4588
        %v6421 = vpack.c.b16 %v4597, %v4589
        %v6422 = vpack.c.b16 %v4598, %v4590
        %v6423 = vpack.c.b16 %v4599, %v4591
        %v6424 = vpack.c.b16 %v4600, %v4592
        %v6425 = vpack.c.b16 %v4601, %v4593
        %v6426 = vpack.c.b16 %v4610, %v4602
        %v6427 = vpack.c.b16 %v4611, %v4603
        %v6428 = vpack.c.b16 %v4612, %v4604
        %v6429 = vpack.c.b16 %v4613, %v4605
        %v6430 = vpack.c.b16 %v4614, %v4606
        %v6431 = vpack.c.b16 %v4615, %v4607
        %v6432 = vpack.c.b16 %v4616, %v4608
        %v6433 = vpack.c.b16 %v4617, %v4609
        %v6434 = vpack.c.b16 %v4626, %v4618
        %v6435 = vpack.c.b16 %v4627, %v4619
        %v6436 = vpack.c.b16 %v4628, %v4620
        %v6437 = vpack.c.b16 %v4629, %v4621
        %v6438 = vpack.c.b16 %v4630, %v4622
        %v6439 = vpack.c.b16 %v4631, %v4623
        %v6440 = vpack.c.b16 %v4632, %v4624
        %v6441 = vpack.c.b16 %v4633, %v4625
        %v6442 = vpack.c.b16 %v4642, %v4634
        %v6443 = vpack.c.b16 %v4643, %v4635
        %v6444 = vpack.c.b16 %v4644, %v4636
        %v6445 = vpack.c.b16 %v4645, %v4637
        %v6446 = vpack.c.b16 %v4646, %v4638
        %v6447 = vpack.c.b16 %v4647, %v4639
        %v6448 = vpack.c.b16 %v4648, %v4640
        %v6449 = vpack.c.b16 %v4649, %v4641
        %v6450 = vpack.c.b16 %v4658, %v4650
        %v6451 = vpack.c.b16 %v4659, %v4651
        %v6452 = vpack.c.b16 %v4660, %v4652
        %v6453 = vpack.c.b16 %v4661, %v4653
        %v6454 = vpack.c.b16 %v4662, %v4654
        %v6455 = vpack.c.b16 %v4663, %v4655
        %v6456 = vpack.c.b16 %v4664, %v4656
        %v6457 = vpack.c.b16 %v4665, %v4657
        %v6458 = vpack.c.b16 %v4674, %v4666
        %v6459 = vpack.c.b16 %v4675, %v4667
        %v6460 = vpack.c.b16 %v4676, %v4668
        %v6461 = vpack.c.b16 %v4677, %v4669
        %v6462 = vpack.c.b16 %v4678, %v4670
        %v6463 = vpack.c.b16 %v4679, %v4671
        %v6464 = vpack.c.b16 %v4680, %v4672
        %v6465 = vpack.c.b16 %v4681, %v4673
        %v6466 = vpack.c.b16 %v4690, %v4682
        %v6467 = vpack.c.b16 %v4691, %v4683
        %v6468 = vpack.c.b16 %v4692, %v4684
        %v6469 = vpack.c.b16 %v4693, %v4685
        %v6470 = vpack.c.b16 %v4694, %v4686
        %v6471 = vpack.c.b16 %v4695, %v4687
        %v6472 = vpack.c.b16 %v4696, %v4688
        %v6473 = vpack.c.b16 %v4697, %v4689
        %v6474 = vpack.c.b16 %v4706, %v4698
        %v6475 = vpack.c.b16 %v4707, %v4699
        %v6476 = vpack.c.b16 %v4708, %v4700
        %v6477 = vpack.c.b16 %v4709, %v4701
        %v6478 = vpack.c.b16 %v4710, %v4702
        %v6479 = vpack.c.b16 %v4711, %v4703
        %v6480 = vpack.c.b16 %v4712, %v4704
        %v6481 = vpack.c.b16 %v4713, %v4705
        %v6482 = vpack.c.b16 %v4722, %v4714
        %v6483 = vpack.c.b16 %v4723, %v4715
        %v6484 = vpack.c.b16 %v4724, %v4716
        %v6485 = vpack.c.b16 %v4725, %v4717
        %v6486 = vpack.c.b16 %v4726, %v4718
        %v6487 = vpack.c.b16 %v4727, %v4719
        %v6488 = vpack.c.b16 %v4728, %v4720
        %v6489 = vpack.c.b16 %v4729, %v4721
        %v6490 = vpack.c.b16 %v4738, %v4730
        %v6491 = vpack.c.b16 %v4739, %v4731
        %v6492 = vpack.c.b16 %v4740, %v4732
        %v6493 = vpack.c.b16 %v4741, %v4733
        %v6494 = vpack.c.b16 %v4742, %v4734
        %v6495 = vpack.c.b16 %v4743, %v4735
        %v6496 = vpack.c.b16 %v4744, %v4736
        %v6497 = vpack.c.b16 %v4745, %v4737
        %v6498 = vpack.c.b16 %v4754, %v4746
        %v6499 = vpack.c.b16 %v4755, %v4747
        %v6500 = vpack.c.b16 %v4756, %v4748
        %v6501 = vpack.c.b16 %v4757, %v4749
        %v6502 = vpack.c.b16 %v4758, %v4750
        %v6503 = vpack.c.b16 %v4759, %v4751
        %v6504 = vpack.c.b16 %v4760, %v4752
        %v6505 = vpack.c.b16 %v4761, %v4753
        %v6506 = vpack.c.b16 %v4770, %v4762
        %v6507 = vpack.c.b16 %v4771, %v4763
        %v6508 = vpack.c.b16 %v4772, %v4764
        %v6509 = vpack.c.b16 %v4773, %v4765
        %v6510 = vpack.c.b16 %v4774, %v4766
        %v6511 = vpack.c.b16 %v4775, %v4767
        %v6512 = vpack.c.b16 %v4776, %v4768
        %v6513 = vpack.c.b16 %v4777, %v4769
        %v6514 = vpack.c.b16 %v4786, %v4778
        %v6515 = vpack.c.b16 %v4787, %v4779
        %v6516 = vpack.c.b16 %v4788, %v4780
        %v6517 = vpack.c.b16 %v4789, %v4781
        %v6518 = vpack.c.b16 %v4790, %v4782
        %v6519 = vpack.c.b16 %v4791, %v4783
        %v6520 = vpack.c.b16 %v4792, %v4784
        %v6521 = vpack.c.b16 %v4793, %v4785
        %v6522 = vpack.c.b16 %v4802, %v4794
        %v6523 = vpack.c.b16 %v4803, %v4795
        %v6524 = vpack.c.b16 %v4804, %v4796
        %v6525 = vpack.c.b16 %v4805, %v4797
        %v6526 = vpack.c.b16 %v4806, %v4798
        %v6527 = vpack.c.b16 %v4807, %v4799
        %v6528 = vpack.c.b16 %v4808, %v4800
        %v6529 = vpack.c.b16 %v4809, %v4801
        %v6530 = vpack.c.b16 %v4818, %v4810
        %v6531 = vpack.c.b16 %v4819, %v4811
        %v6532 = vpack.c.b16 %v4820, %v4812
        %v6533 = vpack.c.b16 %v4821, %v4813
        %v6534 = vpack.c.b16 %v4822, %v4814
        %v6535 = vpack.c.b16 %v4823, %v4815
        %v6536 = vpack.c.b16 %v4824, %v4816
        %v6537 = vpack.c.b16 %v4825, %v4817
        %v6538 = vpack.c.b16 %v4834, %v4826
        %v6539 = vpack.c.b16 %v4835, %v4827
        %v6540 = vpack.c.b16 %v4836, %v4828
        %v6541 = vpack.c.b16 %v4837, %v4829
        %v6542 = vpack.c.b16 %v4838, %v4830
        %v6543 = vpack.c.b16 %v4839, %v4831
        %v6544 = vpack.c.b16 %v4840, %v4832
        %v6545 = vpack.c.b16 %v4841, %v4833
        %v6546 = vpack.c.b16 %v4850, %v4842
        %v6547 = vpack.c.b16 %v4851, %v4843
        %v6548 = vpack.c.b16 %v4852, %v4844
        %v6549 = vpack.c.b16 %v4853, %v4845
        %v6550 = vpack.c.b16 %v4854, %v4846
        %v6551 = vpack.c.b16 %v4855, %v4847
        %v6552 = vpack.c.b16 %v4856, %v4848
        %v6553 = vpack.c.b16 %v4857, %v4849
        %v6554 = vpack.c.b16 %v4866, %v4858
        %v6555 = vpack.c.b16 %v4867, %v4859
        %v6556 = vpack.c.b16 %v4868, %v4860
        %v6557 = vpack.c.b16 %v4869, %v4861
        %v6558 = vpack.c.b16 %v4870, %v4862
        %v6559 = vpack.c.b16 %v4871, %v4863
        %v6560 = vpack.c.b16 %v4872, %v4864
        %v6561 = vpack.c.b16 %v4873, %v4865
        %v6562 = vpack.c.b16 %v4882, %v4874
        %v6563 = vpack.c.b16 %v4883, %v4875
        %v6564 = vpack.c.b16 %v4884, %v4876
        %v6565 = vpack.c.b16 %v4885, %v4877
        %v6566 = vpack.c.b16 %v4886, %v4878
        %v6567 = vpack.c.b16 %v4887, %v4879
        %v6568 = vpack.c.b16 %v4888, %v4880
        %v6569 = vpack.c.b16 %v4889, %v4881
        %v6570 = vpack.c.b16 %v4898, %v4890
        %v6571 = vpack.c.b16 %v4899, %v4891
        %v6572 = vpack.c.b16 %v4900, %v4892
        %v6573 = vpack.c.b16 %v4901, %v4893
        %v6574 = vpack.c.b16 %v4902, %v4894
        %v6575 = vpack.c.b16 %v4903, %v4895
        %v6576 = vpack.c.b16 %v4904, %v4896
        %v6577 = vpack.c.b16 %v4905, %v4897
        %v6578 = vpack.c.b16 %v4914, %v4906
        %v6579 = vpack.c.b16 %v4915, %v4907
        %v6580 = vpack.c.b16 %v4916, %v4908
        %v6581 = vpack.c.b16 %v4917, %v4909
        %v6582 = vpack.c.b16 %v4918, %v4910
        %v6583 = vpack.c.b16 %v4919, %v4911
        %v6584 = vpack.c.b16 %v4920, %v4912
        %v6585 = vpack.c.b16 %v4921, %v4913
        %v6586 = vpack.c.b16 %v4930, %v4922
        %v6587 = vpack.c.b16 %v4931, %v4923
        %v6588 = vpack.c.b16 %v4932, %v4924
        %v6589 = vpack.c.b16 %v4933, %v4925
        %v6590 = vpack.c.b16 %v4934, %v4926
        %v6591 = vpack.c.b16 %v4935, %v4927
        %v6592 = vpack.c.b16 %v4936, %v4928
        %v6593 = vpack.c.b16 %v4937, %v4929
        %v6594 = vpack.c.b16 %v4946, %v4938
        %v6595 = vpack.c.b16 %v4947, %v4939
        %v6596 = vpack.c.b16 %v4948, %v4940
        %v6597 = vpack.c.b16 %v4949, %v4941
        %v6598 = vpack.c.b16 %v4950, %v4942
        %v6599 = vpack.c.b16 %v4951, %v4943
        %v6600 = vpack.c.b16 %v4952, %v4944
        %v6601 = vpack.c.b16 %v4953, %v4945
        %v6602 = vpack.c.b16 %v4962, %v4954
        %v6603 = vpack.c.b16 %v4963, %v4955
        %v6604 = vpack.c.b16 %v4964, %v4956
        %v6605 = vpack.c.b16 %v4965, %v4957
        %v6606 = vpack.c.b16 %v4966, %v4958
        %v6607 = vpack.c.b16 %v4967, %v4959
        %v6608 = vpack.c.b16 %v4968, %v4960
        %v6609 = vpack.c.b16 %v4969, %v4961
        %v6610 = vpack.c.b16 %v4978, %v4970
        %v6611 = vpack.c.b16 %v4979, %v4971
        %v6612 = vpack.c.b16 %v4980, %v4972
        %v6613 = vpack.c.b16 %v4981, %v4973
        %v6614 = vpack.c.b16 %v4982, %v4974
        %v6615 = vpack.c.b16 %v4983, %v4975
        %v6616 = vpack.c.b16 %v4984, %v4976
        %v6617 = vpack.c.b16 %v4985, %v4977
        %v6618 = vpack.c.b16 %v4994, %v4986
        %v6619 = vpack.c.b16 %v4995, %v4987
        %v6620 = vpack.c.b16 %v4996, %v4988
        %v6621 = vpack.c.b16 %v4997, %v4989
        %v6622 = vpack.c.b16 %v4998, %v4990
        %v6623 = vpack.c.b16 %v4999, %v4991
        %v6624 = vpack.c.b16 %v5000, %v4992
        %v6625 = vpack.c.b16 %v5001, %v4993
        %v6626 = vpack.c.b16 %v5010, %v5002
        %v6627 = vpack.c.b16 %v5011, %v5003
        %v6628 = vpack.c.b16 %v5012, %v5004
        %v6629 = vpack.c.b16 %v5013, %v5005
        %v6630 = vpack.c.b16 %v5014, %v5006
        %v6631 = vpack.c.b16 %v5015, %v5007
        %v6632 = vpack.c.b16 %v5016, %v5008
        %v6633 = vpack.c.b16 %v5017, %v5009
        %v6634 = vpack.c.b16 %v5026, %v5018
        %v6635 = vpack.c.b16 %v5027, %v5019
        %v6636 = vpack.c.b16 %v5028, %v5020
        %v6637 = vpack.c.b16 %v5029, %v5021
        %v6638 = vpack.c.b16 %v5030, %v5022
        %v6639 = vpack.c.b16 %v5031, %v5023
        %v6640 = vpack.c.b16 %v5032, %v5024
        %v6641 = vpack.c.b16 %v5033, %v5025
        %v6642 = vpack.c.b16 %v5042, %v5034
        %v6643 = vpack.c.b16 %v5043, %v5035
        %v6644 = vpack.c.b16 %v5044, %v5036
        %v6645 = vpack.c.b16 %v5045, %v5037
        %v6646 = vpack.c.b16 %v5046, %v5038
        %v6647 = vpack.c.b16 %v5047, %v5039
        %v6648 = vpack.c.b16 %v5048, %v5040
        %v6649 = vpack.c.b16 %v5049, %v5041
        %v6650 = vpack.c.b16 %v5058, %v5050
        %v6651 = vpack.c.b16 %v5059, %v5051
        %v6652 = vpack.c.b16 %v5060, %v5052
        %v6653 = vpack.c.b16 %v5061, %v5053
        %v6654 = vpack.c.b16 %v5062, %v5054
        %v6655 = vpack.c.b16 %v5063, %v5055
        %v6656 = vpack.c.b16 %v5064, %v5056
        %v6657 = vpack.c.b16 %v5065, %v5057
        %v6658 = vpack.c.b16 %v5074, %v5066
        %v6659 = vpack.c.b16 %v5075, %v5067
        %v6660 = vpack.c.b16 %v5076, %v5068
        %v6661 = vpack.c.b16 %v5077, %v5069
        %v6662 = vpack.c.b16 %v5078, %v5070
        %v6663 = vpack.c.b16 %v5079, %v5071
        %v6664 = vpack.c.b16 %v5080, %v5072
        %v6665 = vpack.c.b16 %v5081, %v5073
        %v6666 = vpack.c.b16 %v5090, %v5082
        %v6667 = vpack.c.b16 %v5091, %v5083
        %v6668 = vpack.c.b16 %v5092, %v5084
        %v6669 = vpack.c.b16 %v5093, %v5085
        %v6670 = vpack.c.b16 %v5094, %v5086
        %v6671 = vpack.c.b16 %v5095, %v5087
        %v6672 = vpack.c.b16 %v5096, %v5088
        %v6673 = vpack.c.b16 %v5097, %v5089
        %v6674 = vpack.c.b16 %v5106, %v5098
        %v6675 = vpack.c.b16 %v5107, %v5099
        %v6676 = vpack.c.b16 %v5108, %v5100
        %v6677 = vpack.c.b16 %v5109, %v5101
        %v6678 = vpack.c.b16 %v5110, %v5102
        %v6679 = vpack.c.b16 %v5111, %v5103
        %v6680 = vpack.c.b16 %v5112, %v5104
        %v6681 = vpack.c.b16 %v5113, %v5105
        %v6682 = vpack.c.b16 %v5122, %v5114
        %v6683 = vpack.c.b16 %v5123, %v5115
        %v6684 = vpack.c.b16 %v5124, %v5116
        %v6685 = vpack.c.b16 %v5125, %v5117
        %v6686 = vpack.c.b16 %v5126, %v5118
        %v6687 = vpack.c.b16 %v5127, %v5119
        %v6688 = vpack.c.b16 %v5128, %v5120
        %v6689 = vpack.c.b16 %v5129, %v5121
        %v6690 = vpack.c.b16 %v5138, %v5130
        %v6691 = vpack.c.b16 %v5139, %v5131
        %v6692 = vpack.c.b16 %v5140, %v5132
        %v6693 = vpack.c.b16 %v5141, %v5133
        %v6694 = vpack.c.b16 %v5142, %v5134
        %v6695 = vpack.c.b16 %v5143, %v5135
        %v6696 = vpack.c.b16 %v5144, %v5136
        %v6697 = vpack.c.b16 %v5145, %v5137
        %v6698 = vpack.c.b16 %v5154, %v5146
        %v6699 = vpack.c.b16 %v5155, %v5147
        %v6700 = vpack.c.b16 %v5156, %v5148
        %v6701 = vpack.c.b16 %v5157, %v5149
        %v6702 = vpack.c.b16 %v5158, %v5150
        %v6703 = vpack.c.b16 %v5159, %v5151
        %v6704 = vpack.c.b16 %v5160, %v5152
        %v6705 = vpack.c.b16 %v5161, %v5153
        %v6706 = vpack.c.b16 %v5170, %v5162
        %v6707 = vpack.c.b16 %v5171, %v5163
        %v6708 = vpack.c.b16 %v5172, %v5164
        %v6709 = vpack.c.b16 %v5173, %v5165
        %v6710 = vpack.c.b16 %v5174, %v5166
        %v6711 = vpack.c.b16 %v5175, %v5167
        %v6712 = vpack.c.b16 %v5176, %v5168
        %v6713 = vpack.c.b16 %v5177, %v5169
        %v6714 = vpack.c.b16 %v5186, %v5178
        %v6715 = vpack.c.b16 %v5187, %v5179
        %v6716 = vpack.c.b16 %v5188, %v5180
        %v6717 = vpack.c.b16 %v5189, %v5181
        %v6718 = vpack.c.b16 %v5190, %v5182
        %v6719 = vpack.c.b16 %v5191, %v5183
        %v6720 = vpack.c.b16 %v5192, %v5184
        %v6721 = vpack.c.b16 %v5193, %v5185
        %v6722 = vpack.c.b16 %v5202, %v5194
        %v6723 = vpack.c.b16 %v5203, %v5195
        %v6724 = vpack.c.b16 %v5204, %v5196
        %v6725 = vpack.c.b16 %v5205, %v5197
        %v6726 = vpack.c.b16 %v5206, %v5198
        %v6727 = vpack.c.b16 %v5207, %v5199
        %v6728 = vpack.c.b16 %v5208, %v5200
        %v6729 = vpack.c.b16 %v5209, %v5201
        %v6730 = vpack.c.b16 %v5218, %v5210
        %v6731 = vpack.c.b16 %v5219, %v5211
        %v6732 = vpack.c.b16 %v5220, %v5212
        %v6733 = vpack.c.b16 %v5221, %v5213
        %v6734 = vpack.c.b16 %v5222, %v5214
        %v6735 = vpack.c.b16 %v5223, %v5215
        %v6736 = vpack.c.b16 %v5224, %v5216
        %v6737 = vpack.c.b16 %v5225, %v5217
        %v6738 = vpack.c.b16 %v5234, %v5226
        %v6739 = vpack.c.b16 %v5235, %v5227
        %v6740 = vpack.c.b16 %v5236, %v5228
        %v6741 = vpack.c.b16 %v5237, %v5229
        %v6742 = vpack.c.b16 %v5238, %v5230
        %v6743 = vpack.c.b16 %v5239, %v5231
        %v6744 = vpack.c.b16 %v5240, %v5232
        %v6745 = vpack.c.b16 %v5241, %v5233
        %v6746 = vpack.c.b16 %v5250, %v5242
        %v6747 = vpack.c.b16 %v5251, %v5243
        %v6748 = vpack.c.b16 %v5252, %v5244
        %v6749 = vpack.c.b16 %v5253, %v5245
        %v6750 = vpack.c.b16 %v5254, %v5246
        %v6751 = vpack.c.b16 %v5255, %v5247
        %v6752 = vpack.c.b16 %v5256, %v5248
        %v6753 = vpack.c.b16 %v5257, %v5249
        %v6754 = vpack.c.b16 %v5266, %v5258
        %v6755 = vpack.c.b16 %v5267, %v5259
        %v6756 = vpack.c.b16 %v5268, %v5260
        %v6757 = vpack.c.b16 %v5269, %v5261
        %v6758 = vpack.c.b16 %v5270, %v5262
        %v6759 = vpack.c.b16 %v5271, %v5263
        %v6760 = vpack.c.b16 %v5272, %v5264
        %v6761 = vpack.c.b16 %v5273, %v5265
        %v6762 = vpack.c.b16 %v5282, %v5274
        %v6763 = vpack.c.b16 %v5283, %v5275
        %v6764 = vpack.c.b16 %v5284, %v5276
        %v6765 = vpack.c.b16 %v5285, %v5277
        %v6766 = vpack.c.b16 %v5286, %v5278
        %v6767 = vpack.c.b16 %v5287, %v5279
        %v6768 = vpack.c.b16 %v5288, %v5280
        %v6769 = vpack.c.b16 %v5289, %v5281
        %v6770 = vpack.c.b16 %v5298, %v5290
        %v6771 = vpack.c.b16 %v5299, %v5291
        %v6772 = vpack.c.b16 %v5300, %v5292
        %v6773 = vpack.c.b16 %v5301, %v5293
        %v6774 = vpack.c.b16 %v5302, %v5294
        %v6775 = vpack.c.b16 %v5303, %v5295
        %v6776 = vpack.c.b16 %v5304, %v5296
        %v6777 = vpack.c.b16 %v5305, %v5297
        %v6778 = vpack.c.b16 %v5314, %v5306
        %v6779 = vpack.c.b16 %v5315, %v5307
        %v6780 = vpack.c.b16 %v5316, %v5308
        %v6781 = vpack.c.b16 %v5317, %v5309
        %v6782 = vpack.c.b16 %v5318, %v5310
        %v6783 = vpack.c.b16 %v5319, %v5311
        %v6784 = vpack.c.b16 %v5320, %v5312
        %v6785 = vpack.c.b16 %v5321, %v5313
        %v6786 = vpack.c.b16 %v5330, %v5322
        %v6787 = vpack.c.b16 %v5331, %v5323
        %v6788 = vpack.c.b16 %v5332, %v5324
        %v6789 = vpack.c.b16 %v5333, %v5325
        %v6790 = vpack.c.b16 %v5334, %v5326
        %v6791 = vpack.c.b16 %v5335, %v5327
        %v6792 = vpack.c.b16 %v5336, %v5328
        %v6793 = vpack.c.b16 %v5337, %v5329
        %v6794 = vpack.c.b16 %v5346, %v5338
        %v6795 = vpack.c.b16 %v5347, %v5339
        %v6796 = vpack.c.b16 %v5348, %v5340
        %v6797 = vpack.c.b16 %v5349, %v5341
        %v6798 = vpack.c.b16 %v5350, %v5342
        %v6799 = vpack.c.b16 %v5351, %v5343
        %v6800 = vpack.c.b16 %v5352, %v5344
        %v6801 = vpack.c.b16 %v5353, %v5345
        %v6802 = vpack.c.b16 %v5362, %v5354
        %v6803 = vpack.c.b16 %v5363, %v5355
        %v6804 = vpack.c.b16 %v5364, %v5356
        %v6805 = vpack.c.b16 %v5365, %v5357
        %v6806 = vpack.c.b16 %v5366, %v5358
        %v6807 = vpack.c.b16 %v5367, %v5359
        %v6808 = vpack.c.b16 %v5368, %v5360
        %v6809 = vpack.c.b16 %v5369, %v5361
        %v6810 = vpack.c.b16 %v5378, %v5370
        %v6811 = vpack.c.b16 %v5379, %v5371
        %v6812 = vpack.c.b16 %v5380, %v5372
        %v6813 = vpack.c.b16 %v5381, %v5373
        %v6814 = vpack.c.b16 %v5382, %v5374
        %v6815 = vpack.c.b16 %v5383, %v5375
        %v6816 = vpack.c.b16 %v5384, %v5376
        %v6817 = vpack.c.b16 %v5385, %v5377
        %v6818 = vpack.c.b16 %v5394, %v5386
        %v6819 = vpack.c.b16 %v5395, %v5387
        %v6820 = vpack.c.b16 %v5396, %v5388
        %v6821 = vpack.c.b16 %v5397, %v5389
        %v6822 = vpack.c.b16 %v5398, %v5390
        %v6823 = vpack.c.b16 %v5399, %v5391
        %v6824 = vpack.c.b16 %v5400, %v5392
        %v6825 = vpack.c.b16 %v5401, %v5393
        %v6826 = vpack.c.b16 %v5410, %v5402
        %v6827 = vpack.c.b16 %v5411, %v5403
        %v6828 = vpack.c.b16 %v5412, %v5404
        %v6829 = vpack.c.b16 %v5413, %v5405
        %v6830 = vpack.c.b16 %v5414, %v5406
        %v6831 = vpack.c.b16 %v5415, %v5407
        %v6832 = vpack.c.b16 %v5416, %v5408
        %v6833 = vpack.c.b16 %v5417, %v5409
        %v6834 = vpack.c.b16 %v5426, %v5418
        %v6835 = vpack.c.b16 %v5427, %v5419
        %v6836 = vpack.c.b16 %v5428, %v5420
        %v6837 = vpack.c.b16 %v5429, %v5421
        %v6838 = vpack.c.b16 %v5430, %v5422
        %v6839 = vpack.c.b16 %v5431, %v5423
        %v6840 = vpack.c.b16 %v5432, %v5424
        %v6841 = vpack.c.b16 %v5433, %v5425
        %v6842 = vpack.c.b16 %v5442, %v5434
        %v6843 = vpack.c.b16 %v5443, %v5435
        %v6844 = vpack.c.b16 %v5444, %v5436
        %v6845 = vpack.c.b16 %v5445, %v5437
        %v6846 = vpack.c.b16 %v5446, %v5438
        %v6847 = vpack.c.b16 %v5447, %v5439
        %v6848 = vpack.c.b16 %v5448, %v5440
        %v6849 = vpack.c.b16 %v5449, %v5441
        %v6850 = vpack.c.b16 %v5458, %v5450
        %v6851 = vpack.c.b16 %v5459, %v5451
        %v6852 = vpack.c.b16 %v5460, %v5452
        %v6853 = vpack.c.b16 %v5461, %v5453
        %v6854 = vpack.c.b16 %v5462, %v5454
        %v6855 = vpack.c.b16 %v5463, %v5455
        %v6856 = vpack.c.b16 %v5464, %v5456
        %v6857 = vpack.c.b16 %v5465, %v5457
        %v6858 = vpack.c.b16 %v5474, %v5466
        %v6859 = vpack.c.b16 %v5475, %v5467
        %v6860 = vpack.c.b16 %v5476, %v5468
        %v6861 = vpack.c.b16 %v5477, %v5469
        %v6862 = vpack.c.b16 %v5478, %v5470
        %v6863 = vpack.c.b16 %v5479, %v5471
        %v6864 = vpack.c.b16 %v5480, %v5472
        %v6865 = vpack.c.b16 %v5481, %v5473
        %v6866 = vpack.c.b16 %v5490, %v5482
        %v6867 = vpack.c.b16 %v5491, %v5483
        %v6868 = vpack.c.b16 %v5492, %v5484
        %v6869 = vpack.c.b16 %v5493, %v5485
        %v6870 = vpack.c.b16 %v5494, %v5486
        %v6871 = vpack.c.b16 %v5495, %v5487
        %v6872 = vpack.c.b16 %v5496, %v5488
        %v6873 = vpack.c.b16 %v5497, %v5489
        %v6874 = vpack.c.b16 %v5506, %v5498
        %v6875 = vpack.c.b16 %v5507, %v5499
        %v6876 = vpack.c.b16 %v5508, %v5500
        %v6877 = vpack.c.b16 %v5509, %v5501
        %v6878 = vpack.c.b16 %v5510, %v5502
        %v6879 = vpack.c.b16 %v5511, %v5503
        %v6880 = vpack.c.b16 %v5512, %v5504
        %v6881 = vpack.c.b16 %v5513, %v5505
        %v6882 = vpack.c.b16 %v5522, %v5514
        %v6883 = vpack.c.b16 %v5523, %v5515
        %v6884 = vpack.c.b16 %v5524, %v5516
        %v6885 = vpack.c.b16 %v5525, %v5517
        %v6886 = vpack.c.b16 %v5526, %v5518
        %v6887 = vpack.c.b16 %v5527, %v5519
        %v6888 = vpack.c.b16 %v5528, %v5520
        %v6889 = vpack.c.b16 %v5529, %v5521
        %v6890 = vpack.c.b16 %v5538, %v5530
        %v6891 = vpack.c.b16 %v5539, %v5531
        %v6892 = vpack.c.b16 %v5540, %v5532
        %v6893 = vpack.c.b16 %v5541, %v5533
        %v6894 = vpack.c.b16 %v5542, %v5534
        %v6895 = vpack.c.b16 %v5543, %v5535
        %v6896 = vpack.c.b16 %v5544, %v5536
        %v6897 = vpack.c.b16 %v5545, %v5537
        %v6898 = vpack.c.b16 %v5554, %v5546
        %v6899 = vpack.c.b16 %v5555, %v5547
        %v6900 = vpack.c.b16 %v5556, %v5548
        %v6901 = vpack.c.b16 %v5557, %v5549
        %v6902 = vpack.c.b16 %v5558, %v5550
        %v6903 = vpack.c.b16 %v5559, %v5551
        %v6904 = vpack.c.b16 %v5560, %v5552
        %v6905 = vpack.c.b16 %v5561, %v5553
        %v6906 = vpack.c.b16 %v5570, %v5562
        %v6907 = vpack.c.b16 %v5571, %v5563
        %v6908 = vpack.c.b16 %v5572, %v5564
        %v6909 = vpack.c.b16 %v5573, %v5565
        %v6910 = vpack.c.b16 %v5574, %v5566
        %v6911 = vpack.c.b16 %v5575, %v5567
        %v6912 = vpack.c.b16 %v5576, %v5568
        %v6913 = vpack.c.b16 %v5577, %v5569
        %v6914 = vpack.c.b16 %v5586, %v5578
        %v6915 = vpack.c.b16 %v5587, %v5579
        %v6916 = vpack.c.b16 %v5588, %v5580
        %v6917 = vpack.c.b16 %v5589, %v5581
        %v6918 = vpack.c.b16 %v5590, %v5582
        %v6919 = vpack.c.b16 %v5591, %v5583
        %v6920 = vpack.c.b16 %v5592, %v5584
        %v6921 = vpack.c.b16 %v5593, %v5585
        %v6922 = vpack.c.b16 %v5602, %v5594
        %v6923 = vpack.c.b16 %v5603, %v5595
        %v6924 = vpack.c.b16 %v5604, %v5596
        %v6925 = vpack.c.b16 %v5605, %v5597
        %v6926 = vpack.c.b16 %v5606, %v5598
        %v6927 = vpack.c.b16 %v5607, %v5599
        %v6928 = vpack.c.b16 %v5608, %v5600
        %v6929 = vpack.c.b16 %v5609, %v5601
        %v6930 = vpack.c.b16 %v5618, %v5610
        %v6931 = vpack.c.b16 %v5619, %v5611
        %v6932 = vpack.c.b16 %v5620, %v5612
        %v6933 = vpack.c.b16 %v5621, %v5613
        %v6934 = vpack.c.b16 %v5622, %v5614
        %v6935 = vpack.c.b16 %v5623, %v5615
        %v6936 = vpack.c.b16 %v5624, %v5616
        %v6937 = vpack.c.b16 %v5625, %v5617
        %v6938 = vpack.c.b16 %v5634, %v5626
        %v6939 = vpack.c.b16 %v5635, %v5627
        %v6940 = vpack.c.b16 %v5636, %v5628
        %v6941 = vpack.c.b16 %v5637, %v5629
        %v6942 = vpack.c.b16 %v5638, %v5630
        %v6943 = vpack.c.b16 %v5639, %v5631
        %v6944 = vpack.c.b16 %v5640, %v5632
        %v6945 = vpack.c.b16 %v5641, %v5633
        %v6946 = vpack.c.b16 %v5650, %v5642
        %v6947 = vpack.c.b16 %v5651, %v5643
        %v6948 = vpack.c.b16 %v5652, %v5644
        %v6949 = vpack.c.b16 %v5653, %v5645
        %v6950 = vpack.c.b16 %v5654, %v5646
        %v6951 = vpack.c.b16 %v5655, %v5647
        %v6952 = vpack.c.b16 %v5656, %v5648
        %v6953 = vpack.c.b16 %v5657, %v5649
        %v6954 = vpack.c.b16 %v5666, %v5658
        %v6955 = vpack.c.b16 %v5667, %v5659
        %v6956 = vpack.c.b16 %v5668, %v5660
        %v6957 = vpack.c.b16 %v5669, %v5661
        %v6958 = vpack.c.b16 %v5670, %v5662
        %v6959 = vpack.c.b16 %v5671, %v5663
        %v6960 = vpack.c.b16 %v5672, %v5664
        %v6961 = vpack.c.b16 %v5673, %v5665
        %v6962 = vpack.c.b16 %v5682, %v5674
        %v6963 = vpack.c.b16 %v5683, %v5675
        %v6964 = vpack.c.b16 %v5684, %v5676
        %v6965 = vpack.c.b16 %v5685, %v5677
        %v6966 = vpack.c.b16 %v5686, %v5678
        %v6967 = vpack.c.b16 %v5687, %v5679
        %v6968 = vpack.c.b16 %v5688, %v5680
        %v6969 = vpack.c.b16 %v5689, %v5681
        %v6970 = vpack.c.b16 %v5698, %v5690
        %v6971 = vpack.c.b16 %v5699, %v5691
        %v6972 = vpack.c.b16 %v5700, %v5692
        %v6973 = vpack.c.b16 %v5701, %v5693
        %v6974 = vpack.c.b16 %v5702, %v5694
        %v6975 = vpack.c.b16 %v5703, %v5695
        %v6976 = vpack.c.b16 %v5704, %v5696
        %v6977 = vpack.c.b16 %v5705, %v5697
        %v6978 = vpack.c.b16 %v5714, %v5706
        %v6979 = vpack.c.b16 %v5715, %v5707
        %v6980 = vpack.c.b16 %v5716, %v5708
        %v6981 = vpack.c.b16 %v5717, %v5709
        %v6982 = vpack.c.b16 %v5718, %v5710
        %v6983 = vpack.c.b16 %v5719, %v5711
        %v6984 = vpack.c.b16 %v5720, %v5712
        %v6985 = vpack.c.b16 %v5721, %v5713
        %v6986 = vpack.c.b16 %v5730, %v5722
        %v6987 = vpack.c.b16 %v5731, %v5723
        %v6988 = vpack.c.b16 %v5732, %v5724
        %v6989 = vpack.c.b16 %v5733, %v5725
        %v6990 = vpack.c.b16 %v5734, %v5726
        %v6991 = vpack.c.b16 %v5735, %v5727
        %v6992 = vpack.c.b16 %v5736, %v5728
        %v6993 = vpack.c.b16 %v5737, %v5729
        %v6994 = vpack.c.b16 %v5746, %v5738
        %v6995 = vpack.c.b16 %v5747, %v5739
        %v6996 = vpack.c.b16 %v5748, %v5740
        %v6997 = vpack.c.b16 %v5749, %v5741
        %v6998 = vpack.c.b16 %v5750, %v5742
        %v6999 = vpack.c.b16 %v5751, %v5743
        %v7000 = vpack.c.b16 %v5752, %v5744
        %v7001 = vpack.c.b16 %v5753, %v5745
        %v7002 = vpack.c.b16 %v5762, %v5754
        %v7003 = vpack.c.b16 %v5763, %v5755
        %v7004 = vpack.c.b16 %v5764, %v5756
        %v7005 = vpack.c.b16 %v5765, %v5757
        %v7006 = vpack.c.b16 %v5766, %v5758
        %v7007 = vpack.c.b16 %v5767, %v5759
        %v7008 = vpack.c.b16 %v5768, %v5760
        %v7009 = vpack.c.b16 %v5769, %v5761
        %v7010 = vpack.c.b16 %v5778, %v5770
        %v7011 = vpack.c.b16 %v5779, %v5771
        %v7012 = vpack.c.b16 %v5780, %v5772
        %v7013 = vpack.c.b16 %v5781, %v5773
        %v7014 = vpack.c.b16 %v5782, %v5774
        %v7015 = vpack.c.b16 %v5783, %v5775
        %v7016 = vpack.c.b16 %v5784, %v5776
        %v7017 = vpack.c.b16 %v5785, %v5777
        %v7018 = vpack.c.b16 %v5794, %v5786
        %v7019 = vpack.c.b16 %v5795, %v5787
        %v7020 = vpack.c.b16 %v5796, %v5788
        %v7021 = vpack.c.b16 %v5797, %v5789
        %v7022 = vpack.c.b16 %v5798, %v5790
        %v7023 = vpack.c.b16 %v5799, %v5791
        %v7024 = vpack.c.b16 %v5800, %v5792
        %v7025 = vpack.c.b16 %v5801, %v5793
        %v7026 = vpack.c.b16 %v5810, %v5802
        %v7027 = vpack.c.b16 %v5811, %v5803
        %v7028 = vpack.c.b16 %v5812, %v5804
        %v7029 = vpack.c.b16 %v5813, %v5805
        %v7030 = vpack.c.b16 %v5814, %v5806
        %v7031 = vpack.c.b16 %v5815, %v5807
        %v7032 = vpack.c.b16 %v5816, %v5808
        %v7033 = vpack.c.b16 %v5817, %v5809
        %v7034 = vpack.c.b16 %v5826, %v5818
        %v7035 = vpack.c.b16 %v5827, %v5819
        %v7036 = vpack.c.b16 %v5828, %v5820
        %v7037 = vpack.c.b16 %v5829, %v5821
        %v7038 = vpack.c.b16 %v5830, %v5822
        %v7039 = vpack.c.b16 %v5831, %v5823
        %v7040 = vpack.c.b16 %v5832, %v5824
        %v7041 = vpack.c.b16 %v5833, %v5825
        %v7042 = vpack.c.b16 %v5842, %v5834
        %v7043 = vpack.c.b16 %v5843, %v5835
        %v7044 = vpack.c.b16 %v5844, %v5836
        %v7045 = vpack.c.b16 %v5845, %v5837
        %v7046 = vpack.c.b16 %v5846, %v5838
        %v7047 = vpack.c.b16 %v5847, %v5839
        %v7048 = vpack.c.b16 %v5848, %v5840
        %v7049 = vpack.c.b16 %v5849, %v5841
        %v7050 = vpack.c.b16 %v5858, %v5850
        %v7051 = vpack.c.b16 %v5859, %v5851
        %v7052 = vpack.c.b16 %v5860, %v5852
        %v7053 = vpack.c.b16 %v5861, %v5853
        %v7054 = vpack.c.b16 %v5862, %v5854
        %v7055 = vpack.c.b16 %v5863, %v5855
        %v7056 = vpack.c.b16 %v5864, %v5856
        %v7057 = vpack.c.b16 %v5865, %v5857
        %v7058 = vpack.c.b16 %v5874, %v5866
        %v7059 = vpack.c.b16 %v5875, %v5867
        %v7060 = vpack.c.b16 %v5876, %v5868
        %v7061 = vpack.c.b16 %v5877, %v5869
        %v7062 = vpack.c.b16 %v5878, %v5870
        %v7063 = vpack.c.b16 %v5879, %v5871
        %v7064 = vpack.c.b16 %v5880, %v5872
        %v7065 = vpack.c.b16 %v5881, %v5873
        %v7066 = vpack.c.b16 %v5890, %v5882
        %v7067 = vpack.c.b16 %v5891, %v5883
        %v7068 = vpack.c.b16 %v5892, %v5884
        %v7069 = vpack.c.b16 %v5893, %v5885
        %v7070 = vpack.c.b16 %v5894, %v5886
        %v7071 = vpack.c.b16 %v5895, %v5887
        %v7072 = vpack.c.b16 %v5896, %v5888
        %v7073 = vpack.c.b16 %v5897, %v5889
        %v7074 = vpack.c.b16 %v5906, %v5898
        %v7075 = vpack.c.b16 %v5907, %v5899
        %v7076 = vpack.c.b16 %v5908, %v5900
        %v7077 = vpack.c.b16 %v5909, %v5901
        %v7078 = vpack.c.b16 %v5910, %v5902
        %v7079 = vpack.c.b16 %v5911, %v5903
        %v7080 = vpack.c.b16 %v5912, %v5904
        %v7081 = vpack.c.b16 %v5913, %v5905
        %v7082 = vpack.c.b16 %v5922, %v5914
        %v7083 = vpack.c.b16 %v5923, %v5915
        %v7084 = vpack.c.b16 %v5924, %v5916
        %v7085 = vpack.c.b16 %v5925, %v5917
        %v7086 = vpack.c.b16 %v5926, %v5918
        %v7087 = vpack.c.b16 %v5927, %v5919
        %v7088 = vpack.c.b16 %v5928, %v5920
        %v7089 = vpack.c.b16 %v5929, %v5921
        %v7090 = vpack.c.b16 %v5938, %v5930
        %v7091 = vpack.c.b16 %v5939, %v5931
        %v7092 = vpack.c.b16 %v5940, %v5932
        %v7093 = vpack.c.b16 %v5941, %v5933
        %v7094 = vpack.c.b16 %v5942, %v5934
        %v7095 = vpack.c.b16 %v5943, %v5935
        %v7096 = vpack.c.b16 %v5944, %v5936
        %v7097 = vpack.c.b16 %v5945, %v5937
        %v7098 = vpack.c.b16 %v5954, %v5946
        %v7099 = vpack.c.b16 %v5955, %v5947
        %v7100 = vpack.c.b16 %v5956, %v5948
        %v7101 = vpack.c.b16 %v5957, %v5949
        %v7102 = vpack.c.b16 %v5958, %v5950
        %v7103 = vpack.c.b16 %v5959, %v5951
        %v7104 = vpack.c.b16 %v5960, %v5952
        %v7105 = vpack.c.b16 %v5961, %v5953
        %v7106 = vpack.c.b16 %v5970, %v5962
        %v7107 = vpack.c.b16 %v5971, %v5963
        %v7108 = vpack.c.b16 %v5972, %v5964
        %v7109 = vpack.c.b16 %v5973, %v5965
        %v7110 = vpack.c.b16 %v5974, %v5966
        %v7111 = vpack.c.b16 %v5975, %v5967
        %v7112 = vpack.c.b16 %v5976, %v5968
        %v7113 = vpack.c.b16 %v5977, %v5969
        %v7114 = vpack.c.b16 %v5986, %v5978
        %v7115 = vpack.c.b16 %v5987, %v5979
        %v7116 = vpack.c.b16 %v5988, %v5980
        %v7117 = vpack.c.b16 %v5989, %v5981
        %v7118 = vpack.c.b16 %v5990, %v5982
        %v7119 = vpack.c.b16 %v5991, %v5983
        %v7120 = vpack.c.b16 %v5992, %v5984
        %v7121 = vpack.c.b16 %v5993, %v5985
        %v7122 = vpack.c.b16 %v6002, %v5994
        %v7123 = vpack.c.b16 %v6003, %v5995
        %v7124 = vpack.c.b16 %v6004, %v5996
        %v7125 = vpack.c.b16 %v6005, %v5997
        %v7126 = vpack.c.b16 %v6006, %v5998
        %v7127 = vpack.c.b16 %v6007, %v5999
        %v7128 = vpack.c.b16 %v6008, %v6000
        %v7129 = vpack.c.b16 %v6009, %v6001
        %v7130 = vpack.c.b16 %v6018, %v6010
        %v7131 = vpack.c.b16 %v6019, %v6011
        %v7132 = vpack.c.b16 %v6020, %v6012
        %v7133 = vpack.c.b16 %v6021, %v6013
        %v7134 = vpack.c.b16 %v6022, %v6014
        %v7135 = vpack.c.b16 %v6023, %v6015
        %v7136 = vpack.c.b16 %v6024, %v6016
        %v7137 = vpack.c.b16 %v6025, %v6017
        %v7138 = vpack.c.b16 %v6034, %v6026
        %v7139 = vpack.c.b16 %v6035, %v6027
        %v7140 = vpack.c.b16 %v6036, %v6028
        %v7141 = vpack.c.b16 %v6037, %v6029
        %v7142 = vpack.c.b16 %v6038, %v6030
        %v7143 = vpack.c.b16 %v6039, %v6031
        %v7144 = vpack.c.b16 %v6040, %v6032
        %v7145 = vpack.c.b16 %v6041, %v6033
        %v7146 = vpack.c.b16 %v6050, %v6042
        %v7147 = vpack.c.b16 %v6051, %v6043
        %v7148 = vpack.c.b16 %v6052, %v6044
        %v7149 = vpack.c.b16 %v6053, %v6045
        %v7150 = vpack.c.b16 %v6054, %v6046
        %v7151 = vpack.c.b16 %v6055, %v6047
        %v7152 = vpack.c.b16 %v6056, %v6048
        %v7153 = vpack.c.b16 %v6057, %v6049
        %v7154 = vpack.c.b16 %v6066, %v6058
        %v7155 = vpack.c.b16 %v6067, %v6059
        %v7156 = vpack.c.b16 %v6068, %v6060
        %v7157 = vpack.c.b16 %v6069, %v6061
        %v7158 = vpack.c.b16 %v6070, %v6062
        %v7159 = vpack.c.b16 %v6071, %v6063
        %v7160 = vpack.c.b16 %v6072, %v6064
        %v7161 = vpack.c.b16 %v6073, %v6065
        %v7162 = vpack.c.b16 %v6082, %v6074
        %v7163 = vpack.c.b16 %v6083, %v6075
        %v7164 = vpack.c.b16 %v6084, %v6076
        %v7165 = vpack.c.b16 %v6085, %v6077
        %v7166 = vpack.c.b16 %v6086, %v6078
        %v7167 = vpack.c.b16 %v6087, %v6079
        %v7168 = vpack.c.b16 %v6088, %v6080
        %v7169 = vpack.c.b16 %v6089, %v6081
        %v7170 = vpack.c.b16 %v6098, %v6090
        %v7171 = vpack.c.b16 %v6099, %v6091
        %v7172 = vpack.c.b16 %v6100, %v6092
        %v7173 = vpack.c.b16 %v6101, %v6093
        %v7174 = vpack.c.b16 %v6102, %v6094
        %v7175 = vpack.c.b16 %v6103, %v6095
        %v7176 = vpack.c.b16 %v6104, %v6096
        %v7177 = vpack.c.b16 %v6105, %v6097
        %v7178 = vpack.c.b16 %v6114, %v6106
        %v7179 = vpack.c.b16 %v6115, %v6107
        %v7180 = vpack.c.b16 %v6116, %v6108
        %v7181 = vpack.c.b16 %v6117, %v6109
        %v7182 = vpack.c.b16 %v6118, %v6110
        %v7183 = vpack.c.b16 %v6119, %v6111
        %v7184 = vpack.c.b16 %v6120, %v6112
        %v7185 = vpack.c.b16 %v6121, %v6113
        %v7186 = vpack.c.b16 %v6130, %v6122
        %v7187 = vpack.c.b16 %v6131, %v6123
        %v7188 = vpack.c.b16 %v6132, %v6124
        %v7189 = vpack.c.b16 %v6133, %v6125
        %v7190 = vpack.c.b16 %v6134, %v6126
        %v7191 = vpack.c.b16 %v6135, %v6127
        %v7192 = vpack.c.b16 %v6136, %v6128
        %v7193 = vpack.c.b16 %v6137, %v6129
        %v7194 = vpack.c.b16 %v6146, %v6138
        %v7195 = vpack.c.b16 %v6147, %v6139
        %v7196 = vpack.c.b16 %v6148, %v6140
        %v7197 = vpack.c.b16 %v6149, %v6141
        %v7198 = vpack.c.b16 %v6150, %v6142
        %v7199 = vpack.c.b16 %v6151, %v6143
        %v7200 = vpack.c.b16 %v6152, %v6144
        %v7201 = vpack.c.b16 %v6153, %v6145
        %v7202 = vpack.c.b16 %v6162, %v6154
        %v7203 = vpack.c.b16 %v6163, %v6155
        %v7204 = vpack.c.b16 %v6164, %v6156
        %v7205 = vpack.c.b16 %v6165, %v6157
        %v7206 = vpack.c.b16 %v6166, %v6158
        %v7207 = vpack.c.b16 %v6167, %v6159
        %v7208 = vpack.c.b16 %v6168, %v6160
        %v7209 = vpack.c.b16 %v6169, %v6161
        %v7210 = vpack.c.b16 %v6178, %v6170
        %v7211 = vpack.c.b16 %v6179, %v6171
        %v7212 = vpack.c.b16 %v6180, %v6172
        %v7213 = vpack.c.b16 %v6181, %v6173
        %v7214 = vpack.c.b16 %v6182, %v6174
        %v7215 = vpack.c.b16 %v6183, %v6175
        %v7216 = vpack.c.b16 %v6184, %v6176
        %v7217 = vpack.c.b16 %v6185, %v6177
        %v7218 = vpack.c.b16 %v6194, %v6186
        %v7219 = vpack.c.b16 %v6195, %v6187
        %v7220 = vpack.c.b16 %v6196, %v6188
        %v7221 = vpack.c.b16 %v6197, %v6189
        %v7222 = vpack.c.b16 %v6198, %v6190
        %v7223 = vpack.c.b16 %v6199, %v6191
        %v7224 = vpack.c.b16 %v6200, %v6192
        %v7225 = vpack.c.b16 %v6201, %v6193
        %8250 = vmatprep.subr.bf16.mxu0 %v6203
        %8251 = vmatpush1.bf16.msra.mxu0 %v6202
        %8252 = vmatprep.subr.bf16.mxu0 %v6211
        %8253 = vmatpush1.bf16.msra.mxu0 %v6210
        %8254 = vmatprep.subr.bf16.mxu0 %v6219
        %8255 = vmatpush1.bf16.msra.mxu0 %v6218
        %8256 = vmatprep.subr.bf16.mxu0 %v6227
        %8257 = vmatpush1.bf16.msra.mxu0 %v6226
        %8258 = vmatprep.subr.bf16.mxu0 %v6235
        %8259 = vmatpush1.bf16.msra.mxu0 %v6234
        %8260 = vmatprep.subr.bf16.mxu0 %v6243
        %8261 = vmatpush1.bf16.msra.mxu0 %v6242
        %8262 = vmatprep.subr.bf16.mxu0 %v6251
        %8263 = vmatpush1.bf16.msra.mxu0 %v6250
        %8264 = vmatprep.subr.bf16.mxu0 %v6259
        %8265 = vmatpush1.bf16.msra.mxu0 %v6258
        %8266 = vmatprep.subr.bf16.mxu0 %v6267
        %8267 = vmatpush1.bf16.msra.mxu0 %v6266
        %8268 = vmatprep.subr.bf16.mxu0 %v6275
        %8269 = vmatpush1.bf16.msra.mxu0 %v6274
        %8270 = vmatprep.subr.bf16.mxu0 %v6283
        %8271 = vmatpush1.bf16.msra.mxu0 %v6282
        %8272 = vmatprep.subr.bf16.mxu0 %v6291
        %8273 = vmatpush1.bf16.msra.mxu0 %v6290
        %8274 = vmatprep.subr.bf16.mxu0 %v6299
        %8275 = vmatpush1.bf16.msra.mxu0 %v6298
        %8276 = vmatprep.subr.bf16.mxu0 %v6307
        %8277 = vmatpush1.bf16.msra.mxu0 %v6306
        %8278 = vmatprep.subr.bf16.mxu0 %v6315
        %8279 = vmatpush1.bf16.msra.mxu0 %v6314
        %8280 = vmatprep.subr.bf16.mxu0 %v6323
        %8281 = vmatpush1.bf16.msra.mxu0 %v6322
        %8282 = vmatprep.mubr.bf16.mxu0 %v2049
        %8283 = vmatmul.mubr.bf16.gmra.mrb[0].mxu0 %v2048
        %v8284 = vpop.f32.mrb[0].mxu0
        %v8285 = vadd.f32 %v3093, %v8284
        %v8286 = vpop.f32.mrb[0].mxu0
        %v8287 = vadd.f32 %v3097, %v8286
        %v8288 = vpop.f32.mrb[0].mxu0
        %v8289 = vpop.f32.mrb[0].mxu0
        %8290 = vdwg.mxu0
        %8291 = vmatprep.subr.bf16.mxu0 %v6331
        %8292 = vmatpush1.bf16.msra.mxu0 %v6330
        %8293 = vmatprep.subr.bf16.mxu0 %v6339
        %8294 = vmatpush1.bf16.msra.mxu0 %v6338
        %8295 = vmatprep.subr.bf16.mxu0 %v6347
        %8296 = vmatpush1.bf16.msra.mxu0 %v6346
        %8297 = vmatprep.subr.bf16.mxu0 %v6355
        %8298 = vmatpush1.bf16.msra.mxu0 %v6354
        %8299 = vmatprep.subr.bf16.mxu0 %v6363
        %8300 = vmatpush1.bf16.msra.mxu0 %v6362
        %8301 = vmatprep.subr.bf16.mxu0 %v6371
        %8302 = vmatpush1.bf16.msra.mxu0 %v6370
        %8303 = vmatprep.subr.bf16.mxu0 %v6379
        %8304 = vmatpush1.bf16.msra.mxu0 %v6378
        %8305 = vmatprep.subr.bf16.mxu0 %v6387
        %8306 = vmatpush1.bf16.msra.mxu0 %v6386
        %8307 = vmatprep.subr.bf16.mxu0 %v6395
        %8308 = vmatpush1.bf16.msra.mxu0 %v6394
        %8309 = vmatprep.subr.bf16.mxu0 %v6403
        %8310 = vmatpush1.bf16.msra.mxu0 %v6402
        %8311 = vmatprep.subr.bf16.mxu0 %v6411
        %8312 = vmatpush1.bf16.msra.mxu0 %v6410
        %8313 = vmatprep.subr.bf16.mxu0 %v6419
        %8314 = vmatpush1.bf16.msra.mxu0 %v6418
        %8315 = vmatprep.subr.bf16.mxu0 %v6427
        %8316 = vmatpush1.bf16.msra.mxu0 %v6426
        %8317 = vmatprep.subr.bf16.mxu0 %v6435
        %8318 = vmatpush1.bf16.msra.mxu0 %v6434
        %8319 = vmatprep.subr.bf16.mxu0 %v6443
        %8320 = vmatpush1.bf16.msra.mxu0 %v6442
        %8321 = vmatprep.subr.bf16.mxu0 %v6451
        %8322 = vmatpush1.bf16.msra.mxu0 %v6450
        %8323 = vmatprep.mubr.bf16.mxu0 %v2051
        %8324 = vmatmul.mubr.bf16.gmra.mrb[0].mxu0 %v2050
        %v8325 = vpop.f32.mrb[0].mxu0
        %v8326 = vadd.f32 %v8285, %v8325
        %v8327 = vpop.f32.mrb[0].mxu0
        %v8328 = vadd.f32 %v8287, %v8327
        %v8329 = vpop.f32.mrb[0].mxu0
        %v8330 = vpop.f32.mrb[0].mxu0
        %8331 = vdwg.mxu0
        %8332 = vmatprep.subr.bf16.mxu0 %v6459
        %8333 = vmatpush1.bf16.msra.mxu0 %v6458
        %8334 = vmatprep.subr.bf16.mxu0 %v6467
        %8335 = vmatpush1.bf16.msra.mxu0 %v6466
        %8336 = vmatprep.subr.bf16.mxu0 %v6475
        %8337 = vmatpush1.bf16.msra.mxu0 %v6474
        %8338 = vmatprep.subr.bf16.mxu0 %v6483
        %8339 = vmatpush1.bf16.msra.mxu0 %v6482
        %8340 = vmatprep.subr.bf16.mxu0 %v6491
        %8341 = vmatpush1.bf16.msra.mxu0 %v6490
        %8342 = vmatprep.subr.bf16.mxu0 %v6499
        %8343 = vmatpush1.bf16.msra.mxu0 %v6498
        %8344 = vmatprep.subr.bf16.mxu0 %v6507
        %8345 = vmatpush1.bf16.msra.mxu0 %v6506
        %8346 = vmatprep.subr.bf16.mxu0 %v6515
        %8347 = vmatpush1.bf16.msra.mxu0 %v6514
        %8348 = vmatprep.subr.bf16.mxu0 %v6523
        %8349 = vmatpush1.bf16.msra.mxu0 %v6522
        %8350 = vmatprep.subr.bf16.mxu0 %v6531
        %8351 = vmatpush1.bf16.msra.mxu0 %v6530
        %8352 = vmatprep.subr.bf16.mxu0 %v6539
        %8353 = vmatpush1.bf16.msra.mxu0 %v6538
        %8354 = vmatprep.subr.bf16.mxu0 %v6547
        %8355 = vmatpush1.bf16.msra.mxu0 %v6546
        %8356 = vmatprep.subr.bf16.mxu0 %v6555
        %8357 = vmatpush1.bf16.msra.mxu0 %v6554
        %8358 = vmatprep.subr.bf16.mxu0 %v6563
        %8359 = vmatpush1.bf16.msra.mxu0 %v6562
        %8360 = vmatprep.subr.bf16.mxu0 %v6571
        %8361 = vmatpush1.bf16.msra.mxu0 %v6570
        %8362 = vmatprep.subr.bf16.mxu0 %v6579
        %8363 = vmatpush1.bf16.msra.mxu0 %v6578
        %8364 = vmatprep.mubr.bf16.mxu0 %v2053
        %8365 = vmatmul.mubr.bf16.gmra.mrb[0].mxu0 %v2052
        %v8366 = vpop.f32.mrb[0].mxu0
        %v8367 = vadd.f32 %v8326, %v8366
        %v8368 = vpop.f32.mrb[0].mxu0
        %v8369 = vadd.f32 %v8328, %v8368
        %v8370 = vpop.f32.mrb[0].mxu0
        %v8371 = vpop.f32.mrb[0].mxu0
        %8372 = vdwg.mxu0
        %8373 = vmatprep.subr.bf16.mxu0 %v6587
        %8374 = vmatpush1.bf16.msra.mxu0 %v6586
        %8375 = vmatprep.subr.bf16.mxu0 %v6595
        %8376 = vmatpush1.bf16.msra.mxu0 %v6594
        %8377 = vmatprep.subr.bf16.mxu0 %v6603
        %8378 = vmatpush1.bf16.msra.mxu0 %v6602
        %8379 = vmatprep.subr.bf16.mxu0 %v6611
        %8380 = vmatpush1.bf16.msra.mxu0 %v6610
        %8381 = vmatprep.subr.bf16.mxu0 %v6619
        %8382 = vmatpush1.bf16.msra.mxu0 %v6618
        %8383 = vmatprep.subr.bf16.mxu0 %v6627
        %8384 = vmatpush1.bf16.msra.mxu0 %v6626
        %8385 = vmatprep.subr.bf16.mxu0 %v6635
        %8386 = vmatpush1.bf16.msra.mxu0 %v6634
        %8387 = vmatprep.subr.bf16.mxu0 %v6643
        %8388 = vmatpush1.bf16.msra.mxu0 %v6642
        %8389 = vmatprep.subr.bf16.mxu0 %v6651
        %8390 = vmatpush1.bf16.msra.mxu0 %v6650
        %8391 = vmatprep.subr.bf16.mxu0 %v6659
        %8392 = vmatpush1.bf16.msra.mxu0 %v6658
        %8393 = vmatprep.subr.bf16.mxu0 %v6667
        %8394 = vmatpush1.bf16.msra.mxu0 %v6666
        %8395 = vmatprep.subr.bf16.mxu0 %v6675
        %8396 = vmatpush1.bf16.msra.mxu0 %v6674
        %8397 = vmatprep.subr.bf16.mxu0 %v6683
        %8398 = vmatpush1.bf16.msra.mxu0 %v6682
        %8399 = vmatprep.subr.bf16.mxu0 %v6691
        %8400 = vmatpush1.bf16.msra.mxu0 %v6690
        %8401 = vmatprep.subr.bf16.mxu0 %v6699
        %8402 = vmatpush1.bf16.msra.mxu0 %v6698
        %8403 = vmatprep.subr.bf16.mxu0 %v6707
        %8404 = vmatpush1.bf16.msra.mxu0 %v6706
        %8405 = vmatprep.mubr.bf16.mxu0 %v2055
        %8406 = vmatmul.mubr.bf16.gmra.mrb[0].mxu0 %v2054
        %v8407 = vpop.f32.mrb[0].mxu0
        %v8408 = vadd.f32 %v8367, %v8407
        %v8409 = vpop.f32.mrb[0].mxu0
        %v8410 = vadd.f32 %v8369, %v8409
        %v8411 = vpop.f32.mrb[0].mxu0
        %v8412 = vpop.f32.mrb[0].mxu0
        %8413 = vdwg.mxu0
        %8414 = vmatprep.subr.bf16.mxu0 %v6715
        %8415 = vmatpush1.bf16.msra.mxu0 %v6714
        %8416 = vmatprep.subr.bf16.mxu0 %v6723
        %8417 = vmatpush1.bf16.msra.mxu0 %v6722
        %8418 = vmatprep.subr.bf16.mxu0 %v6731
        %8419 = vmatpush1.bf16.msra.mxu0 %v6730
        %8420 = vmatprep.subr.bf16.mxu0 %v6739
        %8421 = vmatpush1.bf16.msra.mxu0 %v6738
        %8422 = vmatprep.subr.bf16.mxu0 %v6747
        %8423 = vmatpush1.bf16.msra.mxu0 %v6746
        %8424 = vmatprep.subr.bf16.mxu0 %v6755
        %8425 = vmatpush1.bf16.msra.mxu0 %v6754
        %8426 = vmatprep.subr.bf16.mxu0 %v6763
        %8427 = vmatpush1.bf16.msra.mxu0 %v6762
        %8428 = vmatprep.subr.bf16.mxu0 %v6771
        %8429 = vmatpush1.bf16.msra.mxu0 %v6770
        %8430 = vmatprep.subr.bf16.mxu0 %v6779
        %8431 = vmatpush1.bf16.msra.mxu0 %v6778
        %8432 = vmatprep.subr.bf16.mxu0 %v6787
        %8433 = vmatpush1.bf16.msra.mxu0 %v6786
        %8434 = vmatprep.subr.bf16.mxu0 %v6795
        %8435 = vmatpush1.bf16.msra.mxu0 %v6794
        %8436 = vmatprep.subr.bf16.mxu0 %v6803
        %8437 = vmatpush1.bf16.msra.mxu0 %v6802
        %8438 = vmatprep.subr.bf16.mxu0 %v6811
        %8439 = vmatpush1.bf16.msra.mxu0 %v6810
        %8440 = vmatprep.subr.bf16.mxu0 %v6819
        %8441 = vmatpush1.bf16.msra.mxu0 %v6818
        %8442 = vmatprep.subr.bf16.mxu0 %v6827
        %8443 = vmatpush1.bf16.msra.mxu0 %v6826
        %8444 = vmatprep.subr.bf16.mxu0 %v6835
        %8445 = vmatpush1.bf16.msra.mxu0 %v6834
        %8446 = vmatprep.mubr.bf16.mxu0 %v2057
        %8447 = vmatmul.mubr.bf16.gmra.mrb[0].mxu0 %v2056
        %v8448 = vpop.f32.mrb[0].mxu0
        %v8449 = vadd.f32 %v8408, %v8448
        %v8450 = vpop.f32.mrb[0].mxu0
        %v8451 = vadd.f32 %v8410, %v8450
        %v8452 = vpop.f32.mrb[0].mxu0
        %v8453 = vpop.f32.mrb[0].mxu0
        %8454 = vdwg.mxu0
        %8455 = vmatprep.subr.bf16.mxu0 %v6843
        %8456 = vmatpush1.bf16.msra.mxu0 %v6842
        %8457 = vmatprep.subr.bf16.mxu0 %v6851
        %8458 = vmatpush1.bf16.msra.mxu0 %v6850
        %8459 = vmatprep.subr.bf16.mxu0 %v6859
        %8460 = vmatpush1.bf16.msra.mxu0 %v6858
        %8461 = vmatprep.subr.bf16.mxu0 %v6867
        %8462 = vmatpush1.bf16.msra.mxu0 %v6866
        %8463 = vmatprep.subr.bf16.mxu0 %v6875
        %8464 = vmatpush1.bf16.msra.mxu0 %v6874
        %8465 = vmatprep.subr.bf16.mxu0 %v6883
        %8466 = vmatpush1.bf16.msra.mxu0 %v6882
        %8467 = vmatprep.subr.bf16.mxu0 %v6891
        %8468 = vmatpush1.bf16.msra.mxu0 %v6890
        %8469 = vmatprep.subr.bf16.mxu0 %v6899
        %8470 = vmatpush1.bf16.msra.mxu0 %v6898
        %8471 = vmatprep.subr.bf16.mxu0 %v6907
        %8472 = vmatpush1.bf16.msra.mxu0 %v6906
        %8473 = vmatprep.subr.bf16.mxu0 %v6915
        %8474 = vmatpush1.bf16.msra.mxu0 %v6914
        %8475 = vmatprep.subr.bf16.mxu0 %v6923
        %8476 = vmatpush1.bf16.msra.mxu0 %v6922
        %8477 = vmatprep.subr.bf16.mxu0 %v6931
        %8478 = vmatpush1.bf16.msra.mxu0 %v6930
        %8479 = vmatprep.subr.bf16.mxu0 %v6939
        %8480 = vmatpush1.bf16.msra.mxu0 %v6938
        %8481 = vmatprep.subr.bf16.mxu0 %v6947
        %8482 = vmatpush1.bf16.msra.mxu0 %v6946
        %8483 = vmatprep.subr.bf16.mxu0 %v6955
        %8484 = vmatpush1.bf16.msra.mxu0 %v6954
        %8485 = vmatprep.subr.bf16.mxu0 %v6963
        %8486 = vmatpush1.bf16.msra.mxu0 %v6962
        %8487 = vmatprep.mubr.bf16.mxu0 %v2059
        %8488 = vmatmul.mubr.bf16.gmra.mrb[0].mxu0 %v2058
        %v8489 = vpop.f32.mrb[0].mxu0
        %v8490 = vadd.f32 %v8449, %v8489
        %v8491 = vpop.f32.mrb[0].mxu0
        %v8492 = vadd.f32 %v8451, %v8491
        %v8493 = vpop.f32.mrb[0].mxu0
        %v8494 = vpop.f32.mrb[0].mxu0
        %8495 = vdwg.mxu0
        %8496 = vmatprep.subr.bf16.mxu0 %v6971
        %8497 = vmatpush1.bf16.msra.mxu0 %v6970
        %8498 = vmatprep.subr.bf16.mxu0 %v6979
        %8499 = vmatpush1.bf16.msra.mxu0 %v6978
        %8500 = vmatprep.subr.bf16.mxu0 %v6987
        %8501 = vmatpush1.bf16.msra.mxu0 %v6986
        %8502 = vmatprep.subr.bf16.mxu0 %v6995
        %8503 = vmatpush1.bf16.msra.mxu0 %v6994
        %8504 = vmatprep.subr.bf16.mxu0 %v7003
        %8505 = vmatpush1.bf16.msra.mxu0 %v7002
        %8506 = vmatprep.subr.bf16.mxu0 %v7011
        %8507 = vmatpush1.bf16.msra.mxu0 %v7010
        %8508 = vmatprep.subr.bf16.mxu0 %v7019
        %8509 = vmatpush1.bf16.msra.mxu0 %v7018
        %8510 = vmatprep.subr.bf16.mxu0 %v7027
        %8511 = vmatpush1.bf16.msra.mxu0 %v7026
        %8512 = vmatprep.subr.bf16.mxu0 %v7035
        %8513 = vmatpush1.bf16.msra.mxu0 %v7034
        %8514 = vmatprep.subr.bf16.mxu0 %v7043
        %8515 = vmatpush1.bf16.msra.mxu0 %v7042
        %8516 = vmatprep.subr.bf16.mxu0 %v7051
        %8517 = vmatpush1.bf16.msra.mxu0 %v7050
        %8518 = vmatprep.subr.bf16.mxu0 %v7059
        %8519 = vmatpush1.bf16.msra.mxu0 %v7058
        %8520 = vmatprep.subr.bf16.mxu0 %v7067
        %8521 = vmatpush1.bf16.msra.mxu0 %v7066
        %8522 = vmatprep.subr.bf16.mxu0 %v7075
        %8523 = vmatpush1.bf16.msra.mxu0 %v7074
        %8524 = vmatprep.subr.bf16.mxu0 %v7083
        %8525 = vmatpush1.bf16.msra.mxu0 %v7082
        %8526 = vmatprep.subr.bf16.mxu0 %v7091
        %8527 = vmatpush1.bf16.msra.mxu0 %v7090
        %8528 = vmatprep.mubr.bf16.mxu0 %v2061
        %8529 = vmatmul.mubr.bf16.gmra.mrb[0].mxu0 %v2060
        %v8530 = vpop.f32.mrb[0].mxu0
        %v8531 = vadd.f32 %v8490, %v8530
        %v8532 = vpop.f32.mrb[0].mxu0
        %v8533 = vadd.f32 %v8492, %v8532
        %v8534 = vpop.f32.mrb[0].mxu0
        %v8535 = vpop.f32.mrb[0].mxu0
        %8536 = vdwg.mxu0
        %8537 = vmatprep.subr.bf16.mxu0 %v7099
        %8538 = vmatpush1.bf16.msra.mxu0 %v7098
        %8539 = vmatprep.subr.bf16.mxu0 %v7107
        %8540 = vmatpush1.bf16.msra.mxu0 %v7106
        %8541 = vmatprep.subr.bf16.mxu0 %v7115
        %8542 = vmatpush1.bf16.msra.mxu0 %v7114
        %8543 = vmatprep.subr.bf16.mxu0 %v7123
        %8544 = vmatpush1.bf16.msra.mxu0 %v7122
        %8545 = vmatprep.subr.bf16.mxu0 %v7131
        %8546 = vmatpush1.bf16.msra.mxu0 %v7130
        %8547 = vmatprep.subr.bf16.mxu0 %v7139
        %8548 = vmatpush1.bf16.msra.mxu0 %v7138
        %8549 = vmatprep.subr.bf16.mxu0 %v7147
        %8550 = vmatpush1.bf16.msra.mxu0 %v7146
        %8551 = vmatprep.subr.bf16.mxu0 %v7155
        %8552 = vmatpush1.bf16.msra.mxu0 %v7154
        %8553 = vmatprep.subr.bf16.mxu0 %v7163
        %8554 = vmatpush1.bf16.msra.mxu0 %v7162
        %8555 = vmatprep.subr.bf16.mxu0 %v7171
        %8556 = vmatpush1.bf16.msra.mxu0 %v7170
        %8557 = vmatprep.subr.bf16.mxu0 %v7179
        %8558 = vmatpush1.bf16.msra.mxu0 %v7178
        %8559 = vmatprep.subr.bf16.mxu0 %v7187
        %8560 = vmatpush1.bf16.msra.mxu0 %v7186
        %8561 = vmatprep.subr.bf16.mxu0 %v7195
        %8562 = vmatpush1.bf16.msra.mxu0 %v7194
        %8563 = vmatprep.subr.bf16.mxu0 %v7203
        %8564 = vmatpush1.bf16.msra.mxu0 %v7202
        %8565 = vmatprep.subr.bf16.mxu0 %v7211
        %8566 = vmatpush1.bf16.msra.mxu0 %v7210
        %8567 = vmatprep.subr.bf16.mxu0 %v7219
        %8568 = vmatpush1.bf16.msra.mxu0 %v7218
        %8569 = vmatprep.mubr.bf16.mxu0 %v2063
        %8570 = vmatmul.mubr.bf16.gmra.mrb[0].mxu0 %v2062
        %v8571 = vpop.f32.mrb[0].mxu0
        %v8572 = vadd.f32 %v8531, %v8571
        %v8573 = vpop.f32.mrb[0].mxu0
        %v8574 = vadd.f32 %v8533, %v8573
        %v8575 = vpop.f32.mrb[0].mxu0
        %v8576 = vpop.f32.mrb[0].mxu0
        %8577 = vdwg.mxu0
        %8578 = vmatprep.subr.bf16.mxu0 %v6205
        %8579 = vmatpush1.bf16.msra.mxu0 %v6204
        %8580 = vmatprep.subr.bf16.mxu0 %v6213
        %8581 = vmatpush1.bf16.msra.mxu0 %v6212
        %8582 = vmatprep.subr.bf16.mxu0 %v6221
        %8583 = vmatpush1.bf16.msra.mxu0 %v6220
        %8584 = vmatprep.subr.bf16.mxu0 %v6229
        %8585 = vmatpush1.bf16.msra.mxu0 %v6228
        %8586 = vmatprep.subr.bf16.mxu0 %v6237
        %8587 = vmatpush1.bf16.msra.mxu0 %v6236
        %8588 = vmatprep.subr.bf16.mxu0 %v6245
        %8589 = vmatpush1.bf16.msra.mxu0 %v6244
        %8590 = vmatprep.subr.bf16.mxu0 %v6253
        %8591 = vmatpush1.bf16.msra.mxu0 %v6252
        %8592 = vmatprep.subr.bf16.mxu0 %v6261
        %8593 = vmatpush1.bf16.msra.mxu0 %v6260
        %8594 = vmatprep.subr.bf16.mxu0 %v6269
        %8595 = vmatpush1.bf16.msra.mxu0 %v6268
        %8596 = vmatprep.subr.bf16.mxu0 %v6277
        %8597 = vmatpush1.bf16.msra.mxu0 %v6276
        %8598 = vmatprep.subr.bf16.mxu0 %v6285
        %8599 = vmatpush1.bf16.msra.mxu0 %v6284
        %8600 = vmatprep.subr.bf16.mxu0 %v6293
        %8601 = vmatpush1.bf16.msra.mxu0 %v6292
        %8602 = vmatprep.subr.bf16.mxu0 %v6301
        %8603 = vmatpush1.bf16.msra.mxu0 %v6300
        %8604 = vmatprep.subr.bf16.mxu0 %v6309
        %8605 = vmatpush1.bf16.msra.mxu0 %v6308
        %8606 = vmatprep.subr.bf16.mxu0 %v6317
        %8607 = vmatpush1.bf16.msra.mxu0 %v6316
        %8608 = vmatprep.subr.bf16.mxu0 %v6325
        %8609 = vmatpush1.bf16.msra.mxu0 %v6324
        %8610 = vmatprep.mubr.bf16.mxu0 %v2049
        %8611 = vmatmul.mubr.bf16.gmra.mrb[0].mxu0 %v2048
        %v8612 = vpop.f32.mrb[0].mxu0
        %v8613 = vadd.f32 %v3101, %v8612
        %v8614 = vpop.f32.mrb[0].mxu0
        %v8615 = vadd.f32 %v3105, %v8614
        %v8616 = vpop.f32.mrb[0].mxu0
        %v8617 = vpop.f32.mrb[0].mxu0
        %8618 = vdwg.mxu0
        %8619 = vmatprep.subr.bf16.mxu0 %v6333
        %8620 = vmatpush1.bf16.msra.mxu0 %v6332
        %8621 = vmatprep.subr.bf16.mxu0 %v6341
        %8622 = vmatpush1.bf16.msra.mxu0 %v6340
        %8623 = vmatprep.subr.bf16.mxu0 %v6349
        %8624 = vmatpush1.bf16.msra.mxu0 %v6348
        %8625 = vmatprep.subr.bf16.mxu0 %v6357
        %8626 = vmatpush1.bf16.msra.mxu0 %v6356
        %8627 = vmatprep.subr.bf16.mxu0 %v6365
        %8628 = vmatpush1.bf16.msra.mxu0 %v6364
        %8629 = vmatprep.subr.bf16.mxu0 %v6373
        %8630 = vmatpush1.bf16.msra.mxu0 %v6372
        %8631 = vmatprep.subr.bf16.mxu0 %v6381
        %8632 = vmatpush1.bf16.msra.mxu0 %v6380
        %8633 = vmatprep.subr.bf16.mxu0 %v6389
        %8634 = vmatpush1.bf16.msra.mxu0 %v6388
        %8635 = vmatprep.subr.bf16.mxu0 %v6397
        %8636 = vmatpush1.bf16.msra.mxu0 %v6396
        %8637 = vmatprep.subr.bf16.mxu0 %v6405
        %8638 = vmatpush1.bf16.msra.mxu0 %v6404
        %8639 = vmatprep.subr.bf16.mxu0 %v6413
        %8640 = vmatpush1.bf16.msra.mxu0 %v6412
        %8641 = vmatprep.subr.bf16.mxu0 %v6421
        %8642 = vmatpush1.bf16.msra.mxu0 %v6420
        %8643 = vmatprep.subr.bf16.mxu0 %v6429
        %8644 = vmatpush1.bf16.msra.mxu0 %v6428
        %8645 = vmatprep.subr.bf16.mxu0 %v6437
        %8646 = vmatpush1.bf16.msra.mxu0 %v6436
        %8647 = vmatprep.subr.bf16.mxu0 %v6445
        %8648 = vmatpush1.bf16.msra.mxu0 %v6444
        %8649 = vmatprep.subr.bf16.mxu0 %v6453
        %8650 = vmatpush1.bf16.msra.mxu0 %v6452
        %8651 = vmatprep.mubr.bf16.mxu0 %v2051
        %8652 = vmatmul.mubr.bf16.gmra.mrb[0].mxu0 %v2050
        %v8653 = vpop.f32.mrb[0].mxu0
        %v8654 = vadd.f32 %v8613, %v8653
        %v8655 = vpop.f32.mrb[0].mxu0
        %v8656 = vadd.f32 %v8615, %v8655
        %v8657 = vpop.f32.mrb[0].mxu0
        %v8658 = vpop.f32.mrb[0].mxu0
        %8659 = vdwg.mxu0
        %8660 = vmatprep.subr.bf16.mxu0 %v6461
        %8661 = vmatpush1.bf16.msra.mxu0 %v6460
        %8662 = vmatprep.subr.bf16.mxu0 %v6469
        %8663 = vmatpush1.bf16.msra.mxu0 %v6468
        %8664 = vmatprep.subr.bf16.mxu0 %v6477
        %8665 = vmatpush1.bf16.msra.mxu0 %v6476
        %8666 = vmatprep.subr.bf16.mxu0 %v6485
        %8667 = vmatpush1.bf16.msra.mxu0 %v6484
        %8668 = vmatprep.subr.bf16.mxu0 %v6493
        %8669 = vmatpush1.bf16.msra.mxu0 %v6492
        %8670 = vmatprep.subr.bf16.mxu0 %v6501
        %8671 = vmatpush1.bf16.msra.mxu0 %v6500
        %8672 = vmatprep.subr.bf16.mxu0 %v6509
        %8673 = vmatpush1.bf16.msra.mxu0 %v6508
        %8674 = vmatprep.subr.bf16.mxu0 %v6517
        %8675 = vmatpush1.bf16.msra.mxu0 %v6516
        %8676 = vmatprep.subr.bf16.mxu0 %v6525
        %8677 = vmatpush1.bf16.msra.mxu0 %v6524
        %8678 = vmatprep.subr.bf16.mxu0 %v6533
        %8679 = vmatpush1.bf16.msra.mxu0 %v6532
        %8680 = vmatprep.subr.bf16.mxu0 %v6541
        %8681 = vmatpush1.bf16.msra.mxu0 %v6540
        %8682 = vmatprep.subr.bf16.mxu0 %v6549
        %8683 = vmatpush1.bf16.msra.mxu0 %v6548
        %8684 = vmatprep.subr.bf16.mxu0 %v6557
        %8685 = vmatpush1.bf16.msra.mxu0 %v6556
        %8686 = vmatprep.subr.bf16.mxu0 %v6565
        %8687 = vmatpush1.bf16.msra.mxu0 %v6564
        %8688 = vmatprep.subr.bf16.mxu0 %v6573
        %8689 = vmatpush1.bf16.msra.mxu0 %v6572
        %8690 = vmatprep.subr.bf16.mxu0 %v6581
        %8691 = vmatpush1.bf16.msra.mxu0 %v6580
        %8692 = vmatprep.mubr.bf16.mxu0 %v2053
        %8693 = vmatmul.mubr.bf16.gmra.mrb[0].mxu0 %v2052
        %v8694 = vpop.f32.mrb[0].mxu0
        %v8695 = vadd.f32 %v8654, %v8694
        %v8696 = vpop.f32.mrb[0].mxu0
        %v8697 = vadd.f32 %v8656, %v8696
        %v8698 = vpop.f32.mrb[0].mxu0
        %v8699 = vpop.f32.mrb[0].mxu0
        %8700 = vdwg.mxu0
        %8701 = vmatprep.subr.bf16.mxu0 %v6589
        %8702 = vmatpush1.bf16.msra.mxu0 %v6588
        %8703 = vmatprep.subr.bf16.mxu0 %v6597
        %8704 = vmatpush1.bf16.msra.mxu0 %v6596
        %8705 = vmatprep.subr.bf16.mxu0 %v6605
        %8706 = vmatpush1.bf16.msra.mxu0 %v6604
        %8707 = vmatprep.subr.bf16.mxu0 %v6613
        %8708 = vmatpush1.bf16.msra.mxu0 %v6612
        %8709 = vmatprep.subr.bf16.mxu0 %v6621
        %8710 = vmatpush1.bf16.msra.mxu0 %v6620
        %8711 = vmatprep.subr.bf16.mxu0 %v6629
        %8712 = vmatpush1.bf16.msra.mxu0 %v6628
        %8713 = vmatprep.subr.bf16.mxu0 %v6637
        %8714 = vmatpush1.bf16.msra.mxu0 %v6636
        %8715 = vmatprep.subr.bf16.mxu0 %v6645
        %8716 = vmatpush1.bf16.msra.mxu0 %v6644
        %8717 = vmatprep.subr.bf16.mxu0 %v6653
        %8718 = vmatpush1.bf16.msra.mxu0 %v6652
        %8719 = vmatprep.subr.bf16.mxu0 %v6661
        %8720 = vmatpush1.bf16.msra.mxu0 %v6660
        %8721 = vmatprep.subr.bf16.mxu0 %v6669
        %8722 = vmatpush1.bf16.msra.mxu0 %v6668
        %8723 = vmatprep.subr.bf16.mxu0 %v6677
        %8724 = vmatpush1.bf16.msra.mxu0 %v6676
        %8725 = vmatprep.subr.bf16.mxu0 %v6685
        %8726 = vmatpush1.bf16.msra.mxu0 %v6684
        %8727 = vmatprep.subr.bf16.mxu0 %v6693
        %8728 = vmatpush1.bf16.msra.mxu0 %v6692
        %8729 = vmatprep.subr.bf16.mxu0 %v6701
        %8730 = vmatpush1.bf16.msra.mxu0 %v6700
        %8731 = vmatprep.subr.bf16.mxu0 %v6709
        %8732 = vmatpush1.bf16.msra.mxu0 %v6708
        %8733 = vmatprep.mubr.bf16.mxu0 %v2055
        %8734 = vmatmul.mubr.bf16.gmra.mrb[0].mxu0 %v2054
        %v8735 = vpop.f32.mrb[0].mxu0
        %v8736 = vadd.f32 %v8695, %v8735
        %v8737 = vpop.f32.mrb[0].mxu0
        %v8738 = vadd.f32 %v8697, %v8737
        %v8739 = vpop.f32.mrb[0].mxu0
        %v8740 = vpop.f32.mrb[0].mxu0
        %8741 = vdwg.mxu0
        %8742 = vmatprep.subr.bf16.mxu0 %v6717
        %8743 = vmatpush1.bf16.msra.mxu0 %v6716
        %8744 = vmatprep.subr.bf16.mxu0 %v6725
        %8745 = vmatpush1.bf16.msra.mxu0 %v6724
        %8746 = vmatprep.subr.bf16.mxu0 %v6733
        %8747 = vmatpush1.bf16.msra.mxu0 %v6732
        %8748 = vmatprep.subr.bf16.mxu0 %v6741
        %8749 = vmatpush1.bf16.msra.mxu0 %v6740
        %8750 = vmatprep.subr.bf16.mxu0 %v6749
        %8751 = vmatpush1.bf16.msra.mxu0 %v6748
        %8752 = vmatprep.subr.bf16.mxu0 %v6757
        %8753 = vmatpush1.bf16.msra.mxu0 %v6756
        %8754 = vmatprep.subr.bf16.mxu0 %v6765
        %8755 = vmatpush1.bf16.msra.mxu0 %v6764
        %8756 = vmatprep.subr.bf16.mxu0 %v6773
        %8757 = vmatpush1.bf16.msra.mxu0 %v6772
        %8758 = vmatprep.subr.bf16.mxu0 %v6781
        %8759 = vmatpush1.bf16.msra.mxu0 %v6780
        %8760 = vmatprep.subr.bf16.mxu0 %v6789
        %8761 = vmatpush1.bf16.msra.mxu0 %v6788
        %8762 = vmatprep.subr.bf16.mxu0 %v6797
        %8763 = vmatpush1.bf16.msra.mxu0 %v6796
        %8764 = vmatprep.subr.bf16.mxu0 %v6805
        %8765 = vmatpush1.bf16.msra.mxu0 %v6804
        %8766 = vmatprep.subr.bf16.mxu0 %v6813
        %8767 = vmatpush1.bf16.msra.mxu0 %v6812
        %8768 = vmatprep.subr.bf16.mxu0 %v6821
        %8769 = vmatpush1.bf16.msra.mxu0 %v6820
        %8770 = vmatprep.subr.bf16.mxu0 %v6829
        %8771 = vmatpush1.bf16.msra.mxu0 %v6828
        %8772 = vmatprep.subr.bf16.mxu0 %v6837
        %8773 = vmatpush1.bf16.msra.mxu0 %v6836
        %8774 = vmatprep.mubr.bf16.mxu0 %v2057
        %8775 = vmatmul.mubr.bf16.gmra.mrb[0].mxu0 %v2056
        %v8776 = vpop.f32.mrb[0].mxu0
        %v8777 = vadd.f32 %v8736, %v8776
        %v8778 = vpop.f32.mrb[0].mxu0
        %v8779 = vadd.f32 %v8738, %v8778
        %v8780 = vpop.f32.mrb[0].mxu0
        %v8781 = vpop.f32.mrb[0].mxu0
        %8782 = vdwg.mxu0
        %8783 = vmatprep.subr.bf16.mxu0 %v6845
        %8784 = vmatpush1.bf16.msra.mxu0 %v6844
        %8785 = vmatprep.subr.bf16.mxu0 %v6853
        %8786 = vmatpush1.bf16.msra.mxu0 %v6852
        %8787 = vmatprep.subr.bf16.mxu0 %v6861
        %8788 = vmatpush1.bf16.msra.mxu0 %v6860
        %8789 = vmatprep.subr.bf16.mxu0 %v6869
        %8790 = vmatpush1.bf16.msra.mxu0 %v6868
        %8791 = vmatprep.subr.bf16.mxu0 %v6877
        %8792 = vmatpush1.bf16.msra.mxu0 %v6876
        %8793 = vmatprep.subr.bf16.mxu0 %v6885
        %8794 = vmatpush1.bf16.msra.mxu0 %v6884
        %8795 = vmatprep.subr.bf16.mxu0 %v6893
        %8796 = vmatpush1.bf16.msra.mxu0 %v6892
        %8797 = vmatprep.subr.bf16.mxu0 %v6901
        %8798 = vmatpush1.bf16.msra.mxu0 %v6900
        %8799 = vmatprep.subr.bf16.mxu0 %v6909
        %8800 = vmatpush1.bf16.msra.mxu0 %v6908
        %8801 = vmatprep.subr.bf16.mxu0 %v6917
        %8802 = vmatpush1.bf16.msra.mxu0 %v6916
        %8803 = vmatprep.subr.bf16.mxu0 %v6925
        %8804 = vmatpush1.bf16.msra.mxu0 %v6924
        %8805 = vmatprep.subr.bf16.mxu0 %v6933
        %8806 = vmatpush1.bf16.msra.mxu0 %v6932
        %8807 = vmatprep.subr.bf16.mxu0 %v6941
        %8808 = vmatpush1.bf16.msra.mxu0 %v6940
        %8809 = vmatprep.subr.bf16.mxu0 %v6949
        %8810 = vmatpush1.bf16.msra.mxu0 %v6948
        %8811 = vmatprep.subr.bf16.mxu0 %v6957
        %8812 = vmatpush1.bf16.msra.mxu0 %v6956
        %8813 = vmatprep.subr.bf16.mxu0 %v6965
        %8814 = vmatpush1.bf16.msra.mxu0 %v6964
        %8815 = vmatprep.mubr.bf16.mxu0 %v2059
        %8816 = vmatmul.mubr.bf16.gmra.mrb[0].mxu0 %v2058
        %v8817 = vpop.f32.mrb[0].mxu0
        %v8818 = vadd.f32 %v8777, %v8817
        %v8819 = vpop.f32.mrb[0].mxu0
        %v8820 = vadd.f32 %v8779, %v8819
        %v8821 = vpop.f32.mrb[0].mxu0
        %v8822 = vpop.f32.mrb[0].mxu0
        %8823 = vdwg.mxu0
        %8824 = vmatprep.subr.bf16.mxu0 %v6973
        %8825 = vmatpush1.bf16.msra.mxu0 %v6972
        %8826 = vmatprep.subr.bf16.mxu0 %v6981
        %8827 = vmatpush1.bf16.msra.mxu0 %v6980
        %8828 = vmatprep.subr.bf16.mxu0 %v6989
        %8829 = vmatpush1.bf16.msra.mxu0 %v6988
        %8830 = vmatprep.subr.bf16.mxu0 %v6997
        %8831 = vmatpush1.bf16.msra.mxu0 %v6996
        %8832 = vmatprep.subr.bf16.mxu0 %v7005
        %8833 = vmatpush1.bf16.msra.mxu0 %v7004
        %8834 = vmatprep.subr.bf16.mxu0 %v7013
        %8835 = vmatpush1.bf16.msra.mxu0 %v7012
        %8836 = vmatprep.subr.bf16.mxu0 %v7021
        %8837 = vmatpush1.bf16.msra.mxu0 %v7020
        %8838 = vmatprep.subr.bf16.mxu0 %v7029
        %8839 = vmatpush1.bf16.msra.mxu0 %v7028
        %8840 = vmatprep.subr.bf16.mxu0 %v7037
        %8841 = vmatpush1.bf16.msra.mxu0 %v7036
        %8842 = vmatprep.subr.bf16.mxu0 %v7045
        %8843 = vmatpush1.bf16.msra.mxu0 %v7044
        %8844 = vmatprep.subr.bf16.mxu0 %v7053
        %8845 = vmatpush1.bf16.msra.mxu0 %v7052
        %8846 = vmatprep.subr.bf16.mxu0 %v7061
        %8847 = vmatpush1.bf16.msra.mxu0 %v7060
        %8848 = vmatprep.subr.bf16.mxu0 %v7069
        %8849 = vmatpush1.bf16.msra.mxu0 %v7068
        %8850 = vmatprep.subr.bf16.mxu0 %v7077
        %8851 = vmatpush1.bf16.msra.mxu0 %v7076
        %8852 = vmatprep.subr.bf16.mxu0 %v7085
        %8853 = vmatpush1.bf16.msra.mxu0 %v7084
        %8854 = vmatprep.subr.bf16.mxu0 %v7093
        %8855 = vmatpush1.bf16.msra.mxu0 %v7092
        %8856 = vmatprep.mubr.bf16.mxu0 %v2061
        %8857 = vmatmul.mubr.bf16.gmra.mrb[0].mxu0 %v2060
        %v8858 = vpop.f32.mrb[0].mxu0
        %v8859 = vadd.f32 %v8818, %v8858
        %v8860 = vpop.f32.mrb[0].mxu0
        %v8861 = vadd.f32 %v8820, %v8860
        %v8862 = vpop.f32.mrb[0].mxu0
        %v8863 = vpop.f32.mrb[0].mxu0
        %8864 = vdwg.mxu0
        %8865 = vmatprep.subr.bf16.mxu0 %v7101
        %8866 = vmatpush1.bf16.msra.mxu0 %v7100
        %8867 = vmatprep.subr.bf16.mxu0 %v7109
        %8868 = vmatpush1.bf16.msra.mxu0 %v7108
        %8869 = vmatprep.subr.bf16.mxu0 %v7117
        %8870 = vmatpush1.bf16.msra.mxu0 %v7116
        %8871 = vmatprep.subr.bf16.mxu0 %v7125
        %8872 = vmatpush1.bf16.msra.mxu0 %v7124
        %8873 = vmatprep.subr.bf16.mxu0 %v7133
        %8874 = vmatpush1.bf16.msra.mxu0 %v7132
        %8875 = vmatprep.subr.bf16.mxu0 %v7141
        %8876 = vmatpush1.bf16.msra.mxu0 %v7140
        %8877 = vmatprep.subr.bf16.mxu0 %v7149
        %8878 = vmatpush1.bf16.msra.mxu0 %v7148
        %8879 = vmatprep.subr.bf16.mxu0 %v7157
        %8880 = vmatpush1.bf16.msra.mxu0 %v7156
        %8881 = vmatprep.subr.bf16.mxu0 %v7165
        %8882 = vmatpush1.bf16.msra.mxu0 %v7164
        %8883 = vmatprep.subr.bf16.mxu0 %v7173
        %8884 = vmatpush1.bf16.msra.mxu0 %v7172
        %8885 = vmatprep.subr.bf16.mxu0 %v7181
        %8886 = vmatpush1.bf16.msra.mxu0 %v7180
        %8887 = vmatprep.subr.bf16.mxu0 %v7189
        %8888 = vmatpush1.bf16.msra.mxu0 %v7188
        %8889 = vmatprep.subr.bf16.mxu0 %v7197
        %8890 = vmatpush1.bf16.msra.mxu0 %v7196
        %8891 = vmatprep.subr.bf16.mxu0 %v7205
        %8892 = vmatpush1.bf16.msra.mxu0 %v7204
        %8893 = vmatprep.subr.bf16.mxu0 %v7213
        %8894 = vmatpush1.bf16.msra.mxu0 %v7212
        %8895 = vmatprep.subr.bf16.mxu0 %v7221
        %8896 = vmatpush1.bf16.msra.mxu0 %v7220
        %8897 = vmatprep.mubr.bf16.mxu0 %v2063
        %8898 = vmatmul.mubr.bf16.gmra.mrb[0].mxu0 %v2062
        %v8899 = vpop.f32.mrb[0].mxu0
        %v8900 = vadd.f32 %v8859, %v8899
        %v8901 = vpop.f32.mrb[0].mxu0
        %v8902 = vadd.f32 %v8861, %v8901
        %v8903 = vpop.f32.mrb[0].mxu0
        %v8904 = vpop.f32.mrb[0].mxu0
        %8905 = vdwg.mxu0
        %8906 = vmatprep.subr.bf16.mxu0 %v6207
        %8907 = vmatpush1.bf16.msra.mxu0 %v6206
        %8908 = vmatprep.subr.bf16.mxu0 %v6215
        %8909 = vmatpush1.bf16.msra.mxu0 %v6214
        %8910 = vmatprep.subr.bf16.mxu0 %v6223
        %8911 = vmatpush1.bf16.msra.mxu0 %v6222
        %8912 = vmatprep.subr.bf16.mxu0 %v6231
        %8913 = vmatpush1.bf16.msra.mxu0 %v6230
        %8914 = vmatprep.subr.bf16.mxu0 %v6239
        %8915 = vmatpush1.bf16.msra.mxu0 %v6238
        %8916 = vmatprep.subr.bf16.mxu0 %v6247
        %8917 = vmatpush1.bf16.msra.mxu0 %v6246
        %8918 = vmatprep.subr.bf16.mxu0 %v6255
        %8919 = vmatpush1.bf16.msra.mxu0 %v6254
        %8920 = vmatprep.subr.bf16.mxu0 %v6263
        %8921 = vmatpush1.bf16.msra.mxu0 %v6262
        %8922 = vmatprep.subr.bf16.mxu0 %v6271
        %8923 = vmatpush1.bf16.msra.mxu0 %v6270
        %8924 = vmatprep.subr.bf16.mxu0 %v6279
        %8925 = vmatpush1.bf16.msra.mxu0 %v6278
        %8926 = vmatprep.subr.bf16.mxu0 %v6287
        %8927 = vmatpush1.bf16.msra.mxu0 %v6286
        %8928 = vmatprep.subr.bf16.mxu0 %v6295
        %8929 = vmatpush1.bf16.msra.mxu0 %v6294
        %8930 = vmatprep.subr.bf16.mxu0 %v6303
        %8931 = vmatpush1.bf16.msra.mxu0 %v6302
        %8932 = vmatprep.subr.bf16.mxu0 %v6311
        %8933 = vmatpush1.bf16.msra.mxu0 %v6310
        %8934 = vmatprep.subr.bf16.mxu0 %v6319
        %8935 = vmatpush1.bf16.msra.mxu0 %v6318
        %8936 = vmatprep.subr.bf16.mxu0 %v6327
        %8937 = vmatpush1.bf16.msra.mxu0 %v6326
        %8938 = vmatprep.mubr.bf16.mxu0 %v2049
        %8939 = vmatmul.mubr.bf16.gmra.mrb[0].mxu0 %v2048
        %v8940 = vpop.f32.mrb[0].mxu0
        %v8941 = vadd.f32 %v3109, %v8940
        %v8942 = vpop.f32.mrb[0].mxu0
        %v8943 = vadd.f32 %v3113, %v8942
        %v8944 = vpop.f32.mrb[0].mxu0
        %v8945 = vpop.f32.mrb[0].mxu0
        %8946 = vdwg.mxu0
        %8947 = vmatprep.subr.bf16.mxu0 %v6335
        %8948 = vmatpush1.bf16.msra.mxu0 %v6334
        %8949 = vmatprep.subr.bf16.mxu0 %v6343
        %8950 = vmatpush1.bf16.msra.mxu0 %v6342
        %8951 = vmatprep.subr.bf16.mxu0 %v6351
        %8952 = vmatpush1.bf16.msra.mxu0 %v6350
        %8953 = vmatprep.subr.bf16.mxu0 %v6359
        %8954 = vmatpush1.bf16.msra.mxu0 %v6358
        %8955 = vmatprep.subr.bf16.mxu0 %v6367
        %8956 = vmatpush1.bf16.msra.mxu0 %v6366
        %8957 = vmatprep.subr.bf16.mxu0 %v6375
        %8958 = vmatpush1.bf16.msra.mxu0 %v6374
        %8959 = vmatprep.subr.bf16.mxu0 %v6383
        %8960 = vmatpush1.bf16.msra.mxu0 %v6382
        %8961 = vmatprep.subr.bf16.mxu0 %v6391
        %8962 = vmatpush1.bf16.msra.mxu0 %v6390
        %8963 = vmatprep.subr.bf16.mxu0 %v6399
        %8964 = vmatpush1.bf16.msra.mxu0 %v6398
        %8965 = vmatprep.subr.bf16.mxu0 %v6407
        %8966 = vmatpush1.bf16.msra.mxu0 %v6406
        %8967 = vmatprep.subr.bf16.mxu0 %v6415
        %8968 = vmatpush1.bf16.msra.mxu0 %v6414
        %8969 = vmatprep.subr.bf16.mxu0 %v6423
        %8970 = vmatpush1.bf16.msra.mxu0 %v6422
        %8971 = vmatprep.subr.bf16.mxu0 %v6431
        %8972 = vmatpush1.bf16.msra.mxu0 %v6430
        %8973 = vmatprep.subr.bf16.mxu0 %v6439
        %8974 = vmatpush1.bf16.msra.mxu0 %v6438
        %8975 = vmatprep.subr.bf16.mxu0 %v6447
        %8976 = vmatpush1.bf16.msra.mxu0 %v6446
        %8977 = vmatprep.subr.bf16.mxu0 %v6455
        %8978 = vmatpush1.bf16.msra.mxu0 %v6454
        %8979 = vmatprep.mubr.bf16.mxu0 %v2051
        %8980 = vmatmul.mubr.bf16.gmra.mrb[0].mxu0 %v2050
        %v8981 = vpop.f32.mrb[0].mxu0
        %v8982 = vadd.f32 %v8941, %v8981
        %v8983 = vpop.f32.mrb[0].mxu0
        %v8984 = vadd.f32 %v8943, %v8983
        %v8985 = vpop.f32.mrb[0].mxu0
        %v8986 = vpop.f32.mrb[0].mxu0
        %8987 = vdwg.mxu0
        %8988 = vmatprep.subr.bf16.mxu0 %v6463
        %8989 = vmatpush1.bf16.msra.mxu0 %v6462
        %8990 = vmatprep.subr.bf16.mxu0 %v6471
        %8991 = vmatpush1.bf16.msra.mxu0 %v6470
        %8992 = vmatprep.subr.bf16.mxu0 %v6479
        %8993 = vmatpush1.bf16.msra.mxu0 %v6478
        %8994 = vmatprep.subr.bf16.mxu0 %v6487
        %8995 = vmatpush1.bf16.msra.mxu0 %v6486
        %8996 = vmatprep.subr.bf16.mxu0 %v6495
        %8997 = vmatpush1.bf16.msra.mxu0 %v6494
        %8998 = vmatprep.subr.bf16.mxu0 %v6503
        %8999 = vmatpush1.bf16.msra.mxu0 %v6502
        %9000 = vmatprep.subr.bf16.mxu0 %v6511
        %9001 = vmatpush1.bf16.msra.mxu0 %v6510
        %9002 = vmatprep.subr.bf16.mxu0 %v6519
        %9003 = vmatpush1.bf16.msra.mxu0 %v6518
        %9004 = vmatprep.subr.bf16.mxu0 %v6527
        %9005 = vmatpush1.bf16.msra.mxu0 %v6526
        %9006 = vmatprep.subr.bf16.mxu0 %v6535
        %9007 = vmatpush1.bf16.msra.mxu0 %v6534
        %9008 = vmatprep.subr.bf16.mxu0 %v6543
        %9009 = vmatpush1.bf16.msra.mxu0 %v6542
        %9010 = vmatprep.subr.bf16.mxu0 %v6551
        %9011 = vmatpush1.bf16.msra.mxu0 %v6550
        %9012 = vmatprep.subr.bf16.mxu0 %v6559
        %9013 = vmatpush1.bf16.msra.mxu0 %v6558
        %9014 = vmatprep.subr.bf16.mxu0 %v6567
        %9015 = vmatpush1.bf16.msra.mxu0 %v6566
        %9016 = vmatprep.subr.bf16.mxu0 %v6575
        %9017 = vmatpush1.bf16.msra.mxu0 %v6574
        %9018 = vmatprep.subr.bf16.mxu0 %v6583
        %9019 = vmatpush1.bf16.msra.mxu0 %v6582
        %9020 = vmatprep.mubr.bf16.mxu0 %v2053
        %9021 = vmatmul.mubr.bf16.gmra.mrb[0].mxu0 %v2052
        %v9022 = vpop.f32.mrb[0].mxu0
        %v9023 = vadd.f32 %v8982, %v9022
        %v9024 = vpop.f32.mrb[0].mxu0
        %v9025 = vadd.f32 %v8984, %v9024
        %v9026 = vpop.f32.mrb[0].mxu0
        %v9027 = vpop.f32.mrb[0].mxu0
        %9028 = vdwg.mxu0
        %9029 = vmatprep.subr.bf16.mxu0 %v6591
        %9030 = vmatpush1.bf16.msra.mxu0 %v6590
        %9031 = vmatprep.subr.bf16.mxu0 %v6599
        %9032 = vmatpush1.bf16.msra.mxu0 %v6598
        %9033 = vmatprep.subr.bf16.mxu0 %v6607
        %9034 = vmatpush1.bf16.msra.mxu0 %v6606
        %9035 = vmatprep.subr.bf16.mxu0 %v6615
        %9036 = vmatpush1.bf16.msra.mxu0 %v6614
        %9037 = vmatprep.subr.bf16.mxu0 %v6623
        %9038 = vmatpush1.bf16.msra.mxu0 %v6622
        %9039 = vmatprep.subr.bf16.mxu0 %v6631
        %9040 = vmatpush1.bf16.msra.mxu0 %v6630
        %9041 = vmatprep.subr.bf16.mxu0 %v6639
        %9042 = vmatpush1.bf16.msra.mxu0 %v6638
        %9043 = vmatprep.subr.bf16.mxu0 %v6647
        %9044 = vmatpush1.bf16.msra.mxu0 %v6646
        %9045 = vmatprep.subr.bf16.mxu0 %v6655
        %9046 = vmatpush1.bf16.msra.mxu0 %v6654
        %9047 = vmatprep.subr.bf16.mxu0 %v6663
        %9048 = vmatpush1.bf16.msra.mxu0 %v6662
        %9049 = vmatprep.subr.bf16.mxu0 %v6671
        %9050 = vmatpush1.bf16.msra.mxu0 %v6670
        %9051 = vmatprep.subr.bf16.mxu0 %v6679
        %9052 = vmatpush1.bf16.msra.mxu0 %v6678
        %9053 = vmatprep.subr.bf16.mxu0 %v6687
        %9054 = vmatpush1.bf16.msra.mxu0 %v6686
        %9055 = vmatprep.subr.bf16.mxu0 %v6695
        %9056 = vmatpush1.bf16.msra.mxu0 %v6694
        %9057 = vmatprep.subr.bf16.mxu0 %v6703
        %9058 = vmatpush1.bf16.msra.mxu0 %v6702
        %9059 = vmatprep.subr.bf16.mxu0 %v6711
        %9060 = vmatpush1.bf16.msra.mxu0 %v6710
        %9061 = vmatprep.mubr.bf16.mxu0 %v2055
        %9062 = vmatmul.mubr.bf16.gmra.mrb[0].mxu0 %v2054
        %v9063 = vpop.f32.mrb[0].mxu0
        %v9064 = vadd.f32 %v9023, %v9063
        %v9065 = vpop.f32.mrb[0].mxu0
        %v9066 = vadd.f32 %v9025, %v9065
        %v9067 = vpop.f32.mrb[0].mxu0
        %v9068 = vpop.f32.mrb[0].mxu0
        %9069 = vdwg.mxu0
        %9070 = vmatprep.subr.bf16.mxu0 %v6719
        %9071 = vmatpush1.bf16.msra.mxu0 %v6718
        %9072 = vmatprep.subr.bf16.mxu0 %v6727
        %9073 = vmatpush1.bf16.msra.mxu0 %v6726
        %9074 = vmatprep.subr.bf16.mxu0 %v6735
        %9075 = vmatpush1.bf16.msra.mxu0 %v6734
        %9076 = vmatprep.subr.bf16.mxu0 %v6743
        %9077 = vmatpush1.bf16.msra.mxu0 %v6742
        %9078 = vmatprep.subr.bf16.mxu0 %v6751
        %9079 = vmatpush1.bf16.msra.mxu0 %v6750
        %9080 = vmatprep.subr.bf16.mxu0 %v6759
        %9081 = vmatpush1.bf16.msra.mxu0 %v6758
        %9082 = vmatprep.subr.bf16.mxu0 %v6767
        %9083 = vmatpush1.bf16.msra.mxu0 %v6766
        %9084 = vmatprep.subr.bf16.mxu0 %v6775
        %9085 = vmatpush1.bf16.msra.mxu0 %v6774
        %9086 = vmatprep.subr.bf16.mxu0 %v6783
        %9087 = vmatpush1.bf16.msra.mxu0 %v6782
        %9088 = vmatprep.subr.bf16.mxu0 %v6791
        %9089 = vmatpush1.bf16.msra.mxu0 %v6790
        %9090 = vmatprep.subr.bf16.mxu0 %v6799
        %9091 = vmatpush1.bf16.msra.mxu0 %v6798
        %9092 = vmatprep.subr.bf16.mxu0 %v6807
        %9093 = vmatpush1.bf16.msra.mxu0 %v6806
        %9094 = vmatprep.subr.bf16.mxu0 %v6815
        %9095 = vmatpush1.bf16.msra.mxu0 %v6814
        %9096 = vmatprep.subr.bf16.mxu0 %v6823
        %9097 = vmatpush1.bf16.msra.mxu0 %v6822
        %9098 = vmatprep.subr.bf16.mxu0 %v6831
        %9099 = vmatpush1.bf16.msra.mxu0 %v6830
        %9100 = vmatprep.subr.bf16.mxu0 %v6839
        %9101 = vmatpush1.bf16.msra.mxu0 %v6838
        %9102 = vmatprep.mubr.bf16.mxu0 %v2057
        %9103 = vmatmul.mubr.bf16.gmra.mrb[0].mxu0 %v2056
        %v9104 = vpop.f32.mrb[0].mxu0
        %v9105 = vadd.f32 %v9064, %v9104
        %v9106 = vpop.f32.mrb[0].mxu0
        %v9107 = vadd.f32 %v9066, %v9106
        %v9108 = vpop.f32.mrb[0].mxu0
        %v9109 = vpop.f32.mrb[0].mxu0
        %9110 = vdwg.mxu0
        %9111 = vmatprep.subr.bf16.mxu0 %v6847
        %9112 = vmatpush1.bf16.msra.mxu0 %v6846
        %9113 = vmatprep.subr.bf16.mxu0 %v6855
        %9114 = vmatpush1.bf16.msra.mxu0 %v6854
        %9115 = vmatprep.subr.bf16.mxu0 %v6863
        %9116 = vmatpush1.bf16.msra.mxu0 %v6862
        %9117 = vmatprep.subr.bf16.mxu0 %v6871
        %9118 = vmatpush1.bf16.msra.mxu0 %v6870
        %9119 = vmatprep.subr.bf16.mxu0 %v6879
        %9120 = vmatpush1.bf16.msra.mxu0 %v6878
        %9121 = vmatprep.subr.bf16.mxu0 %v6887
        %9122 = vmatpush1.bf16.msra.mxu0 %v6886
        %9123 = vmatprep.subr.bf16.mxu0 %v6895
        %9124 = vmatpush1.bf16.msra.mxu0 %v6894
        %9125 = vmatprep.subr.bf16.mxu0 %v6903
        %9126 = vmatpush1.bf16.msra.mxu0 %v6902
        %9127 = vmatprep.subr.bf16.mxu0 %v6911
        %9128 = vmatpush1.bf16.msra.mxu0 %v6910
        %9129 = vmatprep.subr.bf16.mxu0 %v6919
        %9130 = vmatpush1.bf16.msra.mxu0 %v6918
        %9131 = vmatprep.subr.bf16.mxu0 %v6927
        %9132 = vmatpush1.bf16.msra.mxu0 %v6926
        %9133 = vmatprep.subr.bf16.mxu0 %v6935
        %9134 = vmatpush1.bf16.msra.mxu0 %v6934
        %9135 = vmatprep.subr.bf16.mxu0 %v6943
        %9136 = vmatpush1.bf16.msra.mxu0 %v6942
        %9137 = vmatprep.subr.bf16.mxu0 %v6951
        %9138 = vmatpush1.bf16.msra.mxu0 %v6950
        %9139 = vmatprep.subr.bf16.mxu0 %v6959
        %9140 = vmatpush1.bf16.msra.mxu0 %v6958
        %9141 = vmatprep.subr.bf16.mxu0 %v6967
        %9142 = vmatpush1.bf16.msra.mxu0 %v6966
        %9143 = vmatprep.mubr.bf16.mxu0 %v2059
        %9144 = vmatmul.mubr.bf16.gmra.mrb[0].mxu0 %v2058
        %v9145 = vpop.f32.mrb[0].mxu0
        %v9146 = vadd.f32 %v9105, %v9145
        %v9147 = vpop.f32.mrb[0].mxu0
        %v9148 = vadd.f32 %v9107, %v9147
        %v9149 = vpop.f32.mrb[0].mxu0
        %v9150 = vpop.f32.mrb[0].mxu0
        %9151 = vdwg.mxu0
        %9152 = vmatprep.subr.bf16.mxu0 %v6975
        %9153 = vmatpush1.bf16.msra.mxu0 %v6974
        %9154 = vmatprep.subr.bf16.mxu0 %v6983
        %9155 = vmatpush1.bf16.msra.mxu0 %v6982
        %9156 = vmatprep.subr.bf16.mxu0 %v6991
        %9157 = vmatpush1.bf16.msra.mxu0 %v6990
        %9158 = vmatprep.subr.bf16.mxu0 %v6999
        %9159 = vmatpush1.bf16.msra.mxu0 %v6998
        %9160 = vmatprep.subr.bf16.mxu0 %v7007
        %9161 = vmatpush1.bf16.msra.mxu0 %v7006
        %9162 = vmatprep.subr.bf16.mxu0 %v7015
        %9163 = vmatpush1.bf16.msra.mxu0 %v7014
        %9164 = vmatprep.subr.bf16.mxu0 %v7023
        %9165 = vmatpush1.bf16.msra.mxu0 %v7022
        %9166 = vmatprep.subr.bf16.mxu0 %v7031
        %9167 = vmatpush1.bf16.msra.mxu0 %v7030
        %9168 = vmatprep.subr.bf16.mxu0 %v7039
        %9169 = vmatpush1.bf16.msra.mxu0 %v7038
        %9170 = vmatprep.subr.bf16.mxu0 %v7047
        %9171 = vmatpush1.bf16.msra.mxu0 %v7046
        %9172 = vmatprep.subr.bf16.mxu0 %v7055
        %9173 = vmatpush1.bf16.msra.mxu0 %v7054
        %9174 = vmatprep.subr.bf16.mxu0 %v7063
        %9175 = vmatpush1.bf16.msra.mxu0 %v7062
        %9176 = vmatprep.subr.bf16.mxu0 %v7071
        %9177 = vmatpush1.bf16.msra.mxu0 %v7070
        %9178 = vmatprep.subr.bf16.mxu0 %v7079
        %9179 = vmatpush1.bf16.msra.mxu0 %v7078
        %9180 = vmatprep.subr.bf16.mxu0 %v7087
        %9181 = vmatpush1.bf16.msra.mxu0 %v7086
        %9182 = vmatprep.subr.bf16.mxu0 %v7095
        %9183 = vmatpush1.bf16.msra.mxu0 %v7094
        %9184 = vmatprep.mubr.bf16.mxu0 %v2061
        %9185 = vmatmul.mubr.bf16.gmra.mrb[0].mxu0 %v2060
        %v9186 = vpop.f32.mrb[0].mxu0
        %v9187 = vadd.f32 %v9146, %v9186
        %v9188 = vpop.f32.mrb[0].mxu0
        %v9189 = vadd.f32 %v9148, %v9188
        %v9190 = vpop.f32.mrb[0].mxu0
        %v9191 = vpop.f32.mrb[0].mxu0
        %9192 = vdwg.mxu0
        %9193 = vmatprep.subr.bf16.mxu0 %v7103
        %9194 = vmatpush1.bf16.msra.mxu0 %v7102
        %9195 = vmatprep.subr.bf16.mxu0 %v7111
        %9196 = vmatpush1.bf16.msra.mxu0 %v7110
        %9197 = vmatprep.subr.bf16.mxu0 %v7119
        %9198 = vmatpush1.bf16.msra.mxu0 %v7118
        %9199 = vmatprep.subr.bf16.mxu0 %v7127
        %9200 = vmatpush1.bf16.msra.mxu0 %v7126
        %9201 = vmatprep.subr.bf16.mxu0 %v7135
        %9202 = vmatpush1.bf16.msra.mxu0 %v7134
        %9203 = vmatprep.subr.bf16.mxu0 %v7143
        %9204 = vmatpush1.bf16.msra.mxu0 %v7142
        %9205 = vmatprep.subr.bf16.mxu0 %v7151
        %9206 = vmatpush1.bf16.msra.mxu0 %v7150
        %9207 = vmatprep.subr.bf16.mxu0 %v7159
        %9208 = vmatpush1.bf16.msra.mxu0 %v7158
        %9209 = vmatprep.subr.bf16.mxu0 %v7167
        %9210 = vmatpush1.bf16.msra.mxu0 %v7166
        %9211 = vmatprep.subr.bf16.mxu0 %v7175
        %9212 = vmatpush1.bf16.msra.mxu0 %v7174
        %9213 = vmatprep.subr.bf16.mxu0 %v7183
        %9214 = vmatpush1.bf16.msra.mxu0 %v7182
        %9215 = vmatprep.subr.bf16.mxu0 %v7191
        %9216 = vmatpush1.bf16.msra.mxu0 %v7190
        %9217 = vmatprep.subr.bf16.mxu0 %v7199
        %9218 = vmatpush1.bf16.msra.mxu0 %v7198
        %9219 = vmatprep.subr.bf16.mxu0 %v7207
        %9220 = vmatpush1.bf16.msra.mxu0 %v7206
        %9221 = vmatprep.subr.bf16.mxu0 %v7215
        %9222 = vmatpush1.bf16.msra.mxu0 %v7214
        %9223 = vmatprep.subr.bf16.mxu0 %v7223
        %9224 = vmatpush1.bf16.msra.mxu0 %v7222
        %9225 = vmatprep.mubr.bf16.mxu0 %v2063
        %9226 = vmatmul.mubr.bf16.gmra.mrb[0].mxu0 %v2062
        %v9227 = vpop.f32.mrb[0].mxu0
        %v9228 = vadd.f32 %v9187, %v9227
        %v9229 = vpop.f32.mrb[0].mxu0
        %v9230 = vadd.f32 %v9189, %v9229
        %v9231 = vpop.f32.mrb[0].mxu0
        %v9232 = vpop.f32.mrb[0].mxu0
        %9233 = vdwg.mxu0
        %9234 = vmatprep.subr.bf16.mxu0 %v6209
        %9235 = vmatpush1.bf16.msra.mxu0 %v6208
        %9236 = vmatprep.subr.bf16.mxu0 %v6217
        %9237 = vmatpush1.bf16.msra.mxu0 %v6216
        %9238 = vmatprep.subr.bf16.mxu0 %v6225
        %9239 = vmatpush1.bf16.msra.mxu0 %v6224
        %9240 = vmatprep.subr.bf16.mxu0 %v6233
        %9241 = vmatpush1.bf16.msra.mxu0 %v6232
        %9242 = vmatprep.subr.bf16.mxu0 %v6241
        %9243 = vmatpush1.bf16.msra.mxu0 %v6240
        %9244 = vmatprep.subr.bf16.mxu0 %v6249
        %9245 = vmatpush1.bf16.msra.mxu0 %v6248
        %9246 = vmatprep.subr.bf16.mxu0 %v6257
        %9247 = vmatpush1.bf16.msra.mxu0 %v6256
        %9248 = vmatprep.subr.bf16.mxu0 %v6265
        %9249 = vmatpush1.bf16.msra.mxu0 %v6264
        %9250 = vmatprep.subr.bf16.mxu0 %v6273
        %9251 = vmatpush1.bf16.msra.mxu0 %v6272
        %9252 = vmatprep.subr.bf16.mxu0 %v6281
        %9253 = vmatpush1.bf16.msra.mxu0 %v6280
        %9254 = vmatprep.subr.bf16.mxu0 %v6289
        %9255 = vmatpush1.bf16.msra.mxu0 %v6288
        %9256 = vmatprep.subr.bf16.mxu0 %v6297
        %9257 = vmatpush1.bf16.msra.mxu0 %v6296
        %9258 = vmatprep.subr.bf16.mxu0 %v6305
        %9259 = vmatpush1.bf16.msra.mxu0 %v6304
        %9260 = vmatprep.subr.bf16.mxu0 %v6313
        %9261 = vmatpush1.bf16.msra.mxu0 %v6312
        %9262 = vmatprep.subr.bf16.mxu0 %v6321
        %9263 = vmatpush1.bf16.msra.mxu0 %v6320
        %9264 = vmatprep.subr.bf16.mxu0 %v6329
        %9265 = vmatpush1.bf16.msra.mxu0 %v6328
        %9266 = vmatprep.mubr.bf16.mxu0 %v2049
        %9267 = vmatmul.mubr.bf16.gmra.mrb[0].mxu0 %v2048
        %v9268 = vpop.f32.mrb[0].mxu0
        %v9269 = vadd.f32 %v3117, %v9268
        %v9270 = vpop.f32.mrb[0].mxu0
        %v9271 = vadd.f32 %v3121, %v9270
        %v9272 = vpop.f32.mrb[0].mxu0
        %v9273 = vpop.f32.mrb[0].mxu0
        %9274 = vdwg.mxu0
        %9275 = vmatprep.subr.bf16.mxu0 %v6337
        %9276 = vmatpush1.bf16.msra.mxu0 %v6336
        %9277 = vmatprep.subr.bf16.mxu0 %v6345
        %9278 = vmatpush1.bf16.msra.mxu0 %v6344
        %9279 = vmatprep.subr.bf16.mxu0 %v6353
        %9280 = vmatpush1.bf16.msra.mxu0 %v6352
        %9281 = vmatprep.subr.bf16.mxu0 %v6361
        %9282 = vmatpush1.bf16.msra.mxu0 %v6360
        %9283 = vmatprep.subr.bf16.mxu0 %v6369
        %9284 = vmatpush1.bf16.msra.mxu0 %v6368
        %9285 = vmatprep.subr.bf16.mxu0 %v6377
        %9286 = vmatpush1.bf16.msra.mxu0 %v6376
        %9287 = vmatprep.subr.bf16.mxu0 %v6385
        %9288 = vmatpush1.bf16.msra.mxu0 %v6384
        %9289 = vmatprep.subr.bf16.mxu0 %v6393
        %9290 = vmatpush1.bf16.msra.mxu0 %v6392
        %9291 = vmatprep.subr.bf16.mxu0 %v6401
        %9292 = vmatpush1.bf16.msra.mxu0 %v6400
        %9293 = vmatprep.subr.bf16.mxu0 %v6409
        %9294 = vmatpush1.bf16.msra.mxu0 %v6408
        %9295 = vmatprep.subr.bf16.mxu0 %v6417
        %9296 = vmatpush1.bf16.msra.mxu0 %v6416
        %9297 = vmatprep.subr.bf16.mxu0 %v6425
        %9298 = vmatpush1.bf16.msra.mxu0 %v6424
        %9299 = vmatprep.subr.bf16.mxu0 %v6433
        %9300 = vmatpush1.bf16.msra.mxu0 %v6432
        %9301 = vmatprep.subr.bf16.mxu0 %v6441
        %9302 = vmatpush1.bf16.msra.mxu0 %v6440
        %9303 = vmatprep.subr.bf16.mxu0 %v6449
        %9304 = vmatpush1.bf16.msra.mxu0 %v6448
        %9305 = vmatprep.subr.bf16.mxu0 %v6457
        %9306 = vmatpush1.bf16.msra.mxu0 %v6456
        %9307 = vmatprep.mubr.bf16.mxu0 %v2051
        %9308 = vmatmul.mubr.bf16.gmra.mrb[0].mxu0 %v2050
        %v9309 = vpop.f32.mrb[0].mxu0
        %v9310 = vadd.f32 %v9269, %v9309
        %v9311 = vpop.f32.mrb[0].mxu0
        %v9312 = vadd.f32 %v9271, %v9311
        %v9313 = vpop.f32.mrb[0].mxu0
        %v9314 = vpop.f32.mrb[0].mxu0
        %9315 = vdwg.mxu0
        %9316 = vmatprep.subr.bf16.mxu0 %v6465
        %9317 = vmatpush1.bf16.msra.mxu0 %v6464
        %9318 = vmatprep.subr.bf16.mxu0 %v6473
        %9319 = vmatpush1.bf16.msra.mxu0 %v6472
        %9320 = vmatprep.subr.bf16.mxu0 %v6481
        %9321 = vmatpush1.bf16.msra.mxu0 %v6480
        %9322 = vmatprep.subr.bf16.mxu0 %v6489
        %9323 = vmatpush1.bf16.msra.mxu0 %v6488
        %9324 = vmatprep.subr.bf16.mxu0 %v6497
        %9325 = vmatpush1.bf16.msra.mxu0 %v6496
        %9326 = vmatprep.subr.bf16.mxu0 %v6505
        %9327 = vmatpush1.bf16.msra.mxu0 %v6504
        %9328 = vmatprep.subr.bf16.mxu0 %v6513
        %9329 = vmatpush1.bf16.msra.mxu0 %v6512
        %9330 = vmatprep.subr.bf16.mxu0 %v6521
        %9331 = vmatpush1.bf16.msra.mxu0 %v6520
        %9332 = vmatprep.subr.bf16.mxu0 %v6529
        %9333 = vmatpush1.bf16.msra.mxu0 %v6528
        %9334 = vmatprep.subr.bf16.mxu0 %v6537
        %9335 = vmatpush1.bf16.msra.mxu0 %v6536
        %9336 = vmatprep.subr.bf16.mxu0 %v6545
        %9337 = vmatpush1.bf16.msra.mxu0 %v6544
        %9338 = vmatprep.subr.bf16.mxu0 %v6553
        %9339 = vmatpush1.bf16.msra.mxu0 %v6552
        %9340 = vmatprep.subr.bf16.mxu0 %v6561
        %9341 = vmatpush1.bf16.msra.mxu0 %v6560
        %9342 = vmatprep.subr.bf16.mxu0 %v6569
        %9343 = vmatpush1.bf16.msra.mxu0 %v6568
        %9344 = vmatprep.subr.bf16.mxu0 %v6577
        %9345 = vmatpush1.bf16.msra.mxu0 %v6576
        %9346 = vmatprep.subr.bf16.mxu0 %v6585
        %9347 = vmatpush1.bf16.msra.mxu0 %v6584
        %9348 = vmatprep.mubr.bf16.mxu0 %v2053
        %9349 = vmatmul.mubr.bf16.gmra.mrb[0].mxu0 %v2052
        %v9350 = vpop.f32.mrb[0].mxu0
        %v9351 = vadd.f32 %v9310, %v9350
        %v9352 = vpop.f32.mrb[0].mxu0
        %v9353 = vadd.f32 %v9312, %v9352
        %v9354 = vpop.f32.mrb[0].mxu0
        %v9355 = vpop.f32.mrb[0].mxu0
        %9356 = vdwg.mxu0
        %9357 = vmatprep.subr.bf16.mxu0 %v6593
        %9358 = vmatpush1.bf16.msra.mxu0 %v6592
        %9359 = vmatprep.subr.bf16.mxu0 %v6601
        %9360 = vmatpush1.bf16.msra.mxu0 %v6600
        %9361 = vmatprep.subr.bf16.mxu0 %v6609
        %9362 = vmatpush1.bf16.msra.mxu0 %v6608
        %9363 = vmatprep.subr.bf16.mxu0 %v6617
        %9364 = vmatpush1.bf16.msra.mxu0 %v6616
        %9365 = vmatprep.subr.bf16.mxu0 %v6625
        %9366 = vmatpush1.bf16.msra.mxu0 %v6624
        %9367 = vmatprep.subr.bf16.mxu0 %v6633
        %9368 = vmatpush1.bf16.msra.mxu0 %v6632
        %9369 = vmatprep.subr.bf16.mxu0 %v6641
        %9370 = vmatpush1.bf16.msra.mxu0 %v6640
        %9371 = vmatprep.subr.bf16.mxu0 %v6649
        %9372 = vmatpush1.bf16.msra.mxu0 %v6648
        %9373 = vmatprep.subr.bf16.mxu0 %v6657
        %9374 = vmatpush1.bf16.msra.mxu0 %v6656
        %9375 = vmatprep.subr.bf16.mxu0 %v6665
        %9376 = vmatpush1.bf16.msra.mxu0 %v6664
        %9377 = vmatprep.subr.bf16.mxu0 %v6673
        %9378 = vmatpush1.bf16.msra.mxu0 %v6672
        %9379 = vmatprep.subr.bf16.mxu0 %v6681
        %9380 = vmatpush1.bf16.msra.mxu0 %v6680
        %9381 = vmatprep.subr.bf16.mxu0 %v6689
        %9382 = vmatpush1.bf16.msra.mxu0 %v6688
        %9383 = vmatprep.subr.bf16.mxu0 %v6697
        %9384 = vmatpush1.bf16.msra.mxu0 %v6696
        %9385 = vmatprep.subr.bf16.mxu0 %v6705
        %9386 = vmatpush1.bf16.msra.mxu0 %v6704
        %9387 = vmatprep.subr.bf16.mxu0 %v6713
        %9388 = vmatpush1.bf16.msra.mxu0 %v6712
        %9389 = vmatprep.mubr.bf16.mxu0 %v2055
        %9390 = vmatmul.mubr.bf16.gmra.mrb[0].mxu0 %v2054
        %v9391 = vpop.f32.mrb[0].mxu0
        %v9392 = vadd.f32 %v9351, %v9391
        %v9393 = vpop.f32.mrb[0].mxu0
        %v9394 = vadd.f32 %v9353, %v9393
        %v9395 = vpop.f32.mrb[0].mxu0
        %v9396 = vpop.f32.mrb[0].mxu0
        %9397 = vdwg.mxu0
        %9398 = vmatprep.subr.bf16.mxu0 %v6721
        %9399 = vmatpush1.bf16.msra.mxu0 %v6720
        %9400 = vmatprep.subr.bf16.mxu0 %v6729
        %9401 = vmatpush1.bf16.msra.mxu0 %v6728
        %9402 = vmatprep.subr.bf16.mxu0 %v6737
        %9403 = vmatpush1.bf16.msra.mxu0 %v6736
        %9404 = vmatprep.subr.bf16.mxu0 %v6745
        %9405 = vmatpush1.bf16.msra.mxu0 %v6744
        %9406 = vmatprep.subr.bf16.mxu0 %v6753
        %9407 = vmatpush1.bf16.msra.mxu0 %v6752
        %9408 = vmatprep.subr.bf16.mxu0 %v6761
        %9409 = vmatpush1.bf16.msra.mxu0 %v6760
        %9410 = vmatprep.subr.bf16.mxu0 %v6769
        %9411 = vmatpush1.bf16.msra.mxu0 %v6768
        %9412 = vmatprep.subr.bf16.mxu0 %v6777
        %9413 = vmatpush1.bf16.msra.mxu0 %v6776
        %9414 = vmatprep.subr.bf16.mxu0 %v6785
        %9415 = vmatpush1.bf16.msra.mxu0 %v6784
        %9416 = vmatprep.subr.bf16.mxu0 %v6793
        %9417 = vmatpush1.bf16.msra.mxu0 %v6792
        %9418 = vmatprep.subr.bf16.mxu0 %v6801
        %9419 = vmatpush1.bf16.msra.mxu0 %v6800
        %9420 = vmatprep.subr.bf16.mxu0 %v6809
        %9421 = vmatpush1.bf16.msra.mxu0 %v6808
        %9422 = vmatprep.subr.bf16.mxu0 %v6817
        %9423 = vmatpush1.bf16.msra.mxu0 %v6816
        %9424 = vmatprep.subr.bf16.mxu0 %v6825
        %9425 = vmatpush1.bf16.msra.mxu0 %v6824
        %9426 = vmatprep.subr.bf16.mxu0 %v6833
        %9427 = vmatpush1.bf16.msra.mxu0 %v6832
        %9428 = vmatprep.subr.bf16.mxu0 %v6841
        %9429 = vmatpush1.bf16.msra.mxu0 %v6840
        %9430 = vmatprep.mubr.bf16.mxu0 %v2057
        %9431 = vmatmul.mubr.bf16.gmra.mrb[0].mxu0 %v2056
        %v9432 = vpop.f32.mrb[0].mxu0
        %v9433 = vadd.f32 %v9392, %v9432
        %v9434 = vpop.f32.mrb[0].mxu0
        %v9435 = vadd.f32 %v9394, %v9434
        %v9436 = vpop.f32.mrb[0].mxu0
        %v9437 = vpop.f32.mrb[0].mxu0
        %9438 = vdwg.mxu0
        %9439 = vmatprep.subr.bf16.mxu0 %v6849
        %9440 = vmatpush1.bf16.msra.mxu0 %v6848
        %9441 = vmatprep.subr.bf16.mxu0 %v6857
        %9442 = vmatpush1.bf16.msra.mxu0 %v6856
        %9443 = vmatprep.subr.bf16.mxu0 %v6865
        %9444 = vmatpush1.bf16.msra.mxu0 %v6864
        %9445 = vmatprep.subr.bf16.mxu0 %v6873
        %9446 = vmatpush1.bf16.msra.mxu0 %v6872
        %9447 = vmatprep.subr.bf16.mxu0 %v6881
        %9448 = vmatpush1.bf16.msra.mxu0 %v6880
        %9449 = vmatprep.subr.bf16.mxu0 %v6889
        %9450 = vmatpush1.bf16.msra.mxu0 %v6888
        %9451 = vmatprep.subr.bf16.mxu0 %v6897
        %9452 = vmatpush1.bf16.msra.mxu0 %v6896
        %9453 = vmatprep.subr.bf16.mxu0 %v6905
        %9454 = vmatpush1.bf16.msra.mxu0 %v6904
        %9455 = vmatprep.subr.bf16.mxu0 %v6913
        %9456 = vmatpush1.bf16.msra.mxu0 %v6912
        %9457 = vmatprep.subr.bf16.mxu0 %v6921
        %9458 = vmatpush1.bf16.msra.mxu0 %v6920
        %9459 = vmatprep.subr.bf16.mxu0 %v6929
        %9460 = vmatpush1.bf16.msra.mxu0 %v6928
        %9461 = vmatprep.subr.bf16.mxu0 %v6937
        %9462 = vmatpush1.bf16.msra.mxu0 %v6936
        %9463 = vmatprep.subr.bf16.mxu0 %v6945
        %9464 = vmatpush1.bf16.msra.mxu0 %v6944
        %9465 = vmatprep.subr.bf16.mxu0 %v6953
        %9466 = vmatpush1.bf16.msra.mxu0 %v6952
        %9467 = vmatprep.subr.bf16.mxu0 %v6961
        %9468 = vmatpush1.bf16.msra.mxu0 %v6960
        %9469 = vmatprep.subr.bf16.mxu0 %v6969
        %9470 = vmatpush1.bf16.msra.mxu0 %v6968
        %9471 = vmatprep.mubr.bf16.mxu0 %v2059
        %9472 = vmatmul.mubr.bf16.gmra.mrb[0].mxu0 %v2058
        %v9473 = vpop.f32.mrb[0].mxu0
        %v9474 = vadd.f32 %v9433, %v9473
        %v9475 = vpop.f32.mrb[0].mxu0
        %v9476 = vadd.f32 %v9435, %v9475
        %v9477 = vpop.f32.mrb[0].mxu0
        %v9478 = vpop.f32.mrb[0].mxu0
        %9479 = vdwg.mxu0
        %9480 = vmatprep.subr.bf16.mxu0 %v6977
        %9481 = vmatpush1.bf16.msra.mxu0 %v6976
        %9482 = vmatprep.subr.bf16.mxu0 %v6985
        %9483 = vmatpush1.bf16.msra.mxu0 %v6984
        %9484 = vmatprep.subr.bf16.mxu0 %v6993
        %9485 = vmatpush1.bf16.msra.mxu0 %v6992
        %9486 = vmatprep.subr.bf16.mxu0 %v7001
        %9487 = vmatpush1.bf16.msra.mxu0 %v7000
        %9488 = vmatprep.subr.bf16.mxu0 %v7009
        %9489 = vmatpush1.bf16.msra.mxu0 %v7008
        %9490 = vmatprep.subr.bf16.mxu0 %v7017
        %9491 = vmatpush1.bf16.msra.mxu0 %v7016
        %9492 = vmatprep.subr.bf16.mxu0 %v7025
        %9493 = vmatpush1.bf16.msra.mxu0 %v7024
        %9494 = vmatprep.subr.bf16.mxu0 %v7033
        %9495 = vmatpush1.bf16.msra.mxu0 %v7032
        %9496 = vmatprep.subr.bf16.mxu0 %v7041
        %9497 = vmatpush1.bf16.msra.mxu0 %v7040
        %9498 = vmatprep.subr.bf16.mxu0 %v7049
        %9499 = vmatpush1.bf16.msra.mxu0 %v7048
        %9500 = vmatprep.subr.bf16.mxu0 %v7057
        %9501 = vmatpush1.bf16.msra.mxu0 %v7056
        %9502 = vmatprep.subr.bf16.mxu0 %v7065
        %9503 = vmatpush1.bf16.msra.mxu0 %v7064
        %9504 = vmatprep.subr.bf16.mxu0 %v7073
        %9505 = vmatpush1.bf16.msra.mxu0 %v7072
        %9506 = vmatprep.subr.bf16.mxu0 %v7081
        %9507 = vmatpush1.bf16.msra.mxu0 %v7080
        %9508 = vmatprep.subr.bf16.mxu0 %v7089
        %9509 = vmatpush1.bf16.msra.mxu0 %v7088
        %9510 = vmatprep.subr.bf16.mxu0 %v7097
        %9511 = vmatpush1.bf16.msra.mxu0 %v7096
        %9512 = vmatprep.mubr.bf16.mxu0 %v2061
        %9513 = vmatmul.mubr.bf16.gmra.mrb[0].mxu0 %v2060
        %v9514 = vpop.f32.mrb[0].mxu0
        %v9515 = vadd.f32 %v9474, %v9514
        %v9516 = vpop.f32.mrb[0].mxu0
        %v9517 = vadd.f32 %v9476, %v9516
        %v9518 = vpop.f32.mrb[0].mxu0
        %v9519 = vpop.f32.mrb[0].mxu0
        %9520 = vdwg.mxu0
        %9521 = vmatprep.subr.bf16.mxu0 %v7105
        %9522 = vmatpush1.bf16.msra.mxu0 %v7104
        %9523 = vmatprep.subr.bf16.mxu0 %v7113
        %9524 = vmatpush1.bf16.msra.mxu0 %v7112
        %9525 = vmatprep.subr.bf16.mxu0 %v7121
        %9526 = vmatpush1.bf16.msra.mxu0 %v7120
        %9527 = vmatprep.subr.bf16.mxu0 %v7129
        %9528 = vmatpush1.bf16.msra.mxu0 %v7128
        %9529 = vmatprep.subr.bf16.mxu0 %v7137
        %9530 = vmatpush1.bf16.msra.mxu0 %v7136
        %9531 = vmatprep.subr.bf16.mxu0 %v7145
        %9532 = vmatpush1.bf16.msra.mxu0 %v7144
        %9533 = vmatprep.subr.bf16.mxu0 %v7153
        %9534 = vmatpush1.bf16.msra.mxu0 %v7152
        %9535 = vmatprep.subr.bf16.mxu0 %v7161
        %9536 = vmatpush1.bf16.msra.mxu0 %v7160
        %9537 = vmatprep.subr.bf16.mxu0 %v7169
        %9538 = vmatpush1.bf16.msra.mxu0 %v7168
        %9539 = vmatprep.subr.bf16.mxu0 %v7177
        %9540 = vmatpush1.bf16.msra.mxu0 %v7176
        %9541 = vmatprep.subr.bf16.mxu0 %v7185
        %9542 = vmatpush1.bf16.msra.mxu0 %v7184
        %9543 = vmatprep.subr.bf16.mxu0 %v7193
        %9544 = vmatpush1.bf16.msra.mxu0 %v7192
        %9545 = vmatprep.subr.bf16.mxu0 %v7201
        %9546 = vmatpush1.bf16.msra.mxu0 %v7200
        %9547 = vmatprep.subr.bf16.mxu0 %v7209
        %9548 = vmatpush1.bf16.msra.mxu0 %v7208
        %9549 = vmatprep.subr.bf16.mxu0 %v7217
        %9550 = vmatpush1.bf16.msra.mxu0 %v7216
        %9551 = vmatprep.subr.bf16.mxu0 %v7225
        %9552 = vmatpush1.bf16.msra.mxu0 %v7224
        %9553 = vmatprep.mubr.bf16.mxu0 %v2063
        %9554 = vmatmul.mubr.bf16.gmra.mrb[0].mxu0 %v2062
        %v9555 = vpop.f32.mrb[0].mxu0
        %v9556 = vadd.f32 %v9515, %v9555
        %v9557 = vpop.f32.mrb[0].mxu0
        %v9558 = vadd.f32 %v9517, %v9557
        %v9559 = vpop.f32.mrb[0].mxu0
        %v9560 = vpop.f32.mrb[0].mxu0
        %9561 = vdwg.mxu0
        %v9562 = vtanh.pop %v8572
        %v9563 = vtanh.pop %v8574
        %v9564 = vtanh.pop %v8900
        %v9565 = vtanh.pop %v8902
        %v9566 = vtanh.pop %v9228
        %v9567 = vtanh.pop %v9230
        %v9568 = vtanh.pop %v9556
        %v9569 = vtanh.pop %v9558
        %v9570 = vpack.c.bf16 %v9562, %v9562
        %v9571 = vpack.c.bf16 %v9563, %v9563
        %v9572 = vpack.c.bf16 %v9564, %v9564
        %v9573 = vpack.c.bf16 %v9565, %v9565
        %v9574 = vpack.c.bf16 %v9566, %v9566
        %v9575 = vpack.c.bf16 %v9567, %v9567
        %v9576 = vpack.c.bf16 %v9568, %v9568
        %v9577 = vpack.c.bf16 %v9569, %v9569
        %v9578 = vld [vmem:[%s995] sm:$0xff]
        %v9579 = vld [vmem:[%s995 + $0x8] sm:$0xff]
        %v9580 = vld [vmem:[%s995 + $0x10] sm:$0xff]
        %v9581 = vld [vmem:[%s995 + $0x18] sm:$0xff]
        %v9582 = vld [vmem:[%s995 + $0x20] sm:$0xff]
        %v9583 = vld [vmem:[%s995 + $0x28] sm:$0xff]
        %v9584 = vld [vmem:[%s995 + $0x30] sm:$0xff]
        %v9585 = vld [vmem:[%s995 + $0x38] sm:$0xff]
        %v9586 = vld [vmem:[%s995 + $0x40] sm:$0xff]
        %v9587 = vld [vmem:[%s995 + $0x48] sm:$0xff]
        %v9588 = vld [vmem:[%s995 + $0x50] sm:$0xff]
        %v9589 = vld [vmem:[%s995 + $0x58] sm:$0xff]
        %v9590 = vld [vmem:[%s995 + $0x60] sm:$0xff]
        %v9591 = vld [vmem:[%s995 + $0x68] sm:$0xff]
        %v9592 = vld [vmem:[%s995 + $0x70] sm:$0xff]
        %v9593 = vld [vmem:[%s995 + $0x78] sm:$0xff]
        %v9594 = vld [vmem:[%s995 + $0x80] sm:$0xff]
        %v9595 = vld [vmem:[%s995 + $0x88] sm:$0xff]
        %v9596 = vld [vmem:[%s995 + $0x90] sm:$0xff]
        %v9597 = vld [vmem:[%s995 + $0x98] sm:$0xff]
        %v9598 = vld [vmem:[%s995 + $0xa0] sm:$0xff]
        %v9599 = vld [vmem:[%s995 + $0xa8] sm:$0xff]
        %v9600 = vld [vmem:[%s995 + $0xb0] sm:$0xff]
        %v9601 = vld [vmem:[%s995 + $0xb8] sm:$0xff]
        %v9602 = vld [vmem:[%s995 + $0xc0] sm:$0xff]
        %v9603 = vld [vmem:[%s995 + $0xc8] sm:$0xff]
        %v9604 = vld [vmem:[%s995 + $0xd0] sm:$0xff]
        %v9605 = vld [vmem:[%s995 + $0xd8] sm:$0xff]
        %v9606 = vld [vmem:[%s995 + $0xe0] sm:$0xff]
        %v9607 = vld [vmem:[%s995 + $0xe8] sm:$0xff]
        %v9608 = vld [vmem:[%s995 + $0xf0] sm:$0xff]
        %v9609 = vld [vmem:[%s995 + $0xf8] sm:$0xff]
        %v9610 = vld [vmem:[%s995 + $0x100] sm:$0xff]
        %v9611 = vld [vmem:[%s995 + $0x108] sm:$0xff]
        %v9612 = vld [vmem:[%s995 + $0x110] sm:$0xff]
        %v9613 = vld [vmem:[%s995 + $0x118] sm:$0xff]
        %v9614 = vld [vmem:[%s995 + $0x120] sm:$0xff]
        %v9615 = vld [vmem:[%s995 + $0x128] sm:$0xff]
        %v9616 = vld [vmem:[%s995 + $0x130] sm:$0xff]
        %v9617 = vld [vmem:[%s995 + $0x138] sm:$0xff]
        %v9618 = vld [vmem:[%s995 + $0x140] sm:$0xff]
        %v9619 = vld [vmem:[%s995 + $0x148] sm:$0xff]
        %v9620 = vld [vmem:[%s995 + $0x150] sm:$0xff]
        %v9621 = vld [vmem:[%s995 + $0x158] sm:$0xff]
        %v9622 = vld [vmem:[%s995 + $0x160] sm:$0xff]
        %v9623 = vld [vmem:[%s995 + $0x168] sm:$0xff]
        %v9624 = vld [vmem:[%s995 + $0x170] sm:$0xff]
        %v9625 = vld [vmem:[%s995 + $0x178] sm:$0xff]
        %v9626 = vld [vmem:[%s995 + $0x180] sm:$0xff]
        %v9627 = vld [vmem:[%s995 + $0x188] sm:$0xff]
        %v9628 = vld [vmem:[%s995 + $0x190] sm:$0xff]
        %v9629 = vld [vmem:[%s995 + $0x198] sm:$0xff]
        %v9630 = vld [vmem:[%s995 + $0x1a0] sm:$0xff]
        %v9631 = vld [vmem:[%s995 + $0x1a8] sm:$0xff]
        %v9632 = vld [vmem:[%s995 + $0x1b0] sm:$0xff]
        %v9633 = vld [vmem:[%s995 + $0x1b8] sm:$0xff]
        %v9634 = vld [vmem:[%s995 + $0x1c0] sm:$0xff]
        %v9635 = vld [vmem:[%s995 + $0x1c8] sm:$0xff]
        %v9636 = vld [vmem:[%s995 + $0x1d0] sm:$0xff]
        %v9637 = vld [vmem:[%s995 + $0x1d8] sm:$0xff]
        %v9638 = vld [vmem:[%s995 + $0x1e0] sm:$0xff]
        %v9639 = vld [vmem:[%s995 + $0x1e8] sm:$0xff]
        %v9640 = vld [vmem:[%s995 + $0x1f0] sm:$0xff]
        %v9641 = vld [vmem:[%s995 + $0x1f8] sm:$0xff]
        %v9642 = vld [vmem:[%s995 + $0x200] sm:$0xff]
        %v9643 = vld [vmem:[%s995 + $0x208] sm:$0xff]
        %v9644 = vld [vmem:[%s995 + $0x210] sm:$0xff]
        %v9645 = vld [vmem:[%s995 + $0x218] sm:$0xff]
        %v9646 = vld [vmem:[%s995 + $0x220] sm:$0xff]
        %v9647 = vld [vmem:[%s995 + $0x228] sm:$0xff]
        %v9648 = vld [vmem:[%s995 + $0x230] sm:$0xff]
        %v9649 = vld [vmem:[%s995 + $0x238] sm:$0xff]
        %v9650 = vld [vmem:[%s995 + $0x240] sm:$0xff]
        %v9651 = vld [vmem:[%s995 + $0x248] sm:$0xff]
        %v9652 = vld [vmem:[%s995 + $0x250] sm:$0xff]
        %v9653 = vld [vmem:[%s995 + $0x258] sm:$0xff]
        %v9654 = vld [vmem:[%s995 + $0x260] sm:$0xff]
        %v9655 = vld [vmem:[%s995 + $0x268] sm:$0xff]
        %v9656 = vld [vmem:[%s995 + $0x270] sm:$0xff]
        %v9657 = vld [vmem:[%s995 + $0x278] sm:$0xff]
        %v9658 = vld [vmem:[%s995 + $0x280] sm:$0xff]
        %v9659 = vld [vmem:[%s995 + $0x288] sm:$0xff]
        %v9660 = vld [vmem:[%s995 + $0x290] sm:$0xff]
        %v9661 = vld [vmem:[%s995 + $0x298] sm:$0xff]
        %v9662 = vld [vmem:[%s995 + $0x2a0] sm:$0xff]
        %v9663 = vld [vmem:[%s995 + $0x2a8] sm:$0xff]
        %v9664 = vld [vmem:[%s995 + $0x2b0] sm:$0xff]
        %v9665 = vld [vmem:[%s995 + $0x2b8] sm:$0xff]
        %v9666 = vld [vmem:[%s995 + $0x2c0] sm:$0xff]
        %v9667 = vld [vmem:[%s995 + $0x2c8] sm:$0xff]
        %v9668 = vld [vmem:[%s995 + $0x2d0] sm:$0xff]
        %v9669 = vld [vmem:[%s995 + $0x2d8] sm:$0xff]
        %v9670 = vld [vmem:[%s995 + $0x2e0] sm:$0xff]
        %v9671 = vld [vmem:[%s995 + $0x2e8] sm:$0xff]
        %v9672 = vld [vmem:[%s995 + $0x2f0] sm:$0xff]
        %v9673 = vld [vmem:[%s995 + $0x2f8] sm:$0xff]
        %v9674 = vld [vmem:[%s995 + $0x300] sm:$0xff]
        %v9675 = vld [vmem:[%s995 + $0x308] sm:$0xff]
        %v9676 = vld [vmem:[%s995 + $0x310] sm:$0xff]
        %v9677 = vld [vmem:[%s995 + $0x318] sm:$0xff]
        %v9678 = vld [vmem:[%s995 + $0x320] sm:$0xff]
        %v9679 = vld [vmem:[%s995 + $0x328] sm:$0xff]
        %v9680 = vld [vmem:[%s995 + $0x330] sm:$0xff]
        %v9681 = vld [vmem:[%s995 + $0x338] sm:$0xff]
        %v9682 = vld [vmem:[%s995 + $0x340] sm:$0xff]
        %v9683 = vld [vmem:[%s995 + $0x348] sm:$0xff]
        %v9684 = vld [vmem:[%s995 + $0x350] sm:$0xff]
        %v9685 = vld [vmem:[%s995 + $0x358] sm:$0xff]
        %v9686 = vld [vmem:[%s995 + $0x360] sm:$0xff]
        %v9687 = vld [vmem:[%s995 + $0x368] sm:$0xff]
        %v9688 = vld [vmem:[%s995 + $0x370] sm:$0xff]
        %v9689 = vld [vmem:[%s995 + $0x378] sm:$0xff]
        %v9690 = vld [vmem:[%s995 + $0x380] sm:$0xff]
        %v9691 = vld [vmem:[%s995 + $0x388] sm:$0xff]
        %v9692 = vld [vmem:[%s995 + $0x390] sm:$0xff]
        %v9693 = vld [vmem:[%s995 + $0x398] sm:$0xff]
        %v9694 = vld [vmem:[%s995 + $0x3a0] sm:$0xff]
        %v9695 = vld [vmem:[%s995 + $0x3a8] sm:$0xff]
        %v9696 = vld [vmem:[%s995 + $0x3b0] sm:$0xff]
        %v9697 = vld [vmem:[%s995 + $0x3b8] sm:$0xff]
        %v9698 = vld [vmem:[%s995 + $0x3c0] sm:$0xff]
        %v9699 = vld [vmem:[%s995 + $0x3c8] sm:$0xff]
        %v9700 = vld [vmem:[%s995 + $0x3d0] sm:$0xff]
        %v9701 = vld [vmem:[%s995 + $0x3d8] sm:$0xff]
        %v9702 = vld [vmem:[%s995 + $0x3e0] sm:$0xff]
        %v9703 = vld [vmem:[%s995 + $0x3e8] sm:$0xff]
        %v9704 = vld [vmem:[%s995 + $0x3f0] sm:$0xff]
        %v9705 = vld [vmem:[%s995 + $0x3f8] sm:$0xff]
        %v9706 = vld [vmem:[%s995 + $0x400] sm:$0xff]
        %v9707 = vld [vmem:[%s995 + $0x408] sm:$0xff]
        %v9708 = vld [vmem:[%s995 + $0x410] sm:$0xff]
        %v9709 = vld [vmem:[%s995 + $0x418] sm:$0xff]
        %v9710 = vld [vmem:[%s995 + $0x420] sm:$0xff]
        %v9711 = vld [vmem:[%s995 + $0x428] sm:$0xff]
        %v9712 = vld [vmem:[%s995 + $0x430] sm:$0xff]
        %v9713 = vld [vmem:[%s995 + $0x438] sm:$0xff]
        %v9714 = vld [vmem:[%s995 + $0x440] sm:$0xff]
        %v9715 = vld [vmem:[%s995 + $0x448] sm:$0xff]
        %v9716 = vld [vmem:[%s995 + $0x450] sm:$0xff]
        %v9717 = vld [vmem:[%s995 + $0x458] sm:$0xff]
        %v9718 = vld [vmem:[%s995 + $0x460] sm:$0xff]
        %v9719 = vld [vmem:[%s995 + $0x468] sm:$0xff]
        %v9720 = vld [vmem:[%s995 + $0x470] sm:$0xff]
        %v9721 = vld [vmem:[%s995 + $0x478] sm:$0xff]
        %v9722 = vld [vmem:[%s995 + $0x480] sm:$0xff]
        %v9723 = vld [vmem:[%s995 + $0x488] sm:$0xff]
        %v9724 = vld [vmem:[%s995 + $0x490] sm:$0xff]
        %v9725 = vld [vmem:[%s995 + $0x498] sm:$0xff]
        %v9726 = vld [vmem:[%s995 + $0x4a0] sm:$0xff]
        %v9727 = vld [vmem:[%s995 + $0x4a8] sm:$0xff]
        %v9728 = vld [vmem:[%s995 + $0x4b0] sm:$0xff]
        %v9729 = vld [vmem:[%s995 + $0x4b8] sm:$0xff]
        %v9730 = vld [vmem:[%s995 + $0x4c0] sm:$0xff]
        %v9731 = vld [vmem:[%s995 + $0x4c8] sm:$0xff]
        %v9732 = vld [vmem:[%s995 + $0x4d0] sm:$0xff]
        %v9733 = vld [vmem:[%s995 + $0x4d8] sm:$0xff]
        %v9734 = vld [vmem:[%s995 + $0x4e0] sm:$0xff]
        %v9735 = vld [vmem:[%s995 + $0x4e8] sm:$0xff]
        %v9736 = vld [vmem:[%s995 + $0x4f0] sm:$0xff]
        %v9737 = vld [vmem:[%s995 + $0x4f8] sm:$0xff]
        %v9738 = vld [vmem:[%s995 + $0x500] sm:$0xff]
        %v9739 = vld [vmem:[%s995 + $0x508] sm:$0xff]
        %v9740 = vld [vmem:[%s995 + $0x510] sm:$0xff]
        %v9741 = vld [vmem:[%s995 + $0x518] sm:$0xff]
        %v9742 = vld [vmem:[%s995 + $0x520] sm:$0xff]
        %v9743 = vld [vmem:[%s995 + $0x528] sm:$0xff]
        %v9744 = vld [vmem:[%s995 + $0x530] sm:$0xff]
        %v9745 = vld [vmem:[%s995 + $0x538] sm:$0xff]
        %v9746 = vld [vmem:[%s995 + $0x540] sm:$0xff]
        %v9747 = vld [vmem:[%s995 + $0x548] sm:$0xff]
        %v9748 = vld [vmem:[%s995 + $0x550] sm:$0xff]
        %v9749 = vld [vmem:[%s995 + $0x558] sm:$0xff]
        %v9750 = vld [vmem:[%s995 + $0x560] sm:$0xff]
        %v9751 = vld [vmem:[%s995 + $0x568] sm:$0xff]
        %v9752 = vld [vmem:[%s995 + $0x570] sm:$0xff]
        %v9753 = vld [vmem:[%s995 + $0x578] sm:$0xff]
        %v9754 = vld [vmem:[%s995 + $0x580] sm:$0xff]
        %v9755 = vld [vmem:[%s995 + $0x588] sm:$0xff]
        %v9756 = vld [vmem:[%s995 + $0x590] sm:$0xff]
        %v9757 = vld [vmem:[%s995 + $0x598] sm:$0xff]
        %v9758 = vld [vmem:[%s995 + $0x5a0] sm:$0xff]
        %v9759 = vld [vmem:[%s995 + $0x5a8] sm:$0xff]
        %v9760 = vld [vmem:[%s995 + $0x5b0] sm:$0xff]
        %v9761 = vld [vmem:[%s995 + $0x5b8] sm:$0xff]
        %v9762 = vld [vmem:[%s995 + $0x5c0] sm:$0xff]
        %v9763 = vld [vmem:[%s995 + $0x5c8] sm:$0xff]
        %v9764 = vld [vmem:[%s995 + $0x5d0] sm:$0xff]
        %v9765 = vld [vmem:[%s995 + $0x5d8] sm:$0xff]
        %v9766 = vld [vmem:[%s995 + $0x5e0] sm:$0xff]
        %v9767 = vld [vmem:[%s995 + $0x5e8] sm:$0xff]
        %v9768 = vld [vmem:[%s995 + $0x5f0] sm:$0xff]
        %v9769 = vld [vmem:[%s995 + $0x5f8] sm:$0xff]
        %v9770 = vld [vmem:[%s995 + $0x600] sm:$0xff]
        %v9771 = vld [vmem:[%s995 + $0x608] sm:$0xff]
        %v9772 = vld [vmem:[%s995 + $0x610] sm:$0xff]
        %v9773 = vld [vmem:[%s995 + $0x618] sm:$0xff]
        %v9774 = vld [vmem:[%s995 + $0x620] sm:$0xff]
        %v9775 = vld [vmem:[%s995 + $0x628] sm:$0xff]
        %v9776 = vld [vmem:[%s995 + $0x630] sm:$0xff]
        %v9777 = vld [vmem:[%s995 + $0x638] sm:$0xff]
        %v9778 = vld [vmem:[%s995 + $0x640] sm:$0xff]
        %v9779 = vld [vmem:[%s995 + $0x648] sm:$0xff]
        %v9780 = vld [vmem:[%s995 + $0x650] sm:$0xff]
        %v9781 = vld [vmem:[%s995 + $0x658] sm:$0xff]
        %v9782 = vld [vmem:[%s995 + $0x660] sm:$0xff]
        %v9783 = vld [vmem:[%s995 + $0x668] sm:$0xff]
        %v9784 = vld [vmem:[%s995 + $0x670] sm:$0xff]
        %v9785 = vld [vmem:[%s995 + $0x678] sm:$0xff]
        %v9786 = vld [vmem:[%s995 + $0x680] sm:$0xff]
        %v9787 = vld [vmem:[%s995 + $0x688] sm:$0xff]
        %v9788 = vld [vmem:[%s995 + $0x690] sm:$0xff]
        %v9789 = vld [vmem:[%s995 + $0x698] sm:$0xff]
        %v9790 = vld [vmem:[%s995 + $0x6a0] sm:$0xff]
        %v9791 = vld [vmem:[%s995 + $0x6a8] sm:$0xff]
        %v9792 = vld [vmem:[%s995 + $0x6b0] sm:$0xff]
        %v9793 = vld [vmem:[%s995 + $0x6b8] sm:$0xff]
        %v9794 = vld [vmem:[%s995 + $0x6c0] sm:$0xff]
        %v9795 = vld [vmem:[%s995 + $0x6c8] sm:$0xff]
        %v9796 = vld [vmem:[%s995 + $0x6d0] sm:$0xff]
        %v9797 = vld [vmem:[%s995 + $0x6d8] sm:$0xff]
        %v9798 = vld [vmem:[%s995 + $0x6e0] sm:$0xff]
        %v9799 = vld [vmem:[%s995 + $0x6e8] sm:$0xff]
        %v9800 = vld [vmem:[%s995 + $0x6f0] sm:$0xff]
        %v9801 = vld [vmem:[%s995 + $0x6f8] sm:$0xff]
        %v9802 = vld [vmem:[%s995 + $0x700] sm:$0xff]
        %v9803 = vld [vmem:[%s995 + $0x708] sm:$0xff]
        %v9804 = vld [vmem:[%s995 + $0x710] sm:$0xff]
        %v9805 = vld [vmem:[%s995 + $0x718] sm:$0xff]
        %v9806 = vld [vmem:[%s995 + $0x720] sm:$0xff]
        %v9807 = vld [vmem:[%s995 + $0x728] sm:$0xff]
        %v9808 = vld [vmem:[%s995 + $0x730] sm:$0xff]
        %v9809 = vld [vmem:[%s995 + $0x738] sm:$0xff]
        %v9810 = vld [vmem:[%s995 + $0x740] sm:$0xff]
        %v9811 = vld [vmem:[%s995 + $0x748] sm:$0xff]
        %v9812 = vld [vmem:[%s995 + $0x750] sm:$0xff]
        %v9813 = vld [vmem:[%s995 + $0x758] sm:$0xff]
        %v9814 = vld [vmem:[%s995 + $0x760] sm:$0xff]
        %v9815 = vld [vmem:[%s995 + $0x768] sm:$0xff]
        %v9816 = vld [vmem:[%s995 + $0x770] sm:$0xff]
        %v9817 = vld [vmem:[%s995 + $0x778] sm:$0xff]
        %v9818 = vld [vmem:[%s995 + $0x780] sm:$0xff]
        %v9819 = vld [vmem:[%s995 + $0x788] sm:$0xff]
        %v9820 = vld [vmem:[%s995 + $0x790] sm:$0xff]
        %v9821 = vld [vmem:[%s995 + $0x798] sm:$0xff]
        %v9822 = vld [vmem:[%s995 + $0x7a0] sm:$0xff]
        %v9823 = vld [vmem:[%s995 + $0x7a8] sm:$0xff]
        %v9824 = vld [vmem:[%s995 + $0x7b0] sm:$0xff]
        %v9825 = vld [vmem:[%s995 + $0x7b8] sm:$0xff]
        %v9826 = vld [vmem:[%s995 + $0x7c0] sm:$0xff]
        %v9827 = vld [vmem:[%s995 + $0x7c8] sm:$0xff]
        %v9828 = vld [vmem:[%s995 + $0x7d0] sm:$0xff]
        %v9829 = vld [vmem:[%s995 + $0x7d8] sm:$0xff]
        %v9830 = vld [vmem:[%s995 + $0x7e0] sm:$0xff]
        %v9831 = vld [vmem:[%s995 + $0x7e8] sm:$0xff]
        %v9832 = vld [vmem:[%s995 + $0x7f0] sm:$0xff]
        %v9833 = vld [vmem:[%s995 + $0x7f8] sm:$0xff]
        %v9834 = vld [vmem:[%s1004] sm:$0xf]
        %v9836 = vlaneseq
        %v9837 = vshrl.u32 %v9836, 7
        %v9838 = vsub.s32 0, %v9837
        %v9839 = vrot.slane %v9834, %v9838
        %v9840 = vlaneseq
        %v9841 = vshrl.u32 %v9840, 7
        %v9842 = vsub.s32 1, %v9841
        %v9843 = vrot.slane %v9834, %v9842
        %v9844 = vlaneseq
        %v9845 = vshrl.u32 %v9844, 7
        %v9846 = vsub.s32 2, %v9845
        %v9847 = vrot.slane %v9834, %v9846
        %v9848 = vlaneseq
        %v9849 = vshrl.u32 %v9848, 7
        %v9850 = vsub.s32 3, %v9849
        %v9851 = vrot.slane %v9834, %v9850
        %v10112 = vunpack.c.l.b16 %v9578
        %v10113 = vunpack.c.h.b16 %v9578
        %v10114 = vunpack.c.l.b16 %v9579
        %v10115 = vunpack.c.h.b16 %v9579
        %v10116 = vunpack.c.l.b16 %v9580
        %v10117 = vunpack.c.h.b16 %v9580
        %v10118 = vunpack.c.l.b16 %v9581
        %v10119 = vunpack.c.h.b16 %v9581
        %v10120 = vunpack.c.l.b16 %v9582
        %v10121 = vunpack.c.h.b16 %v9582
        %v10122 = vunpack.c.l.b16 %v9583
        %v10123 = vunpack.c.h.b16 %v9583
        %v10124 = vunpack.c.l.b16 %v9584
        %v10125 = vunpack.c.h.b16 %v9584
        %v10126 = vunpack.c.l.b16 %v9585
        %v10127 = vunpack.c.h.b16 %v9585
        %v10128 = vunpack.c.l.b16 %v9586
        %v10129 = vunpack.c.h.b16 %v9586
        %v10130 = vunpack.c.l.b16 %v9587
        %v10131 = vunpack.c.h.b16 %v9587
        %v10132 = vunpack.c.l.b16 %v9588
        %v10133 = vunpack.c.h.b16 %v9588
        %v10134 = vunpack.c.l.b16 %v9589
        %v10135 = vunpack.c.h.b16 %v9589
        %v10136 = vunpack.c.l.b16 %v9590
        %v10137 = vunpack.c.h.b16 %v9590
        %v10138 = vunpack.c.l.b16 %v9591
        %v10139 = vunpack.c.h.b16 %v9591
        %v10140 = vunpack.c.l.b16 %v9592
        %v10141 = vunpack.c.h.b16 %v9592
        %v10142 = vunpack.c.l.b16 %v9593
        %v10143 = vunpack.c.h.b16 %v9593
        %v10144 = vunpack.c.l.b16 %v9594
        %v10145 = vunpack.c.h.b16 %v9594
        %v10146 = vunpack.c.l.b16 %v9595
        %v10147 = vunpack.c.h.b16 %v9595
        %v10148 = vunpack.c.l.b16 %v9596
        %v10149 = vunpack.c.h.b16 %v9596
        %v10150 = vunpack.c.l.b16 %v9597
        %v10151 = vunpack.c.h.b16 %v9597
        %v10152 = vunpack.c.l.b16 %v9598
        %v10153 = vunpack.c.h.b16 %v9598
        %v10154 = vunpack.c.l.b16 %v9599
        %v10155 = vunpack.c.h.b16 %v9599
        %v10156 = vunpack.c.l.b16 %v9600
        %v10157 = vunpack.c.h.b16 %v9600
        %v10158 = vunpack.c.l.b16 %v9601
        %v10159 = vunpack.c.h.b16 %v9601
        %v10160 = vunpack.c.l.b16 %v9602
        %v10161 = vunpack.c.h.b16 %v9602
        %v10162 = vunpack.c.l.b16 %v9603
        %v10163 = vunpack.c.h.b16 %v9603
        %v10164 = vunpack.c.l.b16 %v9604
        %v10165 = vunpack.c.h.b16 %v9604
        %v10166 = vunpack.c.l.b16 %v9605
        %v10167 = vunpack.c.h.b16 %v9605
        %v10168 = vunpack.c.l.b16 %v9606
        %v10169 = vunpack.c.h.b16 %v9606
        %v10170 = vunpack.c.l.b16 %v9607
        %v10171 = vunpack.c.h.b16 %v9607
        %v10172 = vunpack.c.l.b16 %v9608
        %v10173 = vunpack.c.h.b16 %v9608
        %v10174 = vunpack.c.l.b16 %v9609
        %v10175 = vunpack.c.h.b16 %v9609
        %v10176 = vunpack.c.l.b16 %v9610
        %v10177 = vunpack.c.h.b16 %v9610
        %v10178 = vunpack.c.l.b16 %v9611
        %v10179 = vunpack.c.h.b16 %v9611
        %v10180 = vunpack.c.l.b16 %v9612
        %v10181 = vunpack.c.h.b16 %v9612
        %v10182 = vunpack.c.l.b16 %v9613
        %v10183 = vunpack.c.h.b16 %v9613
        %v10184 = vunpack.c.l.b16 %v9614
        %v10185 = vunpack.c.h.b16 %v9614
        %v10186 = vunpack.c.l.b16 %v9615
        %v10187 = vunpack.c.h.b16 %v9615
        %v10188 = vunpack.c.l.b16 %v9616
        %v10189 = vunpack.c.h.b16 %v9616
        %v10190 = vunpack.c.l.b16 %v9617
        %v10191 = vunpack.c.h.b16 %v9617
        %v10192 = vunpack.c.l.b16 %v9618
        %v10193 = vunpack.c.h.b16 %v9618
        %v10194 = vunpack.c.l.b16 %v9619
        %v10195 = vunpack.c.h.b16 %v9619
        %v10196 = vunpack.c.l.b16 %v9620
        %v10197 = vunpack.c.h.b16 %v9620
        %v10198 = vunpack.c.l.b16 %v9621
        %v10199 = vunpack.c.h.b16 %v9621
        %v10200 = vunpack.c.l.b16 %v9622
        %v10201 = vunpack.c.h.b16 %v9622
        %v10202 = vunpack.c.l.b16 %v9623
        %v10203 = vunpack.c.h.b16 %v9623
        %v10204 = vunpack.c.l.b16 %v9624
        %v10205 = vunpack.c.h.b16 %v9624
        %v10206 = vunpack.c.l.b16 %v9625
        %v10207 = vunpack.c.h.b16 %v9625
        %v10208 = vunpack.c.l.b16 %v9626
        %v10209 = vunpack.c.h.b16 %v9626
        %v10210 = vunpack.c.l.b16 %v9627
        %v10211 = vunpack.c.h.b16 %v9627
        %v10212 = vunpack.c.l.b16 %v9628
        %v10213 = vunpack.c.h.b16 %v9628
        %v10214 = vunpack.c.l.b16 %v9629
        %v10215 = vunpack.c.h.b16 %v9629
        %v10216 = vunpack.c.l.b16 %v9630
        %v10217 = vunpack.c.h.b16 %v9630
        %v10218 = vunpack.c.l.b16 %v9631
        %v10219 = vunpack.c.h.b16 %v9631
        %v10220 = vunpack.c.l.b16 %v9632
        %v10221 = vunpack.c.h.b16 %v9632
        %v10222 = vunpack.c.l.b16 %v9633
        %v10223 = vunpack.c.h.b16 %v9633
        %v10224 = vunpack.c.l.b16 %v9634
        %v10225 = vunpack.c.h.b16 %v9634
        %v10226 = vunpack.c.l.b16 %v9635
        %v10227 = vunpack.c.h.b16 %v9635
        %v10228 = vunpack.c.l.b16 %v9636
        %v10229 = vunpack.c.h.b16 %v9636
        %v10230 = vunpack.c.l.b16 %v9637
        %v10231 = vunpack.c.h.b16 %v9637
        %v10232 = vunpack.c.l.b16 %v9638
        %v10233 = vunpack.c.h.b16 %v9638
        %v10234 = vunpack.c.l.b16 %v9639
        %v10235 = vunpack.c.h.b16 %v9639
        %v10236 = vunpack.c.l.b16 %v9640
        %v10237 = vunpack.c.h.b16 %v9640
        %v10238 = vunpack.c.l.b16 %v9641
        %v10239 = vunpack.c.h.b16 %v9641
        %v10240 = vunpack.c.l.b16 %v9642
        %v10241 = vunpack.c.h.b16 %v9642
        %v10242 = vunpack.c.l.b16 %v9643
        %v10243 = vunpack.c.h.b16 %v9643
        %v10244 = vunpack.c.l.b16 %v9644
        %v10245 = vunpack.c.h.b16 %v9644
        %v10246 = vunpack.c.l.b16 %v9645
        %v10247 = vunpack.c.h.b16 %v9645
        %v10248 = vunpack.c.l.b16 %v9646
        %v10249 = vunpack.c.h.b16 %v9646
        %v10250 = vunpack.c.l.b16 %v9647
        %v10251 = vunpack.c.h.b16 %v9647
        %v10252 = vunpack.c.l.b16 %v9648
        %v10253 = vunpack.c.h.b16 %v9648
        %v10254 = vunpack.c.l.b16 %v9649
        %v10255 = vunpack.c.h.b16 %v9649
        %v10256 = vunpack.c.l.b16 %v9650
        %v10257 = vunpack.c.h.b16 %v9650
        %v10258 = vunpack.c.l.b16 %v9651
        %v10259 = vunpack.c.h.b16 %v9651
        %v10260 = vunpack.c.l.b16 %v9652
        %v10261 = vunpack.c.h.b16 %v9652
        %v10262 = vunpack.c.l.b16 %v9653
        %v10263 = vunpack.c.h.b16 %v9653
        %v10264 = vunpack.c.l.b16 %v9654
        %v10265 = vunpack.c.h.b16 %v9654
        %v10266 = vunpack.c.l.b16 %v9655
        %v10267 = vunpack.c.h.b16 %v9655
        %v10268 = vunpack.c.l.b16 %v9656
        %v10269 = vunpack.c.h.b16 %v9656
        %v10270 = vunpack.c.l.b16 %v9657
        %v10271 = vunpack.c.h.b16 %v9657
        %v10272 = vunpack.c.l.b16 %v9658
        %v10273 = vunpack.c.h.b16 %v9658
        %v10274 = vunpack.c.l.b16 %v9659
        %v10275 = vunpack.c.h.b16 %v9659
        %v10276 = vunpack.c.l.b16 %v9660
        %v10277 = vunpack.c.h.b16 %v9660
        %v10278 = vunpack.c.l.b16 %v9661
        %v10279 = vunpack.c.h.b16 %v9661
        %v10280 = vunpack.c.l.b16 %v9662
        %v10281 = vunpack.c.h.b16 %v9662
        %v10282 = vunpack.c.l.b16 %v9663
        %v10283 = vunpack.c.h.b16 %v9663
        %v10284 = vunpack.c.l.b16 %v9664
        %v10285 = vunpack.c.h.b16 %v9664
        %v10286 = vunpack.c.l.b16 %v9665
        %v10287 = vunpack.c.h.b16 %v9665
        %v10288 = vunpack.c.l.b16 %v9666
        %v10289 = vunpack.c.h.b16 %v9666
        %v10290 = vunpack.c.l.b16 %v9667
        %v10291 = vunpack.c.h.b16 %v9667
        %v10292 = vunpack.c.l.b16 %v9668
        %v10293 = vunpack.c.h.b16 %v9668
        %v10294 = vunpack.c.l.b16 %v9669
        %v10295 = vunpack.c.h.b16 %v9669
        %v10296 = vunpack.c.l.b16 %v9670
        %v10297 = vunpack.c.h.b16 %v9670
        %v10298 = vunpack.c.l.b16 %v9671
        %v10299 = vunpack.c.h.b16 %v9671
        %v10300 = vunpack.c.l.b16 %v9672
        %v10301 = vunpack.c.h.b16 %v9672
        %v10302 = vunpack.c.l.b16 %v9673
        %v10303 = vunpack.c.h.b16 %v9673
        %v10304 = vunpack.c.l.b16 %v9674
        %v10305 = vunpack.c.h.b16 %v9674
        %v10306 = vunpack.c.l.b16 %v9675
        %v10307 = vunpack.c.h.b16 %v9675
        %v10308 = vunpack.c.l.b16 %v9676
        %v10309 = vunpack.c.h.b16 %v9676
        %v10310 = vunpack.c.l.b16 %v9677
        %v10311 = vunpack.c.h.b16 %v9677
        %v10312 = vunpack.c.l.b16 %v9678
        %v10313 = vunpack.c.h.b16 %v9678
        %v10314 = vunpack.c.l.b16 %v9679
        %v10315 = vunpack.c.h.b16 %v9679
        %v10316 = vunpack.c.l.b16 %v9680
        %v10317 = vunpack.c.h.b16 %v9680
        %v10318 = vunpack.c.l.b16 %v9681
        %v10319 = vunpack.c.h.b16 %v9681
        %v10320 = vunpack.c.l.b16 %v9682
        %v10321 = vunpack.c.h.b16 %v9682
        %v10322 = vunpack.c.l.b16 %v9683
        %v10323 = vunpack.c.h.b16 %v9683
        %v10324 = vunpack.c.l.b16 %v9684
        %v10325 = vunpack.c.h.b16 %v9684
        %v10326 = vunpack.c.l.b16 %v9685
        %v10327 = vunpack.c.h.b16 %v9685
        %v10328 = vunpack.c.l.b16 %v9686
        %v10329 = vunpack.c.h.b16 %v9686
        %v10330 = vunpack.c.l.b16 %v9687
        %v10331 = vunpack.c.h.b16 %v9687
        %v10332 = vunpack.c.l.b16 %v9688
        %v10333 = vunpack.c.h.b16 %v9688
        %v10334 = vunpack.c.l.b16 %v9689
        %v10335 = vunpack.c.h.b16 %v9689
        %v10336 = vunpack.c.l.b16 %v9690
        %v10337 = vunpack.c.h.b16 %v9690
        %v10338 = vunpack.c.l.b16 %v9691
        %v10339 = vunpack.c.h.b16 %v9691
        %v10340 = vunpack.c.l.b16 %v9692
        %v10341 = vunpack.c.h.b16 %v9692
        %v10342 = vunpack.c.l.b16 %v9693
        %v10343 = vunpack.c.h.b16 %v9693
        %v10344 = vunpack.c.l.b16 %v9694
        %v10345 = vunpack.c.h.b16 %v9694
        %v10346 = vunpack.c.l.b16 %v9695
        %v10347 = vunpack.c.h.b16 %v9695
        %v10348 = vunpack.c.l.b16 %v9696
        %v10349 = vunpack.c.h.b16 %v9696
        %v10350 = vunpack.c.l.b16 %v9697
        %v10351 = vunpack.c.h.b16 %v9697
        %v10352 = vunpack.c.l.b16 %v9698
        %v10353 = vunpack.c.h.b16 %v9698
        %v10354 = vunpack.c.l.b16 %v9699
        %v10355 = vunpack.c.h.b16 %v9699
        %v10356 = vunpack.c.l.b16 %v9700
        %v10357 = vunpack.c.h.b16 %v9700
        %v10358 = vunpack.c.l.b16 %v9701
        %v10359 = vunpack.c.h.b16 %v9701
        %v10360 = vunpack.c.l.b16 %v9702
        %v10361 = vunpack.c.h.b16 %v9702
        %v10362 = vunpack.c.l.b16 %v9703
        %v10363 = vunpack.c.h.b16 %v9703
        %v10364 = vunpack.c.l.b16 %v9704
        %v10365 = vunpack.c.h.b16 %v9704
        %v10366 = vunpack.c.l.b16 %v9705
        %v10367 = vunpack.c.h.b16 %v9705
        %v10368 = vunpack.c.l.b16 %v9706
        %v10369 = vunpack.c.h.b16 %v9706
        %v10370 = vunpack.c.l.b16 %v9707
        %v10371 = vunpack.c.h.b16 %v9707
        %v10372 = vunpack.c.l.b16 %v9708
        %v10373 = vunpack.c.h.b16 %v9708
        %v10374 = vunpack.c.l.b16 %v9709
        %v10375 = vunpack.c.h.b16 %v9709
        %v10376 = vunpack.c.l.b16 %v9710
        %v10377 = vunpack.c.h.b16 %v9710
        %v10378 = vunpack.c.l.b16 %v9711
        %v10379 = vunpack.c.h.b16 %v9711
        %v10380 = vunpack.c.l.b16 %v9712
        %v10381 = vunpack.c.h.b16 %v9712
        %v10382 = vunpack.c.l.b16 %v9713
        %v10383 = vunpack.c.h.b16 %v9713
        %v10384 = vunpack.c.l.b16 %v9714
        %v10385 = vunpack.c.h.b16 %v9714
        %v10386 = vunpack.c.l.b16 %v9715
        %v10387 = vunpack.c.h.b16 %v9715
        %v10388 = vunpack.c.l.b16 %v9716
        %v10389 = vunpack.c.h.b16 %v9716
        %v10390 = vunpack.c.l.b16 %v9717
        %v10391 = vunpack.c.h.b16 %v9717
        %v10392 = vunpack.c.l.b16 %v9718
        %v10393 = vunpack.c.h.b16 %v9718
        %v10394 = vunpack.c.l.b16 %v9719
        %v10395 = vunpack.c.h.b16 %v9719
        %v10396 = vunpack.c.l.b16 %v9720
        %v10397 = vunpack.c.h.b16 %v9720
        %v10398 = vunpack.c.l.b16 %v9721
        %v10399 = vunpack.c.h.b16 %v9721
        %v10400 = vunpack.c.l.b16 %v9722
        %v10401 = vunpack.c.h.b16 %v9722
        %v10402 = vunpack.c.l.b16 %v9723
        %v10403 = vunpack.c.h.b16 %v9723
        %v10404 = vunpack.c.l.b16 %v9724
        %v10405 = vunpack.c.h.b16 %v9724
        %v10406 = vunpack.c.l.b16 %v9725
        %v10407 = vunpack.c.h.b16 %v9725
        %v10408 = vunpack.c.l.b16 %v9726
        %v10409 = vunpack.c.h.b16 %v9726
        %v10410 = vunpack.c.l.b16 %v9727
        %v10411 = vunpack.c.h.b16 %v9727
        %v10412 = vunpack.c.l.b16 %v9728
        %v10413 = vunpack.c.h.b16 %v9728
        %v10414 = vunpack.c.l.b16 %v9729
        %v10415 = vunpack.c.h.b16 %v9729
        %v10416 = vunpack.c.l.b16 %v9730
        %v10417 = vunpack.c.h.b16 %v9730
        %v10418 = vunpack.c.l.b16 %v9731
        %v10419 = vunpack.c.h.b16 %v9731
        %v10420 = vunpack.c.l.b16 %v9732
        %v10421 = vunpack.c.h.b16 %v9732
        %v10422 = vunpack.c.l.b16 %v9733
        %v10423 = vunpack.c.h.b16 %v9733
        %v10424 = vunpack.c.l.b16 %v9734
        %v10425 = vunpack.c.h.b16 %v9734
        %v10426 = vunpack.c.l.b16 %v9735
        %v10427 = vunpack.c.h.b16 %v9735
        %v10428 = vunpack.c.l.b16 %v9736
        %v10429 = vunpack.c.h.b16 %v9736
        %v10430 = vunpack.c.l.b16 %v9737
        %v10431 = vunpack.c.h.b16 %v9737
        %v10432 = vunpack.c.l.b16 %v9738
        %v10433 = vunpack.c.h.b16 %v9738
        %v10434 = vunpack.c.l.b16 %v9739
        %v10435 = vunpack.c.h.b16 %v9739
        %v10436 = vunpack.c.l.b16 %v9740
        %v10437 = vunpack.c.h.b16 %v9740
        %v10438 = vunpack.c.l.b16 %v9741
        %v10439 = vunpack.c.h.b16 %v9741
        %v10440 = vunpack.c.l.b16 %v9742
        %v10441 = vunpack.c.h.b16 %v9742
        %v10442 = vunpack.c.l.b16 %v9743
        %v10443 = vunpack.c.h.b16 %v9743
        %v10444 = vunpack.c.l.b16 %v9744
        %v10445 = vunpack.c.h.b16 %v9744
        %v10446 = vunpack.c.l.b16 %v9745
        %v10447 = vunpack.c.h.b16 %v9745
        %v10448 = vunpack.c.l.b16 %v9746
        %v10449 = vunpack.c.h.b16 %v9746
        %v10450 = vunpack.c.l.b16 %v9747
        %v10451 = vunpack.c.h.b16 %v9747
        %v10452 = vunpack.c.l.b16 %v9748
        %v10453 = vunpack.c.h.b16 %v9748
        %v10454 = vunpack.c.l.b16 %v9749
        %v10455 = vunpack.c.h.b16 %v9749
        %v10456 = vunpack.c.l.b16 %v9750
        %v10457 = vunpack.c.h.b16 %v9750
        %v10458 = vunpack.c.l.b16 %v9751
        %v10459 = vunpack.c.h.b16 %v9751
        %v10460 = vunpack.c.l.b16 %v9752
        %v10461 = vunpack.c.h.b16 %v9752
        %v10462 = vunpack.c.l.b16 %v9753
        %v10463 = vunpack.c.h.b16 %v9753
        %v10464 = vunpack.c.l.b16 %v9754
        %v10465 = vunpack.c.h.b16 %v9754
        %v10466 = vunpack.c.l.b16 %v9755
        %v10467 = vunpack.c.h.b16 %v9755
        %v10468 = vunpack.c.l.b16 %v9756
        %v10469 = vunpack.c.h.b16 %v9756
        %v10470 = vunpack.c.l.b16 %v9757
        %v10471 = vunpack.c.h.b16 %v9757
        %v10472 = vunpack.c.l.b16 %v9758
        %v10473 = vunpack.c.h.b16 %v9758
        %v10474 = vunpack.c.l.b16 %v9759
        %v10475 = vunpack.c.h.b16 %v9759
        %v10476 = vunpack.c.l.b16 %v9760
        %v10477 = vunpack.c.h.b16 %v9760
        %v10478 = vunpack.c.l.b16 %v9761
        %v10479 = vunpack.c.h.b16 %v9761
        %v10480 = vunpack.c.l.b16 %v9762
        %v10481 = vunpack.c.h.b16 %v9762
        %v10482 = vunpack.c.l.b16 %v9763
        %v10483 = vunpack.c.h.b16 %v9763
        %v10484 = vunpack.c.l.b16 %v9764
        %v10485 = vunpack.c.h.b16 %v9764
        %v10486 = vunpack.c.l.b16 %v9765
        %v10487 = vunpack.c.h.b16 %v9765
        %v10488 = vunpack.c.l.b16 %v9766
        %v10489 = vunpack.c.h.b16 %v9766
        %v10490 = vunpack.c.l.b16 %v9767
        %v10491 = vunpack.c.h.b16 %v9767
        %v10492 = vunpack.c.l.b16 %v9768
        %v10493 = vunpack.c.h.b16 %v9768
        %v10494 = vunpack.c.l.b16 %v9769
        %v10495 = vunpack.c.h.b16 %v9769
        %v10496 = vunpack.c.l.b16 %v9770
        %v10497 = vunpack.c.h.b16 %v9770
        %v10498 = vunpack.c.l.b16 %v9771
        %v10499 = vunpack.c.h.b16 %v9771
        %v10500 = vunpack.c.l.b16 %v9772
        %v10501 = vunpack.c.h.b16 %v9772
        %v10502 = vunpack.c.l.b16 %v9773
        %v10503 = vunpack.c.h.b16 %v9773
        %v10504 = vunpack.c.l.b16 %v9774
        %v10505 = vunpack.c.h.b16 %v9774
        %v10506 = vunpack.c.l.b16 %v9775
        %v10507 = vunpack.c.h.b16 %v9775
        %v10508 = vunpack.c.l.b16 %v9776
        %v10509 = vunpack.c.h.b16 %v9776
        %v10510 = vunpack.c.l.b16 %v9777
        %v10511 = vunpack.c.h.b16 %v9777
        %v10512 = vunpack.c.l.b16 %v9778
        %v10513 = vunpack.c.h.b16 %v9778
        %v10514 = vunpack.c.l.b16 %v9779
        %v10515 = vunpack.c.h.b16 %v9779
        %v10516 = vunpack.c.l.b16 %v9780
        %v10517 = vunpack.c.h.b16 %v9780
        %v10518 = vunpack.c.l.b16 %v9781
        %v10519 = vunpack.c.h.b16 %v9781
        %v10520 = vunpack.c.l.b16 %v9782
        %v10521 = vunpack.c.h.b16 %v9782
        %v10522 = vunpack.c.l.b16 %v9783
        %v10523 = vunpack.c.h.b16 %v9783
        %v10524 = vunpack.c.l.b16 %v9784
        %v10525 = vunpack.c.h.b16 %v9784
        %v10526 = vunpack.c.l.b16 %v9785
        %v10527 = vunpack.c.h.b16 %v9785
        %v10528 = vunpack.c.l.b16 %v9786
        %v10529 = vunpack.c.h.b16 %v9786
        %v10530 = vunpack.c.l.b16 %v9787
        %v10531 = vunpack.c.h.b16 %v9787
        %v10532 = vunpack.c.l.b16 %v9788
        %v10533 = vunpack.c.h.b16 %v9788
        %v10534 = vunpack.c.l.b16 %v9789
        %v10535 = vunpack.c.h.b16 %v9789
        %v10536 = vunpack.c.l.b16 %v9790
        %v10537 = vunpack.c.h.b16 %v9790
        %v10538 = vunpack.c.l.b16 %v9791
        %v10539 = vunpack.c.h.b16 %v9791
        %v10540 = vunpack.c.l.b16 %v9792
        %v10541 = vunpack.c.h.b16 %v9792
        %v10542 = vunpack.c.l.b16 %v9793
        %v10543 = vunpack.c.h.b16 %v9793
        %v10544 = vunpack.c.l.b16 %v9794
        %v10545 = vunpack.c.h.b16 %v9794
        %v10546 = vunpack.c.l.b16 %v9795
        %v10547 = vunpack.c.h.b16 %v9795
        %v10548 = vunpack.c.l.b16 %v9796
        %v10549 = vunpack.c.h.b16 %v9796
        %v10550 = vunpack.c.l.b16 %v9797
        %v10551 = vunpack.c.h.b16 %v9797
        %v10552 = vunpack.c.l.b16 %v9798
        %v10553 = vunpack.c.h.b16 %v9798
        %v10554 = vunpack.c.l.b16 %v9799
        %v10555 = vunpack.c.h.b16 %v9799
        %v10556 = vunpack.c.l.b16 %v9800
        %v10557 = vunpack.c.h.b16 %v9800
        %v10558 = vunpack.c.l.b16 %v9801
        %v10559 = vunpack.c.h.b16 %v9801
        %v10560 = vunpack.c.l.b16 %v9802
        %v10561 = vunpack.c.h.b16 %v9802
        %v10562 = vunpack.c.l.b16 %v9803
        %v10563 = vunpack.c.h.b16 %v9803
        %v10564 = vunpack.c.l.b16 %v9804
        %v10565 = vunpack.c.h.b16 %v9804
        %v10566 = vunpack.c.l.b16 %v9805
        %v10567 = vunpack.c.h.b16 %v9805
        %v10568 = vunpack.c.l.b16 %v9806
        %v10569 = vunpack.c.h.b16 %v9806
        %v10570 = vunpack.c.l.b16 %v9807
        %v10571 = vunpack.c.h.b16 %v9807
        %v10572 = vunpack.c.l.b16 %v9808
        %v10573 = vunpack.c.h.b16 %v9808
        %v10574 = vunpack.c.l.b16 %v9809
        %v10575 = vunpack.c.h.b16 %v9809
        %v10576 = vunpack.c.l.b16 %v9810
        %v10577 = vunpack.c.h.b16 %v9810
        %v10578 = vunpack.c.l.b16 %v9811
        %v10579 = vunpack.c.h.b16 %v9811
        %v10580 = vunpack.c.l.b16 %v9812
        %v10581 = vunpack.c.h.b16 %v9812
        %v10582 = vunpack.c.l.b16 %v9813
        %v10583 = vunpack.c.h.b16 %v9813
        %v10584 = vunpack.c.l.b16 %v9814
        %v10585 = vunpack.c.h.b16 %v9814
        %v10586 = vunpack.c.l.b16 %v9815
        %v10587 = vunpack.c.h.b16 %v9815
        %v10588 = vunpack.c.l.b16 %v9816
        %v10589 = vunpack.c.h.b16 %v9816
        %v10590 = vunpack.c.l.b16 %v9817
        %v10591 = vunpack.c.h.b16 %v9817
        %v10592 = vunpack.c.l.b16 %v9818
        %v10593 = vunpack.c.h.b16 %v9818
        %v10594 = vunpack.c.l.b16 %v9819
        %v10595 = vunpack.c.h.b16 %v9819
        %v10596 = vunpack.c.l.b16 %v9820
        %v10597 = vunpack.c.h.b16 %v9820
        %v10598 = vunpack.c.l.b16 %v9821
        %v10599 = vunpack.c.h.b16 %v9821
        %v10600 = vunpack.c.l.b16 %v9822
        %v10601 = vunpack.c.h.b16 %v9822
        %v10602 = vunpack.c.l.b16 %v9823
        %v10603 = vunpack.c.h.b16 %v9823
        %v10604 = vunpack.c.l.b16 %v9824
        %v10605 = vunpack.c.h.b16 %v9824
        %v10606 = vunpack.c.l.b16 %v9825
        %v10607 = vunpack.c.h.b16 %v9825
        %v10608 = vunpack.c.l.b16 %v9826
        %v10609 = vunpack.c.h.b16 %v9826
        %v10610 = vunpack.c.l.b16 %v9827
        %v10611 = vunpack.c.h.b16 %v9827
        %v10612 = vunpack.c.l.b16 %v9828
        %v10613 = vunpack.c.h.b16 %v9828
        %v10614 = vunpack.c.l.b16 %v9829
        %v10615 = vunpack.c.h.b16 %v9829
        %v10616 = vunpack.c.l.b16 %v9830
        %v10617 = vunpack.c.h.b16 %v9830
        %v10618 = vunpack.c.l.b16 %v9831
        %v10619 = vunpack.c.h.b16 %v9831
        %v10620 = vunpack.c.l.b16 %v9832
        %v10621 = vunpack.c.h.b16 %v9832
        %v10622 = vunpack.c.l.b16 %v9833
        %v10623 = vunpack.c.h.b16 %v9833
        %v10624 = vpack.c.b16 %v10116, %v10112
        %v10625 = vpack.c.b16 %v10117, %v10113
        %v10626 = vpack.c.b16 %v10118, %v10114
        %v10627 = vpack.c.b16 %v10119, %v10115
        %v10628 = vpack.c.b16 %v10124, %v10120
        %v10629 = vpack.c.b16 %v10125, %v10121
        %v10630 = vpack.c.b16 %v10126, %v10122
        %v10631 = vpack.c.b16 %v10127, %v10123
        %v10632 = vpack.c.b16 %v10132, %v10128
        %v10633 = vpack.c.b16 %v10133, %v10129
        %v10634 = vpack.c.b16 %v10134, %v10130
        %v10635 = vpack.c.b16 %v10135, %v10131
        %v10636 = vpack.c.b16 %v10140, %v10136
        %v10637 = vpack.c.b16 %v10141, %v10137
        %v10638 = vpack.c.b16 %v10142, %v10138
        %v10639 = vpack.c.b16 %v10143, %v10139
        %v10640 = vpack.c.b16 %v10148, %v10144
        %v10641 = vpack.c.b16 %v10149, %v10145
        %v10642 = vpack.c.b16 %v10150, %v10146
        %v10643 = vpack.c.b16 %v10151, %v10147
        %v10644 = vpack.c.b16 %v10156, %v10152
        %v10645 = vpack.c.b16 %v10157, %v10153
        %v10646 = vpack.c.b16 %v10158, %v10154
        %v10647 = vpack.c.b16 %v10159, %v10155
        %v10648 = vpack.c.b16 %v10164, %v10160
        %v10649 = vpack.c.b16 %v10165, %v10161
        %v10650 = vpack.c.b16 %v10166, %v10162
        %v10651 = vpack.c.b16 %v10167, %v10163
        %v10652 = vpack.c.b16 %v10172, %v10168
        %v10653 = vpack.c.b16 %v10173, %v10169
        %v10654 = vpack.c.b16 %v10174, %v10170
        %v10655 = vpack.c.b16 %v10175, %v10171
        %v10656 = vpack.c.b16 %v10180, %v10176
        %v10657 = vpack.c.b16 %v10181, %v10177
        %v10658 = vpack.c.b16 %v10182, %v10178
        %v10659 = vpack.c.b16 %v10183, %v10179
        %v10660 = vpack.c.b16 %v10188, %v10184
        %v10661 = vpack.c.b16 %v10189, %v10185
        %v10662 = vpack.c.b16 %v10190, %v10186
        %v10663 = vpack.c.b16 %v10191, %v10187
        %v10664 = vpack.c.b16 %v10196, %v10192
        %v10665 = vpack.c.b16 %v10197, %v10193
        %v10666 = vpack.c.b16 %v10198, %v10194
        %v10667 = vpack.c.b16 %v10199, %v10195
        %v10668 = vpack.c.b16 %v10204, %v10200
        %v10669 = vpack.c.b16 %v10205, %v10201
        %v10670 = vpack.c.b16 %v10206, %v10202
        %v10671 = vpack.c.b16 %v10207, %v10203
        %v10672 = vpack.c.b16 %v10212, %v10208
        %v10673 = vpack.c.b16 %v10213, %v10209
        %v10674 = vpack.c.b16 %v10214, %v10210
        %v10675 = vpack.c.b16 %v10215, %v10211
        %v10676 = vpack.c.b16 %v10220, %v10216
        %v10677 = vpack.c.b16 %v10221, %v10217
        %v10678 = vpack.c.b16 %v10222, %v10218
        %v10679 = vpack.c.b16 %v10223, %v10219
        %v10680 = vpack.c.b16 %v10228, %v10224
        %v10681 = vpack.c.b16 %v10229, %v10225
        %v10682 = vpack.c.b16 %v10230, %v10226
        %v10683 = vpack.c.b16 %v10231, %v10227
        %v10684 = vpack.c.b16 %v10236, %v10232
        %v10685 = vpack.c.b16 %v10237, %v10233
        %v10686 = vpack.c.b16 %v10238, %v10234
        %v10687 = vpack.c.b16 %v10239, %v10235
        %v10688 = vpack.c.b16 %v10244, %v10240
        %v10689 = vpack.c.b16 %v10245, %v10241
        %v10690 = vpack.c.b16 %v10246, %v10242
        %v10691 = vpack.c.b16 %v10247, %v10243
        %v10692 = vpack.c.b16 %v10252, %v10248
        %v10693 = vpack.c.b16 %v10253, %v10249
        %v10694 = vpack.c.b16 %v10254, %v10250
        %v10695 = vpack.c.b16 %v10255, %v10251
        %v10696 = vpack.c.b16 %v10260, %v10256
        %v10697 = vpack.c.b16 %v10261, %v10257
        %v10698 = vpack.c.b16 %v10262, %v10258
        %v10699 = vpack.c.b16 %v10263, %v10259
        %v10700 = vpack.c.b16 %v10268, %v10264
        %v10701 = vpack.c.b16 %v10269, %v10265
        %v10702 = vpack.c.b16 %v10270, %v10266
        %v10703 = vpack.c.b16 %v10271, %v10267
        %v10704 = vpack.c.b16 %v10276, %v10272
        %v10705 = vpack.c.b16 %v10277, %v10273
        %v10706 = vpack.c.b16 %v10278, %v10274
        %v10707 = vpack.c.b16 %v10279, %v10275
        %v10708 = vpack.c.b16 %v10284, %v10280
        %v10709 = vpack.c.b16 %v10285, %v10281
        %v10710 = vpack.c.b16 %v10286, %v10282
        %v10711 = vpack.c.b16 %v10287, %v10283
        %v10712 = vpack.c.b16 %v10292, %v10288
        %v10713 = vpack.c.b16 %v10293, %v10289
        %v10714 = vpack.c.b16 %v10294, %v10290
        %v10715 = vpack.c.b16 %v10295, %v10291
        %v10716 = vpack.c.b16 %v10300, %v10296
        %v10717 = vpack.c.b16 %v10301, %v10297
        %v10718 = vpack.c.b16 %v10302, %v10298
        %v10719 = vpack.c.b16 %v10303, %v10299
        %v10720 = vpack.c.b16 %v10308, %v10304
        %v10721 = vpack.c.b16 %v10309, %v10305
        %v10722 = vpack.c.b16 %v10310, %v10306
        %v10723 = vpack.c.b16 %v10311, %v10307
        %v10724 = vpack.c.b16 %v10316, %v10312
        %v10725 = vpack.c.b16 %v10317, %v10313
        %v10726 = vpack.c.b16 %v10318, %v10314
        %v10727 = vpack.c.b16 %v10319, %v10315
        %v10728 = vpack.c.b16 %v10324, %v10320
        %v10729 = vpack.c.b16 %v10325, %v10321
        %v10730 = vpack.c.b16 %v10326, %v10322
        %v10731 = vpack.c.b16 %v10327, %v10323
        %v10732 = vpack.c.b16 %v10332, %v10328
        %v10733 = vpack.c.b16 %v10333, %v10329
        %v10734 = vpack.c.b16 %v10334, %v10330
        %v10735 = vpack.c.b16 %v10335, %v10331
        %v10736 = vpack.c.b16 %v10340, %v10336
        %v10737 = vpack.c.b16 %v10341, %v10337
        %v10738 = vpack.c.b16 %v10342, %v10338
        %v10739 = vpack.c.b16 %v10343, %v10339
        %v10740 = vpack.c.b16 %v10348, %v10344
        %v10741 = vpack.c.b16 %v10349, %v10345
        %v10742 = vpack.c.b16 %v10350, %v10346
        %v10743 = vpack.c.b16 %v10351, %v10347
        %v10744 = vpack.c.b16 %v10356, %v10352
        %v10745 = vpack.c.b16 %v10357, %v10353
        %v10746 = vpack.c.b16 %v10358, %v10354
        %v10747 = vpack.c.b16 %v10359, %v10355
        %v10748 = vpack.c.b16 %v10364, %v10360
        %v10749 = vpack.c.b16 %v10365, %v10361
        %v10750 = vpack.c.b16 %v10366, %v10362
        %v10751 = vpack.c.b16 %v10367, %v10363
        %v10752 = vpack.c.b16 %v10372, %v10368
        %v10753 = vpack.c.b16 %v10373, %v10369
        %v10754 = vpack.c.b16 %v10374, %v10370
        %v10755 = vpack.c.b16 %v10375, %v10371
        %v10756 = vpack.c.b16 %v10380, %v10376
        %v10757 = vpack.c.b16 %v10381, %v10377
        %v10758 = vpack.c.b16 %v10382, %v10378
        %v10759 = vpack.c.b16 %v10383, %v10379
        %v10760 = vpack.c.b16 %v10388, %v10384
        %v10761 = vpack.c.b16 %v10389, %v10385
        %v10762 = vpack.c.b16 %v10390, %v10386
        %v10763 = vpack.c.b16 %v10391, %v10387
        %v10764 = vpack.c.b16 %v10396, %v10392
        %v10765 = vpack.c.b16 %v10397, %v10393
        %v10766 = vpack.c.b16 %v10398, %v10394
        %v10767 = vpack.c.b16 %v10399, %v10395
        %v10768 = vpack.c.b16 %v10404, %v10400
        %v10769 = vpack.c.b16 %v10405, %v10401
        %v10770 = vpack.c.b16 %v10406, %v10402
        %v10771 = vpack.c.b16 %v10407, %v10403
        %v10772 = vpack.c.b16 %v10412, %v10408
        %v10773 = vpack.c.b16 %v10413, %v10409
        %v10774 = vpack.c.b16 %v10414, %v10410
        %v10775 = vpack.c.b16 %v10415, %v10411
        %v10776 = vpack.c.b16 %v10420, %v10416
        %v10777 = vpack.c.b16 %v10421, %v10417
        %v10778 = vpack.c.b16 %v10422, %v10418
        %v10779 = vpack.c.b16 %v10423, %v10419
        %v10780 = vpack.c.b16 %v10428, %v10424
        %v10781 = vpack.c.b16 %v10429, %v10425
        %v10782 = vpack.c.b16 %v10430, %v10426
        %v10783 = vpack.c.b16 %v10431, %v10427
        %v10784 = vpack.c.b16 %v10436, %v10432
        %v10785 = vpack.c.b16 %v10437, %v10433
        %v10786 = vpack.c.b16 %v10438, %v10434
        %v10787 = vpack.c.b16 %v10439, %v10435
        %v10788 = vpack.c.b16 %v10444, %v10440
        %v10789 = vpack.c.b16 %v10445, %v10441
        %v10790 = vpack.c.b16 %v10446, %v10442
        %v10791 = vpack.c.b16 %v10447, %v10443
        %v10792 = vpack.c.b16 %v10452, %v10448
        %v10793 = vpack.c.b16 %v10453, %v10449
        %v10794 = vpack.c.b16 %v10454, %v10450
        %v10795 = vpack.c.b16 %v10455, %v10451
        %v10796 = vpack.c.b16 %v10460, %v10456
        %v10797 = vpack.c.b16 %v10461, %v10457
        %v10798 = vpack.c.b16 %v10462, %v10458
        %v10799 = vpack.c.b16 %v10463, %v10459
        %v10800 = vpack.c.b16 %v10468, %v10464
        %v10801 = vpack.c.b16 %v10469, %v10465
        %v10802 = vpack.c.b16 %v10470, %v10466
        %v10803 = vpack.c.b16 %v10471, %v10467
        %v10804 = vpack.c.b16 %v10476, %v10472
        %v10805 = vpack.c.b16 %v10477, %v10473
        %v10806 = vpack.c.b16 %v10478, %v10474
        %v10807 = vpack.c.b16 %v10479, %v10475
        %v10808 = vpack.c.b16 %v10484, %v10480
        %v10809 = vpack.c.b16 %v10485, %v10481
        %v10810 = vpack.c.b16 %v10486, %v10482
        %v10811 = vpack.c.b16 %v10487, %v10483
        %v10812 = vpack.c.b16 %v10492, %v10488
        %v10813 = vpack.c.b16 %v10493, %v10489
        %v10814 = vpack.c.b16 %v10494, %v10490
        %v10815 = vpack.c.b16 %v10495, %v10491
        %v10816 = vpack.c.b16 %v10500, %v10496
        %v10817 = vpack.c.b16 %v10501, %v10497
        %v10818 = vpack.c.b16 %v10502, %v10498
        %v10819 = vpack.c.b16 %v10503, %v10499
        %v10820 = vpack.c.b16 %v10508, %v10504
        %v10821 = vpack.c.b16 %v10509, %v10505
        %v10822 = vpack.c.b16 %v10510, %v10506
        %v10823 = vpack.c.b16 %v10511, %v10507
        %v10824 = vpack.c.b16 %v10516, %v10512
        %v10825 = vpack.c.b16 %v10517, %v10513
        %v10826 = vpack.c.b16 %v10518, %v10514
        %v10827 = vpack.c.b16 %v10519, %v10515
        %v10828 = vpack.c.b16 %v10524, %v10520
        %v10829 = vpack.c.b16 %v10525, %v10521
        %v10830 = vpack.c.b16 %v10526, %v10522
        %v10831 = vpack.c.b16 %v10527, %v10523
        %v10832 = vpack.c.b16 %v10532, %v10528
        %v10833 = vpack.c.b16 %v10533, %v10529
        %v10834 = vpack.c.b16 %v10534, %v10530
        %v10835 = vpack.c.b16 %v10535, %v10531
        %v10836 = vpack.c.b16 %v10540, %v10536
        %v10837 = vpack.c.b16 %v10541, %v10537
        %v10838 = vpack.c.b16 %v10542, %v10538
        %v10839 = vpack.c.b16 %v10543, %v10539
        %v10840 = vpack.c.b16 %v10548, %v10544
        %v10841 = vpack.c.b16 %v10549, %v10545
        %v10842 = vpack.c.b16 %v10550, %v10546
        %v10843 = vpack.c.b16 %v10551, %v10547
        %v10844 = vpack.c.b16 %v10556, %v10552
        %v10845 = vpack.c.b16 %v10557, %v10553
        %v10846 = vpack.c.b16 %v10558, %v10554
        %v10847 = vpack.c.b16 %v10559, %v10555
        %v10848 = vpack.c.b16 %v10564, %v10560
        %v10849 = vpack.c.b16 %v10565, %v10561
        %v10850 = vpack.c.b16 %v10566, %v10562
        %v10851 = vpack.c.b16 %v10567, %v10563
        %v10852 = vpack.c.b16 %v10572, %v10568
        %v10853 = vpack.c.b16 %v10573, %v10569
        %v10854 = vpack.c.b16 %v10574, %v10570
        %v10855 = vpack.c.b16 %v10575, %v10571
        %v10856 = vpack.c.b16 %v10580, %v10576
        %v10857 = vpack.c.b16 %v10581, %v10577
        %v10858 = vpack.c.b16 %v10582, %v10578
        %v10859 = vpack.c.b16 %v10583, %v10579
        %v10860 = vpack.c.b16 %v10588, %v10584
        %v10861 = vpack.c.b16 %v10589, %v10585
        %v10862 = vpack.c.b16 %v10590, %v10586
        %v10863 = vpack.c.b16 %v10591, %v10587
        %v10864 = vpack.c.b16 %v10596, %v10592
        %v10865 = vpack.c.b16 %v10597, %v10593
        %v10866 = vpack.c.b16 %v10598, %v10594
        %v10867 = vpack.c.b16 %v10599, %v10595
        %v10868 = vpack.c.b16 %v10604, %v10600
        %v10869 = vpack.c.b16 %v10605, %v10601
        %v10870 = vpack.c.b16 %v10606, %v10602
        %v10871 = vpack.c.b16 %v10607, %v10603
        %v10872 = vpack.c.b16 %v10612, %v10608
        %v10873 = vpack.c.b16 %v10613, %v10609
        %v10874 = vpack.c.b16 %v10614, %v10610
        %v10875 = vpack.c.b16 %v10615, %v10611
        %v10876 = vpack.c.b16 %v10620, %v10616
        %v10877 = vpack.c.b16 %v10621, %v10617
        %v10878 = vpack.c.b16 %v10622, %v10618
        %v10879 = vpack.c.b16 %v10623, %v10619
        %11136 = vmatprep.subr.bf16.mxu0 %v10625
        %11137 = vmatpush1.bf16.msra.mxu0 %v10624
        %11138 = vmatprep.subr.bf16.mxu0 %v10629
        %11139 = vmatpush1.bf16.msra.mxu0 %v10628
        %11140 = vmatprep.subr.bf16.mxu0 %v10633
        %11141 = vmatpush1.bf16.msra.mxu0 %v10632
        %11142 = vmatprep.subr.bf16.mxu0 %v10637
        %11143 = vmatpush1.bf16.msra.mxu0 %v10636
        %11144 = vmatprep.subr.bf16.mxu0 %v10641
        %11145 = vmatpush1.bf16.msra.mxu0 %v10640
        %11146 = vmatprep.subr.bf16.mxu0 %v10645
        %11147 = vmatpush1.bf16.msra.mxu0 %v10644
        %11148 = vmatprep.subr.bf16.mxu0 %v10649
        %11149 = vmatpush1.bf16.msra.mxu0 %v10648
        %11150 = vmatprep.subr.bf16.mxu0 %v10653
        %11151 = vmatpush1.bf16.msra.mxu0 %v10652
        %11152 = vmatprep.subr.bf16.mxu0 %v10657
        %11153 = vmatpush1.bf16.msra.mxu0 %v10656
        %11154 = vmatprep.subr.bf16.mxu0 %v10661
        %11155 = vmatpush1.bf16.msra.mxu0 %v10660
        %11156 = vmatprep.subr.bf16.mxu0 %v10665
        %11157 = vmatpush1.bf16.msra.mxu0 %v10664
        %11158 = vmatprep.subr.bf16.mxu0 %v10669
        %11159 = vmatpush1.bf16.msra.mxu0 %v10668
        %11160 = vmatprep.subr.bf16.mxu0 %v10673
        %11161 = vmatpush1.bf16.msra.mxu0 %v10672
        %11162 = vmatprep.subr.bf16.mxu0 %v10677
        %11163 = vmatpush1.bf16.msra.mxu0 %v10676
        %11164 = vmatprep.subr.bf16.mxu0 %v10681
        %11165 = vmatpush1.bf16.msra.mxu0 %v10680
        %11166 = vmatprep.subr.bf16.mxu0 %v10685
        %11167 = vmatpush1.bf16.msra.mxu0 %v10684
        %11168 = vmatprep.mubr.bf16.mxu0 %v9571
        %11169 = vmatmul.mubr.bf16.gmra.mrb[0].mxu0 %v9570
        %v11170 = vpop.f32.mrb[0].mxu0
        %v11171 = vadd.f32 %v9839, %v11170
        %v11172 = vpop.f32.mrb[0].mxu0
        %v11173 = vadd.f32 %v9843, %v11172
        %v11174 = vpop.f32.mrb[0].mxu0
        %v11175 = vpop.f32.mrb[0].mxu0
        %11176 = vdwg.mxu0
        %11177 = vmatprep.subr.bf16.mxu0 %v10689
        %11178 = vmatpush1.bf16.msra.mxu0 %v10688
        %11179 = vmatprep.subr.bf16.mxu0 %v10693
        %11180 = vmatpush1.bf16.msra.mxu0 %v10692
        %11181 = vmatprep.subr.bf16.mxu0 %v10697
        %11182 = vmatpush1.bf16.msra.mxu0 %v10696
        %11183 = vmatprep.subr.bf16.mxu0 %v10701
        %11184 = vmatpush1.bf16.msra.mxu0 %v10700
        %11185 = vmatprep.subr.bf16.mxu0 %v10705
        %11186 = vmatpush1.bf16.msra.mxu0 %v10704
        %11187 = vmatprep.subr.bf16.mxu0 %v10709
        %11188 = vmatpush1.bf16.msra.mxu0 %v10708
        %11189 = vmatprep.subr.bf16.mxu0 %v10713
        %11190 = vmatpush1.bf16.msra.mxu0 %v10712
        %11191 = vmatprep.subr.bf16.mxu0 %v10717
        %11192 = vmatpush1.bf16.msra.mxu0 %v10716
        %11193 = vmatprep.subr.bf16.mxu0 %v10721
        %11194 = vmatpush1.bf16.msra.mxu0 %v10720
        %11195 = vmatprep.subr.bf16.mxu0 %v10725
        %11196 = vmatpush1.bf16.msra.mxu0 %v10724
        %11197 = vmatprep.subr.bf16.mxu0 %v10729
        %11198 = vmatpush1.bf16.msra.mxu0 %v10728
        %11199 = vmatprep.subr.bf16.mxu0 %v10733
        %11200 = vmatpush1.bf16.msra.mxu0 %v10732
        %11201 = vmatprep.subr.bf16.mxu0 %v10737
        %11202 = vmatpush1.bf16.msra.mxu0 %v10736
        %11203 = vmatprep.subr.bf16.mxu0 %v10741
        %11204 = vmatpush1.bf16.msra.mxu0 %v10740
        %11205 = vmatprep.subr.bf16.mxu0 %v10745
        %11206 = vmatpush1.bf16.msra.mxu0 %v10744
        %11207 = vmatprep.subr.bf16.mxu0 %v10749
        %11208 = vmatpush1.bf16.msra.mxu0 %v10748
        %11209 = vmatprep.mubr.bf16.mxu0 %v9573
        %11210 = vmatmul.mubr.bf16.gmra.mrb[0].mxu0 %v9572
        %v11211 = vpop.f32.mrb[0].mxu0
        %v11212 = vadd.f32 %v11171, %v11211
        %v11213 = vpop.f32.mrb[0].mxu0
        %v11214 = vadd.f32 %v11173, %v11213
        %v11215 = vpop.f32.mrb[0].mxu0
        %v11216 = vpop.f32.mrb[0].mxu0
        %11217 = vdwg.mxu0
        %11218 = vmatprep.subr.bf16.mxu0 %v10753
        %11219 = vmatpush1.bf16.msra.mxu0 %v10752
        %11220 = vmatprep.subr.bf16.mxu0 %v10757
        %11221 = vmatpush1.bf16.msra.mxu0 %v10756
        %11222 = vmatprep.subr.bf16.mxu0 %v10761
        %11223 = vmatpush1.bf16.msra.mxu0 %v10760
        %11224 = vmatprep.subr.bf16.mxu0 %v10765
        %11225 = vmatpush1.bf16.msra.mxu0 %v10764
        %11226 = vmatprep.subr.bf16.mxu0 %v10769
        %11227 = vmatpush1.bf16.msra.mxu0 %v10768
        %11228 = vmatprep.subr.bf16.mxu0 %v10773
        %11229 = vmatpush1.bf16.msra.mxu0 %v10772
        %11230 = vmatprep.subr.bf16.mxu0 %v10777
        %11231 = vmatpush1.bf16.msra.mxu0 %v10776
        %11232 = vmatprep.subr.bf16.mxu0 %v10781
        %11233 = vmatpush1.bf16.msra.mxu0 %v10780
        %11234 = vmatprep.subr.bf16.mxu0 %v10785
        %11235 = vmatpush1.bf16.msra.mxu0 %v10784
        %11236 = vmatprep.subr.bf16.mxu0 %v10789
        %11237 = vmatpush1.bf16.msra.mxu0 %v10788
        %11238 = vmatprep.subr.bf16.mxu0 %v10793
        %11239 = vmatpush1.bf16.msra.mxu0 %v10792
        %11240 = vmatprep.subr.bf16.mxu0 %v10797
        %11241 = vmatpush1.bf16.msra.mxu0 %v10796
        %11242 = vmatprep.subr.bf16.mxu0 %v10801
        %11243 = vmatpush1.bf16.msra.mxu0 %v10800
        %11244 = vmatprep.subr.bf16.mxu0 %v10805
        %11245 = vmatpush1.bf16.msra.mxu0 %v10804
        %11246 = vmatprep.subr.bf16.mxu0 %v10809
        %11247 = vmatpush1.bf16.msra.mxu0 %v10808
        %11248 = vmatprep.subr.bf16.mxu0 %v10813
        %11249 = vmatpush1.bf16.msra.mxu0 %v10812
        %11250 = vmatprep.mubr.bf16.mxu0 %v9575
        %11251 = vmatmul.mubr.bf16.gmra.mrb[0].mxu0 %v9574
        %v11252 = vpop.f32.mrb[0].mxu0
        %v11253 = vadd.f32 %v11212, %v11252
        %v11254 = vpop.f32.mrb[0].mxu0
        %v11255 = vadd.f32 %v11214, %v11254
        %v11256 = vpop.f32.mrb[0].mxu0
        %v11257 = vpop.f32.mrb[0].mxu0
        %11258 = vdwg.mxu0
        %11259 = vmatprep.subr.bf16.mxu0 %v10817
        %11260 = vmatpush1.bf16.msra.mxu0 %v10816
        %11261 = vmatprep.subr.bf16.mxu0 %v10821
        %11262 = vmatpush1.bf16.msra.mxu0 %v10820
        %11263 = vmatprep.subr.bf16.mxu0 %v10825
        %11264 = vmatpush1.bf16.msra.mxu0 %v10824
        %11265 = vmatprep.subr.bf16.mxu0 %v10829
        %11266 = vmatpush1.bf16.msra.mxu0 %v10828
        %11267 = vmatprep.subr.bf16.mxu0 %v10833
        %11268 = vmatpush1.bf16.msra.mxu0 %v10832
        %11269 = vmatprep.subr.bf16.mxu0 %v10837
        %11270 = vmatpush1.bf16.msra.mxu0 %v10836
        %11271 = vmatprep.subr.bf16.mxu0 %v10841
        %11272 = vmatpush1.bf16.msra.mxu0 %v10840
        %11273 = vmatprep.subr.bf16.mxu0 %v10845
        %11274 = vmatpush1.bf16.msra.mxu0 %v10844
        %11275 = vmatprep.subr.bf16.mxu0 %v10849
        %11276 = vmatpush1.bf16.msra.mxu0 %v10848
        %11277 = vmatprep.subr.bf16.mxu0 %v10853
        %11278 = vmatpush1.bf16.msra.mxu0 %v10852
        %11279 = vmatprep.subr.bf16.mxu0 %v10857
        %11280 = vmatpush1.bf16.msra.mxu0 %v10856
        %11281 = vmatprep.subr.bf16.mxu0 %v10861
        %11282 = vmatpush1.bf16.msra.mxu0 %v10860
        %11283 = vmatprep.subr.bf16.mxu0 %v10865
        %11284 = vmatpush1.bf16.msra.mxu0 %v10864
        %11285 = vmatprep.subr.bf16.mxu0 %v10869
        %11286 = vmatpush1.bf16.msra.mxu0 %v10868
        %11287 = vmatprep.subr.bf16.mxu0 %v10873
        %11288 = vmatpush1.bf16.msra.mxu0 %v10872
        %11289 = vmatprep.subr.bf16.mxu0 %v10877
        %11290 = vmatpush1.bf16.msra.mxu0 %v10876
        %11291 = vmatprep.mubr.bf16.mxu0 %v9577
        %11292 = vmatmul.mubr.bf16.gmra.mrb[0].mxu0 %v9576
        %v11293 = vpop.f32.mrb[0].mxu0
        %v11294 = vadd.f32 %v11253, %v11293
        %v11295 = vpop.f32.mrb[0].mxu0
        %v11296 = vadd.f32 %v11255, %v11295
        %v11297 = vpop.f32.mrb[0].mxu0
        %v11298 = vpop.f32.mrb[0].mxu0
        %11299 = vdwg.mxu0
        %11300 = vmatprep.subr.bf16.mxu0 %v10627
        %11301 = vmatpush1.bf16.msra.mxu0 %v10626
        %11302 = vmatprep.subr.bf16.mxu0 %v10631
        %11303 = vmatpush1.bf16.msra.mxu0 %v10630
        %11304 = vmatprep.subr.bf16.mxu0 %v10635
        %11305 = vmatpush1.bf16.msra.mxu0 %v10634
        %11306 = vmatprep.subr.bf16.mxu0 %v10639
        %11307 = vmatpush1.bf16.msra.mxu0 %v10638
        %11308 = vmatprep.subr.bf16.mxu0 %v10643
        %11309 = vmatpush1.bf16.msra.mxu0 %v10642
        %11310 = vmatprep.subr.bf16.mxu0 %v10647
        %11311 = vmatpush1.bf16.msra.mxu0 %v10646
        %11312 = vmatprep.subr.bf16.mxu0 %v10651
        %11313 = vmatpush1.bf16.msra.mxu0 %v10650
        %11314 = vmatprep.subr.bf16.mxu0 %v10655
        %11315 = vmatpush1.bf16.msra.mxu0 %v10654
        %11316 = vmatprep.subr.bf16.mxu0 %v10659
        %11317 = vmatpush1.bf16.msra.mxu0 %v10658
        %11318 = vmatprep.subr.bf16.mxu0 %v10663
        %11319 = vmatpush1.bf16.msra.mxu0 %v10662
        %11320 = vmatprep.subr.bf16.mxu0 %v10667
        %11321 = vmatpush1.bf16.msra.mxu0 %v10666
        %11322 = vmatprep.subr.bf16.mxu0 %v10671
        %11323 = vmatpush1.bf16.msra.mxu0 %v10670
        %11324 = vmatprep.subr.bf16.mxu0 %v10675
        %11325 = vmatpush1.bf16.msra.mxu0 %v10674
        %11326 = vmatprep.subr.bf16.mxu0 %v10679
        %11327 = vmatpush1.bf16.msra.mxu0 %v10678
        %11328 = vmatprep.subr.bf16.mxu0 %v10683
        %11329 = vmatpush1.bf16.msra.mxu0 %v10682
        %11330 = vmatprep.subr.bf16.mxu0 %v10687
        %11331 = vmatpush1.bf16.msra.mxu0 %v10686
        %11332 = vmatprep.mubr.bf16.mxu0 %v9571
        %11333 = vmatmul.mubr.bf16.gmra.mrb[0].mxu0 %v9570
        %v11334 = vpop.f32.mrb[0].mxu0
        %v11335 = vadd.f32 %v9847, %v11334
        %v11336 = vpop.f32.mrb[0].mxu0
        %v11337 = vadd.f32 %v9851, %v11336
        %v11338 = vpop.f32.mrb[0].mxu0
        %v11339 = vpop.f32.mrb[0].mxu0
        %11340 = vdwg.mxu0
        %11341 = vmatprep.subr.bf16.mxu0 %v10691
        %11342 = vmatpush1.bf16.msra.mxu0 %v10690
        %11343 = vmatprep.subr.bf16.mxu0 %v10695
        %11344 = vmatpush1.bf16.msra.mxu0 %v10694
        %11345 = vmatprep.subr.bf16.mxu0 %v10699
        %11346 = vmatpush1.bf16.msra.mxu0 %v10698
        %11347 = vmatprep.subr.bf16.mxu0 %v10703
        %11348 = vmatpush1.bf16.msra.mxu0 %v10702
        %11349 = vmatprep.subr.bf16.mxu0 %v10707
        %11350 = vmatpush1.bf16.msra.mxu0 %v10706
        %11351 = vmatprep.subr.bf16.mxu0 %v10711
        %11352 = vmatpush1.bf16.msra.mxu0 %v10710
        %11353 = vmatprep.subr.bf16.mxu0 %v10715
        %11354 = vmatpush1.bf16.msra.mxu0 %v10714
        %11355 = vmatprep.subr.bf16.mxu0 %v10719
        %11356 = vmatpush1.bf16.msra.mxu0 %v10718
        %11357 = vmatprep.subr.bf16.mxu0 %v10723
        %11358 = vmatpush1.bf16.msra.mxu0 %v10722
        %11359 = vmatprep.subr.bf16.mxu0 %v10727
        %11360 = vmatpush1.bf16.msra.mxu0 %v10726
        %11361 = vmatprep.subr.bf16.mxu0 %v10731
        %11362 = vmatpush1.bf16.msra.mxu0 %v10730
        %11363 = vmatprep.subr.bf16.mxu0 %v10735
        %11364 = vmatpush1.bf16.msra.mxu0 %v10734
        %11365 = vmatprep.subr.bf16.mxu0 %v10739
        %11366 = vmatpush1.bf16.msra.mxu0 %v10738
        %11367 = vmatprep.subr.bf16.mxu0 %v10743
        %11368 = vmatpush1.bf16.msra.mxu0 %v10742
        %11369 = vmatprep.subr.bf16.mxu0 %v10747
        %11370 = vmatpush1.bf16.msra.mxu0 %v10746
        %11371 = vmatprep.subr.bf16.mxu0 %v10751
        %11372 = vmatpush1.bf16.msra.mxu0 %v10750
        %11373 = vmatprep.mubr.bf16.mxu0 %v9573
        %11374 = vmatmul.mubr.bf16.gmra.mrb[0].mxu0 %v9572
        %v11375 = vpop.f32.mrb[0].mxu0
        %v11376 = vadd.f32 %v11335, %v11375
        %v11377 = vpop.f32.mrb[0].mxu0
        %v11378 = vadd.f32 %v11337, %v11377
        %v11379 = vpop.f32.mrb[0].mxu0
        %v11380 = vpop.f32.mrb[0].mxu0
        %11381 = vdwg.mxu0
        %11382 = vmatprep.subr.bf16.mxu0 %v10755
        %11383 = vmatpush1.bf16.msra.mxu0 %v10754
        %11384 = vmatprep.subr.bf16.mxu0 %v10759
        %11385 = vmatpush1.bf16.msra.mxu0 %v10758
        %11386 = vmatprep.subr.bf16.mxu0 %v10763
        %11387 = vmatpush1.bf16.msra.mxu0 %v10762
        %11388 = vmatprep.subr.bf16.mxu0 %v10767
        %11389 = vmatpush1.bf16.msra.mxu0 %v10766
        %11390 = vmatprep.subr.bf16.mxu0 %v10771
        %11391 = vmatpush1.bf16.msra.mxu0 %v10770
        %11392 = vmatprep.subr.bf16.mxu0 %v10775
        %11393 = vmatpush1.bf16.msra.mxu0 %v10774
        %11394 = vmatprep.subr.bf16.mxu0 %v10779
        %11395 = vmatpush1.bf16.msra.mxu0 %v10778
        %11396 = vmatprep.subr.bf16.mxu0 %v10783
        %11397 = vmatpush1.bf16.msra.mxu0 %v10782
        %11398 = vmatprep.subr.bf16.mxu0 %v10787
        %11399 = vmatpush1.bf16.msra.mxu0 %v10786
        %11400 = vmatprep.subr.bf16.mxu0 %v10791
        %11401 = vmatpush1.bf16.msra.mxu0 %v10790
        %11402 = vmatprep.subr.bf16.mxu0 %v10795
        %11403 = vmatpush1.bf16.msra.mxu0 %v10794
        %11404 = vmatprep.subr.bf16.mxu0 %v10799
        %11405 = vmatpush1.bf16.msra.mxu0 %v10798
        %11406 = vmatprep.subr.bf16.mxu0 %v10803
        %11407 = vmatpush1.bf16.msra.mxu0 %v10802
        %11408 = vmatprep.subr.bf16.mxu0 %v10807
        %11409 = vmatpush1.bf16.msra.mxu0 %v10806
        %11410 = vmatprep.subr.bf16.mxu0 %v10811
        %11411 = vmatpush1.bf16.msra.mxu0 %v10810
        %11412 = vmatprep.subr.bf16.mxu0 %v10815
        %11413 = vmatpush1.bf16.msra.mxu0 %v10814
        %11414 = vmatprep.mubr.bf16.mxu0 %v9575
        %11415 = vmatmul.mubr.bf16.gmra.mrb[0].mxu0 %v9574
        %v11416 = vpop.f32.mrb[0].mxu0
        %v11417 = vadd.f32 %v11376, %v11416
        %v11418 = vpop.f32.mrb[0].mxu0
        %v11419 = vadd.f32 %v11378, %v11418
        %v11420 = vpop.f32.mrb[0].mxu0
        %v11421 = vpop.f32.mrb[0].mxu0
        %11422 = vdwg.mxu0
        %11423 = vmatprep.subr.bf16.mxu0 %v10819
        %11424 = vmatpush1.bf16.msra.mxu0 %v10818
        %11425 = vmatprep.subr.bf16.mxu0 %v10823
        %11426 = vmatpush1.bf16.msra.mxu0 %v10822
        %11427 = vmatprep.subr.bf16.mxu0 %v10827
        %11428 = vmatpush1.bf16.msra.mxu0 %v10826
        %11429 = vmatprep.subr.bf16.mxu0 %v10831
        %11430 = vmatpush1.bf16.msra.mxu0 %v10830
        %11431 = vmatprep.subr.bf16.mxu0 %v10835
        %11432 = vmatpush1.bf16.msra.mxu0 %v10834
        %11433 = vmatprep.subr.bf16.mxu0 %v10839
        %11434 = vmatpush1.bf16.msra.mxu0 %v10838
        %11435 = vmatprep.subr.bf16.mxu0 %v10843
        %11436 = vmatpush1.bf16.msra.mxu0 %v10842
        %11437 = vmatprep.subr.bf16.mxu0 %v10847
        %11438 = vmatpush1.bf16.msra.mxu0 %v10846
        %11439 = vmatprep.subr.bf16.mxu0 %v10851
        %11440 = vmatpush1.bf16.msra.mxu0 %v10850
        %11441 = vmatprep.subr.bf16.mxu0 %v10855
        %11442 = vmatpush1.bf16.msra.mxu0 %v10854
        %11443 = vmatprep.subr.bf16.mxu0 %v10859
        %11444 = vmatpush1.bf16.msra.mxu0 %v10858
        %11445 = vmatprep.subr.bf16.mxu0 %v10863
        %11446 = vmatpush1.bf16.msra.mxu0 %v10862
        %11447 = vmatprep.subr.bf16.mxu0 %v10867
        %11448 = vmatpush1.bf16.msra.mxu0 %v10866
        %11449 = vmatprep.subr.bf16.mxu0 %v10871
        %11450 = vmatpush1.bf16.msra.mxu0 %v10870
        %11451 = vmatprep.subr.bf16.mxu0 %v10875
        %11452 = vmatpush1.bf16.msra.mxu0 %v10874
        %11453 = vmatprep.subr.bf16.mxu0 %v10879
        %11454 = vmatpush1.bf16.msra.mxu0 %v10878
        %11455 = vmatprep.mubr.bf16.mxu0 %v9577
        %11456 = vmatmul.mubr.bf16.gmra.mrb[0].mxu0 %v9576
        %v11457 = vpop.f32.mrb[0].mxu0
        %v11458 = vadd.f32 %v11417, %v11457
        %v11459 = vpop.f32.mrb[0].mxu0
        %v11460 = vadd.f32 %v11419, %v11459
        %v11461 = vpop.f32.mrb[0].mxu0
        %v11462 = vpop.f32.mrb[0].mxu0
        %11463 = vdwg.mxu0
        %v11464 = vtanh.pop %v11294
        %v11465 = vtanh.pop %v11296
        %v11466 = vtanh.pop %v11458
        %v11467 = vtanh.pop %v11460
        %v11468 = vpack.c.bf16 %v11464, %v11464
        %v11469 = vpack.c.bf16 %v11465, %v11465
        %v11470 = vpack.c.bf16 %v11466, %v11466
        %v11471 = vpack.c.bf16 %v11467, %v11467
        %v11472 = vld [vmem:[%s1013] sm:$0xff]
        %v11473 = vld [vmem:[%s1013 + $0x8] sm:$0xff]
        %v11474 = vld [vmem:[%s1013 + $0x10] sm:$0xff]
        %v11475 = vld [vmem:[%s1013 + $0x18] sm:$0xff]
        %v11476 = vld [vmem:[%s1013 + $0x20] sm:$0xff]
        %v11477 = vld [vmem:[%s1013 + $0x28] sm:$0xff]
        %v11478 = vld [vmem:[%s1013 + $0x30] sm:$0xff]
        %v11479 = vld [vmem:[%s1013 + $0x38] sm:$0xff]
        %v11480 = vld [vmem:[%s1013 + $0x40] sm:$0xff]
        %v11481 = vld [vmem:[%s1013 + $0x48] sm:$0xff]
        %v11482 = vld [vmem:[%s1013 + $0x50] sm:$0xff]
        %v11483 = vld [vmem:[%s1013 + $0x58] sm:$0xff]
        %v11484 = vld [vmem:[%s1013 + $0x60] sm:$0xff]
        %v11485 = vld [vmem:[%s1013 + $0x68] sm:$0xff]
        %v11486 = vld [vmem:[%s1013 + $0x70] sm:$0xff]
        %v11487 = vld [vmem:[%s1013 + $0x78] sm:$0xff]
        %v11488 = vld [vmem:[%s1013 + $0x80] sm:$0xff]
        %v11489 = vld [vmem:[%s1013 + $0x88] sm:$0xff]
        %v11490 = vld [vmem:[%s1013 + $0x90] sm:$0xff]
        %v11491 = vld [vmem:[%s1013 + $0x98] sm:$0xff]
        %v11492 = vld [vmem:[%s1013 + $0xa0] sm:$0xff]
        %v11493 = vld [vmem:[%s1013 + $0xa8] sm:$0xff]
        %v11494 = vld [vmem:[%s1013 + $0xb0] sm:$0xff]
        %v11495 = vld [vmem:[%s1013 + $0xb8] sm:$0xff]
        %v11496 = vld [vmem:[%s1013 + $0xc0] sm:$0xff]
        %v11497 = vld [vmem:[%s1013 + $0xc8] sm:$0xff]
        %v11498 = vld [vmem:[%s1013 + $0xd0] sm:$0xff]
        %v11499 = vld [vmem:[%s1013 + $0xd8] sm:$0xff]
        %v11500 = vld [vmem:[%s1013 + $0xe0] sm:$0xff]
        %v11501 = vld [vmem:[%s1013 + $0xe8] sm:$0xff]
        %v11502 = vld [vmem:[%s1013 + $0xf0] sm:$0xff]
        %v11503 = vld [vmem:[%s1013 + $0xf8] sm:$0xff]
        %v11504 = vld [vmem:[%s1013 + $0x100] sm:$0xff]
        %v11505 = vld [vmem:[%s1013 + $0x108] sm:$0xff]
        %v11506 = vld [vmem:[%s1013 + $0x110] sm:$0xff]
        %v11507 = vld [vmem:[%s1013 + $0x118] sm:$0xff]
        %v11508 = vld [vmem:[%s1013 + $0x120] sm:$0xff]
        %v11509 = vld [vmem:[%s1013 + $0x128] sm:$0xff]
        %v11510 = vld [vmem:[%s1013 + $0x130] sm:$0xff]
        %v11511 = vld [vmem:[%s1013 + $0x138] sm:$0xff]
        %v11512 = vld [vmem:[%s1013 + $0x140] sm:$0xff]
        %v11513 = vld [vmem:[%s1013 + $0x148] sm:$0xff]
        %v11514 = vld [vmem:[%s1013 + $0x150] sm:$0xff]
        %v11515 = vld [vmem:[%s1013 + $0x158] sm:$0xff]
        %v11516 = vld [vmem:[%s1013 + $0x160] sm:$0xff]
        %v11517 = vld [vmem:[%s1013 + $0x168] sm:$0xff]
        %v11518 = vld [vmem:[%s1013 + $0x170] sm:$0xff]
        %v11519 = vld [vmem:[%s1013 + $0x178] sm:$0xff]
        %v11520 = vld [vmem:[%s1013 + $0x180] sm:$0xff]
        %v11521 = vld [vmem:[%s1013 + $0x188] sm:$0xff]
        %v11522 = vld [vmem:[%s1013 + $0x190] sm:$0xff]
        %v11523 = vld [vmem:[%s1013 + $0x198] sm:$0xff]
        %v11524 = vld [vmem:[%s1013 + $0x1a0] sm:$0xff]
        %v11525 = vld [vmem:[%s1013 + $0x1a8] sm:$0xff]
        %v11526 = vld [vmem:[%s1013 + $0x1b0] sm:$0xff]
        %v11527 = vld [vmem:[%s1013 + $0x1b8] sm:$0xff]
        %v11528 = vld [vmem:[%s1013 + $0x1c0] sm:$0xff]
        %v11529 = vld [vmem:[%s1013 + $0x1c8] sm:$0xff]
        %v11530 = vld [vmem:[%s1013 + $0x1d0] sm:$0xff]
        %v11531 = vld [vmem:[%s1013 + $0x1d8] sm:$0xff]
        %v11532 = vld [vmem:[%s1013 + $0x1e0] sm:$0xff]
        %v11533 = vld [vmem:[%s1013 + $0x1e8] sm:$0xff]
        %v11534 = vld [vmem:[%s1013 + $0x1f0] sm:$0xff]
        %v11535 = vld [vmem:[%s1013 + $0x1f8] sm:$0xff]
        %v11536 = vld [vmem:[%s1022] sm:$0x3]
        %v11538 = vlaneseq
        %v11539 = vshrl.u32 %v11538, 7
        %v11540 = vsub.s32 0, %v11539
        %v11541 = vrot.slane %v11536, %v11540
        %v11542 = vlaneseq
        %v11543 = vshrl.u32 %v11542, 7
        %v11544 = vsub.s32 1, %v11543
        %v11545 = vrot.slane %v11536, %v11544
        %v11612 = vunpack.c.l.b16 %v11472
        %v11613 = vunpack.c.h.b16 %v11472
        %v11614 = vunpack.c.l.b16 %v11473
        %v11615 = vunpack.c.h.b16 %v11473
        %v11616 = vunpack.c.l.b16 %v11474
        %v11617 = vunpack.c.h.b16 %v11474
        %v11618 = vunpack.c.l.b16 %v11475
        %v11619 = vunpack.c.h.b16 %v11475
        %v11620 = vunpack.c.l.b16 %v11476
        %v11621 = vunpack.c.h.b16 %v11476
        %v11622 = vunpack.c.l.b16 %v11477
        %v11623 = vunpack.c.h.b16 %v11477
        %v11624 = vunpack.c.l.b16 %v11478
        %v11625 = vunpack.c.h.b16 %v11478
        %v11626 = vunpack.c.l.b16 %v11479
        %v11627 = vunpack.c.h.b16 %v11479
        %v11628 = vunpack.c.l.b16 %v11480
        %v11629 = vunpack.c.h.b16 %v11480
        %v11630 = vunpack.c.l.b16 %v11481
        %v11631 = vunpack.c.h.b16 %v11481
        %v11632 = vunpack.c.l.b16 %v11482
        %v11633 = vunpack.c.h.b16 %v11482
        %v11634 = vunpack.c.l.b16 %v11483
        %v11635 = vunpack.c.h.b16 %v11483
        %v11636 = vunpack.c.l.b16 %v11484
        %v11637 = vunpack.c.h.b16 %v11484
        %v11638 = vunpack.c.l.b16 %v11485
        %v11639 = vunpack.c.h.b16 %v11485
        %v11640 = vunpack.c.l.b16 %v11486
        %v11641 = vunpack.c.h.b16 %v11486
        %v11642 = vunpack.c.l.b16 %v11487
        %v11643 = vunpack.c.h.b16 %v11487
        %v11644 = vunpack.c.l.b16 %v11488
        %v11645 = vunpack.c.h.b16 %v11488
        %v11646 = vunpack.c.l.b16 %v11489
        %v11647 = vunpack.c.h.b16 %v11489
        %v11648 = vunpack.c.l.b16 %v11490
        %v11649 = vunpack.c.h.b16 %v11490
        %v11650 = vunpack.c.l.b16 %v11491
        %v11651 = vunpack.c.h.b16 %v11491
        %v11652 = vunpack.c.l.b16 %v11492
        %v11653 = vunpack.c.h.b16 %v11492
        %v11654 = vunpack.c.l.b16 %v11493
        %v11655 = vunpack.c.h.b16 %v11493
        %v11656 = vunpack.c.l.b16 %v11494
        %v11657 = vunpack.c.h.b16 %v11494
        %v11658 = vunpack.c.l.b16 %v11495
        %v11659 = vunpack.c.h.b16 %v11495
        %v11660 = vunpack.c.l.b16 %v11496
        %v11661 = vunpack.c.h.b16 %v11496
        %v11662 = vunpack.c.l.b16 %v11497
        %v11663 = vunpack.c.h.b16 %v11497
        %v11664 = vunpack.c.l.b16 %v11498
        %v11665 = vunpack.c.h.b16 %v11498
        %v11666 = vunpack.c.l.b16 %v11499
        %v11667 = vunpack.c.h.b16 %v11499
        %v11668 = vunpack.c.l.b16 %v11500
        %v11669 = vunpack.c.h.b16 %v11500
        %v11670 = vunpack.c.l.b16 %v11501
        %v11671 = vunpack.c.h.b16 %v11501
        %v11672 = vunpack.c.l.b16 %v11502
        %v11673 = vunpack.c.h.b16 %v11502
        %v11674 = vunpack.c.l.b16 %v11503
        %v11675 = vunpack.c.h.b16 %v11503
        %v11676 = vunpack.c.l.b16 %v11504
        %v11677 = vunpack.c.h.b16 %v11504
        %v11678 = vunpack.c.l.b16 %v11505
        %v11679 = vunpack.c.h.b16 %v11505
        %v11680 = vunpack.c.l.b16 %v11506
        %v11681 = vunpack.c.h.b16 %v11506
        %v11682 = vunpack.c.l.b16 %v11507
        %v11683 = vunpack.c.h.b16 %v11507
        %v11684 = vunpack.c.l.b16 %v11508
        %v11685 = vunpack.c.h.b16 %v11508
        %v11686 = vunpack.c.l.b16 %v11509
        %v11687 = vunpack.c.h.b16 %v11509
        %v11688 = vunpack.c.l.b16 %v11510
        %v11689 = vunpack.c.h.b16 %v11510
        %v11690 = vunpack.c.l.b16 %v11511
        %v11691 = vunpack.c.h.b16 %v11511
        %v11692 = vunpack.c.l.b16 %v11512
        %v11693 = vunpack.c.h.b16 %v11512
        %v11694 = vunpack.c.l.b16 %v11513
        %v11695 = vunpack.c.h.b16 %v11513
        %v11696 = vunpack.c.l.b16 %v11514
        %v11697 = vunpack.c.h.b16 %v11514
        %v11698 = vunpack.c.l.b16 %v11515
        %v11699 = vunpack.c.h.b16 %v11515
        %v11700 = vunpack.c.l.b16 %v11516
        %v11701 = vunpack.c.h.b16 %v11516
        %v11702 = vunpack.c.l.b16 %v11517
        %v11703 = vunpack.c.h.b16 %v11517
        %v11704 = vunpack.c.l.b16 %v11518
        %v11705 = vunpack.c.h.b16 %v11518
        %v11706 = vunpack.c.l.b16 %v11519
        %v11707 = vunpack.c.h.b16 %v11519
        %v11708 = vunpack.c.l.b16 %v11520
        %v11709 = vunpack.c.h.b16 %v11520
        %v11710 = vunpack.c.l.b16 %v11521
        %v11711 = vunpack.c.h.b16 %v11521
        %v11712 = vunpack.c.l.b16 %v11522
        %v11713 = vunpack.c.h.b16 %v11522
        %v11714 = vunpack.c.l.b16 %v11523
        %v11715 = vunpack.c.h.b16 %v11523
        %v11716 = vunpack.c.l.b16 %v11524
        %v11717 = vunpack.c.h.b16 %v11524
        %v11718 = vunpack.c.l.b16 %v11525
        %v11719 = vunpack.c.h.b16 %v11525
        %v11720 = vunpack.c.l.b16 %v11526
        %v11721 = vunpack.c.h.b16 %v11526
        %v11722 = vunpack.c.l.b16 %v11527
        %v11723 = vunpack.c.h.b16 %v11527
        %v11724 = vunpack.c.l.b16 %v11528
        %v11725 = vunpack.c.h.b16 %v11528
        %v11726 = vunpack.c.l.b16 %v11529
        %v11727 = vunpack.c.h.b16 %v11529
        %v11728 = vunpack.c.l.b16 %v11530
        %v11729 = vunpack.c.h.b16 %v11530
        %v11730 = vunpack.c.l.b16 %v11531
        %v11731 = vunpack.c.h.b16 %v11531
        %v11732 = vunpack.c.l.b16 %v11532
        %v11733 = vunpack.c.h.b16 %v11532
        %v11734 = vunpack.c.l.b16 %v11533
        %v11735 = vunpack.c.h.b16 %v11533
        %v11736 = vunpack.c.l.b16 %v11534
        %v11737 = vunpack.c.h.b16 %v11534
        %v11738 = vunpack.c.l.b16 %v11535
        %v11739 = vunpack.c.h.b16 %v11535
        %v11740 = vpack.c.b16 %v11614, %v11612
        %v11741 = vpack.c.b16 %v11615, %v11613
        %v11742 = vpack.c.b16 %v11618, %v11616
        %v11743 = vpack.c.b16 %v11619, %v11617
        %v11744 = vpack.c.b16 %v11622, %v11620
        %v11745 = vpack.c.b16 %v11623, %v11621
        %v11746 = vpack.c.b16 %v11626, %v11624
        %v11747 = vpack.c.b16 %v11627, %v11625
        %v11748 = vpack.c.b16 %v11630, %v11628
        %v11749 = vpack.c.b16 %v11631, %v11629
        %v11750 = vpack.c.b16 %v11634, %v11632
        %v11751 = vpack.c.b16 %v11635, %v11633
        %v11752 = vpack.c.b16 %v11638, %v11636
        %v11753 = vpack.c.b16 %v11639, %v11637
        %v11754 = vpack.c.b16 %v11642, %v11640
        %v11755 = vpack.c.b16 %v11643, %v11641
        %v11756 = vpack.c.b16 %v11646, %v11644
        %v11757 = vpack.c.b16 %v11647, %v11645
        %v11758 = vpack.c.b16 %v11650, %v11648
        %v11759 = vpack.c.b16 %v11651, %v11649
        %v11760 = vpack.c.b16 %v11654, %v11652
        %v11761 = vpack.c.b16 %v11655, %v11653
        %v11762 = vpack.c.b16 %v11658, %v11656
        %v11763 = vpack.c.b16 %v11659, %v11657
        %v11764 = vpack.c.b16 %v11662, %v11660
        %v11765 = vpack.c.b16 %v11663, %v11661
        %v11766 = vpack.c.b16 %v11666, %v11664
        %v11767 = vpack.c.b16 %v11667, %v11665
        %v11768 = vpack.c.b16 %v11670, %v11668
        %v11769 = vpack.c.b16 %v11671, %v11669
        %v11770 = vpack.c.b16 %v11674, %v11672
        %v11771 = vpack.c.b16 %v11675, %v11673
        %v11772 = vpack.c.b16 %v11678, %v11676
        %v11773 = vpack.c.b16 %v11679, %v11677
        %v11774 = vpack.c.b16 %v11682, %v11680
        %v11775 = vpack.c.b16 %v11683, %v11681
        %v11776 = vpack.c.b16 %v11686, %v11684
        %v11777 = vpack.c.b16 %v11687, %v11685
        %v11778 = vpack.c.b16 %v11690, %v11688
        %v11779 = vpack.c.b16 %v11691, %v11689
        %v11780 = vpack.c.b16 %v11694, %v11692
        %v11781 = vpack.c.b16 %v11695, %v11693
        %v11782 = vpack.c.b16 %v11698, %v11696
        %v11783 = vpack.c.b16 %v11699, %v11697
        %v11784 = vpack.c.b16 %v11702, %v11700
        %v11785 = vpack.c.b16 %v11703, %v11701
        %v11786 = vpack.c.b16 %v11706, %v11704
        %v11787 = vpack.c.b16 %v11707, %v11705
        %v11788 = vpack.c.b16 %v11710, %v11708
        %v11789 = vpack.c.b16 %v11711, %v11709
        %v11790 = vpack.c.b16 %v11714, %v11712
        %v11791 = vpack.c.b16 %v11715, %v11713
        %v11792 = vpack.c.b16 %v11718, %v11716
        %v11793 = vpack.c.b16 %v11719, %v11717
        %v11794 = vpack.c.b16 %v11722, %v11720
        %v11795 = vpack.c.b16 %v11723, %v11721
        %v11796 = vpack.c.b16 %v11726, %v11724
        %v11797 = vpack.c.b16 %v11727, %v11725
        %v11798 = vpack.c.b16 %v11730, %v11728
        %v11799 = vpack.c.b16 %v11731, %v11729
        %v11800 = vpack.c.b16 %v11734, %v11732
        %v11801 = vpack.c.b16 %v11735, %v11733
        %v11802 = vpack.c.b16 %v11738, %v11736
        %v11803 = vpack.c.b16 %v11739, %v11737
        %11868 = vmatprep.subr.bf16.mxu0 %v11741
        %11869 = vmatpush1.bf16.msra.mxu0 %v11740
        %11870 = vmatprep.subr.bf16.mxu0 %v11743
        %11871 = vmatpush1.bf16.msra.mxu0 %v11742
        %11872 = vmatprep.subr.bf16.mxu0 %v11745
        %11873 = vmatpush1.bf16.msra.mxu0 %v11744
        %11874 = vmatprep.subr.bf16.mxu0 %v11747
        %11875 = vmatpush1.bf16.msra.mxu0 %v11746
        %11876 = vmatprep.subr.bf16.mxu0 %v11749
        %11877 = vmatpush1.bf16.msra.mxu0 %v11748
        %11878 = vmatprep.subr.bf16.mxu0 %v11751
        %11879 = vmatpush1.bf16.msra.mxu0 %v11750
        %11880 = vmatprep.subr.bf16.mxu0 %v11753
        %11881 = vmatpush1.bf16.msra.mxu0 %v11752
        %11882 = vmatprep.subr.bf16.mxu0 %v11755
        %11883 = vmatpush1.bf16.msra.mxu0 %v11754
        %11884 = vmatprep.subr.bf16.mxu0 %v11757
        %11885 = vmatpush1.bf16.msra.mxu0 %v11756
        %11886 = vmatprep.subr.bf16.mxu0 %v11759
        %11887 = vmatpush1.bf16.msra.mxu0 %v11758
        %11888 = vmatprep.subr.bf16.mxu0 %v11761
        %11889 = vmatpush1.bf16.msra.mxu0 %v11760
        %11890 = vmatprep.subr.bf16.mxu0 %v11763
        %11891 = vmatpush1.bf16.msra.mxu0 %v11762
        %11892 = vmatprep.subr.bf16.mxu0 %v11765
        %11893 = vmatpush1.bf16.msra.mxu0 %v11764
        %11894 = vmatprep.subr.bf16.mxu0 %v11767
        %11895 = vmatpush1.bf16.msra.mxu0 %v11766
        %11896 = vmatprep.subr.bf16.mxu0 %v11769
        %11897 = vmatpush1.bf16.msra.mxu0 %v11768
        %11898 = vmatprep.subr.bf16.mxu0 %v11771
        %11899 = vmatpush1.bf16.msra.mxu0 %v11770
        %11900 = vmatprep.mubr.bf16.mxu0 %v11469
        %11901 = vmatmul.mubr.bf16.gmra.mrb[0].mxu0 %v11468
        %v11902 = vpop.f32.mrb[0].mxu0
        %v11903 = vadd.f32 %v11541, %v11902
        %v11904 = vpop.f32.mrb[0].mxu0
        %v11905 = vadd.f32 %v11545, %v11904
        %v11906 = vpop.f32.mrb[0].mxu0
        %v11907 = vpop.f32.mrb[0].mxu0
        %11908 = vdwg.mxu0
        %11909 = vmatprep.subr.bf16.mxu0 %v11773
        %11910 = vmatpush1.bf16.msra.mxu0 %v11772
        %11911 = vmatprep.subr.bf16.mxu0 %v11775
        %11912 = vmatpush1.bf16.msra.mxu0 %v11774
        %11913 = vmatprep.subr.bf16.mxu0 %v11777
        %11914 = vmatpush1.bf16.msra.mxu0 %v11776
        %11915 = vmatprep.subr.bf16.mxu0 %v11779
        %11916 = vmatpush1.bf16.msra.mxu0 %v11778
        %11917 = vmatprep.subr.bf16.mxu0 %v11781
        %11918 = vmatpush1.bf16.msra.mxu0 %v11780
        %11919 = vmatprep.subr.bf16.mxu0 %v11783
        %11920 = vmatpush1.bf16.msra.mxu0 %v11782
        %11921 = vmatprep.subr.bf16.mxu0 %v11785
        %11922 = vmatpush1.bf16.msra.mxu0 %v11784
        %11923 = vmatprep.subr.bf16.mxu0 %v11787
        %11924 = vmatpush1.bf16.msra.mxu0 %v11786
        %11925 = vmatprep.subr.bf16.mxu0 %v11789
        %11926 = vmatpush1.bf16.msra.mxu0 %v11788
        %11927 = vmatprep.subr.bf16.mxu0 %v11791
        %11928 = vmatpush1.bf16.msra.mxu0 %v11790
        %11929 = vmatprep.subr.bf16.mxu0 %v11793
        %11930 = vmatpush1.bf16.msra.mxu0 %v11792
        %11931 = vmatprep.subr.bf16.mxu0 %v11795
        %11932 = vmatpush1.bf16.msra.mxu0 %v11794
        %11933 = vmatprep.subr.bf16.mxu0 %v11797
        %11934 = vmatpush1.bf16.msra.mxu0 %v11796
        %11935 = vmatprep.subr.bf16.mxu0 %v11799
        %11936 = vmatpush1.bf16.msra.mxu0 %v11798
        %11937 = vmatprep.subr.bf16.mxu0 %v11801
        %11938 = vmatpush1.bf16.msra.mxu0 %v11800
        %11939 = vmatprep.subr.bf16.mxu0 %v11803
        %11940 = vmatpush1.bf16.msra.mxu0 %v11802
        %11941 = vmatprep.mubr.bf16.mxu0 %v11471
        %11942 = vmatmul.mubr.bf16.gmra.mrb[0].mxu0 %v11470
        %v11943 = vpop.f32.mrb[0].mxu0
        %v11944 = vadd.f32 %v11903, %v11943
        %v11945 = vpop.f32.mrb[0].mxu0
        %v11946 = vadd.f32 %v11905, %v11945
        %v11947 = vpop.f32.mrb[0].mxu0
        %v11948 = vpop.f32.mrb[0].mxu0
        %11949 = vdwg.mxu0
        %v11950 = vtanh.pop %v11944
        %v11951 = vtanh.pop %v11946
        %v11952 = vpack.c.bf16 %v11950, %v11950
        %v11953 = vpack.c.bf16 %v11951, %v11951
        %v11954 = vld [vmem:[%s1031] sm:$0xf]
        %v11955 = vld [vmem:[%s1031 + $0x4] sm:$0xf]
        %v11956 = vld [vmem:[%s1031 + $0x8] sm:$0xf]
        %v11957 = vld [vmem:[%s1031 + $0xc] sm:$0xf]
        %v11958 = vld [vmem:[%s1031 + $0x10] sm:$0xf]
        %v11959 = vld [vmem:[%s1031 + $0x14] sm:$0xf]
        %v11960 = vld [vmem:[%s1031 + $0x18] sm:$0xf]
        %v11961 = vld [vmem:[%s1031 + $0x1c] sm:$0xf]
        %v11962 = vld [vmem:[%s1031 + $0x20] sm:$0xf]
        %v11963 = vld [vmem:[%s1031 + $0x24] sm:$0xf]
        %v11964 = vld [vmem:[%s1031 + $0x28] sm:$0xf]
        %v11965 = vld [vmem:[%s1031 + $0x2c] sm:$0xf]
        %v11966 = vld [vmem:[%s1031 + $0x30] sm:$0xf]
        %v11967 = vld [vmem:[%s1031 + $0x34] sm:$0xf]
        %v11968 = vld [vmem:[%s1031 + $0x38] sm:$0xf]
        %v11969 = vld [vmem:[%s1031 + $0x3c] sm:$0xf]
        %v11970 = vld [vmem:[%s1031 + $0x40] sm:$0xf]
        %v11971 = vld [vmem:[%s1031 + $0x44] sm:$0xf]
        %v11972 = vld [vmem:[%s1031 + $0x48] sm:$0xf]
        %v11973 = vld [vmem:[%s1031 + $0x4c] sm:$0xf]
        %v11974 = vld [vmem:[%s1031 + $0x50] sm:$0xf]
        %v11975 = vld [vmem:[%s1031 + $0x54] sm:$0xf]
        %v11976 = vld [vmem:[%s1031 + $0x58] sm:$0xf]
        %v11977 = vld [vmem:[%s1031 + $0x5c] sm:$0xf]
        %v11978 = vld [vmem:[%s1031 + $0x60] sm:$0xf]
        %v11979 = vld [vmem:[%s1031 + $0x64] sm:$0xf]
        %v11980 = vld [vmem:[%s1031 + $0x68] sm:$0xf]
        %v11981 = vld [vmem:[%s1031 + $0x6c] sm:$0xf]
        %v11982 = vld [vmem:[%s1031 + $0x70] sm:$0xf]
        %v11983 = vld [vmem:[%s1031 + $0x74] sm:$0xf]
        %v11984 = vld [vmem:[%s1031 + $0x78] sm:$0xf]
        %v11985 = vld [vmem:[%s1031 + $0x7c] sm:$0xf]
        %v11986 = vld [vmem:[%s1039] sm:$0x1]
        %v11988 = vlaneseq
        %v11989 = vshrl.u32 %v11988, 7
        %v11990 = vsub.s32 0, %v11989
        %v11991 = vrot.slane %v11986, %v11990
        %v12025 = vunpack.c.l.b16 %v11954
        %v12026 = vunpack.c.l.b16 %v11955
        %v12027 = vunpack.c.l.b16 %v11956
        %v12028 = vunpack.c.l.b16 %v11957
        %v12029 = vunpack.c.l.b16 %v11958
        %v12030 = vunpack.c.l.b16 %v11959
        %v12031 = vunpack.c.l.b16 %v11960
        %v12032 = vunpack.c.l.b16 %v11961
        %v12033 = vunpack.c.l.b16 %v11962
        %v12034 = vunpack.c.l.b16 %v11963
        %v12035 = vunpack.c.l.b16 %v11964
        %v12036 = vunpack.c.l.b16 %v11965
        %v12037 = vunpack.c.l.b16 %v11966
        %v12038 = vunpack.c.l.b16 %v11967
        %v12039 = vunpack.c.l.b16 %v11968
        %v12040 = vunpack.c.l.b16 %v11969
        %v12041 = vunpack.c.l.b16 %v11970
        %v12042 = vunpack.c.l.b16 %v11971
        %v12043 = vunpack.c.l.b16 %v11972
        %v12044 = vunpack.c.l.b16 %v11973
        %v12045 = vunpack.c.l.b16 %v11974
        %v12046 = vunpack.c.l.b16 %v11975
        %v12047 = vunpack.c.l.b16 %v11976
        %v12048 = vunpack.c.l.b16 %v11977
        %v12049 = vunpack.c.l.b16 %v11978
        %v12050 = vunpack.c.l.b16 %v11979
        %v12051 = vunpack.c.l.b16 %v11980
        %v12052 = vunpack.c.l.b16 %v11981
        %v12053 = vunpack.c.l.b16 %v11982
        %v12054 = vunpack.c.l.b16 %v11983
        %v12055 = vunpack.c.l.b16 %v11984
        %v12056 = vunpack.c.l.b16 %v11985
        %v12057 = vpack.c.b16 %v12026, %v12025
        %v12058 = vpack.c.b16 %v12028, %v12027
        %v12059 = vpack.c.b16 %v12030, %v12029
        %v12060 = vpack.c.b16 %v12032, %v12031
        %v12061 = vpack.c.b16 %v12034, %v12033
        %v12062 = vpack.c.b16 %v12036, %v12035
        %v12063 = vpack.c.b16 %v12038, %v12037
        %v12064 = vpack.c.b16 %v12040, %v12039
        %v12065 = vpack.c.b16 %v12042, %v12041
        %v12066 = vpack.c.b16 %v12044, %v12043
        %v12067 = vpack.c.b16 %v12046, %v12045
        %v12068 = vpack.c.b16 %v12048, %v12047
        %v12069 = vpack.c.b16 %v12050, %v12049
        %v12070 = vpack.c.b16 %v12052, %v12051
        %v12071 = vpack.c.b16 %v12054, %v12053
        %v12072 = vpack.c.b16 %v12056, %v12055
        %12089 = vmatprep.subr.bf16.mxu0 0
        %12090 = vmatpush1.bf16.msra.mxu0 %v12057
        %12091 = vmatprep.subr.bf16.mxu0 0
        %12092 = vmatpush1.bf16.msra.mxu0 %v12058
        %12093 = vmatprep.subr.bf16.mxu0 0
        %12094 = vmatpush1.bf16.msra.mxu0 %v12059
        %12095 = vmatprep.subr.bf16.mxu0 0
        %12096 = vmatpush1.bf16.msra.mxu0 %v12060
        %12097 = vmatprep.subr.bf16.mxu0 0
        %12098 = vmatpush1.bf16.msra.mxu0 %v12061
        %12099 = vmatprep.subr.bf16.mxu0 0
        %12100 = vmatpush1.bf16.msra.mxu0 %v12062
        %12101 = vmatprep.subr.bf16.mxu0 0
        %12102 = vmatpush1.bf16.msra.mxu0 %v12063
        %12103 = vmatprep.subr.bf16.mxu0 0
        %12104 = vmatpush1.bf16.msra.mxu0 %v12064
        %12105 = vmatprep.subr.bf16.mxu0 0
        %12106 = vmatpush1.bf16.msra.mxu0 %v12065
        %12107 = vmatprep.subr.bf16.mxu0 0
        %12108 = vmatpush1.bf16.msra.mxu0 %v12066
        %12109 = vmatprep.subr.bf16.mxu0 0
        %12110 = vmatpush1.bf16.msra.mxu0 %v12067
        %12111 = vmatprep.subr.bf16.mxu0 0
        %12112 = vmatpush1.bf16.msra.mxu0 %v12068
        %12113 = vmatprep.subr.bf16.mxu0 0
        %12114 = vmatpush1.bf16.msra.mxu0 %v12069
        %12115 = vmatprep.subr.bf16.mxu0 0
        %12116 = vmatpush1.bf16.msra.mxu0 %v12070
        %12117 = vmatprep.subr.bf16.mxu0 0
        %12118 = vmatpush1.bf16.msra.mxu0 %v12071
        %12119 = vmatprep.subr.bf16.mxu0 0
        %12120 = vmatpush1.bf16.msra.mxu0 %v12072
        %12121 = vmatprep.mubr.bf16.mxu0 %v11953
        %12122 = vmatmul.mubr.bf16.gmra.mrb[0].mxu0 %v11952
        %v12123 = vpop.f32.mrb[0].mxu0
        %v12124 = vadd.f32 %v11991, %v12123
        %v12125 = vpop.f32.mrb[0].mxu0
        %v12126 = vpop.f32.mrb[0].mxu0
        %v12127 = vpop.f32.mrb[0].mxu0
        %12128 = vdwg.mxu0
        %v12129 = vtanh.pop %v12124
        %v12130 = vpack.c.bf16 %v12129, %v12129
        %v12131 = vld [vmem:[%s1189] sm:$0xf]
        %v12132 = vld [vmem:[%s1189 + $0x4] sm:$0xf]
        %v12133 = vld [vmem:[%s1189 + $0x8] sm:$0xf]
        %v12134 = vld [vmem:[%s1189 + $0xc] sm:$0xf]
        %v12135 = vld [vmem:[%s1189 + $0x10] sm:$0xf]
        %v12136 = vld [vmem:[%s1189 + $0x14] sm:$0xf]
        %v12137 = vld [vmem:[%s1189 + $0x18] sm:$0xf]
        %v12138 = vld [vmem:[%s1189 + $0x1c] sm:$0xf]
        %v12139 = vld [vmem:[%s1189 + $0x20] sm:$0xf]
        %v12140 = vld [vmem:[%s1189 + $0x24] sm:$0xf]
        %v12141 = vld [vmem:[%s1189 + $0x28] sm:$0xf]
        %v12142 = vld [vmem:[%s1189 + $0x2c] sm:$0xf]
        %v12143 = vld [vmem:[%s1189 + $0x30] sm:$0xf]
        %v12144 = vld [vmem:[%s1189 + $0x34] sm:$0xf]
        %v12145 = vld [vmem:[%s1189 + $0x38] sm:$0xf]
        %v12146 = vld [vmem:[%s1189 + $0x3c] sm:$0xf]
        %v12147 = vld [vmem:[%s1047] sm:$0x1]
        %v12149 = vlaneseq
        %v12150 = vshrl.u32 %v12149, 7
        %v12151 = vsub.s32 0, %v12150
        %v12152 = vrot.slane %v12147, %v12151
        %v12170 = vunpack.c.l.b16 %v12131
        %v12171 = vunpack.c.l.b16 %v12132
        %v12172 = vunpack.c.l.b16 %v12133
        %v12173 = vunpack.c.l.b16 %v12134
        %v12174 = vunpack.c.l.b16 %v12135
        %v12175 = vunpack.c.l.b16 %v12136
        %v12176 = vunpack.c.l.b16 %v12137
        %v12177 = vunpack.c.l.b16 %v12138
        %v12178 = vunpack.c.l.b16 %v12139
        %v12179 = vunpack.c.l.b16 %v12140
        %v12180 = vunpack.c.l.b16 %v12141
        %v12181 = vunpack.c.l.b16 %v12142
        %v12182 = vunpack.c.l.b16 %v12143
        %v12183 = vunpack.c.l.b16 %v12144
        %v12184 = vunpack.c.l.b16 %v12145
        %v12185 = vunpack.c.l.b16 %v12146
        %v12186 = vpack.c.b16 %v12171, %v12170
        %v12187 = vpack.c.b16 %v12173, %v12172
        %v12188 = vpack.c.b16 %v12175, %v12174
        %v12189 = vpack.c.b16 %v12177, %v12176
        %v12190 = vpack.c.b16 %v12179, %v12178
        %v12191 = vpack.c.b16 %v12181, %v12180
        %v12192 = vpack.c.b16 %v12183, %v12182
        %v12193 = vpack.c.b16 %v12185, %v12184
        %12202 = vmatprep.subr.bf16.mxu0 0
        %12203 = vmatpush1.bf16.msra.mxu0 %v12186
        %12204 = vmatprep.subr.bf16.mxu0 0
        %12205 = vmatpush1.bf16.msra.mxu0 %v12187
        %12206 = vmatprep.subr.bf16.mxu0 0
        %12207 = vmatpush1.bf16.msra.mxu0 %v12188
        %12208 = vmatprep.subr.bf16.mxu0 0
        %12209 = vmatpush1.bf16.msra.mxu0 %v12189
        %12210 = vmatprep.subr.bf16.mxu0 0
        %12211 = vmatpush1.bf16.msra.mxu0 %v12190
        %12212 = vmatprep.subr.bf16.mxu0 0
        %12213 = vmatpush1.bf16.msra.mxu0 %v12191
        %12214 = vmatprep.subr.bf16.mxu0 0
        %12215 = vmatpush1.bf16.msra.mxu0 %v12192
        %12216 = vmatprep.subr.bf16.mxu0 0
        %12217 = vmatpush1.bf16.msra.mxu0 %v12193
        %12218 = vmatprep.subr.bf16.mxu0 0
        %12219 = vmatpush1.bf16.msra.mxu0 0
        %12220 = vmatprep.subr.bf16.mxu0 0
        %12221 = vmatpush1.bf16.msra.mxu0 0
        %12222 = vmatprep.subr.bf16.mxu0 0
        %12223 = vmatpush1.bf16.msra.mxu0 0
        %12224 = vmatprep.subr.bf16.mxu0 0
        %12225 = vmatpush1.bf16.msra.mxu0 0
        %12226 = vmatprep.subr.bf16.mxu0 0
        %12227 = vmatpush1.bf16.msra.mxu0 0
        %12228 = vmatprep.subr.bf16.mxu0 0
        %12229 = vmatpush1.bf16.msra.mxu0 0
        %12230 = vmatprep.subr.bf16.mxu0 0
        %12231 = vmatpush1.bf16.msra.mxu0 0
        %12232 = vmatprep.subr.bf16.mxu0 0
        %12233 = vmatpush1.bf16.msra.mxu0 0
        %12234 = vmatprep.mubr.bf16.mxu0 0
        %12235 = vmatmul.mubr.bf16.gmra.mrb[0].mxu0 %v12130
        %v12236 = vpop.f32.mrb[0].mxu0
        %v12237 = vadd.f32 %v12152, %v12236
        %v12238 = vpop.f32.mrb[0].mxu0
        %v12239 = vpop.f32.mrb[0].mxu0
        %v12240 = vpop.f32.mrb[0].mxu0
        %12241 = vdwg.mxu0
        %v12242 = vtanh.pop %v12237
        %v12243 = vpack.c.bf16 %v12242, %v12242
        %v12244 = vld [vmem:[%s1056] sm:$0xf]
        %v12245 = vld [vmem:[%s1056 + $0x4] sm:$0xf]
        %v12246 = vld [vmem:[%s1056 + $0x8] sm:$0xf]
        %v12247 = vld [vmem:[%s1056 + $0xc] sm:$0xf]
        %v12248 = vld [vmem:[%s1056 + $0x10] sm:$0xf]
        %v12249 = vld [vmem:[%s1056 + $0x14] sm:$0xf]
        %v12250 = vld [vmem:[%s1056 + $0x18] sm:$0xf]
        %v12251 = vld [vmem:[%s1056 + $0x1c] sm:$0xf]
        %v12252 = vld [vmem:[%s1064] sm:$0x1]
        %v12254 = vlaneseq
        %v12255 = vshrl.u32 %v12254, 7
        %v12256 = vsub.s32 0, %v12255
        %v12257 = vrot.slane %v12252, %v12256
        %v12267 = vunpack.c.l.b16 %v12244
        %v12268 = vunpack.c.l.b16 %v12245
        %v12269 = vunpack.c.l.b16 %v12246
        %v12270 = vunpack.c.l.b16 %v12247
        %v12271 = vunpack.c.l.b16 %v12248
        %v12272 = vunpack.c.l.b16 %v12249
        %v12273 = vunpack.c.l.b16 %v12250
        %v12274 = vunpack.c.l.b16 %v12251
        %v12275 = vpack.c.b16 %v12268, %v12267
        %v12276 = vpack.c.b16 %v12270, %v12269
        %v12277 = vpack.c.b16 %v12272, %v12271
        %v12278 = vpack.c.b16 %v12274, %v12273
        %vm12283 = vcmask 523264
        %v12285 = vsel %vm12283, %v12243, 0
        %12287 = vmatprep.subr.bf16.mxu0 0
        %12288 = vmatpush1.bf16.msra.mxu0 %v12275
        %12289 = vmatprep.subr.bf16.mxu0 0
        %12290 = vmatpush1.bf16.msra.mxu0 %v12276
        %12291 = vmatprep.subr.bf16.mxu0 0
        %12292 = vmatpush1.bf16.msra.mxu0 %v12277
        %12293 = vmatprep.subr.bf16.mxu0 0
        %12294 = vmatpush1.bf16.msra.mxu0 %v12278
        %12295 = vmatprep.subr.bf16.mxu0 0
        %12296 = vmatpush1.bf16.msra.mxu0 0
        %12297 = vmatprep.subr.bf16.mxu0 0
        %12298 = vmatpush1.bf16.msra.mxu0 0
        %12299 = vmatprep.subr.bf16.mxu0 0
        %12300 = vmatpush1.bf16.msra.mxu0 0
        %12301 = vmatprep.subr.bf16.mxu0 0
        %12302 = vmatpush1.bf16.msra.mxu0 0
        %12303 = vmatprep.subr.bf16.mxu0 0
        %12304 = vmatpush1.bf16.msra.mxu0 0
        %12305 = vmatprep.subr.bf16.mxu0 0
        %12306 = vmatpush1.bf16.msra.mxu0 0
        %12307 = vmatprep.subr.bf16.mxu0 0
        %12308 = vmatpush1.bf16.msra.mxu0 0
        %12309 = vmatprep.subr.bf16.mxu0 0
        %12310 = vmatpush1.bf16.msra.mxu0 0
        %12311 = vmatprep.subr.bf16.mxu0 0
        %12312 = vmatpush1.bf16.msra.mxu0 0
        %12313 = vmatprep.subr.bf16.mxu0 0
        %12314 = vmatpush1.bf16.msra.mxu0 0
        %12315 = vmatprep.subr.bf16.mxu0 0
        %12316 = vmatpush1.bf16.msra.mxu0 0
        %12317 = vmatprep.subr.bf16.mxu0 0
        %12318 = vmatpush1.bf16.msra.mxu0 0
        %12319 = vmatprep.mubr.bf16.mxu0 0
        %12320 = vmatmul.mubr.bf16.gmra.mrb[0].mxu0 %v12285
        %v12321 = vpop.f32.mrb[0].mxu0
        %v12322 = vadd.f32 %v12257, %v12321
        %v12323 = vpop.f32.mrb[0].mxu0
        %v12324 = vpop.f32.mrb[0].mxu0
        %v12325 = vpop.f32.mrb[0].mxu0
        %12326 = vdwg.mxu0
        %p12327 = scmp.eq.s32.totalorder %s39, 0
        // Predicated region
        $region181: #{tpu_custom_call.1} parent=103 // pred_check
          %p12328 = pneg %p12327
        $region182: #{tpu_custom_call.1} parent=103 // pred_check_branch
          %12330 = sbr.rel (%p12328) target = $region184
        $region183: #{tpu_custom_call.1} parent=103 // pred_region
          %12331 = vst [vmem:[%s1184] sm:$0xff] %v12322
        $region184: #{tpu_custom_call.1} parent=103 // pred_fallthru
          _
        %p12332 = scmp.eq.s32.totalorder %s39, 1
        // Predicated region
        $region185: #{tpu_custom_call.1} parent=103 // pred_check
          %p12333 = pneg %p12332
        $region186: #{tpu_custom_call.1} parent=103 // pred_check_branch
          %12335 = sbr.rel (%p12333) target = $region188
        $region187: #{tpu_custom_call.1} parent=103 // pred_region
          %v12336 = vlaneseq
          %v12337 = vand.u32 %v12336, 127
          %vm12338 = vcmp.lt.s32.totalorder %v12337, 2
          %v12339 = vsel %vm12338, %v12322, -inf
          %12340 = vmax.xlane.f32.xlu0 %v12339
          %v12341 = vpop.xlane.xlu0 %12340
          %v12342 = vsub.f32 %v12339, %v12341
          %v12343 = vmul.f32 %v12342, 1.442695
          %v12344 = vpow.pop %v12343
          %12345 = vadd.xlane.f32.xlu0 %v12344
          %v12346 = vpop.xlane.xlu0 %12345
          %v12347 = vlog2.pop %v12346
          %v12348 = vmul.f32 %v12347, 0.6931472
          %v12349 = vsub.f32 %v12342, %v12348
          %v12350 = vsel %vm12338, %v12349, 0.0
          %12351 = vst [vmem:[%s1184] sm:$0xff] %v12350
        $region188: #{tpu_custom_call.1} parent=103 // pred_fallthru
          _
        %s12352 = sand.u32 %s558, 1
        %s12353 = scalar_lea.sflag [#allocation4], %s12352
        %s12354 = sand.u32 %s558, 1
        %s12355 = smul.addr %s12354, 8
        %s12356 = scalar_lea.vmem [#allocation26], %s12355
        // Predicated region
        $region189: #{tpu_custom_call.1} parent=103 // pred_check
          %p12357 = pneg %p568
        $region190: #{tpu_custom_call.1} parent=103 // pred_check_branch
          %12359 = sbr.rel (%p12357) target = $region192
        $region191: #{tpu_custom_call.1} parent=103 // pred_region
          %s12361 = ssub.s32 128, 128
          %12362 = vsyncadd %s12353, %s12361
          %s12363 = smul.addr %s39, 128
          %s12364 = scalar_lea.hbm %s21, %s12363
          %s12366 = sshll.u32 %s12356, 4
          %s12367 = int_to_ptr.vmem [resolvable:$true] %s12366
          %12369 = dma.vmem_to_hbm [thread:$0]  %s12367, 128, %s12364, %s12353
        $region192: #{tpu_custom_call.1} parent=103 // pred_fallthru
          _
      $region104: #{tpu_custom_call.1} parent=5 // pred_fallthru
        _
      %p12370 = scmp.le.s32.totalorder 2, %s34
      // Predicated region
      $region193: #{tpu_custom_call.1} parent=5 // pred_check
        %p12371 = pneg %p12370
      $region194: #{tpu_custom_call.1} parent=5 // pred_check_branch
        %12373 = sbr.rel (%p12371) target = $region196
      $region195: #{tpu_custom_call.1} parent=5 // pred_region
        %s12374 = ssub.s32 %s34, 2
        // Predicated region
        $region197: #{tpu_custom_call.1} parent=195 // pred_check
          %p12375 = pneg %p574
        $region198: #{tpu_custom_call.1} parent=195 // pred_check_branch
          %12377 = sbr.rel (%p12375) target = $region200
        $region199: #{tpu_custom_call.1} parent=195 // pred_region
          %s12378 = sand.u32 %s559, 1
          %s12379 = scalar_lea.sflag [#allocation4], %s12378
          %s12380 = sand.u32 %s559, 1
          %s12381 = smul.addr %s12380, 8
          %s12382 = scalar_lea.vmem [#allocation26], %s12381
          %12383 = dma.done %s12379, 128
        $region200: #{tpu_custom_call.1} parent=195 // pred_fallthru
          _
      $region196: #{tpu_custom_call.1} parent=5 // pred_fallthru
        _
    $region6: #{tpu_custom_call.1} parent=1 // loop_footer
      %s38 = sadd.s32 1, %s34
    $region7: #{tpu_custom_call.1} parent=1 // loop_footer_branch
      %33 = sbr.rel target = $region3
    $region8: #{tpu_custom_call.1} parent=1 // loop_exit
      _
    %12384 = vsyncpa [#allocation3], 1
    %s12385 = scalar_lea.sflag [#allocation3], 1
    %12386 = vsyncpa %s12385, 1
    %12387 = vsyncpa [#allocation6], 1
    %12388 = vsyncpa [#allocation9], 1
    %12389 = vsyncpa [#allocation12], 1
    %12390 = vsyncpa [#allocation4], 1
    %s12391 = scalar_lea.sflag [#allocation4], 1
    %12392 = vsyncpa %s12391, 1

</llo_original>
